<compile_context>
chip_gen: v5e
topology: v5e:2x2
jax: 0.10.0
libtpu: 0.0.40
codegen_flags: <defaults>
</compile_context>

<pallas_src>
import functools

import jax
import jax.numpy as jnp
from jax.experimental import pallas as pl
from jax.experimental.pallas import tpu as pltpu

C_PAD = 128  # lane-dense channel width (128-lane vreg axis)


# ----------------------------------------------------------------------------
# Fused Pallas kernel: one grid step == G images, everything VMEM-resident.
# ----------------------------------------------------------------------------
def _enetv2_fused_kernel(patches_ref, stem_w_ref, stem_b_ref,
                         dw_w_ref, dw_b_ref, pw_w_ref, pw_b_ref,
                         fc_w_ref, fc_b_ref, out_ref, halo_ref,
                         *, g, ho, wo, w_pad):
    c = out_ref.shape[-1]            # 128 (lane-dense padded channels)
    l = ho * wo

    # --- stem: conv3x3 stride2 as im2col matmul, M = g*l (bf16 MXU, f32 acc)
    y = jnp.dot(patches_ref[...], stem_w_ref[...],
                preferred_element_type=jnp.float32)
    y = y + stem_b_ref[...]
    h = y * jax.nn.sigmoid(y)                                   # (g*l, c) f32

    # --- depthwise 3x3 stride1: aligned zero-halo VMEM scratch, 9 VPU FMAs.
    dw_w = dw_w_ref[...]                                        # (9, c) f32
    # Hoisted constants / broadcasts (JAX does not CSE broadcast_in_dim).
    w_taps = [dw_w[t:t + 1, :].reshape(1, 1, c) for t in range(9)]
    zero_row = jnp.zeros((w_pad, c), jnp.float32)
    zero_col = jnp.zeros((ho, 1, c), jnp.float32)

    dw_blocks = []
    for img in range(g):                                        # unrolled over G
        h_img = h[img * l:(img + 1) * l, :].reshape(ho, wo, c)
        # Border-only zeroing (interior is fully overwritten each step); the
        # taps only ever read columns 0 .. wo+1, so only those guard columns
        # need to be zero.  All row stores hit aligned (w_pad, 128) tiles.
        halo_ref[img, 0, :, :] = zero_row                       # top halo row
        halo_ref[img, ho + 1, :, :] = zero_row                  # bottom halo row
        halo_ref[img, 1:ho + 1, 0:1, :] = zero_col              # left guard col
        halo_ref[img, 1:ho + 1, wo + 1:wo + 2, :] = zero_col    # right guard col
        halo_ref[img, 1:ho + 1, 1:wo + 1, :] = h_img            # interior

        acc = jnp.zeros((ho, wo, c), jnp.float32)
        for di in range(3):
            # One aligned row-block load per row offset; the three column
            # taps are value slices (sublane shifts on the XLU) that overlap
            # the VPU FMAs.
            rows = halo_ref[img, di:di + ho, :, :]              # (ho, w_pad, c)
            for dj in range(3):
                acc = acc + rows[:, dj:dj + wo, :] * w_taps[3 * di + dj]
        dw_blocks.append(acc.reshape(l, c))

    acc_all = jnp.concatenate(dw_blocks, axis=0)                # (g*l, c) f32
    acc_all = acc_all + dw_b_ref[...]
    h2 = acc_all * jax.nn.sigmoid(acc_all)

    # --- pointwise 1x1 projection + SiLU, M = g*l (bf16 MXU, f32 epilogue)
    y = jnp.dot(h2.astype(jnp.bfloat16), pw_w_ref[...],
                preferred_element_type=jnp.float32) + pw_b_ref[...]
    h3 = y * jax.nn.sigmoid(y)                                  # (g*l, c) f32

    # --- per-image global average pool + ONE batched FC head per step
    feat = jnp.sum(h3.reshape(g, l, c), axis=1) * (1.0 / l)     # (g, c)
    logits = jnp.dot(feat.astype(jnp.bfloat16), fc_w_ref[...],
                     preferred_element_type=jnp.float32) + fc_b_ref[...]
    out_ref[...] = logits.astype(out_ref.dtype)                 # (g, c) lane-dense


# ----------------------------------------------------------------------------
# Plain-JAX glue: stem im2col (stride 2 => only ~2.25x the small input bytes).
# ----------------------------------------------------------------------------
def im2col(x, k, stride, pad):
    """x: (B, H, W, C) NHWC -> patches (B, Ho, Wo, k*k, C)."""
    B, H, W, C = x.shape
    xp = jnp.pad(x, ((0, 0), (pad, pad), (pad, pad), (0, 0)))
    Ho = (H + 2 * pad - k) // stride + 1
    Wo = (W + 2 * pad - k) // stride + 1
    cols = []
    for i in range(k):
        for j in range(k):
            cols.append(xp[:, i:i + stride * Ho:stride, j:j + stride * Wo:stride, :])
    return jnp.stack(cols, axis=-2), Ho, Wo


# ----------------------------------------------------------------------------
# Parameters (deterministic synthetic init — no checkpoint loading)
# ----------------------------------------------------------------------------
def init_params(key, in_ch=3, stem_ch=16, feat_ch=32, out_dim=5):
    ks = jax.random.split(key, 8)
    return {
        "stem_w": jax.random.normal(ks[0], (3, 3, in_ch, stem_ch), jnp.float32) * 0.1,
        "stem_b": jax.random.normal(ks[1], (1, stem_ch), jnp.float32) * 0.01,
        "dw_w":   jax.random.normal(ks[2], (9, stem_ch), jnp.float32) * 0.1,
        "dw_b":   jax.random.normal(ks[3], (1, stem_ch), jnp.float32) * 0.01,
        "pw_w":   jax.random.normal(ks[4], (stem_ch, feat_ch), jnp.float32) * 0.1,
        "pw_b":   jax.random.normal(ks[5], (1, feat_ch), jnp.float32) * 0.01,
        "fc_w":   jax.random.normal(ks[6], (feat_ch, out_dim), jnp.float32) * 0.1,
        "fc_b":   jax.random.normal(ks[7], (1, out_dim), jnp.float32) * 0.01,
    }


def pad_params(p, c_pad=C_PAD):
    """Zero-pad channel dims to the 128-lane axis (done once; results unchanged)
    and pre-cast MXU weights to bf16 (halves weight HBM bytes, f32 accumulate)."""
    in_ch, stem_ch = p["stem_w"].shape[2], p["stem_w"].shape[3]
    k = 9 * in_ch
    kp = max(8, ((k + 7) // 8) * 8)                             # 27 -> 32

    def pad2(a, rows, cols):
        return jnp.pad(a, ((0, rows - a.shape[0]), (0, cols - a.shape[1])))

    return {
        "stem_w": pad2(p["stem_w"].reshape(k, stem_ch), kp, c_pad).astype(jnp.bfloat16),
        "stem_b": pad2(p["stem_b"], 1, c_pad),
        "dw_w":   pad2(p["dw_w"], 9, c_pad),
        "dw_b":   pad2(p["dw_b"], 1, c_pad),
        "pw_w":   pad2(p["pw_w"], c_pad, c_pad).astype(jnp.bfloat16),
        "pw_b":   pad2(p["pw_b"], 1, c_pad),
        "fc_w":   pad2(p["fc_w"], c_pad, c_pad).astype(jnp.bfloat16),
        "fc_b":   pad2(p["fc_b"], 1, c_pad),
    }


# ----------------------------------------------------------------------------
# enetv2.forward — single fused pallas_call, G images per grid step
# ----------------------------------------------------------------------------
def enetv2_forward(params, x_nchw, out_dim, block_g=8):
    """params: lane-dense padded params from pad_params(); x_nchw: NCHW input."""
    x = jnp.transpose(x_nchw, (0, 2, 3, 1)).astype(jnp.float32)  # -> NHWC
    b, _, _, cin = x.shape
    kp, c_pad = params["stem_w"].shape

    # Stem patches built in XLA (cheap, stride-2); the expensive stride-1
    # depthwise im2col is eliminated entirely (done in-kernel from VMEM).
    patches, ho, wo = im2col(x, k=3, stride=2, pad=1)            # (b,ho,wo,9,cin)
    l = ho * wo
    pm = patches.reshape(b * l, 9 * cin)
    pm = jnp.pad(pm, ((0, 0), (0, kp - 9 * cin))).astype(jnp.bfloat16)  # bf16 stream

    # Images per grid step: largest divisor of b that is <= block_g.  Keeps
    # M = g*l large for the MXU while leaving >= 1 step per TensorCore.
    g = max(d for d in range(1, min(block_g, b) + 1) if b % d == 0)
    w_pad = ((wo + 2 + 7) // 8) * 8                              # aligned halo width

    kernel = functools.partial(_enetv2_fused_kernel, g=g, ho=ho, wo=wo, w_pad=w_pad)

    flops = (2 * b * l * (kp * c_pad + 9 * c_pad + c_pad * c_pad)
             + 2 * b * c_pad * c_pad)
    transcendentals = 3 * b * l * c_pad                          # three SiLUs
    weight_bytes = sum(int(v.size) * v.dtype.itemsize for v in params.values())
    bytes_accessed = int(pm.size) * pm.dtype.itemsize + weight_bytes + b * c_pad * 4

    def const2d(shape):                                          # resident weights
        return pl.BlockSpec(shape, lambda i: (0, 0))

    out = pl.pallas_call(
        kernel,
        out_shape=jax.ShapeDtypeStruct((b, c_pad), jnp.float32),
        grid=(b // g,),
        in_specs=[
            pl.BlockSpec((g * l, kp), lambda i: (i, 0)),         # stem im2col patches (bf16)
            const2d((kp, c_pad)),                                # stem_w (bf16)
            const2d((1, c_pad)),                                 # stem_b
            const2d((9, c_pad)),                                 # dw_w
            const2d((1, c_pad)),                                 # dw_b
            const2d((c_pad, c_pad)),                             # pw_w (bf16)
            const2d((1, c_pad)),                                 # pw_b
            const2d((c_pad, c_pad)),                             # fc_w (bf16)
            const2d((1, c_pad)),                                 # fc_b
        ],
        out_specs=pl.BlockSpec((g, c_pad), lambda i: (i, 0)),
        scratch_shapes=[pltpu.VMEM((g, ho + 2, w_pad, c_pad), jnp.float32)],
        compiler_params=pltpu.CompilerParams(
            dimension_semantics=("parallel",)),                  # v7x: 2 TCs split the steps
        cost_estimate=pl.CostEstimate(flops=int(flops),
                                      transcendentals=int(transcendentals),
                                      bytes_accessed=int(bytes_accessed)),
    )(pm, params["stem_w"], params["stem_b"], params["dw_w"], params["dw_b"],
      params["pw_w"], params["pw_b"], params["fc_w"], params["fc_b"])

    # Padded logit lanes beyond out_dim are exactly zero; slice them away.
    return out[:, :out_dim]


# ----------------------------------------------------------------------------
# Pure-JAX reference (identical math: bf16 MXU operands, f32 epilogues)
# ----------------------------------------------------------------------------
def enetv2_reference(p, x_nchw):
    x = jnp.transpose(x_nchw, (0, 2, 3, 1)).astype(jnp.float32)
    b = x.shape[0]
    patches, ho, wo = im2col(x, k=3, stride=2, pad=1)
    pm = patches.reshape(b * ho * wo, -1)
    w = p["stem_w"].reshape(pm.shape[-1], -1).astype(jnp.bfloat16)
    y = jnp.dot(pm.astype(jnp.bfloat16), w, preferred_element_type=jnp.float32)
    y = y + p["stem_b"]
    h = y * jax.nn.sigmoid(y)
    c = h.shape[-1]
    h = h.reshape(b, ho, wo, c)
    hp = jnp.pad(h, ((0, 0), (1, 1), (1, 1), (0, 0)))
    acc = jnp.zeros_like(h)
    for di in range(3):
        for dj in range(3):
            acc = acc + hp[:, di:di + ho, dj:dj + wo, :] * p["dw_w"][3 * di + dj]
    acc = acc + p["dw_b"]
    h2 = (acc * jax.nn.sigmoid(acc)).reshape(b * ho * wo, c)
    y = jnp.dot(h2.astype(jnp.bfloat16), p["pw_w"].astype(jnp.bfloat16),
                preferred_element_type=jnp.float32) + p["pw_b"]
    h3 = y * jax.nn.sigmoid(y)
    feat = h3.reshape(b, ho * wo, -1).mean(axis=1)
    return jnp.dot(feat.astype(jnp.bfloat16), p["fc_w"].astype(jnp.bfloat16),
                   preferred_element_type=jnp.float32) + p["fc_b"]


if __name__ == "__main__":
    key = jax.random.PRNGKey(0)
    k_param, k_x = jax.random.split(key)
    IN_CH, STEM_CH, FEAT_CH, OUT_DIM = 3, 16, 32, 5
    params = init_params(k_param, IN_CH, STEM_CH, FEAT_CH, OUT_DIM)
    padded = pad_params(params)

    # Small NCHW input, PyTorch convention: batch=16 (so G=8 images/step, 2
    # grid steps -> one per v7x TensorCore), channels=3, spatial=16x16.
    x = jax.random.normal(k_x, (16, IN_CH, 16, 16), jnp.float32)

    fwd = jax.jit(functools.partial(enetv2_forward, out_dim=OUT_DIM, block_g=8))
    out = fwd(padded, x)
    jax.block_until_ready(out)
    assert out.shape == (16, OUT_DIM), out.shape
    assert bool(jnp.all(jnp.isfinite(out)))

    # Channel padding + fusion + G-batching must not change the numbers.
    ref = enetv2_reference(params, x)
    assert jnp.allclose(out, ref, atol=2e-3, rtol=2e-3), (out, ref)
    print("KERNEL_OK")
</pallas_src>

<mosaic_0001>
module attributes {stable_mosaic.version = 11 : i64} {
  func.func @_enetv2_fused_kernel(%arg0: i32, %arg1: memref<512x32xbf16, #tpu.memory_space<vmem>>, %arg2: memref<32x128xbf16, #tpu.memory_space<vmem>>, %arg3: memref<1x128xf32, #tpu.memory_space<vmem>>, %arg4: memref<9x128xf32, #tpu.memory_space<vmem>>, %arg5: memref<1x128xf32, #tpu.memory_space<vmem>>, %arg6: memref<128x128xbf16, #tpu.memory_space<vmem>>, %arg7: memref<1x128xf32, #tpu.memory_space<vmem>>, %arg8: memref<128x128xbf16, #tpu.memory_space<vmem>>, %arg9: memref<1x128xf32, #tpu.memory_space<vmem>>, %arg10: memref<8x128xf32, #tpu.memory_space<vmem>>, %arg11: memref<8x10x16x128xf32, #tpu.memory_space<vmem>>) attributes {dimension_semantics = [#tpu.dimension_semantics<parallel>], iteration_bounds = array<i64: 2>, scalar_prefetch = 0 : i64, scratch_operands = 1 : i64, tpu.core_type = #tpu.core_type<tc>, window_params = [{transform_indices = @transform_0, window_bounds = array<i64: 512, 32>}, {pipeline_mode = #tpu.pipeline_mode<synchronous>, transform_indices = @transform_1, window_bounds = array<i64: 32, 128>}, {pipeline_mode = #tpu.pipeline_mode<synchronous>, transform_indices = @transform_2, window_bounds = array<i64: 1, 128>}, {pipeline_mode = #tpu.pipeline_mode<synchronous>, transform_indices = @transform_3, window_bounds = array<i64: 9, 128>}, {pipeline_mode = #tpu.pipeline_mode<synchronous>, transform_indices = @transform_4, window_bounds = array<i64: 1, 128>}, {pipeline_mode = #tpu.pipeline_mode<synchronous>, transform_indices = @transform_5, window_bounds = array<i64: 128, 128>}, {pipeline_mode = #tpu.pipeline_mode<synchronous>, transform_indices = @transform_6, window_bounds = array<i64: 1, 128>}, {pipeline_mode = #tpu.pipeline_mode<synchronous>, transform_indices = @transform_7, window_bounds = array<i64: 128, 128>}, {pipeline_mode = #tpu.pipeline_mode<synchronous>, transform_indices = @transform_8, window_bounds = array<i64: 1, 128>}, {transform_indices = @transform_9, window_bounds = array<i64: 8, 128>}]} {
    %c0 = arith.constant 0 : index
    %c0_0 = arith.constant 0 : index
    %0 = vector.load %arg1[%c0, %c0_0] : memref<512x32xbf16, #tpu.memory_space<vmem>>, vector<512x32xbf16>
    %c0_1 = arith.constant 0 : index
    %c0_2 = arith.constant 0 : index
    %1 = vector.load %arg2[%c0_1, %c0_2] : memref<32x128xbf16, #tpu.memory_space<vmem>>, vector<32x128xbf16>
    %cst = arith.constant dense<0.000000e+00> : vector<512x128xf32>
    %2 = tpu.matmul %0, %1, %cst {dimension_numbers = #tpu.dot_dimension_numbers<[1], [0], [0], [1], [0, 0, 1, 1], [], []>} : vector<512x32xbf16>, vector<32x128xbf16>, vector<512x128xf32> -> vector<512x128xf32>
    %c0_3 = arith.constant 0 : index
    %c0_4 = arith.constant 0 : index
    %3 = vector.load %arg3[%c0_3, %c0_4] : memref<1x128xf32, #tpu.memory_space<vmem>>, vector<1x128xf32>
    %4 = vector.broadcast %3 : vector<1x128xf32> to vector<512x128xf32>
    %5 = arith.addf %2, %4 : vector<512x128xf32>
    %6 = arith.negf %5 : vector<512x128xf32>
    %7 = math.exp %6 : vector<512x128xf32>
    %cst_5 = arith.constant 1.000000e+00 : f32
    %8 = vector.broadcast %cst_5 : f32 to vector<512x128xf32>
    %9 = arith.addf %8, %7 : vector<512x128xf32>
    %10 = arith.divf %8, %9 : vector<512x128xf32>
    %11 = arith.mulf %5, %10 : vector<512x128xf32>
    %c0_6 = arith.constant 0 : index
    %c0_7 = arith.constant 0 : index
    %12 = vector.load %arg4[%c0_6, %c0_7] : memref<9x128xf32, #tpu.memory_space<vmem>>, vector<9x128xf32>
    %13 = vector.extract_strided_slice %12 {offsets = [0, 0], sizes = [1, 128], strides = [1, 1]} : vector<9x128xf32> to vector<1x128xf32>
    %14 = vector.shape_cast %13 : vector<1x128xf32> to vector<1x1x128xf32>
    %15 = vector.extract_strided_slice %12 {offsets = [1, 0], sizes = [1, 128], strides = [1, 1]} : vector<9x128xf32> to vector<1x128xf32>
    %16 = vector.shape_cast %15 : vector<1x128xf32> to vector<1x1x128xf32>
    %17 = vector.extract_strided_slice %12 {offsets = [2, 0], sizes = [1, 128], strides = [1, 1]} : vector<9x128xf32> to vector<1x128xf32>
    %18 = vector.shape_cast %17 : vector<1x128xf32> to vector<1x1x128xf32>
    %19 = vector.extract_strided_slice %12 {offsets = [3, 0], sizes = [1, 128], strides = [1, 1]} : vector<9x128xf32> to vector<1x128xf32>
    %20 = vector.shape_cast %19 : vector<1x128xf32> to vector<1x1x128xf32>
    %21 = vector.extract_strided_slice %12 {offsets = [4, 0], sizes = [1, 128], strides = [1, 1]} : vector<9x128xf32> to vector<1x128xf32>
    %22 = vector.shape_cast %21 : vector<1x128xf32> to vector<1x1x128xf32>
    %23 = vector.extract_strided_slice %12 {offsets = [5, 0], sizes = [1, 128], strides = [1, 1]} : vector<9x128xf32> to vector<1x128xf32>
    %24 = vector.shape_cast %23 : vector<1x128xf32> to vector<1x1x128xf32>
    %25 = vector.extract_strided_slice %12 {offsets = [6, 0], sizes = [1, 128], strides = [1, 1]} : vector<9x128xf32> to vector<1x128xf32>
    %26 = vector.shape_cast %25 : vector<1x128xf32> to vector<1x1x128xf32>
    %27 = vector.extract_strided_slice %12 {offsets = [7, 0], sizes = [1, 128], strides = [1, 1]} : vector<9x128xf32> to vector<1x128xf32>
    %28 = vector.shape_cast %27 : vector<1x128xf32> to vector<1x1x128xf32>
    %29 = vector.extract_strided_slice %12 {offsets = [8, 0], sizes = [1, 128], strides = [1, 1]} : vector<9x128xf32> to vector<1x128xf32>
    %30 = vector.shape_cast %29 : vector<1x128xf32> to vector<1x1x128xf32>
    %cst_8 = arith.constant 0.000000e+00 : f32
    %31 = vector.broadcast %cst_8 : f32 to vector<16x128xf32>
    %cst_9 = arith.constant 0.000000e+00 : f32
    %32 = vector.broadcast %cst_9 : f32 to vector<8x1x128xf32>
    %33 = vector.extract_strided_slice %11 {offsets = [0, 0], sizes = [64, 128], strides = [1, 1]} : vector<512x128xf32> to vector<64x128xf32>
    %34 = vector.shape_cast %33 : vector<64x128xf32> to vector<8x8x128xf32>
    %c0_10 = arith.constant 0 : index
    %c0_11 = arith.constant 0 : index
    %c0_12 = arith.constant 0 : index
    %c0_13 = arith.constant 0 : index
    %35 = vector.load %arg11[%c0_10, %c0_11, %c0_12, %c0_13] : memref<8x10x16x128xf32, #tpu.memory_space<vmem>>, vector<1x1x16x128xf32>
    %36 = vector.shape_cast %35 : vector<1x1x16x128xf32> to vector<16x128xf32>
    %37 = vector.shape_cast %31 : vector<16x128xf32> to vector<1x1x16x128xf32>
    tpu.vector_store %arg11[%c0_10, %c0_11, %c0_12, %c0_13], %37 {strides = array<i32>} : memref<8x10x16x128xf32, #tpu.memory_space<vmem>>, vector<1x1x16x128xf32>,
    %c0_14 = arith.constant 0 : index
    %c9 = arith.constant 9 : index
    %c0_15 = arith.constant 0 : index
    %c0_16 = arith.constant 0 : index
    %38 = vector.load %arg11[%c0_14, %c9, %c0_15, %c0_16] : memref<8x10x16x128xf32, #tpu.memory_space<vmem>>, vector<1x1x16x128xf32>
    %39 = vector.shape_cast %38 : vector<1x1x16x128xf32> to vector<16x128xf32>
    %40 = vector.shape_cast %31 : vector<16x128xf32> to vector<1x1x16x128xf32>
    tpu.vector_store %arg11[%c0_14, %c9, %c0_15, %c0_16], %40 {strides = array<i32>} : memref<8x10x16x128xf32, #tpu.memory_space<vmem>>, vector<1x1x16x128xf32>,
    %c0_17 = arith.constant 0 : index
    %c1 = arith.constant 1 : index
    %c0_18 = arith.constant 0 : index
    %c0_19 = arith.constant 0 : index
    %41 = vector.load %arg11[%c0_17, %c1, %c0_18, %c0_19] : memref<8x10x16x128xf32, #tpu.memory_space<vmem>>, vector<1x8x1x128xf32>
    %42 = vector.shape_cast %41 : vector<1x8x1x128xf32> to vector<8x1x128xf32>
    %43 = vector.shape_cast %32 : vector<8x1x128xf32> to vector<1x8x1x128xf32>
    tpu.vector_store %arg11[%c0_17, %c1, %c0_18, %c0_19], %43 {strides = array<i32>} : memref<8x10x16x128xf32, #tpu.memory_space<vmem>>, vector<1x8x1x128xf32>,
    %c0_20 = arith.constant 0 : index
    %c1_21 = arith.constant 1 : index
    %c9_22 = arith.constant 9 : index
    %c0_23 = arith.constant 0 : index
    %44 = vector.load %arg11[%c0_20, %c1_21, %c9_22, %c0_23] : memref<8x10x16x128xf32, #tpu.memory_space<vmem>>, vector<1x8x1x128xf32>
    %45 = vector.shape_cast %44 : vector<1x8x1x128xf32> to vector<8x1x128xf32>
    %46 = vector.shape_cast %32 : vector<8x1x128xf32> to vector<1x8x1x128xf32>
    tpu.vector_store %arg11[%c0_20, %c1_21, %c9_22, %c0_23], %46 {strides = array<i32>} : memref<8x10x16x128xf32, #tpu.memory_space<vmem>>, vector<1x8x1x128xf32>,
    %c0_24 = arith.constant 0 : index
    %c1_25 = arith.constant 1 : index
    %c1_26 = arith.constant 1 : index
    %c0_27 = arith.constant 0 : index
    %47 = vector.load %arg11[%c0_24, %c1_25, %c1_26, %c0_27] : memref<8x10x16x128xf32, #tpu.memory_space<vmem>>, vector<1x8x8x128xf32>
    %48 = vector.shape_cast %47 : vector<1x8x8x128xf32> to vector<8x8x128xf32>
    %49 = vector.shape_cast %34 : vector<8x8x128xf32> to vector<1x8x8x128xf32>
    tpu.vector_store %arg11[%c0_24, %c1_25, %c1_26, %c0_27], %49 {strides = array<i32>} : memref<8x10x16x128xf32, #tpu.memory_space<vmem>>, vector<1x8x8x128xf32>,
    %cst_28 = arith.constant 0.000000e+00 : f32
    %50 = vector.broadcast %cst_28 : f32 to vector<8x8x128xf32>
    %c0_29 = arith.constant 0 : index
    %c0_30 = arith.constant 0 : index
    %c0_31 = arith.constant 0 : index
    %c0_32 = arith.constant 0 : index
    %51 = vector.load %arg11[%c0_29, %c0_30, %c0_31, %c0_32] : memref<8x10x16x128xf32, #tpu.memory_space<vmem>>, vector<1x8x16x128xf32>
    %52 = vector.shape_cast %51 : vector<1x8x16x128xf32> to vector<8x16x128xf32>
    %53 = vector.extract_strided_slice %52 {offsets = [0, 0, 0], sizes = [8, 8, 128], strides = [1, 1, 1]} : vector<8x16x128xf32> to vector<8x8x128xf32>
    %54 = vector.broadcast %14 : vector<1x1x128xf32> to vector<8x8x128xf32>
    %55 = arith.mulf %53, %54 : vector<8x8x128xf32>
    %56 = arith.addf %50, %55 : vector<8x8x128xf32>
    %57 = vector.extract_strided_slice %52 {offsets = [0, 1, 0], sizes = [8, 8, 128], strides = [1, 1, 1]} : vector<8x16x128xf32> to vector<8x8x128xf32>
    %58 = vector.broadcast %16 : vector<1x1x128xf32> to vector<8x8x128xf32>
    %59 = arith.mulf %57, %58 : vector<8x8x128xf32>
    %60 = arith.addf %56, %59 : vector<8x8x128xf32>
    %61 = vector.extract_strided_slice %52 {offsets = [0, 2, 0], sizes = [8, 8, 128], strides = [1, 1, 1]} : vector<8x16x128xf32> to vector<8x8x128xf32>
    %62 = vector.broadcast %18 : vector<1x1x128xf32> to vector<8x8x128xf32>
    %63 = arith.mulf %61, %62 : vector<8x8x128xf32>
    %64 = arith.addf %60, %63 : vector<8x8x128xf32>
    %c0_33 = arith.constant 0 : index
    %c1_34 = arith.constant 1 : index
    %c0_35 = arith.constant 0 : index
    %c0_36 = arith.constant 0 : index
    %65 = vector.load %arg11[%c0_33, %c1_34, %c0_35, %c0_36] : memref<8x10x16x128xf32, #tpu.memory_space<vmem>>, vector<1x8x16x128xf32>
    %66 = vector.shape_cast %65 : vector<1x8x16x128xf32> to vector<8x16x128xf32>
    %67 = vector.extract_strided_slice %66 {offsets = [0, 0, 0], sizes = [8, 8, 128], strides = [1, 1, 1]} : vector<8x16x128xf32> to vector<8x8x128xf32>
    %68 = vector.broadcast %20 : vector<1x1x128xf32> to vector<8x8x128xf32>
    %69 = arith.mulf %67, %68 : vector<8x8x128xf32>
    %70 = arith.addf %64, %69 : vector<8x8x128xf32>
    %71 = vector.extract_strided_slice %66 {offsets = [0, 1, 0], sizes = [8, 8, 128], strides = [1, 1, 1]} : vector<8x16x128xf32> to vector<8x8x128xf32>
    %72 = vector.broadcast %22 : vector<1x1x128xf32> to vector<8x8x128xf32>
    %73 = arith.mulf %71, %72 : vector<8x8x128xf32>
    %74 = arith.addf %70, %73 : vector<8x8x128xf32>
    %75 = vector.extract_strided_slice %66 {offsets = [0, 2, 0], sizes = [8, 8, 128], strides = [1, 1, 1]} : vector<8x16x128xf32> to vector<8x8x128xf32>
    %76 = vector.broadcast %24 : vector<1x1x128xf32> to vector<8x8x128xf32>
    %77 = arith.mulf %75, %76 : vector<8x8x128xf32>
    %78 = arith.addf %74, %77 : vector<8x8x128xf32>
    %c0_37 = arith.constant 0 : index
    %c2 = arith.constant 2 : index
    %c0_38 = arith.constant 0 : index
    %c0_39 = arith.constant 0 : index
    %79 = vector.load %arg11[%c0_37, %c2, %c0_38, %c0_39] : memref<8x10x16x128xf32, #tpu.memory_space<vmem>>, vector<1x8x16x128xf32>
    %80 = vector.shape_cast %79 : vector<1x8x16x128xf32> to vector<8x16x128xf32>
    %81 = vector.extract_strided_slice %80 {offsets = [0, 0, 0], sizes = [8, 8, 128], strides = [1, 1, 1]} : vector<8x16x128xf32> to vector<8x8x128xf32>
    %82 = vector.broadcast %26 : vector<1x1x128xf32> to vector<8x8x128xf32>
    %83 = arith.mulf %81, %82 : vector<8x8x128xf32>
    %84 = arith.addf %78, %83 : vector<8x8x128xf32>
    %85 = vector.extract_strided_slice %80 {offsets = [0, 1, 0], sizes = [8, 8, 128], strides = [1, 1, 1]} : vector<8x16x128xf32> to vector<8x8x128xf32>
    %86 = vector.broadcast %28 : vector<1x1x128xf32> to vector<8x8x128xf32>
    %87 = arith.mulf %85, %86 : vector<8x8x128xf32>
    %88 = arith.addf %84, %87 : vector<8x8x128xf32>
    %89 = vector.extract_strided_slice %80 {offsets = [0, 2, 0], sizes = [8, 8, 128], strides = [1, 1, 1]} : vector<8x16x128xf32> to vector<8x8x128xf32>
    %90 = vector.broadcast %30 : vector<1x1x128xf32> to vector<8x8x128xf32>
    %91 = arith.mulf %89, %90 : vector<8x8x128xf32>
    %92 = arith.addf %88, %91 : vector<8x8x128xf32>
    %93 = vector.shape_cast %92 : vector<8x8x128xf32> to vector<64x128xf32>
    %94 = vector.extract_strided_slice %11 {offsets = [64, 0], sizes = [64, 128], strides = [1, 1]} : vector<512x128xf32> to vector<64x128xf32>
    %95 = vector.shape_cast %94 : vector<64x128xf32> to vector<8x8x128xf32>
    %c1_40 = arith.constant 1 : index
    %c0_41 = arith.constant 0 : index
    %c0_42 = arith.constant 0 : index
    %c0_43 = arith.constant 0 : index
    %96 = vector.load %arg11[%c1_40, %c0_41, %c0_42, %c0_43] : memref<8x10x16x128xf32, #tpu.memory_space<vmem>>, vector<1x1x16x128xf32>
    %97 = vector.shape_cast %96 : vector<1x1x16x128xf32> to vector<16x128xf32>
    %98 = vector.shape_cast %31 : vector<16x128xf32> to vector<1x1x16x128xf32>
    tpu.vector_store %arg11[%c1_40, %c0_41, %c0_42, %c0_43], %98 {strides = array<i32>} : memref<8x10x16x128xf32, #tpu.memory_space<vmem>>, vector<1x1x16x128xf32>,
    %c1_44 = arith.constant 1 : index
    %c9_45 = arith.constant 9 : index
    %c0_46 = arith.constant 0 : index
    %c0_47 = arith.constant 0 : index
    %99 = vector.load %arg11[%c1_44, %c9_45, %c0_46, %c0_47] : memref<8x10x16x128xf32, #tpu.memory_space<vmem>>, vector<1x1x16x128xf32>
    %100 = vector.shape_cast %99 : vector<1x1x16x128xf32> to vector<16x128xf32>
    %101 = vector.shape_cast %31 : vector<16x128xf32> to vector<1x1x16x128xf32>
    tpu.vector_store %arg11[%c1_44, %c9_45, %c0_46, %c0_47], %101 {strides = array<i32>} : memref<8x10x16x128xf32, #tpu.memory_space<vmem>>, vector<1x1x16x128xf32>,
    %c1_48 = arith.constant 1 : index
    %c1_49 = arith.constant 1 : index
    %c0_50 = arith.constant 0 : index
    %c0_51 = arith.constant 0 : index
    %102 = vector.load %arg11[%c1_48, %c1_49, %c0_50, %c0_51] : memref<8x10x16x128xf32, #tpu.memory_space<vmem>>, vector<1x8x1x128xf32>
    %103 = vector.shape_cast %102 : vector<1x8x1x128xf32> to vector<8x1x128xf32>
    %104 = vector.shape_cast %32 : vector<8x1x128xf32> to vector<1x8x1x128xf32>
    tpu.vector_store %arg11[%c1_48, %c1_49, %c0_50, %c0_51], %104 {strides = array<i32>} : memref<8x10x16x128xf32, #tpu.memory_space<vmem>>, vector<1x8x1x128xf32>,
    %c1_52 = arith.constant 1 : index
    %c1_53 = arith.constant 1 : index
    %c9_54 = arith.constant 9 : index
    %c0_55 = arith.constant 0 : index
    %105 = vector.load %arg11[%c1_52, %c1_53, %c9_54, %c0_55] : memref<8x10x16x128xf32, #tpu.memory_space<vmem>>, vector<1x8x1x128xf32>
    %106 = vector.shape_cast %105 : vector<1x8x1x128xf32> to vector<8x1x128xf32>
    %107 = vector.shape_cast %32 : vector<8x1x128xf32> to vector<1x8x1x128xf32>
    tpu.vector_store %arg11[%c1_52, %c1_53, %c9_54, %c0_55], %107 {strides = array<i32>} : memref<8x10x16x128xf32, #tpu.memory_space<vmem>>, vector<1x8x1x128xf32>,
    %c1_56 = arith.constant 1 : index
    %c1_57 = arith.constant 1 : index
    %c1_58 = arith.constant 1 : index
    %c0_59 = arith.constant 0 : index
    %108 = vector.load %arg11[%c1_56, %c1_57, %c1_58, %c0_59] : memref<8x10x16x128xf32, #tpu.memory_space<vmem>>, vector<1x8x8x128xf32>
    %109 = vector.shape_cast %108 : vector<1x8x8x128xf32> to vector<8x8x128xf32>
    %110 = vector.shape_cast %95 : vector<8x8x128xf32> to vector<1x8x8x128xf32>
    tpu.vector_store %arg11[%c1_56, %c1_57, %c1_58, %c0_59], %110 {strides = array<i32>} : memref<8x10x16x128xf32, #tpu.memory_space<vmem>>, vector<1x8x8x128xf32>,
    %cst_60 = arith.constant 0.000000e+00 : f32
    %111 = vector.broadcast %cst_60 : f32 to vector<8x8x128xf32>
    %c1_61 = arith.constant 1 : index
    %c0_62 = arith.constant 0 : index
    %c0_63 = arith.constant 0 : index
    %c0_64 = arith.constant 0 : index
    %112 = vector.load %arg11[%c1_61, %c0_62, %c0_63, %c0_64] : memref<8x10x16x128xf32, #tpu.memory_space<vmem>>, vector<1x8x16x128xf32>
    %113 = vector.shape_cast %112 : vector<1x8x16x128xf32> to vector<8x16x128xf32>
    %114 = vector.extract_strided_slice %113 {offsets = [0, 0, 0], sizes = [8, 8, 128], strides = [1, 1, 1]} : vector<8x16x128xf32> to vector<8x8x128xf32>
    %115 = vector.broadcast %14 : vector<1x1x128xf32> to vector<8x8x128xf32>
    %116 = arith.mulf %114, %115 : vector<8x8x128xf32>
    %117 = arith.addf %111, %116 : vector<8x8x128xf32>
    %118 = vector.extract_strided_slice %113 {offsets = [0, 1, 0], sizes = [8, 8, 128], strides = [1, 1, 1]} : vector<8x16x128xf32> to vector<8x8x128xf32>
    %119 = vector.broadcast %16 : vector<1x1x128xf32> to vector<8x8x128xf32>
    %120 = arith.mulf %118, %119 : vector<8x8x128xf32>
    %121 = arith.addf %117, %120 : vector<8x8x128xf32>
    %122 = vector.extract_strided_slice %113 {offsets = [0, 2, 0], sizes = [8, 8, 128], strides = [1, 1, 1]} : vector<8x16x128xf32> to vector<8x8x128xf32>
    %123 = vector.broadcast %18 : vector<1x1x128xf32> to vector<8x8x128xf32>
    %124 = arith.mulf %122, %123 : vector<8x8x128xf32>
    %125 = arith.addf %121, %124 : vector<8x8x128xf32>
    %c1_65 = arith.constant 1 : index
    %c1_66 = arith.constant 1 : index
    %c0_67 = arith.constant 0 : index
    %c0_68 = arith.constant 0 : index
    %126 = vector.load %arg11[%c1_65, %c1_66, %c0_67, %c0_68] : memref<8x10x16x128xf32, #tpu.memory_space<vmem>>, vector<1x8x16x128xf32>
    %127 = vector.shape_cast %126 : vector<1x8x16x128xf32> to vector<8x16x128xf32>
    %128 = vector.extract_strided_slice %127 {offsets = [0, 0, 0], sizes = [8, 8, 128], strides = [1, 1, 1]} : vector<8x16x128xf32> to vector<8x8x128xf32>
    %129 = vector.broadcast %20 : vector<1x1x128xf32> to vector<8x8x128xf32>
    %130 = arith.mulf %128, %129 : vector<8x8x128xf32>
    %131 = arith.addf %125, %130 : vector<8x8x128xf32>
    %132 = vector.extract_strided_slice %127 {offsets = [0, 1, 0], sizes = [8, 8, 128], strides = [1, 1, 1]} : vector<8x16x128xf32> to vector<8x8x128xf32>
    %133 = vector.broadcast %22 : vector<1x1x128xf32> to vector<8x8x128xf32>
    %134 = arith.mulf %132, %133 : vector<8x8x128xf32>
    %135 = arith.addf %131, %134 : vector<8x8x128xf32>
    %136 = vector.extract_strided_slice %127 {offsets = [0, 2, 0], sizes = [8, 8, 128], strides = [1, 1, 1]} : vector<8x16x128xf32> to vector<8x8x128xf32>
    %137 = vector.broadcast %24 : vector<1x1x128xf32> to vector<8x8x128xf32>
    %138 = arith.mulf %136, %137 : vector<8x8x128xf32>
    %139 = arith.addf %135, %138 : vector<8x8x128xf32>
    %c1_69 = arith.constant 1 : index
    %c2_70 = arith.constant 2 : index
    %c0_71 = arith.constant 0 : index
    %c0_72 = arith.constant 0 : index
    %140 = vector.load %arg11[%c1_69, %c2_70, %c0_71, %c0_72] : memref<8x10x16x128xf32, #tpu.memory_space<vmem>>, vector<1x8x16x128xf32>
    %141 = vector.shape_cast %140 : vector<1x8x16x128xf32> to vector<8x16x128xf32>
    %142 = vector.extract_strided_slice %141 {offsets = [0, 0, 0], sizes = [8, 8, 128], strides = [1, 1, 1]} : vector<8x16x128xf32> to vector<8x8x128xf32>
    %143 = vector.broadcast %26 : vector<1x1x128xf32> to vector<8x8x128xf32>
    %144 = arith.mulf %142, %143 : vector<8x8x128xf32>
    %145 = arith.addf %139, %144 : vector<8x8x128xf32>
    %146 = vector.extract_strided_slice %141 {offsets = [0, 1, 0], sizes = [8, 8, 128], strides = [1, 1, 1]} : vector<8x16x128xf32> to vector<8x8x128xf32>
    %147 = vector.broadcast %28 : vector<1x1x128xf32> to vector<8x8x128xf32>
    %148 = arith.mulf %146, %147 : vector<8x8x128xf32>
    %149 = arith.addf %145, %148 : vector<8x8x128xf32>
    %150 = vector.extract_strided_slice %141 {offsets = [0, 2, 0], sizes = [8, 8, 128], strides = [1, 1, 1]} : vector<8x16x128xf32> to vector<8x8x128xf32>
    %151 = vector.broadcast %30 : vector<1x1x128xf32> to vector<8x8x128xf32>
    %152 = arith.mulf %150, %151 : vector<8x8x128xf32>
    %153 = arith.addf %149, %152 : vector<8x8x128xf32>
    %154 = vector.shape_cast %153 : vector<8x8x128xf32> to vector<64x128xf32>
    %155 = vector.extract_strided_slice %11 {offsets = [128, 0], sizes = [64, 128], strides = [1, 1]} : vector<512x128xf32> to vector<64x128xf32>
    %156 = vector.shape_cast %155 : vector<64x128xf32> to vector<8x8x128xf32>
    %c2_73 = arith.constant 2 : index
    %c0_74 = arith.constant 0 : index
    %c0_75 = arith.constant 0 : index
    %c0_76 = arith.constant 0 : index
    %157 = vector.load %arg11[%c2_73, %c0_74, %c0_75, %c0_76] : memref<8x10x16x128xf32, #tpu.memory_space<vmem>>, vector<1x1x16x128xf32>
    %158 = vector.shape_cast %157 : vector<1x1x16x128xf32> to vector<16x128xf32>
    %159 = vector.shape_cast %31 : vector<16x128xf32> to vector<1x1x16x128xf32>
    tpu.vector_store %arg11[%c2_73, %c0_74, %c0_75, %c0_76], %159 {strides = array<i32>} : memref<8x10x16x128xf32, #tpu.memory_space<vmem>>, vector<1x1x16x128xf32>,
    %c2_77 = arith.constant 2 : index
    %c9_78 = arith.constant 9 : index
    %c0_79 = arith.constant 0 : index
    %c0_80 = arith.constant 0 : index
    %160 = vector.load %arg11[%c2_77, %c9_78, %c0_79, %c0_80] : memref<8x10x16x128xf32, #tpu.memory_space<vmem>>, vector<1x1x16x128xf32>
    %161 = vector.shape_cast %160 : vector<1x1x16x128xf32> to vector<16x128xf32>
    %162 = vector.shape_cast %31 : vector<16x128xf32> to vector<1x1x16x128xf32>
    tpu.vector_store %arg11[%c2_77, %c9_78, %c0_79, %c0_80], %162 {strides = array<i32>} : memref<8x10x16x128xf32, #tpu.memory_space<vmem>>, vector<1x1x16x128xf32>,
    %c2_81 = arith.constant 2 : index
    %c1_82 = arith.constant 1 : index
    %c0_83 = arith.constant 0 : index
    %c0_84 = arith.constant 0 : index
    %163 = vector.load %arg11[%c2_81, %c1_82, %c0_83, %c0_84] : memref<8x10x16x128xf32, #tpu.memory_space<vmem>>, vector<1x8x1x128xf32>
    %164 = vector.shape_cast %163 : vector<1x8x1x128xf32> to vector<8x1x128xf32>
    %165 = vector.shape_cast %32 : vector<8x1x128xf32> to vector<1x8x1x128xf32>
    tpu.vector_store %arg11[%c2_81, %c1_82, %c0_83, %c0_84], %165 {strides = array<i32>} : memref<8x10x16x128xf32, #tpu.memory_space<vmem>>, vector<1x8x1x128xf32>,
    %c2_85 = arith.constant 2 : index
    %c1_86 = arith.constant 1 : index
    %c9_87 = arith.constant 9 : index
    %c0_88 = arith.constant 0 : index
    %166 = vector.load %arg11[%c2_85, %c1_86, %c9_87, %c0_88] : memref<8x10x16x128xf32, #tpu.memory_space<vmem>>, vector<1x8x1x128xf32>
    %167 = vector.shape_cast %166 : vector<1x8x1x128xf32> to vector<8x1x128xf32>
    %168 = vector.shape_cast %32 : vector<8x1x128xf32> to vector<1x8x1x128xf32>
    tpu.vector_store %arg11[%c2_85, %c1_86, %c9_87, %c0_88], %168 {strides = array<i32>} : memref<8x10x16x128xf32, #tpu.memory_space<vmem>>, vector<1x8x1x128xf32>,
    %c2_89 = arith.constant 2 : index
    %c1_90 = arith.constant 1 : index
    %c1_91 = arith.constant 1 : index
    %c0_92 = arith.constant 0 : index
    %169 = vector.load %arg11[%c2_89, %c1_90, %c1_91, %c0_92] : memref<8x10x16x128xf32, #tpu.memory_space<vmem>>, vector<1x8x8x128xf32>
    %170 = vector.shape_cast %169 : vector<1x8x8x128xf32> to vector<8x8x128xf32>
    %171 = vector.shape_cast %156 : vector<8x8x128xf32> to vector<1x8x8x128xf32>
    tpu.vector_store %arg11[%c2_89, %c1_90, %c1_91, %c0_92], %171 {strides = array<i32>} : memref<8x10x16x128xf32, #tpu.memory_space<vmem>>, vector<1x8x8x128xf32>,
    %cst_93 = arith.constant 0.000000e+00 : f32
    %172 = vector.broadcast %cst_93 : f32 to vector<8x8x128xf32>
    %c2_94 = arith.constant 2 : index
    %c0_95 = arith.constant 0 : index
    %c0_96 = arith.constant 0 : index
    %c0_97 = arith.constant 0 : index
    %173 = vector.load %arg11[%c2_94, %c0_95, %c0_96, %c0_97] : memref<8x10x16x128xf32, #tpu.memory_space<vmem>>, vector<1x8x16x128xf32>
    %174 = vector.shape_cast %173 : vector<1x8x16x128xf32> to vector<8x16x128xf32>
    %175 = vector.extract_strided_slice %174 {offsets = [0, 0, 0], sizes = [8, 8, 128], strides = [1, 1, 1]} : vector<8x16x128xf32> to vector<8x8x128xf32>
    %176 = vector.broadcast %14 : vector<1x1x128xf32> to vector<8x8x128xf32>
    %177 = arith.mulf %175, %176 : vector<8x8x128xf32>
    %178 = arith.addf %172, %177 : vector<8x8x128xf32>
    %179 = vector.extract_strided_slice %174 {offsets = [0, 1, 0], sizes = [8, 8, 128], strides = [1, 1, 1]} : vector<8x16x128xf32> to vector<8x8x128xf32>
    %180 = vector.broadcast %16 : vector<1x1x128xf32> to vector<8x8x128xf32>
    %181 = arith.mulf %179, %180 : vector<8x8x128xf32>
    %182 = arith.addf %178, %181 : vector<8x8x128xf32>
    %183 = vector.extract_strided_slice %174 {offsets = [0, 2, 0], sizes = [8, 8, 128], strides = [1, 1, 1]} : vector<8x16x128xf32> to vector<8x8x128xf32>
    %184 = vector.broadcast %18 : vector<1x1x128xf32> to vector<8x8x128xf32>
    %185 = arith.mulf %183, %184 : vector<8x8x128xf32>
    %186 = arith.addf %182, %185 : vector<8x8x128xf32>
    %c2_98 = arith.constant 2 : index
    %c1_99 = arith.constant 1 : index
    %c0_100 = arith.constant 0 : index
    %c0_101 = arith.constant 0 : index
    %187 = vector.load %arg11[%c2_98, %c1_99, %c0_100, %c0_101] : memref<8x10x16x128xf32, #tpu.memory_space<vmem>>, vector<1x8x16x128xf32>
    %188 = vector.shape_cast %187 : vector<1x8x16x128xf32> to vector<8x16x128xf32>
    %189 = vector.extract_strided_slice %188 {offsets = [0, 0, 0], sizes = [8, 8, 128], strides = [1, 1, 1]} : vector<8x16x128xf32> to vector<8x8x128xf32>
    %190 = vector.broadcast %20 : vector<1x1x128xf32> to vector<8x8x128xf32>
    %191 = arith.mulf %189, %190 : vector<8x8x128xf32>
    %192 = arith.addf %186, %191 : vector<8x8x128xf32>
    %193 = vector.extract_strided_slice %188 {offsets = [0, 1, 0], sizes = [8, 8, 128], strides = [1, 1, 1]} : vector<8x16x128xf32> to vector<8x8x128xf32>
    %194 = vector.broadcast %22 : vector<1x1x128xf32> to vector<8x8x128xf32>
    %195 = arith.mulf %193, %194 : vector<8x8x128xf32>
    %196 = arith.addf %192, %195 : vector<8x8x128xf32>
    %197 = vector.extract_strided_slice %188 {offsets = [0, 2, 0], sizes = [8, 8, 128], strides = [1, 1, 1]} : vector<8x16x128xf32> to vector<8x8x128xf32>
    %198 = vector.broadcast %24 : vector<1x1x128xf32> to vector<8x8x128xf32>
    %199 = arith.mulf %197, %198 : vector<8x8x128xf32>
    %200 = arith.addf %196, %199 : vector<8x8x128xf32>
    %c2_102 = arith.constant 2 : index
    %c2_103 = arith.constant 2 : index
    %c0_104 = arith.constant 0 : index
    %c0_105 = arith.constant 0 : index
    %201 = vector.load %arg11[%c2_102, %c2_103, %c0_104, %c0_105] : memref<8x10x16x128xf32, #tpu.memory_space<vmem>>, vector<1x8x16x128xf32>
    %202 = vector.shape_cast %201 : vector<1x8x16x128xf32> to vector<8x16x128xf32>
    %203 = vector.extract_strided_slice %202 {offsets = [0, 0, 0], sizes = [8, 8, 128], strides = [1, 1, 1]} : vector<8x16x128xf32> to vector<8x8x128xf32>
    %204 = vector.broadcast %26 : vector<1x1x128xf32> to vector<8x8x128xf32>
    %205 = arith.mulf %203, %204 : vector<8x8x128xf32>
    %206 = arith.addf %200, %205 : vector<8x8x128xf32>
    %207 = vector.extract_strided_slice %202 {offsets = [0, 1, 0], sizes = [8, 8, 128], strides = [1, 1, 1]} : vector<8x16x128xf32> to vector<8x8x128xf32>
    %208 = vector.broadcast %28 : vector<1x1x128xf32> to vector<8x8x128xf32>
    %209 = arith.mulf %207, %208 : vector<8x8x128xf32>
    %210 = arith.addf %206, %209 : vector<8x8x128xf32>
    %211 = vector.extract_strided_slice %202 {offsets = [0, 2, 0], sizes = [8, 8, 128], strides = [1, 1, 1]} : vector<8x16x128xf32> to vector<8x8x128xf32>
    %212 = vector.broadcast %30 : vector<1x1x128xf32> to vector<8x8x128xf32>
    %213 = arith.mulf %211, %212 : vector<8x8x128xf32>
    %214 = arith.addf %210, %213 : vector<8x8x128xf32>
    %215 = vector.shape_cast %214 : vector<8x8x128xf32> to vector<64x128xf32>
    %216 = vector.extract_strided_slice %11 {offsets = [192, 0], sizes = [64, 128], strides = [1, 1]} : vector<512x128xf32> to vector<64x128xf32>
    %217 = vector.shape_cast %216 : vector<64x128xf32> to vector<8x8x128xf32>
    %c3 = arith.constant 3 : index
    %c0_106 = arith.constant 0 : index
    %c0_107 = arith.constant 0 : index
    %c0_108 = arith.constant 0 : index
    %218 = vector.load %arg11[%c3, %c0_106, %c0_107, %c0_108] : memref<8x10x16x128xf32, #tpu.memory_space<vmem>>, vector<1x1x16x128xf32>
    %219 = vector.shape_cast %218 : vector<1x1x16x128xf32> to vector<16x128xf32>
    %220 = vector.shape_cast %31 : vector<16x128xf32> to vector<1x1x16x128xf32>
    tpu.vector_store %arg11[%c3, %c0_106, %c0_107, %c0_108], %220 {strides = array<i32>} : memref<8x10x16x128xf32, #tpu.memory_space<vmem>>, vector<1x1x16x128xf32>,
    %c3_109 = arith.constant 3 : index
    %c9_110 = arith.constant 9 : index
    %c0_111 = arith.constant 0 : index
    %c0_112 = arith.constant 0 : index
    %221 = vector.load %arg11[%c3_109, %c9_110, %c0_111, %c0_112] : memref<8x10x16x128xf32, #tpu.memory_space<vmem>>, vector<1x1x16x128xf32>
    %222 = vector.shape_cast %221 : vector<1x1x16x128xf32> to vector<16x128xf32>
    %223 = vector.shape_cast %31 : vector<16x128xf32> to vector<1x1x16x128xf32>
    tpu.vector_store %arg11[%c3_109, %c9_110, %c0_111, %c0_112], %223 {strides = array<i32>} : memref<8x10x16x128xf32, #tpu.memory_space<vmem>>, vector<1x1x16x128xf32>,
    %c3_113 = arith.constant 3 : index
    %c1_114 = arith.constant 1 : index
    %c0_115 = arith.constant 0 : index
    %c0_116 = arith.constant 0 : index
    %224 = vector.load %arg11[%c3_113, %c1_114, %c0_115, %c0_116] : memref<8x10x16x128xf32, #tpu.memory_space<vmem>>, vector<1x8x1x128xf32>
    %225 = vector.shape_cast %224 : vector<1x8x1x128xf32> to vector<8x1x128xf32>
    %226 = vector.shape_cast %32 : vector<8x1x128xf32> to vector<1x8x1x128xf32>
    tpu.vector_store %arg11[%c3_113, %c1_114, %c0_115, %c0_116], %226 {strides = array<i32>} : memref<8x10x16x128xf32, #tpu.memory_space<vmem>>, vector<1x8x1x128xf32>,
    %c3_117 = arith.constant 3 : index
    %c1_118 = arith.constant 1 : index
    %c9_119 = arith.constant 9 : index
    %c0_120 = arith.constant 0 : index
    %227 = vector.load %arg11[%c3_117, %c1_118, %c9_119, %c0_120] : memref<8x10x16x128xf32, #tpu.memory_space<vmem>>, vector<1x8x1x128xf32>
    %228 = vector.shape_cast %227 : vector<1x8x1x128xf32> to vector<8x1x128xf32>
    %229 = vector.shape_cast %32 : vector<8x1x128xf32> to vector<1x8x1x128xf32>
    tpu.vector_store %arg11[%c3_117, %c1_118, %c9_119, %c0_120], %229 {strides = array<i32>} : memref<8x10x16x128xf32, #tpu.memory_space<vmem>>, vector<1x8x1x128xf32>,
    %c3_121 = arith.constant 3 : index
    %c1_122 = arith.constant 1 : index
    %c1_123 = arith.constant 1 : index
    %c0_124 = arith.constant 0 : index
    %230 = vector.load %arg11[%c3_121, %c1_122, %c1_123, %c0_124] : memref<8x10x16x128xf32, #tpu.memory_space<vmem>>, vector<1x8x8x128xf32>
    %231 = vector.shape_cast %230 : vector<1x8x8x128xf32> to vector<8x8x128xf32>
    %232 = vector.shape_cast %217 : vector<8x8x128xf32> to vector<1x8x8x128xf32>
    tpu.vector_store %arg11[%c3_121, %c1_122, %c1_123, %c0_124], %232 {strides = array<i32>} : memref<8x10x16x128xf32, #tpu.memory_space<vmem>>, vector<1x8x8x128xf32>,
    %cst_125 = arith.constant 0.000000e+00 : f32
    %233 = vector.broadcast %cst_125 : f32 to vector<8x8x128xf32>
    %c3_126 = arith.constant 3 : index
    %c0_127 = arith.constant 0 : index
    %c0_128 = arith.constant 0 : index
    %c0_129 = arith.constant 0 : index
    %234 = vector.load %arg11[%c3_126, %c0_127, %c0_128, %c0_129] : memref<8x10x16x128xf32, #tpu.memory_space<vmem>>, vector<1x8x16x128xf32>
    %235 = vector.shape_cast %234 : vector<1x8x16x128xf32> to vector<8x16x128xf32>
    %236 = vector.extract_strided_slice %235 {offsets = [0, 0, 0], sizes = [8, 8, 128], strides = [1, 1, 1]} : vector<8x16x128xf32> to vector<8x8x128xf32>
    %237 = vector.broadcast %14 : vector<1x1x128xf32> to vector<8x8x128xf32>
    %238 = arith.mulf %236, %237 : vector<8x8x128xf32>
    %239 = arith.addf %233, %238 : vector<8x8x128xf32>
    %240 = vector.extract_strided_slice %235 {offsets = [0, 1, 0], sizes = [8, 8, 128], strides = [1, 1, 1]} : vector<8x16x128xf32> to vector<8x8x128xf32>
    %241 = vector.broadcast %16 : vector<1x1x128xf32> to vector<8x8x128xf32>
    %242 = arith.mulf %240, %241 : vector<8x8x128xf32>
    %243 = arith.addf %239, %242 : vector<8x8x128xf32>
    %244 = vector.extract_strided_slice %235 {offsets = [0, 2, 0], sizes = [8, 8, 128], strides = [1, 1, 1]} : vector<8x16x128xf32> to vector<8x8x128xf32>
    %245 = vector.broadcast %18 : vector<1x1x128xf32> to vector<8x8x128xf32>
    %246 = arith.mulf %244, %245 : vector<8x8x128xf32>
    %247 = arith.addf %243, %246 : vector<8x8x128xf32>
    %c3_130 = arith.constant 3 : index
    %c1_131 = arith.constant 1 : index
    %c0_132 = arith.constant 0 : index
    %c0_133 = arith.constant 0 : index
    %248 = vector.load %arg11[%c3_130, %c1_131, %c0_132, %c0_133] : memref<8x10x16x128xf32, #tpu.memory_space<vmem>>, vector<1x8x16x128xf32>
    %249 = vector.shape_cast %248 : vector<1x8x16x128xf32> to vector<8x16x128xf32>
    %250 = vector.extract_strided_slice %249 {offsets = [0, 0, 0], sizes = [8, 8, 128], strides = [1, 1, 1]} : vector<8x16x128xf32> to vector<8x8x128xf32>
    %251 = vector.broadcast %20 : vector<1x1x128xf32> to vector<8x8x128xf32>
    %252 = arith.mulf %250, %251 : vector<8x8x128xf32>
    %253 = arith.addf %247, %252 : vector<8x8x128xf32>
    %254 = vector.extract_strided_slice %249 {offsets = [0, 1, 0], sizes = [8, 8, 128], strides = [1, 1, 1]} : vector<8x16x128xf32> to vector<8x8x128xf32>
    %255 = vector.broadcast %22 : vector<1x1x128xf32> to vector<8x8x128xf32>
    %256 = arith.mulf %254, %255 : vector<8x8x128xf32>
    %257 = arith.addf %253, %256 : vector<8x8x128xf32>
    %258 = vector.extract_strided_slice %249 {offsets = [0, 2, 0], sizes = [8, 8, 128], strides = [1, 1, 1]} : vector<8x16x128xf32> to vector<8x8x128xf32>
    %259 = vector.broadcast %24 : vector<1x1x128xf32> to vector<8x8x128xf32>
    %260 = arith.mulf %258, %259 : vector<8x8x128xf32>
    %261 = arith.addf %257, %260 : vector<8x8x128xf32>
    %c3_134 = arith.constant 3 : index
    %c2_135 = arith.constant 2 : index
    %c0_136 = arith.constant 0 : index
    %c0_137 = arith.constant 0 : index
    %262 = vector.load %arg11[%c3_134, %c2_135, %c0_136, %c0_137] : memref<8x10x16x128xf32, #tpu.memory_space<vmem>>, vector<1x8x16x128xf32>
    %263 = vector.shape_cast %262 : vector<1x8x16x128xf32> to vector<8x16x128xf32>
    %264 = vector.extract_strided_slice %263 {offsets = [0, 0, 0], sizes = [8, 8, 128], strides = [1, 1, 1]} : vector<8x16x128xf32> to vector<8x8x128xf32>
    %265 = vector.broadcast %26 : vector<1x1x128xf32> to vector<8x8x128xf32>
    %266 = arith.mulf %264, %265 : vector<8x8x128xf32>
    %267 = arith.addf %261, %266 : vector<8x8x128xf32>
    %268 = vector.extract_strided_slice %263 {offsets = [0, 1, 0], sizes = [8, 8, 128], strides = [1, 1, 1]} : vector<8x16x128xf32> to vector<8x8x128xf32>
    %269 = vector.broadcast %28 : vector<1x1x128xf32> to vector<8x8x128xf32>
    %270 = arith.mulf %268, %269 : vector<8x8x128xf32>
    %271 = arith.addf %267, %270 : vector<8x8x128xf32>
    %272 = vector.extract_strided_slice %263 {offsets = [0, 2, 0], sizes = [8, 8, 128], strides = [1, 1, 1]} : vector<8x16x128xf32> to vector<8x8x128xf32>
    %273 = vector.broadcast %30 : vector<1x1x128xf32> to vector<8x8x128xf32>
    %274 = arith.mulf %272, %273 : vector<8x8x128xf32>
    %275 = arith.addf %271, %274 : vector<8x8x128xf32>
    %276 = vector.shape_cast %275 : vector<8x8x128xf32> to vector<64x128xf32>
    %277 = vector.extract_strided_slice %11 {offsets = [256, 0], sizes = [64, 128], strides = [1, 1]} : vector<512x128xf32> to vector<64x128xf32>
    %278 = vector.shape_cast %277 : vector<64x128xf32> to vector<8x8x128xf32>
    %c4 = arith.constant 4 : index
    %c0_138 = arith.constant 0 : index
    %c0_139 = arith.constant 0 : index
    %c0_140 = arith.constant 0 : index
    %279 = vector.load %arg11[%c4, %c0_138, %c0_139, %c0_140] : memref<8x10x16x128xf32, #tpu.memory_space<vmem>>, vector<1x1x16x128xf32>
    %280 = vector.shape_cast %279 : vector<1x1x16x128xf32> to vector<16x128xf32>
    %281 = vector.shape_cast %31 : vector<16x128xf32> to vector<1x1x16x128xf32>
    tpu.vector_store %arg11[%c4, %c0_138, %c0_139, %c0_140], %281 {strides = array<i32>} : memref<8x10x16x128xf32, #tpu.memory_space<vmem>>, vector<1x1x16x128xf32>,
    %c4_141 = arith.constant 4 : index
    %c9_142 = arith.constant 9 : index
    %c0_143 = arith.constant 0 : index
    %c0_144 = arith.constant 0 : index
    %282 = vector.load %arg11[%c4_141, %c9_142, %c0_143, %c0_144] : memref<8x10x16x128xf32, #tpu.memory_space<vmem>>, vector<1x1x16x128xf32>
    %283 = vector.shape_cast %282 : vector<1x1x16x128xf32> to vector<16x128xf32>
    %284 = vector.shape_cast %31 : vector<16x128xf32> to vector<1x1x16x128xf32>
    tpu.vector_store %arg11[%c4_141, %c9_142, %c0_143, %c0_144], %284 {strides = array<i32>} : memref<8x10x16x128xf32, #tpu.memory_space<vmem>>, vector<1x1x16x128xf32>,
    %c4_145 = arith.constant 4 : index
    %c1_146 = arith.constant 1 : index
    %c0_147 = arith.constant 0 : index
    %c0_148 = arith.constant 0 : index
    %285 = vector.load %arg11[%c4_145, %c1_146, %c0_147, %c0_148] : memref<8x10x16x128xf32, #tpu.memory_space<vmem>>, vector<1x8x1x128xf32>
    %286 = vector.shape_cast %285 : vector<1x8x1x128xf32> to vector<8x1x128xf32>
    %287 = vector.shape_cast %32 : vector<8x1x128xf32> to vector<1x8x1x128xf32>
    tpu.vector_store %arg11[%c4_145, %c1_146, %c0_147, %c0_148], %287 {strides = array<i32>} : memref<8x10x16x128xf32, #tpu.memory_space<vmem>>, vector<1x8x1x128xf32>,
    %c4_149 = arith.constant 4 : index
    %c1_150 = arith.constant 1 : index
    %c9_151 = arith.constant 9 : index
    %c0_152 = arith.constant 0 : index
    %288 = vector.load %arg11[%c4_149, %c1_150, %c9_151, %c0_152] : memref<8x10x16x128xf32, #tpu.memory_space<vmem>>, vector<1x8x1x128xf32>
    %289 = vector.shape_cast %288 : vector<1x8x1x128xf32> to vector<8x1x128xf32>
    %290 = vector.shape_cast %32 : vector<8x1x128xf32> to vector<1x8x1x128xf32>
    tpu.vector_store %arg11[%c4_149, %c1_150, %c9_151, %c0_152], %290 {strides = array<i32>} : memref<8x10x16x128xf32, #tpu.memory_space<vmem>>, vector<1x8x1x128xf32>,
    %c4_153 = arith.constant 4 : index
    %c1_154 = arith.constant 1 : index
    %c1_155 = arith.constant 1 : index
    %c0_156 = arith.constant 0 : index
    %291 = vector.load %arg11[%c4_153, %c1_154, %c1_155, %c0_156] : memref<8x10x16x128xf32, #tpu.memory_space<vmem>>, vector<1x8x8x128xf32>
    %292 = vector.shape_cast %291 : vector<1x8x8x128xf32> to vector<8x8x128xf32>
    %293 = vector.shape_cast %278 : vector<8x8x128xf32> to vector<1x8x8x128xf32>
    tpu.vector_store %arg11[%c4_153, %c1_154, %c1_155, %c0_156], %293 {strides = array<i32>} : memref<8x10x16x128xf32, #tpu.memory_space<vmem>>, vector<1x8x8x128xf32>,
    %cst_157 = arith.constant 0.000000e+00 : f32
    %294 = vector.broadcast %cst_157 : f32 to vector<8x8x128xf32>
    %c4_158 = arith.constant 4 : index
    %c0_159 = arith.constant 0 : index
    %c0_160 = arith.constant 0 : index
    %c0_161 = arith.constant 0 : index
    %295 = vector.load %arg11[%c4_158, %c0_159, %c0_160, %c0_161] : memref<8x10x16x128xf32, #tpu.memory_space<vmem>>, vector<1x8x16x128xf32>
    %296 = vector.shape_cast %295 : vector<1x8x16x128xf32> to vector<8x16x128xf32>
    %297 = vector.extract_strided_slice %296 {offsets = [0, 0, 0], sizes = [8, 8, 128], strides = [1, 1, 1]} : vector<8x16x128xf32> to vector<8x8x128xf32>
    %298 = vector.broadcast %14 : vector<1x1x128xf32> to vector<8x8x128xf32>
    %299 = arith.mulf %297, %298 : vector<8x8x128xf32>
    %300 = arith.addf %294, %299 : vector<8x8x128xf32>
    %301 = vector.extract_strided_slice %296 {offsets = [0, 1, 0], sizes = [8, 8, 128], strides = [1, 1, 1]} : vector<8x16x128xf32> to vector<8x8x128xf32>
    %302 = vector.broadcast %16 : vector<1x1x128xf32> to vector<8x8x128xf32>
    %303 = arith.mulf %301, %302 : vector<8x8x128xf32>
    %304 = arith.addf %300, %303 : vector<8x8x128xf32>
    %305 = vector.extract_strided_slice %296 {offsets = [0, 2, 0], sizes = [8, 8, 128], strides = [1, 1, 1]} : vector<8x16x128xf32> to vector<8x8x128xf32>
    %306 = vector.broadcast %18 : vector<1x1x128xf32> to vector<8x8x128xf32>
    %307 = arith.mulf %305, %306 : vector<8x8x128xf32>
    %308 = arith.addf %304, %307 : vector<8x8x128xf32>
    %c4_162 = arith.constant 4 : index
    %c1_163 = arith.constant 1 : index
    %c0_164 = arith.constant 0 : index
    %c0_165 = arith.constant 0 : index
    %309 = vector.load %arg11[%c4_162, %c1_163, %c0_164, %c0_165] : memref<8x10x16x128xf32, #tpu.memory_space<vmem>>, vector<1x8x16x128xf32>
    %310 = vector.shape_cast %309 : vector<1x8x16x128xf32> to vector<8x16x128xf32>
    %311 = vector.extract_strided_slice %310 {offsets = [0, 0, 0], sizes = [8, 8, 128], strides = [1, 1, 1]} : vector<8x16x128xf32> to vector<8x8x128xf32>
    %312 = vector.broadcast %20 : vector<1x1x128xf32> to vector<8x8x128xf32>
    %313 = arith.mulf %311, %312 : vector<8x8x128xf32>
    %314 = arith.addf %308, %313 : vector<8x8x128xf32>
    %315 = vector.extract_strided_slice %310 {offsets = [0, 1, 0], sizes = [8, 8, 128], strides = [1, 1, 1]} : vector<8x16x128xf32> to vector<8x8x128xf32>
    %316 = vector.broadcast %22 : vector<1x1x128xf32> to vector<8x8x128xf32>
    %317 = arith.mulf %315, %316 : vector<8x8x128xf32>
    %318 = arith.addf %314, %317 : vector<8x8x128xf32>
    %319 = vector.extract_strided_slice %310 {offsets = [0, 2, 0], sizes = [8, 8, 128], strides = [1, 1, 1]} : vector<8x16x128xf32> to vector<8x8x128xf32>
    %320 = vector.broadcast %24 : vector<1x1x128xf32> to vector<8x8x128xf32>
    %321 = arith.mulf %319, %320 : vector<8x8x128xf32>
    %322 = arith.addf %318, %321 : vector<8x8x128xf32>
    %c4_166 = arith.constant 4 : index
    %c2_167 = arith.constant 2 : index
    %c0_168 = arith.constant 0 : index
    %c0_169 = arith.constant 0 : index
    %323 = vector.load %arg11[%c4_166, %c2_167, %c0_168, %c0_169] : memref<8x10x16x128xf32, #tpu.memory_space<vmem>>, vector<1x8x16x128xf32>
    %324 = vector.shape_cast %323 : vector<1x8x16x128xf32> to vector<8x16x128xf32>
    %325 = vector.extract_strided_slice %324 {offsets = [0, 0, 0], sizes = [8, 8, 128], strides = [1, 1, 1]} : vector<8x16x128xf32> to vector<8x8x128xf32>
    %326 = vector.broadcast %26 : vector<1x1x128xf32> to vector<8x8x128xf32>
    %327 = arith.mulf %325, %326 : vector<8x8x128xf32>
    %328 = arith.addf %322, %327 : vector<8x8x128xf32>
    %329 = vector.extract_strided_slice %324 {offsets = [0, 1, 0], sizes = [8, 8, 128], strides = [1, 1, 1]} : vector<8x16x128xf32> to vector<8x8x128xf32>
    %330 = vector.broadcast %28 : vector<1x1x128xf32> to vector<8x8x128xf32>
    %331 = arith.mulf %329, %330 : vector<8x8x128xf32>
    %332 = arith.addf %328, %331 : vector<8x8x128xf32>
    %333 = vector.extract_strided_slice %324 {offsets = [0, 2, 0], sizes = [8, 8, 128], strides = [1, 1, 1]} : vector<8x16x128xf32> to vector<8x8x128xf32>
    %334 = vector.broadcast %30 : vector<1x1x128xf32> to vector<8x8x128xf32>
    %335 = arith.mulf %333, %334 : vector<8x8x128xf32>
    %336 = arith.addf %332, %335 : vector<8x8x128xf32>
    %337 = vector.shape_cast %336 : vector<8x8x128xf32> to vector<64x128xf32>
    %338 = vector.extract_strided_slice %11 {offsets = [320, 0], sizes = [64, 128], strides = [1, 1]} : vector<512x128xf32> to vector<64x128xf32>
    %339 = vector.shape_cast %338 : vector<64x128xf32> to vector<8x8x128xf32>
    %c5 = arith.constant 5 : index
    %c0_170 = arith.constant 0 : index
    %c0_171 = arith.constant 0 : index
    %c0_172 = arith.constant 0 : index
    %340 = vector.load %arg11[%c5, %c0_170, %c0_171, %c0_172] : memref<8x10x16x128xf32, #tpu.memory_space<vmem>>, vector<1x1x16x128xf32>
    %341 = vector.shape_cast %340 : vector<1x1x16x128xf32> to vector<16x128xf32>
    %342 = vector.shape_cast %31 : vector<16x128xf32> to vector<1x1x16x128xf32>
    tpu.vector_store %arg11[%c5, %c0_170, %c0_171, %c0_172], %342 {strides = array<i32>} : memref<8x10x16x128xf32, #tpu.memory_space<vmem>>, vector<1x1x16x128xf32>,
    %c5_173 = arith.constant 5 : index
    %c9_174 = arith.constant 9 : index
    %c0_175 = arith.constant 0 : index
    %c0_176 = arith.constant 0 : index
    %343 = vector.load %arg11[%c5_173, %c9_174, %c0_175, %c0_176] : memref<8x10x16x128xf32, #tpu.memory_space<vmem>>, vector<1x1x16x128xf32>
    %344 = vector.shape_cast %343 : vector<1x1x16x128xf32> to vector<16x128xf32>
    %345 = vector.shape_cast %31 : vector<16x128xf32> to vector<1x1x16x128xf32>
    tpu.vector_store %arg11[%c5_173, %c9_174, %c0_175, %c0_176], %345 {strides = array<i32>} : memref<8x10x16x128xf32, #tpu.memory_space<vmem>>, vector<1x1x16x128xf32>,
    %c5_177 = arith.constant 5 : index
    %c1_178 = arith.constant 1 : index
    %c0_179 = arith.constant 0 : index
    %c0_180 = arith.constant 0 : index
    %346 = vector.load %arg11[%c5_177, %c1_178, %c0_179, %c0_180] : memref<8x10x16x128xf32, #tpu.memory_space<vmem>>, vector<1x8x1x128xf32>
    %347 = vector.shape_cast %346 : vector<1x8x1x128xf32> to vector<8x1x128xf32>
    %348 = vector.shape_cast %32 : vector<8x1x128xf32> to vector<1x8x1x128xf32>
    tpu.vector_store %arg11[%c5_177, %c1_178, %c0_179, %c0_180], %348 {strides = array<i32>} : memref<8x10x16x128xf32, #tpu.memory_space<vmem>>, vector<1x8x1x128xf32>,
    %c5_181 = arith.constant 5 : index
    %c1_182 = arith.constant 1 : index
    %c9_183 = arith.constant 9 : index
    %c0_184 = arith.constant 0 : index
    %349 = vector.load %arg11[%c5_181, %c1_182, %c9_183, %c0_184] : memref<8x10x16x128xf32, #tpu.memory_space<vmem>>, vector<1x8x1x128xf32>
    %350 = vector.shape_cast %349 : vector<1x8x1x128xf32> to vector<8x1x128xf32>
    %351 = vector.shape_cast %32 : vector<8x1x128xf32> to vector<1x8x1x128xf32>
    tpu.vector_store %arg11[%c5_181, %c1_182, %c9_183, %c0_184], %351 {strides = array<i32>} : memref<8x10x16x128xf32, #tpu.memory_space<vmem>>, vector<1x8x1x128xf32>,
    %c5_185 = arith.constant 5 : index
    %c1_186 = arith.constant 1 : index
    %c1_187 = arith.constant 1 : index
    %c0_188 = arith.constant 0 : index
    %352 = vector.load %arg11[%c5_185, %c1_186, %c1_187, %c0_188] : memref<8x10x16x128xf32, #tpu.memory_space<vmem>>, vector<1x8x8x128xf32>
    %353 = vector.shape_cast %352 : vector<1x8x8x128xf32> to vector<8x8x128xf32>
    %354 = vector.shape_cast %339 : vector<8x8x128xf32> to vector<1x8x8x128xf32>
    tpu.vector_store %arg11[%c5_185, %c1_186, %c1_187, %c0_188], %354 {strides = array<i32>} : memref<8x10x16x128xf32, #tpu.memory_space<vmem>>, vector<1x8x8x128xf32>,
    %cst_189 = arith.constant 0.000000e+00 : f32
    %355 = vector.broadcast %cst_189 : f32 to vector<8x8x128xf32>
    %c5_190 = arith.constant 5 : index
    %c0_191 = arith.constant 0 : index
    %c0_192 = arith.constant 0 : index
    %c0_193 = arith.constant 0 : index
    %356 = vector.load %arg11[%c5_190, %c0_191, %c0_192, %c0_193] : memref<8x10x16x128xf32, #tpu.memory_space<vmem>>, vector<1x8x16x128xf32>
    %357 = vector.shape_cast %356 : vector<1x8x16x128xf32> to vector<8x16x128xf32>
    %358 = vector.extract_strided_slice %357 {offsets = [0, 0, 0], sizes = [8, 8, 128], strides = [1, 1, 1]} : vector<8x16x128xf32> to vector<8x8x128xf32>
    %359 = vector.broadcast %14 : vector<1x1x128xf32> to vector<8x8x128xf32>
    %360 = arith.mulf %358, %359 : vector<8x8x128xf32>
    %361 = arith.addf %355, %360 : vector<8x8x128xf32>
    %362 = vector.extract_strided_slice %357 {offsets = [0, 1, 0], sizes = [8, 8, 128], strides = [1, 1, 1]} : vector<8x16x128xf32> to vector<8x8x128xf32>
    %363 = vector.broadcast %16 : vector<1x1x128xf32> to vector<8x8x128xf32>
    %364 = arith.mulf %362, %363 : vector<8x8x128xf32>
    %365 = arith.addf %361, %364 : vector<8x8x128xf32>
    %366 = vector.extract_strided_slice %357 {offsets = [0, 2, 0], sizes = [8, 8, 128], strides = [1, 1, 1]} : vector<8x16x128xf32> to vector<8x8x128xf32>
    %367 = vector.broadcast %18 : vector<1x1x128xf32> to vector<8x8x128xf32>
    %368 = arith.mulf %366, %367 : vector<8x8x128xf32>
    %369 = arith.addf %365, %368 : vector<8x8x128xf32>
    %c5_194 = arith.constant 5 : index
    %c1_195 = arith.constant 1 : index
    %c0_196 = arith.constant 0 : index
    %c0_197 = arith.constant 0 : index
    %370 = vector.load %arg11[%c5_194, %c1_195, %c0_196, %c0_197] : memref<8x10x16x128xf32, #tpu.memory_space<vmem>>, vector<1x8x16x128xf32>
    %371 = vector.shape_cast %370 : vector<1x8x16x128xf32> to vector<8x16x128xf32>
    %372 = vector.extract_strided_slice %371 {offsets = [0, 0, 0], sizes = [8, 8, 128], strides = [1, 1, 1]} : vector<8x16x128xf32> to vector<8x8x128xf32>
    %373 = vector.broadcast %20 : vector<1x1x128xf32> to vector<8x8x128xf32>
    %374 = arith.mulf %372, %373 : vector<8x8x128xf32>
    %375 = arith.addf %369, %374 : vector<8x8x128xf32>
    %376 = vector.extract_strided_slice %371 {offsets = [0, 1, 0], sizes = [8, 8, 128], strides = [1, 1, 1]} : vector<8x16x128xf32> to vector<8x8x128xf32>
    %377 = vector.broadcast %22 : vector<1x1x128xf32> to vector<8x8x128xf32>
    %378 = arith.mulf %376, %377 : vector<8x8x128xf32>
    %379 = arith.addf %375, %378 : vector<8x8x128xf32>
    %380 = vector.extract_strided_slice %371 {offsets = [0, 2, 0], sizes = [8, 8, 128], strides = [1, 1, 1]} : vector<8x16x128xf32> to vector<8x8x128xf32>
    %381 = vector.broadcast %24 : vector<1x1x128xf32> to vector<8x8x128xf32>
    %382 = arith.mulf %380, %381 : vector<8x8x128xf32>
    %383 = arith.addf %379, %382 : vector<8x8x128xf32>
    %c5_198 = arith.constant 5 : index
    %c2_199 = arith.constant 2 : index
    %c0_200 = arith.constant 0 : index
    %c0_201 = arith.constant 0 : index
    %384 = vector.load %arg11[%c5_198, %c2_199, %c0_200, %c0_201] : memref<8x10x16x128xf32, #tpu.memory_space<vmem>>, vector<1x8x16x128xf32>
    %385 = vector.shape_cast %384 : vector<1x8x16x128xf32> to vector<8x16x128xf32>
    %386 = vector.extract_strided_slice %385 {offsets = [0, 0, 0], sizes = [8, 8, 128], strides = [1, 1, 1]} : vector<8x16x128xf32> to vector<8x8x128xf32>
    %387 = vector.broadcast %26 : vector<1x1x128xf32> to vector<8x8x128xf32>
    %388 = arith.mulf %386, %387 : vector<8x8x128xf32>
    %389 = arith.addf %383, %388 : vector<8x8x128xf32>
    %390 = vector.extract_strided_slice %385 {offsets = [0, 1, 0], sizes = [8, 8, 128], strides = [1, 1, 1]} : vector<8x16x128xf32> to vector<8x8x128xf32>
    %391 = vector.broadcast %28 : vector<1x1x128xf32> to vector<8x8x128xf32>
    %392 = arith.mulf %390, %391 : vector<8x8x128xf32>
    %393 = arith.addf %389, %392 : vector<8x8x128xf32>
    %394 = vector.extract_strided_slice %385 {offsets = [0, 2, 0], sizes = [8, 8, 128], strides = [1, 1, 1]} : vector<8x16x128xf32> to vector<8x8x128xf32>
    %395 = vector.broadcast %30 : vector<1x1x128xf32> to vector<8x8x128xf32>
    %396 = arith.mulf %394, %395 : vector<8x8x128xf32>
    %397 = arith.addf %393, %396 : vector<8x8x128xf32>
    %398 = vector.shape_cast %397 : vector<8x8x128xf32> to vector<64x128xf32>
    %399 = vector.extract_strided_slice %11 {offsets = [384, 0], sizes = [64, 128], strides = [1, 1]} : vector<512x128xf32> to vector<64x128xf32>
    %400 = vector.shape_cast %399 : vector<64x128xf32> to vector<8x8x128xf32>
    %c6 = arith.constant 6 : index
    %c0_202 = arith.constant 0 : index
    %c0_203 = arith.constant 0 : index
    %c0_204 = arith.constant 0 : index
    %401 = vector.load %arg11[%c6, %c0_202, %c0_203, %c0_204] : memref<8x10x16x128xf32, #tpu.memory_space<vmem>>, vector<1x1x16x128xf32>
    %402 = vector.shape_cast %401 : vector<1x1x16x128xf32> to vector<16x128xf32>
    %403 = vector.shape_cast %31 : vector<16x128xf32> to vector<1x1x16x128xf32>
    tpu.vector_store %arg11[%c6, %c0_202, %c0_203, %c0_204], %403 {strides = array<i32>} : memref<8x10x16x128xf32, #tpu.memory_space<vmem>>, vector<1x1x16x128xf32>,
    %c6_205 = arith.constant 6 : index
    %c9_206 = arith.constant 9 : index
    %c0_207 = arith.constant 0 : index
    %c0_208 = arith.constant 0 : index
    %404 = vector.load %arg11[%c6_205, %c9_206, %c0_207, %c0_208] : memref<8x10x16x128xf32, #tpu.memory_space<vmem>>, vector<1x1x16x128xf32>
    %405 = vector.shape_cast %404 : vector<1x1x16x128xf32> to vector<16x128xf32>
    %406 = vector.shape_cast %31 : vector<16x128xf32> to vector<1x1x16x128xf32>
    tpu.vector_store %arg11[%c6_205, %c9_206, %c0_207, %c0_208], %406 {strides = array<i32>} : memref<8x10x16x128xf32, #tpu.memory_space<vmem>>, vector<1x1x16x128xf32>,
    %c6_209 = arith.constant 6 : index
    %c1_210 = arith.constant 1 : index
    %c0_211 = arith.constant 0 : index
    %c0_212 = arith.constant 0 : index
    %407 = vector.load %arg11[%c6_209, %c1_210, %c0_211, %c0_212] : memref<8x10x16x128xf32, #tpu.memory_space<vmem>>, vector<1x8x1x128xf32>
    %408 = vector.shape_cast %407 : vector<1x8x1x128xf32> to vector<8x1x128xf32>
    %409 = vector.shape_cast %32 : vector<8x1x128xf32> to vector<1x8x1x128xf32>
    tpu.vector_store %arg11[%c6_209, %c1_210, %c0_211, %c0_212], %409 {strides = array<i32>} : memref<8x10x16x128xf32, #tpu.memory_space<vmem>>, vector<1x8x1x128xf32>,
    %c6_213 = arith.constant 6 : index
    %c1_214 = arith.constant 1 : index
    %c9_215 = arith.constant 9 : index
    %c0_216 = arith.constant 0 : index
    %410 = vector.load %arg11[%c6_213, %c1_214, %c9_215, %c0_216] : memref<8x10x16x128xf32, #tpu.memory_space<vmem>>, vector<1x8x1x128xf32>
    %411 = vector.shape_cast %410 : vector<1x8x1x128xf32> to vector<8x1x128xf32>
    %412 = vector.shape_cast %32 : vector<8x1x128xf32> to vector<1x8x1x128xf32>
    tpu.vector_store %arg11[%c6_213, %c1_214, %c9_215, %c0_216], %412 {strides = array<i32>} : memref<8x10x16x128xf32, #tpu.memory_space<vmem>>, vector<1x8x1x128xf32>,
    %c6_217 = arith.constant 6 : index
    %c1_218 = arith.constant 1 : index
    %c1_219 = arith.constant 1 : index
    %c0_220 = arith.constant 0 : index
    %413 = vector.load %arg11[%c6_217, %c1_218, %c1_219, %c0_220] : memref<8x10x16x128xf32, #tpu.memory_space<vmem>>, vector<1x8x8x128xf32>
    %414 = vector.shape_cast %413 : vector<1x8x8x128xf32> to vector<8x8x128xf32>
    %415 = vector.shape_cast %400 : vector<8x8x128xf32> to vector<1x8x8x128xf32>
    tpu.vector_store %arg11[%c6_217, %c1_218, %c1_219, %c0_220], %415 {strides = array<i32>} : memref<8x10x16x128xf32, #tpu.memory_space<vmem>>, vector<1x8x8x128xf32>,
    %cst_221 = arith.constant 0.000000e+00 : f32
    %416 = vector.broadcast %cst_221 : f32 to vector<8x8x128xf32>
    %c6_222 = arith.constant 6 : index
    %c0_223 = arith.constant 0 : index
    %c0_224 = arith.constant 0 : index
    %c0_225 = arith.constant 0 : index
    %417 = vector.load %arg11[%c6_222, %c0_223, %c0_224, %c0_225] : memref<8x10x16x128xf32, #tpu.memory_space<vmem>>, vector<1x8x16x128xf32>
    %418 = vector.shape_cast %417 : vector<1x8x16x128xf32> to vector<8x16x128xf32>
    %419 = vector.extract_strided_slice %418 {offsets = [0, 0, 0], sizes = [8, 8, 128], strides = [1, 1, 1]} : vector<8x16x128xf32> to vector<8x8x128xf32>
    %420 = vector.broadcast %14 : vector<1x1x128xf32> to vector<8x8x128xf32>
    %421 = arith.mulf %419, %420 : vector<8x8x128xf32>
    %422 = arith.addf %416, %421 : vector<8x8x128xf32>
    %423 = vector.extract_strided_slice %418 {offsets = [0, 1, 0], sizes = [8, 8, 128], strides = [1, 1, 1]} : vector<8x16x128xf32> to vector<8x8x128xf32>
    %424 = vector.broadcast %16 : vector<1x1x128xf32> to vector<8x8x128xf32>
    %425 = arith.mulf %423, %424 : vector<8x8x128xf32>
    %426 = arith.addf %422, %425 : vector<8x8x128xf32>
    %427 = vector.extract_strided_slice %418 {offsets = [0, 2, 0], sizes = [8, 8, 128], strides = [1, 1, 1]} : vector<8x16x128xf32> to vector<8x8x128xf32>
    %428 = vector.broadcast %18 : vector<1x1x128xf32> to vector<8x8x128xf32>
    %429 = arith.mulf %427, %428 : vector<8x8x128xf32>
    %430 = arith.addf %426, %429 : vector<8x8x128xf32>
    %c6_226 = arith.constant 6 : index
    %c1_227 = arith.constant 1 : index
    %c0_228 = arith.constant 0 : index
    %c0_229 = arith.constant 0 : index
    %431 = vector.load %arg11[%c6_226, %c1_227, %c0_228, %c0_229] : memref<8x10x16x128xf32, #tpu.memory_space<vmem>>, vector<1x8x16x128xf32>
    %432 = vector.shape_cast %431 : vector<1x8x16x128xf32> to vector<8x16x128xf32>
    %433 = vector.extract_strided_slice %432 {offsets = [0, 0, 0], sizes = [8, 8, 128], strides = [1, 1, 1]} : vector<8x16x128xf32> to vector<8x8x128xf32>
    %434 = vector.broadcast %20 : vector<1x1x128xf32> to vector<8x8x128xf32>
    %435 = arith.mulf %433, %434 : vector<8x8x128xf32>
    %436 = arith.addf %430, %435 : vector<8x8x128xf32>
    %437 = vector.extract_strided_slice %432 {offsets = [0, 1, 0], sizes = [8, 8, 128], strides = [1, 1, 1]} : vector<8x16x128xf32> to vector<8x8x128xf32>
    %438 = vector.broadcast %22 : vector<1x1x128xf32> to vector<8x8x128xf32>
    %439 = arith.mulf %437, %438 : vector<8x8x128xf32>
    %440 = arith.addf %436, %439 : vector<8x8x128xf32>
    %441 = vector.extract_strided_slice %432 {offsets = [0, 2, 0], sizes = [8, 8, 128], strides = [1, 1, 1]} : vector<8x16x128xf32> to vector<8x8x128xf32>
    %442 = vector.broadcast %24 : vector<1x1x128xf32> to vector<8x8x128xf32>
    %443 = arith.mulf %441, %442 : vector<8x8x128xf32>
    %444 = arith.addf %440, %443 : vector<8x8x128xf32>
    %c6_230 = arith.constant 6 : index
    %c2_231 = arith.constant 2 : index
    %c0_232 = arith.constant 0 : index
    %c0_233 = arith.constant 0 : index
    %445 = vector.load %arg11[%c6_230, %c2_231, %c0_232, %c0_233] : memref<8x10x16x128xf32, #tpu.memory_space<vmem>>, vector<1x8x16x128xf32>
    %446 = vector.shape_cast %445 : vector<1x8x16x128xf32> to vector<8x16x128xf32>
    %447 = vector.extract_strided_slice %446 {offsets = [0, 0, 0], sizes = [8, 8, 128], strides = [1, 1, 1]} : vector<8x16x128xf32> to vector<8x8x128xf32>
    %448 = vector.broadcast %26 : vector<1x1x128xf32> to vector<8x8x128xf32>
    %449 = arith.mulf %447, %448 : vector<8x8x128xf32>
    %450 = arith.addf %444, %449 : vector<8x8x128xf32>
    %451 = vector.extract_strided_slice %446 {offsets = [0, 1, 0], sizes = [8, 8, 128], strides = [1, 1, 1]} : vector<8x16x128xf32> to vector<8x8x128xf32>
    %452 = vector.broadcast %28 : vector<1x1x128xf32> to vector<8x8x128xf32>
    %453 = arith.mulf %451, %452 : vector<8x8x128xf32>
    %454 = arith.addf %450, %453 : vector<8x8x128xf32>
    %455 = vector.extract_strided_slice %446 {offsets = [0, 2, 0], sizes = [8, 8, 128], strides = [1, 1, 1]} : vector<8x16x128xf32> to vector<8x8x128xf32>
    %456 = vector.broadcast %30 : vector<1x1x128xf32> to vector<8x8x128xf32>
    %457 = arith.mulf %455, %456 : vector<8x8x128xf32>
    %458 = arith.addf %454, %457 : vector<8x8x128xf32>
    %459 = vector.shape_cast %458 : vector<8x8x128xf32> to vector<64x128xf32>
    %460 = vector.extract_strided_slice %11 {offsets = [448, 0], sizes = [64, 128], strides = [1, 1]} : vector<512x128xf32> to vector<64x128xf32>
    %461 = vector.shape_cast %460 : vector<64x128xf32> to vector<8x8x128xf32>
    %c7 = arith.constant 7 : index
    %c0_234 = arith.constant 0 : index
    %c0_235 = arith.constant 0 : index
    %c0_236 = arith.constant 0 : index
    %462 = vector.load %arg11[%c7, %c0_234, %c0_235, %c0_236] : memref<8x10x16x128xf32, #tpu.memory_space<vmem>>, vector<1x1x16x128xf32>
    %463 = vector.shape_cast %462 : vector<1x1x16x128xf32> to vector<16x128xf32>
    %464 = vector.shape_cast %31 : vector<16x128xf32> to vector<1x1x16x128xf32>
    tpu.vector_store %arg11[%c7, %c0_234, %c0_235, %c0_236], %464 {strides = array<i32>} : memref<8x10x16x128xf32, #tpu.memory_space<vmem>>, vector<1x1x16x128xf32>,
    %c7_237 = arith.constant 7 : index
    %c9_238 = arith.constant 9 : index
    %c0_239 = arith.constant 0 : index
    %c0_240 = arith.constant 0 : index
    %465 = vector.load %arg11[%c7_237, %c9_238, %c0_239, %c0_240] : memref<8x10x16x128xf32, #tpu.memory_space<vmem>>, vector<1x1x16x128xf32>
    %466 = vector.shape_cast %465 : vector<1x1x16x128xf32> to vector<16x128xf32>
    %467 = vector.shape_cast %31 : vector<16x128xf32> to vector<1x1x16x128xf32>
    tpu.vector_store %arg11[%c7_237, %c9_238, %c0_239, %c0_240], %467 {strides = array<i32>} : memref<8x10x16x128xf32, #tpu.memory_space<vmem>>, vector<1x1x16x128xf32>,
    %c7_241 = arith.constant 7 : index
    %c1_242 = arith.constant 1 : index
    %c0_243 = arith.constant 0 : index
    %c0_244 = arith.constant 0 : index
    %468 = vector.load %arg11[%c7_241, %c1_242, %c0_243, %c0_244] : memref<8x10x16x128xf32, #tpu.memory_space<vmem>>, vector<1x8x1x128xf32>
    %469 = vector.shape_cast %468 : vector<1x8x1x128xf32> to vector<8x1x128xf32>
    %470 = vector.shape_cast %32 : vector<8x1x128xf32> to vector<1x8x1x128xf32>
    tpu.vector_store %arg11[%c7_241, %c1_242, %c0_243, %c0_244], %470 {strides = array<i32>} : memref<8x10x16x128xf32, #tpu.memory_space<vmem>>, vector<1x8x1x128xf32>,
    %c7_245 = arith.constant 7 : index
    %c1_246 = arith.constant 1 : index
    %c9_247 = arith.constant 9 : index
    %c0_248 = arith.constant 0 : index
    %471 = vector.load %arg11[%c7_245, %c1_246, %c9_247, %c0_248] : memref<8x10x16x128xf32, #tpu.memory_space<vmem>>, vector<1x8x1x128xf32>
    %472 = vector.shape_cast %471 : vector<1x8x1x128xf32> to vector<8x1x128xf32>
    %473 = vector.shape_cast %32 : vector<8x1x128xf32> to vector<1x8x1x128xf32>
    tpu.vector_store %arg11[%c7_245, %c1_246, %c9_247, %c0_248], %473 {strides = array<i32>} : memref<8x10x16x128xf32, #tpu.memory_space<vmem>>, vector<1x8x1x128xf32>,
    %c7_249 = arith.constant 7 : index
    %c1_250 = arith.constant 1 : index
    %c1_251 = arith.constant 1 : index
    %c0_252 = arith.constant 0 : index
    %474 = vector.load %arg11[%c7_249, %c1_250, %c1_251, %c0_252] : memref<8x10x16x128xf32, #tpu.memory_space<vmem>>, vector<1x8x8x128xf32>
    %475 = vector.shape_cast %474 : vector<1x8x8x128xf32> to vector<8x8x128xf32>
    %476 = vector.shape_cast %461 : vector<8x8x128xf32> to vector<1x8x8x128xf32>
    tpu.vector_store %arg11[%c7_249, %c1_250, %c1_251, %c0_252], %476 {strides = array<i32>} : memref<8x10x16x128xf32, #tpu.memory_space<vmem>>, vector<1x8x8x128xf32>,
    %cst_253 = arith.constant 0.000000e+00 : f32
    %477 = vector.broadcast %cst_253 : f32 to vector<8x8x128xf32>
    %c7_254 = arith.constant 7 : index
    %c0_255 = arith.constant 0 : index
    %c0_256 = arith.constant 0 : index
    %c0_257 = arith.constant 0 : index
    %478 = vector.load %arg11[%c7_254, %c0_255, %c0_256, %c0_257] : memref<8x10x16x128xf32, #tpu.memory_space<vmem>>, vector<1x8x16x128xf32>
    %479 = vector.shape_cast %478 : vector<1x8x16x128xf32> to vector<8x16x128xf32>
    %480 = vector.extract_strided_slice %479 {offsets = [0, 0, 0], sizes = [8, 8, 128], strides = [1, 1, 1]} : vector<8x16x128xf32> to vector<8x8x128xf32>
    %481 = vector.broadcast %14 : vector<1x1x128xf32> to vector<8x8x128xf32>
    %482 = arith.mulf %480, %481 : vector<8x8x128xf32>
    %483 = arith.addf %477, %482 : vector<8x8x128xf32>
    %484 = vector.extract_strided_slice %479 {offsets = [0, 1, 0], sizes = [8, 8, 128], strides = [1, 1, 1]} : vector<8x16x128xf32> to vector<8x8x128xf32>
    %485 = vector.broadcast %16 : vector<1x1x128xf32> to vector<8x8x128xf32>
    %486 = arith.mulf %484, %485 : vector<8x8x128xf32>
    %487 = arith.addf %483, %486 : vector<8x8x128xf32>
    %488 = vector.extract_strided_slice %479 {offsets = [0, 2, 0], sizes = [8, 8, 128], strides = [1, 1, 1]} : vector<8x16x128xf32> to vector<8x8x128xf32>
    %489 = vector.broadcast %18 : vector<1x1x128xf32> to vector<8x8x128xf32>
    %490 = arith.mulf %488, %489 : vector<8x8x128xf32>
    %491 = arith.addf %487, %490 : vector<8x8x128xf32>
    %c7_258 = arith.constant 7 : index
    %c1_259 = arith.constant 1 : index
    %c0_260 = arith.constant 0 : index
    %c0_261 = arith.constant 0 : index
    %492 = vector.load %arg11[%c7_258, %c1_259, %c0_260, %c0_261] : memref<8x10x16x128xf32, #tpu.memory_space<vmem>>, vector<1x8x16x128xf32>
    %493 = vector.shape_cast %492 : vector<1x8x16x128xf32> to vector<8x16x128xf32>
    %494 = vector.extract_strided_slice %493 {offsets = [0, 0, 0], sizes = [8, 8, 128], strides = [1, 1, 1]} : vector<8x16x128xf32> to vector<8x8x128xf32>
    %495 = vector.broadcast %20 : vector<1x1x128xf32> to vector<8x8x128xf32>
    %496 = arith.mulf %494, %495 : vector<8x8x128xf32>
    %497 = arith.addf %491, %496 : vector<8x8x128xf32>
    %498 = vector.extract_strided_slice %493 {offsets = [0, 1, 0], sizes = [8, 8, 128], strides = [1, 1, 1]} : vector<8x16x128xf32> to vector<8x8x128xf32>
    %499 = vector.broadcast %22 : vector<1x1x128xf32> to vector<8x8x128xf32>
    %500 = arith.mulf %498, %499 : vector<8x8x128xf32>
    %501 = arith.addf %497, %500 : vector<8x8x128xf32>
    %502 = vector.extract_strided_slice %493 {offsets = [0, 2, 0], sizes = [8, 8, 128], strides = [1, 1, 1]} : vector<8x16x128xf32> to vector<8x8x128xf32>
    %503 = vector.broadcast %24 : vector<1x1x128xf32> to vector<8x8x128xf32>
    %504 = arith.mulf %502, %503 : vector<8x8x128xf32>
    %505 = arith.addf %501, %504 : vector<8x8x128xf32>
    %c7_262 = arith.constant 7 : index
    %c2_263 = arith.constant 2 : index
    %c0_264 = arith.constant 0 : index
    %c0_265 = arith.constant 0 : index
    %506 = vector.load %arg11[%c7_262, %c2_263, %c0_264, %c0_265] : memref<8x10x16x128xf32, #tpu.memory_space<vmem>>, vector<1x8x16x128xf32>
    %507 = vector.shape_cast %506 : vector<1x8x16x128xf32> to vector<8x16x128xf32>
    %508 = vector.extract_strided_slice %507 {offsets = [0, 0, 0], sizes = [8, 8, 128], strides = [1, 1, 1]} : vector<8x16x128xf32> to vector<8x8x128xf32>
    %509 = vector.broadcast %26 : vector<1x1x128xf32> to vector<8x8x128xf32>
    %510 = arith.mulf %508, %509 : vector<8x8x128xf32>
    %511 = arith.addf %505, %510 : vector<8x8x128xf32>
    %512 = vector.extract_strided_slice %507 {offsets = [0, 1, 0], sizes = [8, 8, 128], strides = [1, 1, 1]} : vector<8x16x128xf32> to vector<8x8x128xf32>
    %513 = vector.broadcast %28 : vector<1x1x128xf32> to vector<8x8x128xf32>
    %514 = arith.mulf %512, %513 : vector<8x8x128xf32>
    %515 = arith.addf %511, %514 : vector<8x8x128xf32>
    %516 = vector.extract_strided_slice %507 {offsets = [0, 2, 0], sizes = [8, 8, 128], strides = [1, 1, 1]} : vector<8x16x128xf32> to vector<8x8x128xf32>
    %517 = vector.broadcast %30 : vector<1x1x128xf32> to vector<8x8x128xf32>
    %518 = arith.mulf %516, %517 : vector<8x8x128xf32>
    %519 = arith.addf %515, %518 : vector<8x8x128xf32>
    %520 = vector.shape_cast %519 : vector<8x8x128xf32> to vector<64x128xf32>
    %521 = tpu.concatenate %93, %154, %215, %276, %337, %398, %459, %520 in 0 : vector<64x128xf32>, vector<64x128xf32>, vector<64x128xf32>, vector<64x128xf32>, vector<64x128xf32>, vector<64x128xf32>, vector<64x128xf32>, vector<64x128xf32> -> vector<512x128xf32>
    %c0_266 = arith.constant 0 : index
    %c0_267 = arith.constant 0 : index
    %522 = vector.load %arg5[%c0_266, %c0_267] : memref<1x128xf32, #tpu.memory_space<vmem>>, vector<1x128xf32>
    %523 = vector.broadcast %522 : vector<1x128xf32> to vector<512x128xf32>
    %524 = arith.addf %521, %523 : vector<512x128xf32>
    %525 = arith.negf %524 : vector<512x128xf32>
    %526 = math.exp %525 : vector<512x128xf32>
    %cst_268 = arith.constant 1.000000e+00 : f32
    %527 = vector.broadcast %cst_268 : f32 to vector<512x128xf32>
    %528 = arith.addf %527, %526 : vector<512x128xf32>
    %529 = arith.divf %527, %528 : vector<512x128xf32>
    %530 = arith.mulf %524, %529 : vector<512x128xf32>
    %531 = arith.truncf %530 : vector<512x128xf32> to vector<512x128xbf16>
    %c0_269 = arith.constant 0 : index
    %c0_270 = arith.constant 0 : index
    %532 = vector.load %arg6[%c0_269, %c0_270] : memref<128x128xbf16, #tpu.memory_space<vmem>>, vector<128x128xbf16>
    %cst_271 = arith.constant dense<0.000000e+00> : vector<512x128xf32>
    %533 = tpu.matmul %531, %532, %cst_271 {dimension_numbers = #tpu.dot_dimension_numbers<[1], [0], [0], [1], [0, 0, 1, 1], [], []>} : vector<512x128xbf16>, vector<128x128xbf16>, vector<512x128xf32> -> vector<512x128xf32>
    %c0_272 = arith.constant 0 : index
    %c0_273 = arith.constant 0 : index
    %534 = vector.load %arg7[%c0_272, %c0_273] : memref<1x128xf32, #tpu.memory_space<vmem>>, vector<1x128xf32>
    %535 = vector.broadcast %534 : vector<1x128xf32> to vector<512x128xf32>
    %536 = arith.addf %533, %535 : vector<512x128xf32>
    %537 = arith.negf %536 : vector<512x128xf32>
    %538 = math.exp %537 : vector<512x128xf32>
    %cst_274 = arith.constant 1.000000e+00 : f32
    %539 = vector.broadcast %cst_274 : f32 to vector<512x128xf32>
    %540 = arith.addf %539, %538 : vector<512x128xf32>
    %541 = arith.divf %539, %540 : vector<512x128xf32>
    %542 = arith.mulf %536, %541 : vector<512x128xf32>
    %543 = vector.shape_cast %542 : vector<512x128xf32> to vector<8x64x128xf32>
    %cst_275 = arith.constant dense<0.000000e+00> : vector<8x128xf32>
    %544 = vector.multi_reduction <add>, %543, %cst_275 [1] : vector<8x64x128xf32> to vector<8x128xf32>
    %cst_276 = arith.constant 1.562500e-02 : f32
    %545 = vector.broadcast %cst_276 : f32 to vector<8x128xf32>
    %546 = arith.mulf %544, %545 : vector<8x128xf32>
    %547 = arith.truncf %546 : vector<8x128xf32> to vector<8x128xbf16>
    %c0_277 = arith.constant 0 : index
    %c0_278 = arith.constant 0 : index
    %548 = vector.load %arg8[%c0_277, %c0_278] : memref<128x128xbf16, #tpu.memory_space<vmem>>, vector<128x128xbf16>
    %cst_279 = arith.constant dense<0.000000e+00> : vector<8x128xf32>
    %549 = tpu.matmul %547, %548, %cst_279 {dimension_numbers = #tpu.dot_dimension_numbers<[1], [0], [0], [1], [0, 0, 1, 1], [], []>} : vector<8x128xbf16>, vector<128x128xbf16>, vector<8x128xf32> -> vector<8x128xf32>
    %c0_280 = arith.constant 0 : index
    %c0_281 = arith.constant 0 : index
    %550 = vector.load %arg9[%c0_280, %c0_281] : memref<1x128xf32, #tpu.memory_space<vmem>>, vector<1x128xf32>
    %551 = vector.broadcast %550 : vector<1x128xf32> to vector<8x128xf32>
    %552 = arith.addf %549, %551 : vector<8x128xf32>
    %c0_282 = arith.constant 0 : index
    %c0_283 = arith.constant 0 : index
    %553 = vector.load %arg10[%c0_282, %c0_283] : memref<8x128xf32, #tpu.memory_space<vmem>>, vector<8x128xf32>
    tpu.vector_store %arg10[%c0_282, %c0_283], %552 {strides = array<i32>} : memref<8x128xf32, #tpu.memory_space<vmem>>, vector<8x128xf32>,
    return
  }
  func.func @transform_0(%arg0: i32) -> (i32, i32) {
    %c0_i32 = arith.constant 0 : i32
    %c0_i32_0 = arith.constant 0 : i32
    return %arg0, %c0_i32 : i32, i32
  }
  func.func @transform_1(%arg0: i32) -> (i32, i32) {
    %c0_i32 = arith.constant 0 : i32
    %c0_i32_0 = arith.constant 0 : i32
    %c0_i32_1 = arith.constant 0 : i32
    return %c0_i32, %c0_i32_0 : i32, i32
  }
  func.func @transform_2(%arg0: i32) -> (i32, i32) {
    %c0_i32 = arith.constant 0 : i32
    %c0_i32_0 = arith.constant 0 : i32
    %c0_i32_1 = arith.constant 0 : i32
    return %c0_i32, %c0_i32_0 : i32, i32
  }
  func.func @transform_3(%arg0: i32) -> (i32, i32) {
    %c0_i32 = arith.constant 0 : i32
    %c0_i32_0 = arith.constant 0 : i32
    %c0_i32_1 = arith.constant 0 : i32
    return %c0_i32, %c0_i32_0 : i32, i32
  }
  func.func @transform_4(%arg0: i32) -> (i32, i32) {
    %c0_i32 = arith.constant 0 : i32
    %c0_i32_0 = arith.constant 0 : i32
    %c0_i32_1 = arith.constant 0 : i32
    return %c0_i32, %c0_i32_0 : i32, i32
  }
  func.func @transform_5(%arg0: i32) -> (i32, i32) {
    %c0_i32 = arith.constant 0 : i32
    %c0_i32_0 = arith.constant 0 : i32
    %c0_i32_1 = arith.constant 0 : i32
    return %c0_i32, %c0_i32_0 : i32, i32
  }
  func.func @transform_6(%arg0: i32) -> (i32, i32) {
    %c0_i32 = arith.constant 0 : i32
    %c0_i32_0 = arith.constant 0 : i32
    %c0_i32_1 = arith.constant 0 : i32
    return %c0_i32, %c0_i32_0 : i32, i32
  }
  func.func @transform_7(%arg0: i32) -> (i32, i32) {
    %c0_i32 = arith.constant 0 : i32
    %c0_i32_0 = arith.constant 0 : i32
    %c0_i32_1 = arith.constant 0 : i32
    return %c0_i32, %c0_i32_0 : i32, i32
  }
  func.func @transform_8(%arg0: i32) -> (i32, i32) {
    %c0_i32 = arith.constant 0 : i32
    %c0_i32_0 = arith.constant 0 : i32
    %c0_i32_1 = arith.constant 0 : i32
    return %c0_i32, %c0_i32_0 : i32, i32
  }
  func.func @transform_9(%arg0: i32) -> (i32, i32) {
    %c0_i32 = arith.constant 0 : i32
    %c0_i32_0 = arith.constant 0 : i32
    return %arg0, %c0_i32 : i32, i32
  }
}

</mosaic_0001>

<llo_original>
// kernel: enetv2_forward.1
$region0: #{enetv2_forward.1}
  #allocation0 [shape = 'u32[]', space=smem, size = 0x4, offset = 0x4, fixed_abs, tag = 'smem constant byte address 0x4 - core index']
  #allocation1 [shape = 'u32[72,128]{1,0:T(1,128)}', space=vmem, size = 0x9000, scoped, tag = 'internal scratch']
  #allocation2 [shape = 'f32[8,10,16,128]{3,2,1,0:T(8,128)}', space=vmem, size = 0xa0000, scoped, tag = 'scratch operand']
  %s0 = inlined_call_operand.vmem [shape: bf16[1024,32], index: 0, kind: input, shape index: {}]
  %s1 = inlined_call_operand.vmem [shape: bf16[32,128], index: 1, kind: input, shape index: {}]
  %s2 = inlined_call_operand.vmem [shape: f32[1,128], index: 2, kind: input, shape index: {}]
  %s3 = inlined_call_operand.vmem [shape: f32[9,128], index: 3, kind: input, shape index: {}]
  %s4 = inlined_call_operand.vmem [shape: f32[1,128], index: 4, kind: input, shape index: {}]
  %s5 = inlined_call_operand.vmem [shape: bf16[128,128], index: 5, kind: input, shape index: {}]
  %s6 = inlined_call_operand.vmem [shape: f32[1,128], index: 6, kind: input, shape index: {}]
  %s7 = inlined_call_operand.vmem [shape: bf16[128,128], index: 7, kind: input, shape index: {}]
  %s8 = inlined_call_operand.vmem [shape: f32[1,128], index: 8, kind: input, shape index: {}]
  %s9 = inlined_call_operand.vmem [shape: f32[16,128], index: 9, kind: output, shape index: {}]
  %s10 = sld [smem:[#allocation0]]
  $region69: #{enetv2_forward.1} parent=0
    _
  %s12 = ssub.s32 1, %s10
  %s13 = scalar_select 0, %s12, %s10
  loop: start=0, step=1, limit=4
  $region2: #{enetv2_forward.1} parent=0 // loop_pre_header
    _
  $region3: #{enetv2_forward.1} parent=0 // loop_header
    %s15 = sphi 0, %s19
    %p16 = scmp.ge.s32.totalorder %s15, 4
    %s25 = sphi 0, %s27
    %s28 = sphi 0, %s25
    %s29 = sphi 0, %s28
    %s45 = sphi 0, %s29
    %s49 = sphi 0, %s49
    %s51 = sphi 0, %s49
    %s52 = sphi 0, %s51
    %s66 = sphi 0, %s52
    %s70 = sphi 0, %s70
    %s72 = sphi 0, %s70
    %s73 = sphi 0, %s72
    %s87 = sphi 0, %s73
    %s91 = sphi 0, %s91
    %s93 = sphi 0, %s91
    %s94 = sphi 0, %s93
    %s108 = sphi 0, %s94
    %s112 = sphi 0, %s112
    %s114 = sphi 0, %s112
    %s115 = sphi 0, %s114
    %s129 = sphi 0, %s115
    %s133 = sphi 0, %s133
    %s135 = sphi 0, %s133
    %s136 = sphi 0, %s135
    %s150 = sphi 0, %s136
    %s154 = sphi 0, %s154
    %s156 = sphi 0, %s154
    %s157 = sphi 0, %s156
    %s171 = sphi 0, %s157
    %s175 = sphi 0, %s175
    %s177 = sphi 0, %s175
    %s178 = sphi 0, %s177
    %s192 = sphi 0, %s178
    %s196 = sphi 0, %s196
    %s198 = sphi 0, %s196
    %s199 = sphi 0, %s198
    %s213 = sphi 0, %s199
    %s219 = sphi 0, %s221
    %s222 = sphi 0, %s219
    %s223 = sphi 0, %s222
    %s239 = sphi 0, %s223
  $region4: #{enetv2_forward.1} parent=0 // loop_header_branch
    %18 = sbr.rel (%p16) target = $region8
  $region5: #{enetv2_forward.1} parent=0 // loop_body
    %s20 = ssub.s32 %s15, 1
    %s21 = ssub.s32 %s15, 2
    %s22 = sadd.s32 %s15, 1
    %s23 = ssub.s32 %s15, %s22
    %p24 = scmp.eq.s32.totalorder %s23, 0
    %s26 = sadd.s32 %s25, 1
    %s27 = scalar_select %p24, %s25, %s26
    %p30 = pneg %p24
    %p31 = scmp.eq.s32.totalorder %s15, 1
    %p32 = por %p30, %p31
    %p33 = scmp.ne.s32.totalorder %s25, %s28
    %p34 = scmp.eq.s32.totalorder %s15, 0
    %p35 = por %p33, %p34
    %p36 = scmp.ne.s32.totalorder %s25, %s28
    %p37 = scmp.eq.s32.totalorder %s20, 1
    %p38 = por %p36, %p37
    %p39 = scmp.ne.s32.totalorder %s28, %s29
    %p40 = scmp.eq.s32.totalorder %s20, 0
    %p41 = por %p39, %p40
    %p42 = scmp.ne.s32.totalorder %s28, %s29
    %p43 = scmp.eq.s32.totalorder %s21, 1
    %p44 = por %p42, %p43
    %p46 = scmp.ne.s32.totalorder %s29, %s45
    %p47 = scmp.eq.s32.totalorder %s21, 0
    %p48 = por %p46, %p47
    %s50 = sadd.s32 %s49, 1
    %p53 = scmp.eq.s32.totalorder %s15, 1
    %p54 = scmp.ne.s32.totalorder %s49, %s51
    %p55 = scmp.eq.s32.totalorder %s15, 0
    %p56 = por %p54, %p55
    %p57 = scmp.ne.s32.totalorder %s49, %s51
    %p58 = scmp.eq.s32.totalorder %s20, 1
    %p59 = por %p57, %p58
    %p60 = scmp.ne.s32.totalorder %s51, %s52
    %p61 = scmp.eq.s32.totalorder %s20, 0
    %p62 = por %p60, %p61
    %p63 = scmp.ne.s32.totalorder %s51, %s52
    %p64 = scmp.eq.s32.totalorder %s21, 1
    %p65 = por %p63, %p64
    %p67 = scmp.ne.s32.totalorder %s52, %s66
    %p68 = scmp.eq.s32.totalorder %s21, 0
    %p69 = por %p67, %p68
    %s71 = sadd.s32 %s70, 1
    %p74 = scmp.eq.s32.totalorder %s15, 1
    %p75 = scmp.ne.s32.totalorder %s70, %s72
    %p76 = scmp.eq.s32.totalorder %s15, 0
    %p77 = por %p75, %p76
    %p78 = scmp.ne.s32.totalorder %s70, %s72
    %p79 = scmp.eq.s32.totalorder %s20, 1
    %p80 = por %p78, %p79
    %p81 = scmp.ne.s32.totalorder %s72, %s73
    %p82 = scmp.eq.s32.totalorder %s20, 0
    %p83 = por %p81, %p82
    %p84 = scmp.ne.s32.totalorder %s72, %s73
    %p85 = scmp.eq.s32.totalorder %s21, 1
    %p86 = por %p84, %p85
    %p88 = scmp.ne.s32.totalorder %s73, %s87
    %p89 = scmp.eq.s32.totalorder %s21, 0
    %p90 = por %p88, %p89
    %s92 = sadd.s32 %s91, 1
    %p95 = scmp.eq.s32.totalorder %s15, 1
    %p96 = scmp.ne.s32.totalorder %s91, %s93
    %p97 = scmp.eq.s32.totalorder %s15, 0
    %p98 = por %p96, %p97
    %p99 = scmp.ne.s32.totalorder %s91, %s93
    %p100 = scmp.eq.s32.totalorder %s20, 1
    %p101 = por %p99, %p100
    %p102 = scmp.ne.s32.totalorder %s93, %s94
    %p103 = scmp.eq.s32.totalorder %s20, 0
    %p104 = por %p102, %p103
    %p105 = scmp.ne.s32.totalorder %s93, %s94
    %p106 = scmp.eq.s32.totalorder %s21, 1
    %p107 = por %p105, %p106
    %p109 = scmp.ne.s32.totalorder %s94, %s108
    %p110 = scmp.eq.s32.totalorder %s21, 0
    %p111 = por %p109, %p110
    %s113 = sadd.s32 %s112, 1
    %p116 = scmp.eq.s32.totalorder %s15, 1
    %p117 = scmp.ne.s32.totalorder %s112, %s114
    %p118 = scmp.eq.s32.totalorder %s15, 0
    %p119 = por %p117, %p118
    %p120 = scmp.ne.s32.totalorder %s112, %s114
    %p121 = scmp.eq.s32.totalorder %s20, 1
    %p122 = por %p120, %p121
    %p123 = scmp.ne.s32.totalorder %s114, %s115
    %p124 = scmp.eq.s32.totalorder %s20, 0
    %p125 = por %p123, %p124
    %p126 = scmp.ne.s32.totalorder %s114, %s115
    %p127 = scmp.eq.s32.totalorder %s21, 1
    %p128 = por %p126, %p127
    %p130 = scmp.ne.s32.totalorder %s115, %s129
    %p131 = scmp.eq.s32.totalorder %s21, 0
    %p132 = por %p130, %p131
    %s134 = sadd.s32 %s133, 1
    %p137 = scmp.eq.s32.totalorder %s15, 1
    %p138 = scmp.ne.s32.totalorder %s133, %s135
    %p139 = scmp.eq.s32.totalorder %s15, 0
    %p140 = por %p138, %p139
    %p141 = scmp.ne.s32.totalorder %s133, %s135
    %p142 = scmp.eq.s32.totalorder %s20, 1
    %p143 = por %p141, %p142
    %p144 = scmp.ne.s32.totalorder %s135, %s136
    %p145 = scmp.eq.s32.totalorder %s20, 0
    %p146 = por %p144, %p145
    %p147 = scmp.ne.s32.totalorder %s135, %s136
    %p148 = scmp.eq.s32.totalorder %s21, 1
    %p149 = por %p147, %p148
    %p151 = scmp.ne.s32.totalorder %s136, %s150
    %p152 = scmp.eq.s32.totalorder %s21, 0
    %p153 = por %p151, %p152
    %s155 = sadd.s32 %s154, 1
    %p158 = scmp.eq.s32.totalorder %s15, 1
    %p159 = scmp.ne.s32.totalorder %s154, %s156
    %p160 = scmp.eq.s32.totalorder %s15, 0
    %p161 = por %p159, %p160
    %p162 = scmp.ne.s32.totalorder %s154, %s156
    %p163 = scmp.eq.s32.totalorder %s20, 1
    %p164 = por %p162, %p163
    %p165 = scmp.ne.s32.totalorder %s156, %s157
    %p166 = scmp.eq.s32.totalorder %s20, 0
    %p167 = por %p165, %p166
    %p168 = scmp.ne.s32.totalorder %s156, %s157
    %p169 = scmp.eq.s32.totalorder %s21, 1
    %p170 = por %p168, %p169
    %p172 = scmp.ne.s32.totalorder %s157, %s171
    %p173 = scmp.eq.s32.totalorder %s21, 0
    %p174 = por %p172, %p173
    %s176 = sadd.s32 %s175, 1
    %p179 = scmp.eq.s32.totalorder %s15, 1
    %p180 = scmp.ne.s32.totalorder %s175, %s177
    %p181 = scmp.eq.s32.totalorder %s15, 0
    %p182 = por %p180, %p181
    %p183 = scmp.ne.s32.totalorder %s175, %s177
    %p184 = scmp.eq.s32.totalorder %s20, 1
    %p185 = por %p183, %p184
    %p186 = scmp.ne.s32.totalorder %s177, %s178
    %p187 = scmp.eq.s32.totalorder %s20, 0
    %p188 = por %p186, %p187
    %p189 = scmp.ne.s32.totalorder %s177, %s178
    %p190 = scmp.eq.s32.totalorder %s21, 1
    %p191 = por %p189, %p190
    %p193 = scmp.ne.s32.totalorder %s178, %s192
    %p194 = scmp.eq.s32.totalorder %s21, 0
    %p195 = por %p193, %p194
    %s197 = sadd.s32 %s196, 1
    %p200 = scmp.eq.s32.totalorder %s15, 1
    %p201 = scmp.ne.s32.totalorder %s196, %s198
    %p202 = scmp.eq.s32.totalorder %s15, 0
    %p203 = por %p201, %p202
    %p204 = scmp.ne.s32.totalorder %s196, %s198
    %p205 = scmp.eq.s32.totalorder %s20, 1
    %p206 = por %p204, %p205
    %p207 = scmp.ne.s32.totalorder %s198, %s199
    %p208 = scmp.eq.s32.totalorder %s20, 0
    %p209 = por %p207, %p208
    %p210 = scmp.ne.s32.totalorder %s198, %s199
    %p211 = scmp.eq.s32.totalorder %s21, 1
    %p212 = por %p210, %p211
    %p214 = scmp.ne.s32.totalorder %s199, %s213
    %p215 = scmp.eq.s32.totalorder %s21, 0
    %p216 = por %p214, %p215
    %s217 = ssub.s32 %s15, %s22
    %p218 = scmp.eq.s32.totalorder %s217, 0
    %s220 = sadd.s32 %s219, 1
    %s221 = scalar_select %p218, %s219, %s220
    %p224 = pneg %p218
    %p225 = scmp.eq.s32.totalorder %s15, 1
    %p226 = por %p224, %p225
    %p227 = scmp.ne.s32.totalorder %s219, %s222
    %p228 = scmp.eq.s32.totalorder %s15, 0
    %p229 = por %p227, %p228
    %p230 = scmp.ne.s32.totalorder %s219, %s222
    %p231 = scmp.eq.s32.totalorder %s20, 1
    %p232 = por %p230, %p231
    %p233 = scmp.ne.s32.totalorder %s222, %s223
    %p234 = scmp.eq.s32.totalorder %s20, 0
    %p235 = por %p233, %p234
    %p236 = scmp.ne.s32.totalorder %s222, %s223
    %p237 = scmp.eq.s32.totalorder %s21, 1
    %p238 = por %p236, %p237
    %p240 = scmp.ne.s32.totalorder %s223, %s239
    %p241 = scmp.eq.s32.totalorder %s21, 0
    %p242 = por %p240, %p241
    %p243 = scmp.le.s32.totalorder 1, %s15
    %p244 = scmp.lt.s32.totalorder %s15, 3
    %p245 = pnand %p243, %p244
    %p246 = pneg %p245
    // Predicated region
    $region9: #{enetv2_forward.1} parent=5 // pred_check
      _
    $region10: #{enetv2_forward.1} parent=5 // pred_check_branch
      %248 = sbr.rel (%p245) target = $region12
    $region11: #{enetv2_forward.1} parent=5 // pred_region
      %s249 = ssub.s32 %s15, 1
      // Predicated region
      $region13: #{enetv2_forward.1} parent=11 // pred_check
        %p250 = pneg %p62
      $region14: #{enetv2_forward.1} parent=11 // pred_check_branch
        %252 = sbr.rel (%p250) target = $region16
      $region15: #{enetv2_forward.1} parent=11 // pred_region
        _
      $region16: #{enetv2_forward.1} parent=11 // pred_fallthru
        _
      // Predicated region
      $region17: #{enetv2_forward.1} parent=11 // pred_check
        %p253 = pneg %p83
      $region18: #{enetv2_forward.1} parent=11 // pred_check_branch
        %255 = sbr.rel (%p253) target = $region20
      $region19: #{enetv2_forward.1} parent=11 // pred_region
        _
      $region20: #{enetv2_forward.1} parent=11 // pred_fallthru
        _
      // Predicated region
      $region21: #{enetv2_forward.1} parent=11 // pred_check
        %p256 = pneg %p104
      $region22: #{enetv2_forward.1} parent=11 // pred_check_branch
        %258 = sbr.rel (%p256) target = $region24
      $region23: #{enetv2_forward.1} parent=11 // pred_region
        _
      $region24: #{enetv2_forward.1} parent=11 // pred_fallthru
        _
      // Predicated region
      $region25: #{enetv2_forward.1} parent=11 // pred_check
        %p259 = pneg %p125
      $region26: #{enetv2_forward.1} parent=11 // pred_check_branch
        %261 = sbr.rel (%p259) target = $region28
      $region27: #{enetv2_forward.1} parent=11 // pred_region
        _
      $region28: #{enetv2_forward.1} parent=11 // pred_fallthru
        _
      // Predicated region
      $region29: #{enetv2_forward.1} parent=11 // pred_check
        %p262 = pneg %p146
      $region30: #{enetv2_forward.1} parent=11 // pred_check_branch
        %264 = sbr.rel (%p262) target = $region32
      $region31: #{enetv2_forward.1} parent=11 // pred_region
        _
      $region32: #{enetv2_forward.1} parent=11 // pred_fallthru
        _
      // Predicated region
      $region33: #{enetv2_forward.1} parent=11 // pred_check
        %p265 = pneg %p167
      $region34: #{enetv2_forward.1} parent=11 // pred_check_branch
        %267 = sbr.rel (%p265) target = $region36
      $region35: #{enetv2_forward.1} parent=11 // pred_region
        _
      $region36: #{enetv2_forward.1} parent=11 // pred_fallthru
        _
      // Predicated region
      $region37: #{enetv2_forward.1} parent=11 // pred_check
        %p268 = pneg %p188
      $region38: #{enetv2_forward.1} parent=11 // pred_check_branch
        %270 = sbr.rel (%p268) target = $region40
      $region39: #{enetv2_forward.1} parent=11 // pred_region
        _
      $region40: #{enetv2_forward.1} parent=11 // pred_fallthru
        _
      // Predicated region
      $region41: #{enetv2_forward.1} parent=11 // pred_check
        %p271 = pneg %p209
      $region42: #{enetv2_forward.1} parent=11 // pred_check_branch
        %273 = sbr.rel (%p271) target = $region44
      $region43: #{enetv2_forward.1} parent=11 // pred_region
        _
      $region44: #{enetv2_forward.1} parent=11 // pred_fallthru
        _
    $region12: #{enetv2_forward.1} parent=5 // pred_fallthru
      _
    %p274 = scmp.lt.s32.totalorder %s15, 2
    // Predicated region
    $region45: #{enetv2_forward.1} parent=5 // pred_check
      %p275 = pneg %p274
    $region46: #{enetv2_forward.1} parent=5 // pred_check_branch
      %277 = sbr.rel (%p275) target = $region48
    $region47: #{enetv2_forward.1} parent=5 // pred_region
      // Predicated region
      $region49: #{enetv2_forward.1} parent=47 // pred_check
        %p278 = pneg %p35
      $region50: #{enetv2_forward.1} parent=47 // pred_check_branch
        %280 = sbr.rel (%p278) target = $region52
      $region51: #{enetv2_forward.1} parent=47 // pred_region
        %s281 = smul.u32 64, %s15
        %p282 = scmp.lt.s32.totalorder %s281, 127
        %s283 = scalar_select %p282, %s281, 127
        %s284 = smul.addr %s283, 4
        %s285 = scalar_lea.vmem %s0, %s284
        %s286 = smul.u32 64, %s15
      $region52: #{enetv2_forward.1} parent=47 // pred_fallthru
        _
    $region48: #{enetv2_forward.1} parent=5 // pred_fallthru
      _
    %p287 = scmp.le.s32.totalorder 1, %s15
    %p288 = scmp.lt.s32.totalorder %s15, 3
    %p289 = pnand %p287, %p288
    %p290 = pneg %p289
    // Predicated region
    $region53: #{enetv2_forward.1} parent=5 // pred_check
      _
    $region54: #{enetv2_forward.1} parent=5 // pred_check_branch
      %292 = sbr.rel (%p289) target = $region56
    $region55: #{enetv2_forward.1} parent=5 // pred_region
      %s293 = ssub.s32 %s15, 1
      %s294 = smul.u32 64, %s20
      %p295 = scmp.lt.s32.totalorder %s294, 127
      %s296 = scalar_select %p295, %s294, 127
      %s297 = smul.addr %s296, 4
      %s298 = scalar_lea.vmem %s0, %s297
      %p299 = pneg %p41
      %p300 = pneg %p38
      %p301 = pneg %p62
      %p302 = pneg %p59
      %p303 = pneg %p83
      %p304 = pneg %p80
      %p305 = pneg %p104
      %p306 = pneg %p101
      %p307 = pneg %p125
      %p308 = pneg %p122
      %p309 = pneg %p146
      %p310 = pneg %p143
      %p311 = pneg %p167
      %p312 = pneg %p164
      %p313 = pneg %p188
      %p314 = pneg %p185
      %p315 = pneg %p209
      %p316 = pneg %p206
      %p317 = pneg %p235
      %p318 = pneg %p232
      %p319 = scmp.lt.s32.totalorder %s20, 1
      %s320 = scalar_select %p319, %s20, 1
      %s321 = smul.addr %s320, 8
      %s322 = scalar_lea.vmem %s9, %s321
      %s323 = smul.u32 64, %s20
      %p324 = scmp.lt.s32.totalorder %s323, 127
      %s325 = scalar_select %p324, %s323, 127
      %s326 = smul.addr %s325, 4
      %s327 = scalar_lea.vmem %s0, %s326
      %s328 = smul.u32 64, %s20
      %p329 = scmp.lt.s32.totalorder %s20, 1
      %s330 = scalar_select %p329, %s20, 1
      %s331 = smul.addr %s330, 8
      %s332 = scalar_lea.vmem %s9, %s331
      %v334 = vld [vmem:[%s327] sm:$0xf]
      %v335 = vld [vmem:[%s327 + $0x4] sm:$0xf]
      %v336 = vld [vmem:[%s327 + $0x8] sm:$0xf]
      %v337 = vld [vmem:[%s327 + $0xc] sm:$0xf]
      %v338 = vld [vmem:[%s327 + $0x10] sm:$0xf]
      %v339 = vld [vmem:[%s327 + $0x14] sm:$0xf]
      %v340 = vld [vmem:[%s327 + $0x18] sm:$0xf]
      %v341 = vld [vmem:[%s327 + $0x1c] sm:$0xf]
      %v342 = vld [vmem:[%s327 + $0x20] sm:$0xf]
      %v343 = vld [vmem:[%s327 + $0x24] sm:$0xf]
      %v344 = vld [vmem:[%s327 + $0x28] sm:$0xf]
      %v345 = vld [vmem:[%s327 + $0x2c] sm:$0xf]
      %v346 = vld [vmem:[%s327 + $0x30] sm:$0xf]
      %v347 = vld [vmem:[%s327 + $0x34] sm:$0xf]
      %v348 = vld [vmem:[%s327 + $0x38] sm:$0xf]
      %v349 = vld [vmem:[%s327 + $0x3c] sm:$0xf]
      %v350 = vld [vmem:[%s327 + $0x40] sm:$0xf]
      %v351 = vld [vmem:[%s327 + $0x44] sm:$0xf]
      %v352 = vld [vmem:[%s327 + $0x48] sm:$0xf]
      %v353 = vld [vmem:[%s327 + $0x4c] sm:$0xf]
      %v354 = vld [vmem:[%s327 + $0x50] sm:$0xf]
      %v355 = vld [vmem:[%s327 + $0x54] sm:$0xf]
      %v356 = vld [vmem:[%s327 + $0x58] sm:$0xf]
      %v357 = vld [vmem:[%s327 + $0x5c] sm:$0xf]
      %v358 = vld [vmem:[%s327 + $0x60] sm:$0xf]
      %v359 = vld [vmem:[%s327 + $0x64] sm:$0xf]
      %v360 = vld [vmem:[%s327 + $0x68] sm:$0xf]
      %v361 = vld [vmem:[%s327 + $0x6c] sm:$0xf]
      %v362 = vld [vmem:[%s327 + $0x70] sm:$0xf]
      %v363 = vld [vmem:[%s327 + $0x74] sm:$0xf]
      %v364 = vld [vmem:[%s327 + $0x78] sm:$0xf]
      %v365 = vld [vmem:[%s327 + $0x7c] sm:$0xf]
      %v366 = vld [vmem:[%s327 + $0x80] sm:$0xf]
      %v367 = vld [vmem:[%s327 + $0x84] sm:$0xf]
      %v368 = vld [vmem:[%s327 + $0x88] sm:$0xf]
      %v369 = vld [vmem:[%s327 + $0x8c] sm:$0xf]
      %v370 = vld [vmem:[%s327 + $0x90] sm:$0xf]
      %v371 = vld [vmem:[%s327 + $0x94] sm:$0xf]
      %v372 = vld [vmem:[%s327 + $0x98] sm:$0xf]
      %v373 = vld [vmem:[%s327 + $0x9c] sm:$0xf]
      %v374 = vld [vmem:[%s327 + $0xa0] sm:$0xf]
      %v375 = vld [vmem:[%s327 + $0xa4] sm:$0xf]
      %v376 = vld [vmem:[%s327 + $0xa8] sm:$0xf]
      %v377 = vld [vmem:[%s327 + $0xac] sm:$0xf]
      %v378 = vld [vmem:[%s327 + $0xb0] sm:$0xf]
      %v379 = vld [vmem:[%s327 + $0xb4] sm:$0xf]
      %v380 = vld [vmem:[%s327 + $0xb8] sm:$0xf]
      %v381 = vld [vmem:[%s327 + $0xbc] sm:$0xf]
      %v382 = vld [vmem:[%s327 + $0xc0] sm:$0xf]
      %v383 = vld [vmem:[%s327 + $0xc4] sm:$0xf]
      %v384 = vld [vmem:[%s327 + $0xc8] sm:$0xf]
      %v385 = vld [vmem:[%s327 + $0xcc] sm:$0xf]
      %v386 = vld [vmem:[%s327 + $0xd0] sm:$0xf]
      %v387 = vld [vmem:[%s327 + $0xd4] sm:$0xf]
      %v388 = vld [vmem:[%s327 + $0xd8] sm:$0xf]
      %v389 = vld [vmem:[%s327 + $0xdc] sm:$0xf]
      %v390 = vld [vmem:[%s327 + $0xe0] sm:$0xf]
      %v391 = vld [vmem:[%s327 + $0xe4] sm:$0xf]
      %v392 = vld [vmem:[%s327 + $0xe8] sm:$0xf]
      %v393 = vld [vmem:[%s327 + $0xec] sm:$0xf]
      %v394 = vld [vmem:[%s327 + $0xf0] sm:$0xf]
      %v395 = vld [vmem:[%s327 + $0xf4] sm:$0xf]
      %v396 = vld [vmem:[%s327 + $0xf8] sm:$0xf]
      %v397 = vld [vmem:[%s327 + $0xfc] sm:$0xf]
      %v398 = vld [vmem:[%s1] sm:$0xf]
      %v399 = vld [vmem:[%s1 + $0x4] sm:$0xf]
      %v400 = vld [vmem:[%s1 + $0x8] sm:$0xf]
      %v401 = vld [vmem:[%s1 + $0xc] sm:$0xf]
      %v402 = vld [vmem:[%s2] sm:$0x1]
      %v404 = vperm.slane %v402, 0
      %v470 = vunpack.c.l.b16 %v334
      %v471 = vunpack.c.l.b16 %v335
      %v472 = vunpack.c.l.b16 %v336
      %v473 = vunpack.c.l.b16 %v337
      %v474 = vunpack.c.l.b16 %v338
      %v475 = vunpack.c.l.b16 %v339
      %v476 = vunpack.c.l.b16 %v340
      %v477 = vunpack.c.l.b16 %v341
      %v478 = vunpack.c.l.b16 %v342
      %v479 = vunpack.c.l.b16 %v343
      %v480 = vunpack.c.l.b16 %v344
      %v481 = vunpack.c.l.b16 %v345
      %v482 = vunpack.c.l.b16 %v346
      %v483 = vunpack.c.l.b16 %v347
      %v484 = vunpack.c.l.b16 %v348
      %v485 = vunpack.c.l.b16 %v349
      %v486 = vunpack.c.l.b16 %v350
      %v487 = vunpack.c.l.b16 %v351
      %v488 = vunpack.c.l.b16 %v352
      %v489 = vunpack.c.l.b16 %v353
      %v490 = vunpack.c.l.b16 %v354
      %v491 = vunpack.c.l.b16 %v355
      %v492 = vunpack.c.l.b16 %v356
      %v493 = vunpack.c.l.b16 %v357
      %v494 = vunpack.c.l.b16 %v358
      %v495 = vunpack.c.l.b16 %v359
      %v496 = vunpack.c.l.b16 %v360
      %v497 = vunpack.c.l.b16 %v361
      %v498 = vunpack.c.l.b16 %v362
      %v499 = vunpack.c.l.b16 %v363
      %v500 = vunpack.c.l.b16 %v364
      %v501 = vunpack.c.l.b16 %v365
      %v502 = vunpack.c.l.b16 %v366
      %v503 = vunpack.c.l.b16 %v367
      %v504 = vunpack.c.l.b16 %v368
      %v505 = vunpack.c.l.b16 %v369
      %v506 = vunpack.c.l.b16 %v370
      %v507 = vunpack.c.l.b16 %v371
      %v508 = vunpack.c.l.b16 %v372
      %v509 = vunpack.c.l.b16 %v373
      %v510 = vunpack.c.l.b16 %v374
      %v511 = vunpack.c.l.b16 %v375
      %v512 = vunpack.c.l.b16 %v376
      %v513 = vunpack.c.l.b16 %v377
      %v514 = vunpack.c.l.b16 %v378
      %v515 = vunpack.c.l.b16 %v379
      %v516 = vunpack.c.l.b16 %v380
      %v517 = vunpack.c.l.b16 %v381
      %v518 = vunpack.c.l.b16 %v382
      %v519 = vunpack.c.l.b16 %v383
      %v520 = vunpack.c.l.b16 %v384
      %v521 = vunpack.c.l.b16 %v385
      %v522 = vunpack.c.l.b16 %v386
      %v523 = vunpack.c.l.b16 %v387
      %v524 = vunpack.c.l.b16 %v388
      %v525 = vunpack.c.l.b16 %v389
      %v526 = vunpack.c.l.b16 %v390
      %v527 = vunpack.c.l.b16 %v391
      %v528 = vunpack.c.l.b16 %v392
      %v529 = vunpack.c.l.b16 %v393
      %v530 = vunpack.c.l.b16 %v394
      %v531 = vunpack.c.l.b16 %v395
      %v532 = vunpack.c.l.b16 %v396
      %v533 = vunpack.c.l.b16 %v397
      %v534 = vpack.c.b16 %v471, %v470
      %v535 = vpack.c.b16 %v473, %v472
      %v536 = vpack.c.b16 %v475, %v474
      %v537 = vpack.c.b16 %v477, %v476
      %v538 = vpack.c.b16 %v479, %v478
      %v539 = vpack.c.b16 %v481, %v480
      %v540 = vpack.c.b16 %v483, %v482
      %v541 = vpack.c.b16 %v485, %v484
      %v542 = vpack.c.b16 %v487, %v486
      %v543 = vpack.c.b16 %v489, %v488
      %v544 = vpack.c.b16 %v491, %v490
      %v545 = vpack.c.b16 %v493, %v492
      %v546 = vpack.c.b16 %v495, %v494
      %v547 = vpack.c.b16 %v497, %v496
      %v548 = vpack.c.b16 %v499, %v498
      %v549 = vpack.c.b16 %v501, %v500
      %v550 = vpack.c.b16 %v503, %v502
      %v551 = vpack.c.b16 %v505, %v504
      %v552 = vpack.c.b16 %v507, %v506
      %v553 = vpack.c.b16 %v509, %v508
      %v554 = vpack.c.b16 %v511, %v510
      %v555 = vpack.c.b16 %v513, %v512
      %v556 = vpack.c.b16 %v515, %v514
      %v557 = vpack.c.b16 %v517, %v516
      %v558 = vpack.c.b16 %v519, %v518
      %v559 = vpack.c.b16 %v521, %v520
      %v560 = vpack.c.b16 %v523, %v522
      %v561 = vpack.c.b16 %v525, %v524
      %v562 = vpack.c.b16 %v527, %v526
      %v563 = vpack.c.b16 %v529, %v528
      %v564 = vpack.c.b16 %v531, %v530
      %v565 = vpack.c.b16 %v533, %v532
      %v570 = vunpack.c.l.b16 %v398
      %v571 = vunpack.c.l.b16 %v399
      %v572 = vunpack.c.l.b16 %v400
      %v573 = vunpack.c.l.b16 %v401
      %v574 = vpack.c.b16 %v571, %v570
      %v575 = vpack.c.b16 %v573, %v572
      %vm578 = vcmask 261120
      %v580 = vsel %vm578, %v534, 0
      %v583 = vsel %vm578, %v535, 0
      %v586 = vsel %vm578, %v536, 0
      %v589 = vsel %vm578, %v537, 0
      %v592 = vsel %vm578, %v538, 0
      %v595 = vsel %vm578, %v539, 0
      %v598 = vsel %vm578, %v540, 0
      %v601 = vsel %vm578, %v541, 0
      %v604 = vsel %vm578, %v542, 0
      %v607 = vsel %vm578, %v543, 0
      %v610 = vsel %vm578, %v544, 0
      %v613 = vsel %vm578, %v545, 0
      %v616 = vsel %vm578, %v546, 0
      %v619 = vsel %vm578, %v547, 0
      %v622 = vsel %vm578, %v548, 0
      %v625 = vsel %vm578, %v549, 0
      %v628 = vsel %vm578, %v550, 0
      %v631 = vsel %vm578, %v551, 0
      %v634 = vsel %vm578, %v552, 0
      %v637 = vsel %vm578, %v553, 0
      %v640 = vsel %vm578, %v554, 0
      %v643 = vsel %vm578, %v555, 0
      %v646 = vsel %vm578, %v556, 0
      %v649 = vsel %vm578, %v557, 0
      %v652 = vsel %vm578, %v558, 0
      %v655 = vsel %vm578, %v559, 0
      %v658 = vsel %vm578, %v560, 0
      %v661 = vsel %vm578, %v561, 0
      %v664 = vsel %vm578, %v562, 0
      %v667 = vsel %vm578, %v563, 0
      %v670 = vsel %vm578, %v564, 0
      %v673 = vsel %vm578, %v565, 0
      %675 = vmatpush.bf16.msra.mxu0 0
      %676 = vmatpush.bf16.msra.mxu0 0
      %677 = vmatpush.bf16.msra.mxu0 0
      %678 = vmatpush.bf16.msra.mxu0 0
      %679 = vmatpush.bf16.msra.mxu0 0
      %680 = vmatpush.bf16.msra.mxu0 0
      %681 = vmatpush.bf16.msra.mxu0 %v575
      %682 = vmatpush.bf16.msra.mxu0 %v574
      %683 = vmatmul.bf16.gmra.mxu0 %v580
      %v684 = vpop.f32.mrf.mxu0
      %v685 = vadd.f32 %v404, %v684
      %v686 = vpop.f32.mrf.mxu0
      %v687 = vadd.f32 %v404, %v686
      %688 = vmatmul.bf16.gmra.mxu0 %v583
      %v689 = vpop.f32.mrf.mxu0
      %v690 = vadd.f32 %v404, %v689
      %v691 = vpop.f32.mrf.mxu0
      %v692 = vadd.f32 %v404, %v691
      %693 = vmatmul.bf16.gmra.mxu0 %v586
      %v694 = vpop.f32.mrf.mxu0
      %v695 = vadd.f32 %v404, %v694
      %v696 = vpop.f32.mrf.mxu0
      %v697 = vadd.f32 %v404, %v696
      %698 = vmatmul.bf16.gmra.mxu0 %v589
      %v699 = vpop.f32.mrf.mxu0
      %v700 = vadd.f32 %v404, %v699
      %v701 = vpop.f32.mrf.mxu0
      %v702 = vadd.f32 %v404, %v701
      %703 = vmatmul.bf16.gmra.mxu0 %v592
      %v704 = vpop.f32.mrf.mxu0
      %v705 = vadd.f32 %v404, %v704
      %v706 = vpop.f32.mrf.mxu0
      %v707 = vadd.f32 %v404, %v706
      %708 = vmatmul.bf16.gmra.mxu0 %v595
      %v709 = vpop.f32.mrf.mxu0
      %v710 = vadd.f32 %v404, %v709
      %v711 = vpop.f32.mrf.mxu0
      %v712 = vadd.f32 %v404, %v711
      %713 = vmatmul.bf16.gmra.mxu0 %v598
      %v714 = vpop.f32.mrf.mxu0
      %v715 = vadd.f32 %v404, %v714
      %v716 = vpop.f32.mrf.mxu0
      %v717 = vadd.f32 %v404, %v716
      %718 = vmatmul.bf16.gmra.mxu0 %v601
      %v719 = vpop.f32.mrf.mxu0
      %v720 = vadd.f32 %v404, %v719
      %v721 = vpop.f32.mrf.mxu0
      %v722 = vadd.f32 %v404, %v721
      %723 = vmatmul.bf16.gmra.mxu0 %v604
      %v724 = vpop.f32.mrf.mxu0
      %v725 = vadd.f32 %v404, %v724
      %v726 = vpop.f32.mrf.mxu0
      %v727 = vadd.f32 %v404, %v726
      %728 = vmatmul.bf16.gmra.mxu0 %v607
      %v729 = vpop.f32.mrf.mxu0
      %v730 = vadd.f32 %v404, %v729
      %v731 = vpop.f32.mrf.mxu0
      %v732 = vadd.f32 %v404, %v731
      %733 = vmatmul.bf16.gmra.mxu0 %v610
      %v734 = vpop.f32.mrf.mxu0
      %v735 = vadd.f32 %v404, %v734
      %v736 = vpop.f32.mrf.mxu0
      %v737 = vadd.f32 %v404, %v736
      %738 = vmatmul.bf16.gmra.mxu0 %v613
      %v739 = vpop.f32.mrf.mxu0
      %v740 = vadd.f32 %v404, %v739
      %v741 = vpop.f32.mrf.mxu0
      %v742 = vadd.f32 %v404, %v741
      %743 = vmatmul.bf16.gmra.mxu0 %v616
      %v744 = vpop.f32.mrf.mxu0
      %v745 = vadd.f32 %v404, %v744
      %v746 = vpop.f32.mrf.mxu0
      %v747 = vadd.f32 %v404, %v746
      %748 = vmatmul.bf16.gmra.mxu0 %v619
      %v749 = vpop.f32.mrf.mxu0
      %v750 = vadd.f32 %v404, %v749
      %v751 = vpop.f32.mrf.mxu0
      %v752 = vadd.f32 %v404, %v751
      %753 = vmatmul.bf16.gmra.mxu0 %v622
      %v754 = vpop.f32.mrf.mxu0
      %v755 = vadd.f32 %v404, %v754
      %v756 = vpop.f32.mrf.mxu0
      %v757 = vadd.f32 %v404, %v756
      %758 = vmatmul.bf16.gmra.mxu0 %v625
      %v759 = vpop.f32.mrf.mxu0
      %v760 = vadd.f32 %v404, %v759
      %v761 = vpop.f32.mrf.mxu0
      %v762 = vadd.f32 %v404, %v761
      %763 = vmatmul.bf16.gmra.mxu0 %v628
      %v764 = vpop.f32.mrf.mxu0
      %v765 = vadd.f32 %v404, %v764
      %v766 = vpop.f32.mrf.mxu0
      %v767 = vadd.f32 %v404, %v766
      %768 = vmatmul.bf16.gmra.mxu0 %v631
      %v769 = vpop.f32.mrf.mxu0
      %v770 = vadd.f32 %v404, %v769
      %v771 = vpop.f32.mrf.mxu0
      %v772 = vadd.f32 %v404, %v771
      %773 = vmatmul.bf16.gmra.mxu0 %v634
      %v774 = vpop.f32.mrf.mxu0
      %v775 = vadd.f32 %v404, %v774
      %v776 = vpop.f32.mrf.mxu0
      %v777 = vadd.f32 %v404, %v776
      %778 = vmatmul.bf16.gmra.mxu0 %v637
      %v779 = vpop.f32.mrf.mxu0
      %v780 = vadd.f32 %v404, %v779
      %v781 = vpop.f32.mrf.mxu0
      %v782 = vadd.f32 %v404, %v781
      %783 = vmatmul.bf16.gmra.mxu0 %v640
      %v784 = vpop.f32.mrf.mxu0
      %v785 = vadd.f32 %v404, %v784
      %v786 = vpop.f32.mrf.mxu0
      %v787 = vadd.f32 %v404, %v786
      %788 = vmatmul.bf16.gmra.mxu0 %v643
      %v789 = vpop.f32.mrf.mxu0
      %v790 = vadd.f32 %v404, %v789
      %v791 = vpop.f32.mrf.mxu0
      %v792 = vadd.f32 %v404, %v791
      %793 = vmatmul.bf16.gmra.mxu0 %v646
      %v794 = vpop.f32.mrf.mxu0
      %v795 = vadd.f32 %v404, %v794
      %v796 = vpop.f32.mrf.mxu0
      %v797 = vadd.f32 %v404, %v796
      %798 = vmatmul.bf16.gmra.mxu0 %v649
      %v799 = vpop.f32.mrf.mxu0
      %v800 = vadd.f32 %v404, %v799
      %v801 = vpop.f32.mrf.mxu0
      %v802 = vadd.f32 %v404, %v801
      %803 = vmatmul.bf16.gmra.mxu0 %v652
      %v804 = vpop.f32.mrf.mxu0
      %v805 = vadd.f32 %v404, %v804
      %v806 = vpop.f32.mrf.mxu0
      %v807 = vadd.f32 %v404, %v806
      %808 = vmatmul.bf16.gmra.mxu0 %v655
      %v809 = vpop.f32.mrf.mxu0
      %v810 = vadd.f32 %v404, %v809
      %v811 = vpop.f32.mrf.mxu0
      %v812 = vadd.f32 %v404, %v811
      %813 = vmatmul.bf16.gmra.mxu0 %v658
      %v814 = vpop.f32.mrf.mxu0
      %v815 = vadd.f32 %v404, %v814
      %v816 = vpop.f32.mrf.mxu0
      %v817 = vadd.f32 %v404, %v816
      %818 = vmatmul.bf16.gmra.mxu0 %v661
      %v819 = vpop.f32.mrf.mxu0
      %v820 = vadd.f32 %v404, %v819
      %v821 = vpop.f32.mrf.mxu0
      %v822 = vadd.f32 %v404, %v821
      %823 = vmatmul.bf16.gmra.mxu0 %v664
      %v824 = vpop.f32.mrf.mxu0
      %v825 = vadd.f32 %v404, %v824
      %v826 = vpop.f32.mrf.mxu0
      %v827 = vadd.f32 %v404, %v826
      %828 = vmatmul.bf16.gmra.mxu0 %v667
      %v829 = vpop.f32.mrf.mxu0
      %v830 = vadd.f32 %v404, %v829
      %v831 = vpop.f32.mrf.mxu0
      %v832 = vadd.f32 %v404, %v831
      %833 = vmatmul.bf16.gmra.mxu0 %v670
      %v834 = vpop.f32.mrf.mxu0
      %v835 = vadd.f32 %v404, %v834
      %v836 = vpop.f32.mrf.mxu0
      %v837 = vadd.f32 %v404, %v836
      %838 = vmatmul.bf16.gmra.mxu0 %v673
      %v839 = vpop.f32.mrf.mxu0
      %v840 = vadd.f32 %v404, %v839
      %v841 = vpop.f32.mrf.mxu0
      %v842 = vadd.f32 %v404, %v841
      %843 = vdwg.mxu0
      %v844 = vxor.u32 %v685, 2147483648
      %v845 = vxor.u32 %v687, 2147483648
      %v846 = vxor.u32 %v690, 2147483648
      %v847 = vxor.u32 %v692, 2147483648
      %v848 = vxor.u32 %v695, 2147483648
      %v849 = vxor.u32 %v697, 2147483648
      %v850 = vxor.u32 %v700, 2147483648
      %v851 = vxor.u32 %v702, 2147483648
      %v852 = vxor.u32 %v705, 2147483648
      %v853 = vxor.u32 %v707, 2147483648
      %v854 = vxor.u32 %v710, 2147483648
      %v855 = vxor.u32 %v712, 2147483648
      %v856 = vxor.u32 %v715, 2147483648
      %v857 = vxor.u32 %v717, 2147483648
      %v858 = vxor.u32 %v720, 2147483648
      %v859 = vxor.u32 %v722, 2147483648
      %v860 = vxor.u32 %v725, 2147483648
      %v861 = vxor.u32 %v727, 2147483648
      %v862 = vxor.u32 %v730, 2147483648
      %v863 = vxor.u32 %v732, 2147483648
      %v864 = vxor.u32 %v735, 2147483648
      %v865 = vxor.u32 %v737, 2147483648
      %v866 = vxor.u32 %v740, 2147483648
      %v867 = vxor.u32 %v742, 2147483648
      %v868 = vxor.u32 %v745, 2147483648
      %v869 = vxor.u32 %v747, 2147483648
      %v870 = vxor.u32 %v750, 2147483648
      %v871 = vxor.u32 %v752, 2147483648
      %v872 = vxor.u32 %v755, 2147483648
      %v873 = vxor.u32 %v757, 2147483648
      %v874 = vxor.u32 %v760, 2147483648
      %v875 = vxor.u32 %v762, 2147483648
      %v876 = vxor.u32 %v765, 2147483648
      %v877 = vxor.u32 %v767, 2147483648
      %v878 = vxor.u32 %v770, 2147483648
      %v879 = vxor.u32 %v772, 2147483648
      %v880 = vxor.u32 %v775, 2147483648
      %v881 = vxor.u32 %v777, 2147483648
      %v882 = vxor.u32 %v780, 2147483648
      %v883 = vxor.u32 %v782, 2147483648
      %v884 = vxor.u32 %v785, 2147483648
      %v885 = vxor.u32 %v787, 2147483648
      %v886 = vxor.u32 %v790, 2147483648
      %v887 = vxor.u32 %v792, 2147483648
      %v888 = vxor.u32 %v795, 2147483648
      %v889 = vxor.u32 %v797, 2147483648
      %v890 = vxor.u32 %v800, 2147483648
      %v891 = vxor.u32 %v802, 2147483648
      %v892 = vxor.u32 %v805, 2147483648
      %v893 = vxor.u32 %v807, 2147483648
      %v894 = vxor.u32 %v810, 2147483648
      %v895 = vxor.u32 %v812, 2147483648
      %v896 = vxor.u32 %v815, 2147483648
      %v897 = vxor.u32 %v817, 2147483648
      %v898 = vxor.u32 %v820, 2147483648
      %v899 = vxor.u32 %v822, 2147483648
      %v900 = vxor.u32 %v825, 2147483648
      %v901 = vxor.u32 %v827, 2147483648
      %v902 = vxor.u32 %v830, 2147483648
      %v903 = vxor.u32 %v832, 2147483648
      %v904 = vxor.u32 %v835, 2147483648
      %v905 = vxor.u32 %v837, 2147483648
      %v906 = vxor.u32 %v840, 2147483648
      %v907 = vxor.u32 %v842, 2147483648
      %v908 = vmul.f32 %v844, 1.442695
      %v909 = vpow.pop %v908
      %v910 = vmul.f32 %v845, 1.442695
      %v911 = vpow.pop %v910
      %v912 = vmul.f32 %v846, 1.442695
      %v913 = vpow.pop %v912
      %v914 = vmul.f32 %v847, 1.442695
      %v915 = vpow.pop %v914
      %v916 = vmul.f32 %v848, 1.442695
      %v917 = vpow.pop %v916
      %v918 = vmul.f32 %v849, 1.442695
      %v919 = vpow.pop %v918
      %v920 = vmul.f32 %v850, 1.442695
      %v921 = vpow.pop %v920
      %v922 = vmul.f32 %v851, 1.442695
      %v923 = vpow.pop %v922
      %v924 = vmul.f32 %v852, 1.442695
      %v925 = vpow.pop %v924
      %v926 = vmul.f32 %v853, 1.442695
      %v927 = vpow.pop %v926
      %v928 = vmul.f32 %v854, 1.442695
      %v929 = vpow.pop %v928
      %v930 = vmul.f32 %v855, 1.442695
      %v931 = vpow.pop %v930
      %v932 = vmul.f32 %v856, 1.442695
      %v933 = vpow.pop %v932
      %v934 = vmul.f32 %v857, 1.442695
      %v935 = vpow.pop %v934
      %v936 = vmul.f32 %v858, 1.442695
      %v937 = vpow.pop %v936
      %v938 = vmul.f32 %v859, 1.442695
      %v939 = vpow.pop %v938
      %v940 = vmul.f32 %v860, 1.442695
      %v941 = vpow.pop %v940
      %v942 = vmul.f32 %v861, 1.442695
      %v943 = vpow.pop %v942
      %v944 = vmul.f32 %v862, 1.442695
      %v945 = vpow.pop %v944
      %v946 = vmul.f32 %v863, 1.442695
      %v947 = vpow.pop %v946
      %v948 = vmul.f32 %v864, 1.442695
      %v949 = vpow.pop %v948
      %v950 = vmul.f32 %v865, 1.442695
      %v951 = vpow.pop %v950
      %v952 = vmul.f32 %v866, 1.442695
      %v953 = vpow.pop %v952
      %v954 = vmul.f32 %v867, 1.442695
      %v955 = vpow.pop %v954
      %v956 = vmul.f32 %v868, 1.442695
      %v957 = vpow.pop %v956
      %v958 = vmul.f32 %v869, 1.442695
      %v959 = vpow.pop %v958
      %v960 = vmul.f32 %v870, 1.442695
      %v961 = vpow.pop %v960
      %v962 = vmul.f32 %v871, 1.442695
      %v963 = vpow.pop %v962
      %v964 = vmul.f32 %v872, 1.442695
      %v965 = vpow.pop %v964
      %v966 = vmul.f32 %v873, 1.442695
      %v967 = vpow.pop %v966
      %v968 = vmul.f32 %v874, 1.442695
      %v969 = vpow.pop %v968
      %v970 = vmul.f32 %v875, 1.442695
      %v971 = vpow.pop %v970
      %v972 = vmul.f32 %v876, 1.442695
      %v973 = vpow.pop %v972
      %v974 = vmul.f32 %v877, 1.442695
      %v975 = vpow.pop %v974
      %v976 = vmul.f32 %v878, 1.442695
      %v977 = vpow.pop %v976
      %v978 = vmul.f32 %v879, 1.442695
      %v979 = vpow.pop %v978
      %v980 = vmul.f32 %v880, 1.442695
      %v981 = vpow.pop %v980
      %v982 = vmul.f32 %v881, 1.442695
      %v983 = vpow.pop %v982
      %v984 = vmul.f32 %v882, 1.442695
      %v985 = vpow.pop %v984
      %v986 = vmul.f32 %v883, 1.442695
      %v987 = vpow.pop %v986
      %v988 = vmul.f32 %v884, 1.442695
      %v989 = vpow.pop %v988
      %v990 = vmul.f32 %v885, 1.442695
      %v991 = vpow.pop %v990
      %v992 = vmul.f32 %v886, 1.442695
      %v993 = vpow.pop %v992
      %v994 = vmul.f32 %v887, 1.442695
      %v995 = vpow.pop %v994
      %v996 = vmul.f32 %v888, 1.442695
      %v997 = vpow.pop %v996
      %v998 = vmul.f32 %v889, 1.442695
      %v999 = vpow.pop %v998
      %v1000 = vmul.f32 %v890, 1.442695
      %v1001 = vpow.pop %v1000
      %v1002 = vmul.f32 %v891, 1.442695
      %v1003 = vpow.pop %v1002
      %v1004 = vmul.f32 %v892, 1.442695
      %v1005 = vpow.pop %v1004
      %v1006 = vmul.f32 %v893, 1.442695
      %v1007 = vpow.pop %v1006
      %v1008 = vmul.f32 %v894, 1.442695
      %v1009 = vpow.pop %v1008
      %v1010 = vmul.f32 %v895, 1.442695
      %v1011 = vpow.pop %v1010
      %v1012 = vmul.f32 %v896, 1.442695
      %v1013 = vpow.pop %v1012
      %v1014 = vmul.f32 %v897, 1.442695
      %v1015 = vpow.pop %v1014
      %v1016 = vmul.f32 %v898, 1.442695
      %v1017 = vpow.pop %v1016
      %v1018 = vmul.f32 %v899, 1.442695
      %v1019 = vpow.pop %v1018
      %v1020 = vmul.f32 %v900, 1.442695
      %v1021 = vpow.pop %v1020
      %v1022 = vmul.f32 %v901, 1.442695
      %v1023 = vpow.pop %v1022
      %v1024 = vmul.f32 %v902, 1.442695
      %v1025 = vpow.pop %v1024
      %v1026 = vmul.f32 %v903, 1.442695
      %v1027 = vpow.pop %v1026
      %v1028 = vmul.f32 %v904, 1.442695
      %v1029 = vpow.pop %v1028
      %v1030 = vmul.f32 %v905, 1.442695
      %v1031 = vpow.pop %v1030
      %v1032 = vmul.f32 %v906, 1.442695
      %v1033 = vpow.pop %v1032
      %v1034 = vmul.f32 %v907, 1.442695
      %v1035 = vpow.pop %v1034
      %v1036 = vadd.f32 %v909, 1.0
      %v1037 = vadd.f32 %v911, 1.0
      %v1038 = vadd.f32 %v913, 1.0
      %v1039 = vadd.f32 %v915, 1.0
      %v1040 = vadd.f32 %v917, 1.0
      %v1041 = vadd.f32 %v919, 1.0
      %v1042 = vadd.f32 %v921, 1.0
      %v1043 = vadd.f32 %v923, 1.0
      %v1044 = vadd.f32 %v925, 1.0
      %v1045 = vadd.f32 %v927, 1.0
      %v1046 = vadd.f32 %v929, 1.0
      %v1047 = vadd.f32 %v931, 1.0
      %v1048 = vadd.f32 %v933, 1.0
      %v1049 = vadd.f32 %v935, 1.0
      %v1050 = vadd.f32 %v937, 1.0
      %v1051 = vadd.f32 %v939, 1.0
      %v1052 = vadd.f32 %v941, 1.0
      %v1053 = vadd.f32 %v943, 1.0
      %v1054 = vadd.f32 %v945, 1.0
      %v1055 = vadd.f32 %v947, 1.0
      %v1056 = vadd.f32 %v949, 1.0
      %v1057 = vadd.f32 %v951, 1.0
      %v1058 = vadd.f32 %v953, 1.0
      %v1059 = vadd.f32 %v955, 1.0
      %v1060 = vadd.f32 %v957, 1.0
      %v1061 = vadd.f32 %v959, 1.0
      %v1062 = vadd.f32 %v961, 1.0
      %v1063 = vadd.f32 %v963, 1.0
      %v1064 = vadd.f32 %v965, 1.0
      %v1065 = vadd.f32 %v967, 1.0
      %v1066 = vadd.f32 %v969, 1.0
      %v1067 = vadd.f32 %v971, 1.0
      %v1068 = vadd.f32 %v973, 1.0
      %v1069 = vadd.f32 %v975, 1.0
      %v1070 = vadd.f32 %v977, 1.0
      %v1071 = vadd.f32 %v979, 1.0
      %v1072 = vadd.f32 %v981, 1.0
      %v1073 = vadd.f32 %v983, 1.0
      %v1074 = vadd.f32 %v985, 1.0
      %v1075 = vadd.f32 %v987, 1.0
      %v1076 = vadd.f32 %v989, 1.0
      %v1077 = vadd.f32 %v991, 1.0
      %v1078 = vadd.f32 %v993, 1.0
      %v1079 = vadd.f32 %v995, 1.0
      %v1080 = vadd.f32 %v997, 1.0
      %v1081 = vadd.f32 %v999, 1.0
      %v1082 = vadd.f32 %v1001, 1.0
      %v1083 = vadd.f32 %v1003, 1.0
      %v1084 = vadd.f32 %v1005, 1.0
      %v1085 = vadd.f32 %v1007, 1.0
      %v1086 = vadd.f32 %v1009, 1.0
      %v1087 = vadd.f32 %v1011, 1.0
      %v1088 = vadd.f32 %v1013, 1.0
      %v1089 = vadd.f32 %v1015, 1.0
      %v1090 = vadd.f32 %v1017, 1.0
      %v1091 = vadd.f32 %v1019, 1.0
      %v1092 = vadd.f32 %v1021, 1.0
      %v1093 = vadd.f32 %v1023, 1.0
      %v1094 = vadd.f32 %v1025, 1.0
      %v1095 = vadd.f32 %v1027, 1.0
      %v1096 = vadd.f32 %v1029, 1.0
      %v1097 = vadd.f32 %v1031, 1.0
      %v1098 = vadd.f32 %v1033, 1.0
      %v1099 = vadd.f32 %v1035, 1.0
      %v1100 = vrcp.pop %v1036
      %v1101 = vmul.f32 %v1036, %v1100
      %v1102 = vsub.f32 1.0, %v1101
      %v1103 = vmul.f32 %v1100, %v1102
      %v1104 = vadd.f32 %v1100, %v1103
      %vm1105 = vweird.f32 %v1036
      %vm1106 = vweird.f32 %v1100
      %vm1107 = vmor %vm1105, %vm1106
      %v1108 = vsel %vm1107, %v1100, %v1104
      %v1109 = vand.u32 2147483647, %v1036
      %vm1110 = vcmp.eq.f32.partialorder %v1109, 8.507059e+37
      %v1111 = vand.u32 %v1036, 2147483648
      %v1112 = vor.u32 1.1754944e-38, %v1111
      %v1113 = vsel %vm1110, %v1112, %v1108
      %v1114 = vmul.f32 1.0, %v1113
      %v1115 = vrcp.pop %v1037
      %v1116 = vmul.f32 %v1037, %v1115
      %v1117 = vsub.f32 1.0, %v1116
      %v1118 = vmul.f32 %v1115, %v1117
      %v1119 = vadd.f32 %v1115, %v1118
      %vm1120 = vweird.f32 %v1037
      %vm1121 = vweird.f32 %v1115
      %vm1122 = vmor %vm1120, %vm1121
      %v1123 = vsel %vm1122, %v1115, %v1119
      %v1124 = vand.u32 2147483647, %v1037
      %vm1125 = vcmp.eq.f32.partialorder %v1124, 8.507059e+37
      %v1126 = vand.u32 %v1037, 2147483648
      %v1127 = vor.u32 1.1754944e-38, %v1126
      %v1128 = vsel %vm1125, %v1127, %v1123
      %v1129 = vmul.f32 1.0, %v1128
      %v1130 = vrcp.pop %v1038
      %v1131 = vmul.f32 %v1038, %v1130
      %v1132 = vsub.f32 1.0, %v1131
      %v1133 = vmul.f32 %v1130, %v1132
      %v1134 = vadd.f32 %v1130, %v1133
      %vm1135 = vweird.f32 %v1038
      %vm1136 = vweird.f32 %v1130
      %vm1137 = vmor %vm1135, %vm1136
      %v1138 = vsel %vm1137, %v1130, %v1134
      %v1139 = vand.u32 2147483647, %v1038
      %vm1140 = vcmp.eq.f32.partialorder %v1139, 8.507059e+37
      %v1141 = vand.u32 %v1038, 2147483648
      %v1142 = vor.u32 1.1754944e-38, %v1141
      %v1143 = vsel %vm1140, %v1142, %v1138
      %v1144 = vmul.f32 1.0, %v1143
      %v1145 = vrcp.pop %v1039
      %v1146 = vmul.f32 %v1039, %v1145
      %v1147 = vsub.f32 1.0, %v1146
      %v1148 = vmul.f32 %v1145, %v1147
      %v1149 = vadd.f32 %v1145, %v1148
      %vm1150 = vweird.f32 %v1039
      %vm1151 = vweird.f32 %v1145
      %vm1152 = vmor %vm1150, %vm1151
      %v1153 = vsel %vm1152, %v1145, %v1149
      %v1154 = vand.u32 2147483647, %v1039
      %vm1155 = vcmp.eq.f32.partialorder %v1154, 8.507059e+37
      %v1156 = vand.u32 %v1039, 2147483648
      %v1157 = vor.u32 1.1754944e-38, %v1156
      %v1158 = vsel %vm1155, %v1157, %v1153
      %v1159 = vmul.f32 1.0, %v1158
      %v1160 = vrcp.pop %v1040
      %v1161 = vmul.f32 %v1040, %v1160
      %v1162 = vsub.f32 1.0, %v1161
      %v1163 = vmul.f32 %v1160, %v1162
      %v1164 = vadd.f32 %v1160, %v1163
      %vm1165 = vweird.f32 %v1040
      %vm1166 = vweird.f32 %v1160
      %vm1167 = vmor %vm1165, %vm1166
      %v1168 = vsel %vm1167, %v1160, %v1164
      %v1169 = vand.u32 2147483647, %v1040
      %vm1170 = vcmp.eq.f32.partialorder %v1169, 8.507059e+37
      %v1171 = vand.u32 %v1040, 2147483648
      %v1172 = vor.u32 1.1754944e-38, %v1171
      %v1173 = vsel %vm1170, %v1172, %v1168
      %v1174 = vmul.f32 1.0, %v1173
      %v1175 = vrcp.pop %v1041
      %v1176 = vmul.f32 %v1041, %v1175
      %v1177 = vsub.f32 1.0, %v1176
      %v1178 = vmul.f32 %v1175, %v1177
      %v1179 = vadd.f32 %v1175, %v1178
      %vm1180 = vweird.f32 %v1041
      %vm1181 = vweird.f32 %v1175
      %vm1182 = vmor %vm1180, %vm1181
      %v1183 = vsel %vm1182, %v1175, %v1179
      %v1184 = vand.u32 2147483647, %v1041
      %vm1185 = vcmp.eq.f32.partialorder %v1184, 8.507059e+37
      %v1186 = vand.u32 %v1041, 2147483648
      %v1187 = vor.u32 1.1754944e-38, %v1186
      %v1188 = vsel %vm1185, %v1187, %v1183
      %v1189 = vmul.f32 1.0, %v1188
      %v1190 = vrcp.pop %v1042
      %v1191 = vmul.f32 %v1042, %v1190
      %v1192 = vsub.f32 1.0, %v1191
      %v1193 = vmul.f32 %v1190, %v1192
      %v1194 = vadd.f32 %v1190, %v1193
      %vm1195 = vweird.f32 %v1042
      %vm1196 = vweird.f32 %v1190
      %vm1197 = vmor %vm1195, %vm1196
      %v1198 = vsel %vm1197, %v1190, %v1194
      %v1199 = vand.u32 2147483647, %v1042
      %vm1200 = vcmp.eq.f32.partialorder %v1199, 8.507059e+37
      %v1201 = vand.u32 %v1042, 2147483648
      %v1202 = vor.u32 1.1754944e-38, %v1201
      %v1203 = vsel %vm1200, %v1202, %v1198
      %v1204 = vmul.f32 1.0, %v1203
      %v1205 = vrcp.pop %v1043
      %v1206 = vmul.f32 %v1043, %v1205
      %v1207 = vsub.f32 1.0, %v1206
      %v1208 = vmul.f32 %v1205, %v1207
      %v1209 = vadd.f32 %v1205, %v1208
      %vm1210 = vweird.f32 %v1043
      %vm1211 = vweird.f32 %v1205
      %vm1212 = vmor %vm1210, %vm1211
      %v1213 = vsel %vm1212, %v1205, %v1209
      %v1214 = vand.u32 2147483647, %v1043
      %vm1215 = vcmp.eq.f32.partialorder %v1214, 8.507059e+37
      %v1216 = vand.u32 %v1043, 2147483648
      %v1217 = vor.u32 1.1754944e-38, %v1216
      %v1218 = vsel %vm1215, %v1217, %v1213
      %v1219 = vmul.f32 1.0, %v1218
      %v1220 = vrcp.pop %v1044
      %v1221 = vmul.f32 %v1044, %v1220
      %v1222 = vsub.f32 1.0, %v1221
      %v1223 = vmul.f32 %v1220, %v1222
      %v1224 = vadd.f32 %v1220, %v1223
      %vm1225 = vweird.f32 %v1044
      %vm1226 = vweird.f32 %v1220
      %vm1227 = vmor %vm1225, %vm1226
      %v1228 = vsel %vm1227, %v1220, %v1224
      %v1229 = vand.u32 2147483647, %v1044
      %vm1230 = vcmp.eq.f32.partialorder %v1229, 8.507059e+37
      %v1231 = vand.u32 %v1044, 2147483648
      %v1232 = vor.u32 1.1754944e-38, %v1231
      %v1233 = vsel %vm1230, %v1232, %v1228
      %v1234 = vmul.f32 1.0, %v1233
      %v1235 = vrcp.pop %v1045
      %v1236 = vmul.f32 %v1045, %v1235
      %v1237 = vsub.f32 1.0, %v1236
      %v1238 = vmul.f32 %v1235, %v1237
      %v1239 = vadd.f32 %v1235, %v1238
      %vm1240 = vweird.f32 %v1045
      %vm1241 = vweird.f32 %v1235
      %vm1242 = vmor %vm1240, %vm1241
      %v1243 = vsel %vm1242, %v1235, %v1239
      %v1244 = vand.u32 2147483647, %v1045
      %vm1245 = vcmp.eq.f32.partialorder %v1244, 8.507059e+37
      %v1246 = vand.u32 %v1045, 2147483648
      %v1247 = vor.u32 1.1754944e-38, %v1246
      %v1248 = vsel %vm1245, %v1247, %v1243
      %v1249 = vmul.f32 1.0, %v1248
      %v1250 = vrcp.pop %v1046
      %v1251 = vmul.f32 %v1046, %v1250
      %v1252 = vsub.f32 1.0, %v1251
      %v1253 = vmul.f32 %v1250, %v1252
      %v1254 = vadd.f32 %v1250, %v1253
      %vm1255 = vweird.f32 %v1046
      %vm1256 = vweird.f32 %v1250
      %vm1257 = vmor %vm1255, %vm1256
      %v1258 = vsel %vm1257, %v1250, %v1254
      %v1259 = vand.u32 2147483647, %v1046
      %vm1260 = vcmp.eq.f32.partialorder %v1259, 8.507059e+37
      %v1261 = vand.u32 %v1046, 2147483648
      %v1262 = vor.u32 1.1754944e-38, %v1261
      %v1263 = vsel %vm1260, %v1262, %v1258
      %v1264 = vmul.f32 1.0, %v1263
      %v1265 = vrcp.pop %v1047
      %v1266 = vmul.f32 %v1047, %v1265
      %v1267 = vsub.f32 1.0, %v1266
      %v1268 = vmul.f32 %v1265, %v1267
      %v1269 = vadd.f32 %v1265, %v1268
      %vm1270 = vweird.f32 %v1047
      %vm1271 = vweird.f32 %v1265
      %vm1272 = vmor %vm1270, %vm1271
      %v1273 = vsel %vm1272, %v1265, %v1269
      %v1274 = vand.u32 2147483647, %v1047
      %vm1275 = vcmp.eq.f32.partialorder %v1274, 8.507059e+37
      %v1276 = vand.u32 %v1047, 2147483648
      %v1277 = vor.u32 1.1754944e-38, %v1276
      %v1278 = vsel %vm1275, %v1277, %v1273
      %v1279 = vmul.f32 1.0, %v1278
      %v1280 = vrcp.pop %v1048
      %v1281 = vmul.f32 %v1048, %v1280
      %v1282 = vsub.f32 1.0, %v1281
      %v1283 = vmul.f32 %v1280, %v1282
      %v1284 = vadd.f32 %v1280, %v1283
      %vm1285 = vweird.f32 %v1048
      %vm1286 = vweird.f32 %v1280
      %vm1287 = vmor %vm1285, %vm1286
      %v1288 = vsel %vm1287, %v1280, %v1284
      %v1289 = vand.u32 2147483647, %v1048
      %vm1290 = vcmp.eq.f32.partialorder %v1289, 8.507059e+37
      %v1291 = vand.u32 %v1048, 2147483648
      %v1292 = vor.u32 1.1754944e-38, %v1291
      %v1293 = vsel %vm1290, %v1292, %v1288
      %v1294 = vmul.f32 1.0, %v1293
      %v1295 = vrcp.pop %v1049
      %v1296 = vmul.f32 %v1049, %v1295
      %v1297 = vsub.f32 1.0, %v1296
      %v1298 = vmul.f32 %v1295, %v1297
      %v1299 = vadd.f32 %v1295, %v1298
      %vm1300 = vweird.f32 %v1049
      %vm1301 = vweird.f32 %v1295
      %vm1302 = vmor %vm1300, %vm1301
      %v1303 = vsel %vm1302, %v1295, %v1299
      %v1304 = vand.u32 2147483647, %v1049
      %vm1305 = vcmp.eq.f32.partialorder %v1304, 8.507059e+37
      %v1306 = vand.u32 %v1049, 2147483648
      %v1307 = vor.u32 1.1754944e-38, %v1306
      %v1308 = vsel %vm1305, %v1307, %v1303
      %v1309 = vmul.f32 1.0, %v1308
      %v1310 = vrcp.pop %v1050
      %v1311 = vmul.f32 %v1050, %v1310
      %v1312 = vsub.f32 1.0, %v1311
      %v1313 = vmul.f32 %v1310, %v1312
      %v1314 = vadd.f32 %v1310, %v1313
      %vm1315 = vweird.f32 %v1050
      %vm1316 = vweird.f32 %v1310
      %vm1317 = vmor %vm1315, %vm1316
      %v1318 = vsel %vm1317, %v1310, %v1314
      %v1319 = vand.u32 2147483647, %v1050
      %vm1320 = vcmp.eq.f32.partialorder %v1319, 8.507059e+37
      %v1321 = vand.u32 %v1050, 2147483648
      %v1322 = vor.u32 1.1754944e-38, %v1321
      %v1323 = vsel %vm1320, %v1322, %v1318
      %v1324 = vmul.f32 1.0, %v1323
      %v1325 = vrcp.pop %v1051
      %v1326 = vmul.f32 %v1051, %v1325
      %v1327 = vsub.f32 1.0, %v1326
      %v1328 = vmul.f32 %v1325, %v1327
      %v1329 = vadd.f32 %v1325, %v1328
      %vm1330 = vweird.f32 %v1051
      %vm1331 = vweird.f32 %v1325
      %vm1332 = vmor %vm1330, %vm1331
      %v1333 = vsel %vm1332, %v1325, %v1329
      %v1334 = vand.u32 2147483647, %v1051
      %vm1335 = vcmp.eq.f32.partialorder %v1334, 8.507059e+37
      %v1336 = vand.u32 %v1051, 2147483648
      %v1337 = vor.u32 1.1754944e-38, %v1336
      %v1338 = vsel %vm1335, %v1337, %v1333
      %v1339 = vmul.f32 1.0, %v1338
      %v1340 = vrcp.pop %v1052
      %v1341 = vmul.f32 %v1052, %v1340
      %v1342 = vsub.f32 1.0, %v1341
      %v1343 = vmul.f32 %v1340, %v1342
      %v1344 = vadd.f32 %v1340, %v1343
      %vm1345 = vweird.f32 %v1052
      %vm1346 = vweird.f32 %v1340
      %vm1347 = vmor %vm1345, %vm1346
      %v1348 = vsel %vm1347, %v1340, %v1344
      %v1349 = vand.u32 2147483647, %v1052
      %vm1350 = vcmp.eq.f32.partialorder %v1349, 8.507059e+37
      %v1351 = vand.u32 %v1052, 2147483648
      %v1352 = vor.u32 1.1754944e-38, %v1351
      %v1353 = vsel %vm1350, %v1352, %v1348
      %v1354 = vmul.f32 1.0, %v1353
      %v1355 = vrcp.pop %v1053
      %v1356 = vmul.f32 %v1053, %v1355
      %v1357 = vsub.f32 1.0, %v1356
      %v1358 = vmul.f32 %v1355, %v1357
      %v1359 = vadd.f32 %v1355, %v1358
      %vm1360 = vweird.f32 %v1053
      %vm1361 = vweird.f32 %v1355
      %vm1362 = vmor %vm1360, %vm1361
      %v1363 = vsel %vm1362, %v1355, %v1359
      %v1364 = vand.u32 2147483647, %v1053
      %vm1365 = vcmp.eq.f32.partialorder %v1364, 8.507059e+37
      %v1366 = vand.u32 %v1053, 2147483648
      %v1367 = vor.u32 1.1754944e-38, %v1366
      %v1368 = vsel %vm1365, %v1367, %v1363
      %v1369 = vmul.f32 1.0, %v1368
      %v1370 = vrcp.pop %v1054
      %v1371 = vmul.f32 %v1054, %v1370
      %v1372 = vsub.f32 1.0, %v1371
      %v1373 = vmul.f32 %v1370, %v1372
      %v1374 = vadd.f32 %v1370, %v1373
      %vm1375 = vweird.f32 %v1054
      %vm1376 = vweird.f32 %v1370
      %vm1377 = vmor %vm1375, %vm1376
      %v1378 = vsel %vm1377, %v1370, %v1374
      %v1379 = vand.u32 2147483647, %v1054
      %vm1380 = vcmp.eq.f32.partialorder %v1379, 8.507059e+37
      %v1381 = vand.u32 %v1054, 2147483648
      %v1382 = vor.u32 1.1754944e-38, %v1381
      %v1383 = vsel %vm1380, %v1382, %v1378
      %v1384 = vmul.f32 1.0, %v1383
      %v1385 = vrcp.pop %v1055
      %v1386 = vmul.f32 %v1055, %v1385
      %v1387 = vsub.f32 1.0, %v1386
      %v1388 = vmul.f32 %v1385, %v1387
      %v1389 = vadd.f32 %v1385, %v1388
      %vm1390 = vweird.f32 %v1055
      %vm1391 = vweird.f32 %v1385
      %vm1392 = vmor %vm1390, %vm1391
      %v1393 = vsel %vm1392, %v1385, %v1389
      %v1394 = vand.u32 2147483647, %v1055
      %vm1395 = vcmp.eq.f32.partialorder %v1394, 8.507059e+37
      %v1396 = vand.u32 %v1055, 2147483648
      %v1397 = vor.u32 1.1754944e-38, %v1396
      %v1398 = vsel %vm1395, %v1397, %v1393
      %v1399 = vmul.f32 1.0, %v1398
      %v1400 = vrcp.pop %v1056
      %v1401 = vmul.f32 %v1056, %v1400
      %v1402 = vsub.f32 1.0, %v1401
      %v1403 = vmul.f32 %v1400, %v1402
      %v1404 = vadd.f32 %v1400, %v1403
      %vm1405 = vweird.f32 %v1056
      %vm1406 = vweird.f32 %v1400
      %vm1407 = vmor %vm1405, %vm1406
      %v1408 = vsel %vm1407, %v1400, %v1404
      %v1409 = vand.u32 2147483647, %v1056
      %vm1410 = vcmp.eq.f32.partialorder %v1409, 8.507059e+37
      %v1411 = vand.u32 %v1056, 2147483648
      %v1412 = vor.u32 1.1754944e-38, %v1411
      %v1413 = vsel %vm1410, %v1412, %v1408
      %v1414 = vmul.f32 1.0, %v1413
      %v1415 = vrcp.pop %v1057
      %v1416 = vmul.f32 %v1057, %v1415
      %v1417 = vsub.f32 1.0, %v1416
      %v1418 = vmul.f32 %v1415, %v1417
      %v1419 = vadd.f32 %v1415, %v1418
      %vm1420 = vweird.f32 %v1057
      %vm1421 = vweird.f32 %v1415
      %vm1422 = vmor %vm1420, %vm1421
      %v1423 = vsel %vm1422, %v1415, %v1419
      %v1424 = vand.u32 2147483647, %v1057
      %vm1425 = vcmp.eq.f32.partialorder %v1424, 8.507059e+37
      %v1426 = vand.u32 %v1057, 2147483648
      %v1427 = vor.u32 1.1754944e-38, %v1426
      %v1428 = vsel %vm1425, %v1427, %v1423
      %v1429 = vmul.f32 1.0, %v1428
      %v1430 = vrcp.pop %v1058
      %v1431 = vmul.f32 %v1058, %v1430
      %v1432 = vsub.f32 1.0, %v1431
      %v1433 = vmul.f32 %v1430, %v1432
      %v1434 = vadd.f32 %v1430, %v1433
      %vm1435 = vweird.f32 %v1058
      %vm1436 = vweird.f32 %v1430
      %vm1437 = vmor %vm1435, %vm1436
      %v1438 = vsel %vm1437, %v1430, %v1434
      %v1439 = vand.u32 2147483647, %v1058
      %vm1440 = vcmp.eq.f32.partialorder %v1439, 8.507059e+37
      %v1441 = vand.u32 %v1058, 2147483648
      %v1442 = vor.u32 1.1754944e-38, %v1441
      %v1443 = vsel %vm1440, %v1442, %v1438
      %v1444 = vmul.f32 1.0, %v1443
      %v1445 = vrcp.pop %v1059
      %v1446 = vmul.f32 %v1059, %v1445
      %v1447 = vsub.f32 1.0, %v1446
      %v1448 = vmul.f32 %v1445, %v1447
      %v1449 = vadd.f32 %v1445, %v1448
      %vm1450 = vweird.f32 %v1059
      %vm1451 = vweird.f32 %v1445
      %vm1452 = vmor %vm1450, %vm1451
      %v1453 = vsel %vm1452, %v1445, %v1449
      %v1454 = vand.u32 2147483647, %v1059
      %vm1455 = vcmp.eq.f32.partialorder %v1454, 8.507059e+37
      %v1456 = vand.u32 %v1059, 2147483648
      %v1457 = vor.u32 1.1754944e-38, %v1456
      %v1458 = vsel %vm1455, %v1457, %v1453
      %v1459 = vmul.f32 1.0, %v1458
      %v1460 = vrcp.pop %v1060
      %v1461 = vmul.f32 %v1060, %v1460
      %v1462 = vsub.f32 1.0, %v1461
      %v1463 = vmul.f32 %v1460, %v1462
      %v1464 = vadd.f32 %v1460, %v1463
      %vm1465 = vweird.f32 %v1060
      %vm1466 = vweird.f32 %v1460
      %vm1467 = vmor %vm1465, %vm1466
      %v1468 = vsel %vm1467, %v1460, %v1464
      %v1469 = vand.u32 2147483647, %v1060
      %vm1470 = vcmp.eq.f32.partialorder %v1469, 8.507059e+37
      %v1471 = vand.u32 %v1060, 2147483648
      %v1472 = vor.u32 1.1754944e-38, %v1471
      %v1473 = vsel %vm1470, %v1472, %v1468
      %v1474 = vmul.f32 1.0, %v1473
      %v1475 = vrcp.pop %v1061
      %v1476 = vmul.f32 %v1061, %v1475
      %v1477 = vsub.f32 1.0, %v1476
      %v1478 = vmul.f32 %v1475, %v1477
      %v1479 = vadd.f32 %v1475, %v1478
      %vm1480 = vweird.f32 %v1061
      %vm1481 = vweird.f32 %v1475
      %vm1482 = vmor %vm1480, %vm1481
      %v1483 = vsel %vm1482, %v1475, %v1479
      %v1484 = vand.u32 2147483647, %v1061
      %vm1485 = vcmp.eq.f32.partialorder %v1484, 8.507059e+37
      %v1486 = vand.u32 %v1061, 2147483648
      %v1487 = vor.u32 1.1754944e-38, %v1486
      %v1488 = vsel %vm1485, %v1487, %v1483
      %v1489 = vmul.f32 1.0, %v1488
      %v1490 = vrcp.pop %v1062
      %v1491 = vmul.f32 %v1062, %v1490
      %v1492 = vsub.f32 1.0, %v1491
      %v1493 = vmul.f32 %v1490, %v1492
      %v1494 = vadd.f32 %v1490, %v1493
      %vm1495 = vweird.f32 %v1062
      %vm1496 = vweird.f32 %v1490
      %vm1497 = vmor %vm1495, %vm1496
      %v1498 = vsel %vm1497, %v1490, %v1494
      %v1499 = vand.u32 2147483647, %v1062
      %vm1500 = vcmp.eq.f32.partialorder %v1499, 8.507059e+37
      %v1501 = vand.u32 %v1062, 2147483648
      %v1502 = vor.u32 1.1754944e-38, %v1501
      %v1503 = vsel %vm1500, %v1502, %v1498
      %v1504 = vmul.f32 1.0, %v1503
      %v1505 = vrcp.pop %v1063
      %v1506 = vmul.f32 %v1063, %v1505
      %v1507 = vsub.f32 1.0, %v1506
      %v1508 = vmul.f32 %v1505, %v1507
      %v1509 = vadd.f32 %v1505, %v1508
      %vm1510 = vweird.f32 %v1063
      %vm1511 = vweird.f32 %v1505
      %vm1512 = vmor %vm1510, %vm1511
      %v1513 = vsel %vm1512, %v1505, %v1509
      %v1514 = vand.u32 2147483647, %v1063
      %vm1515 = vcmp.eq.f32.partialorder %v1514, 8.507059e+37
      %v1516 = vand.u32 %v1063, 2147483648
      %v1517 = vor.u32 1.1754944e-38, %v1516
      %v1518 = vsel %vm1515, %v1517, %v1513
      %v1519 = vmul.f32 1.0, %v1518
      %v1520 = vrcp.pop %v1064
      %v1521 = vmul.f32 %v1064, %v1520
      %v1522 = vsub.f32 1.0, %v1521
      %v1523 = vmul.f32 %v1520, %v1522
      %v1524 = vadd.f32 %v1520, %v1523
      %vm1525 = vweird.f32 %v1064
      %vm1526 = vweird.f32 %v1520
      %vm1527 = vmor %vm1525, %vm1526
      %v1528 = vsel %vm1527, %v1520, %v1524
      %v1529 = vand.u32 2147483647, %v1064
      %vm1530 = vcmp.eq.f32.partialorder %v1529, 8.507059e+37
      %v1531 = vand.u32 %v1064, 2147483648
      %v1532 = vor.u32 1.1754944e-38, %v1531
      %v1533 = vsel %vm1530, %v1532, %v1528
      %v1534 = vmul.f32 1.0, %v1533
      %v1535 = vrcp.pop %v1065
      %v1536 = vmul.f32 %v1065, %v1535
      %v1537 = vsub.f32 1.0, %v1536
      %v1538 = vmul.f32 %v1535, %v1537
      %v1539 = vadd.f32 %v1535, %v1538
      %vm1540 = vweird.f32 %v1065
      %vm1541 = vweird.f32 %v1535
      %vm1542 = vmor %vm1540, %vm1541
      %v1543 = vsel %vm1542, %v1535, %v1539
      %v1544 = vand.u32 2147483647, %v1065
      %vm1545 = vcmp.eq.f32.partialorder %v1544, 8.507059e+37
      %v1546 = vand.u32 %v1065, 2147483648
      %v1547 = vor.u32 1.1754944e-38, %v1546
      %v1548 = vsel %vm1545, %v1547, %v1543
      %v1549 = vmul.f32 1.0, %v1548
      %v1550 = vrcp.pop %v1066
      %v1551 = vmul.f32 %v1066, %v1550
      %v1552 = vsub.f32 1.0, %v1551
      %v1553 = vmul.f32 %v1550, %v1552
      %v1554 = vadd.f32 %v1550, %v1553
      %vm1555 = vweird.f32 %v1066
      %vm1556 = vweird.f32 %v1550
      %vm1557 = vmor %vm1555, %vm1556
      %v1558 = vsel %vm1557, %v1550, %v1554
      %v1559 = vand.u32 2147483647, %v1066
      %vm1560 = vcmp.eq.f32.partialorder %v1559, 8.507059e+37
      %v1561 = vand.u32 %v1066, 2147483648
      %v1562 = vor.u32 1.1754944e-38, %v1561
      %v1563 = vsel %vm1560, %v1562, %v1558
      %v1564 = vmul.f32 1.0, %v1563
      %v1565 = vrcp.pop %v1067
      %v1566 = vmul.f32 %v1067, %v1565
      %v1567 = vsub.f32 1.0, %v1566
      %v1568 = vmul.f32 %v1565, %v1567
      %v1569 = vadd.f32 %v1565, %v1568
      %vm1570 = vweird.f32 %v1067
      %vm1571 = vweird.f32 %v1565
      %vm1572 = vmor %vm1570, %vm1571
      %v1573 = vsel %vm1572, %v1565, %v1569
      %v1574 = vand.u32 2147483647, %v1067
      %vm1575 = vcmp.eq.f32.partialorder %v1574, 8.507059e+37
      %v1576 = vand.u32 %v1067, 2147483648
      %v1577 = vor.u32 1.1754944e-38, %v1576
      %v1578 = vsel %vm1575, %v1577, %v1573
      %v1579 = vmul.f32 1.0, %v1578
      %v1580 = vrcp.pop %v1068
      %v1581 = vmul.f32 %v1068, %v1580
      %v1582 = vsub.f32 1.0, %v1581
      %v1583 = vmul.f32 %v1580, %v1582
      %v1584 = vadd.f32 %v1580, %v1583
      %vm1585 = vweird.f32 %v1068
      %vm1586 = vweird.f32 %v1580
      %vm1587 = vmor %vm1585, %vm1586
      %v1588 = vsel %vm1587, %v1580, %v1584
      %v1589 = vand.u32 2147483647, %v1068
      %vm1590 = vcmp.eq.f32.partialorder %v1589, 8.507059e+37
      %v1591 = vand.u32 %v1068, 2147483648
      %v1592 = vor.u32 1.1754944e-38, %v1591
      %v1593 = vsel %vm1590, %v1592, %v1588
      %v1594 = vmul.f32 1.0, %v1593
      %v1595 = vrcp.pop %v1069
      %v1596 = vmul.f32 %v1069, %v1595
      %v1597 = vsub.f32 1.0, %v1596
      %v1598 = vmul.f32 %v1595, %v1597
      %v1599 = vadd.f32 %v1595, %v1598
      %vm1600 = vweird.f32 %v1069
      %vm1601 = vweird.f32 %v1595
      %vm1602 = vmor %vm1600, %vm1601
      %v1603 = vsel %vm1602, %v1595, %v1599
      %v1604 = vand.u32 2147483647, %v1069
      %vm1605 = vcmp.eq.f32.partialorder %v1604, 8.507059e+37
      %v1606 = vand.u32 %v1069, 2147483648
      %v1607 = vor.u32 1.1754944e-38, %v1606
      %v1608 = vsel %vm1605, %v1607, %v1603
      %v1609 = vmul.f32 1.0, %v1608
      %v1610 = vrcp.pop %v1070
      %v1611 = vmul.f32 %v1070, %v1610
      %v1612 = vsub.f32 1.0, %v1611
      %v1613 = vmul.f32 %v1610, %v1612
      %v1614 = vadd.f32 %v1610, %v1613
      %vm1615 = vweird.f32 %v1070
      %vm1616 = vweird.f32 %v1610
      %vm1617 = vmor %vm1615, %vm1616
      %v1618 = vsel %vm1617, %v1610, %v1614
      %v1619 = vand.u32 2147483647, %v1070
      %vm1620 = vcmp.eq.f32.partialorder %v1619, 8.507059e+37
      %v1621 = vand.u32 %v1070, 2147483648
      %v1622 = vor.u32 1.1754944e-38, %v1621
      %v1623 = vsel %vm1620, %v1622, %v1618
      %v1624 = vmul.f32 1.0, %v1623
      %v1625 = vrcp.pop %v1071
      %v1626 = vmul.f32 %v1071, %v1625
      %v1627 = vsub.f32 1.0, %v1626
      %v1628 = vmul.f32 %v1625, %v1627
      %v1629 = vadd.f32 %v1625, %v1628
      %vm1630 = vweird.f32 %v1071
      %vm1631 = vweird.f32 %v1625
      %vm1632 = vmor %vm1630, %vm1631
      %v1633 = vsel %vm1632, %v1625, %v1629
      %v1634 = vand.u32 2147483647, %v1071
      %vm1635 = vcmp.eq.f32.partialorder %v1634, 8.507059e+37
      %v1636 = vand.u32 %v1071, 2147483648
      %v1637 = vor.u32 1.1754944e-38, %v1636
      %v1638 = vsel %vm1635, %v1637, %v1633
      %v1639 = vmul.f32 1.0, %v1638
      %v1640 = vrcp.pop %v1072
      %v1641 = vmul.f32 %v1072, %v1640
      %v1642 = vsub.f32 1.0, %v1641
      %v1643 = vmul.f32 %v1640, %v1642
      %v1644 = vadd.f32 %v1640, %v1643
      %vm1645 = vweird.f32 %v1072
      %vm1646 = vweird.f32 %v1640
      %vm1647 = vmor %vm1645, %vm1646
      %v1648 = vsel %vm1647, %v1640, %v1644
      %v1649 = vand.u32 2147483647, %v1072
      %vm1650 = vcmp.eq.f32.partialorder %v1649, 8.507059e+37
      %v1651 = vand.u32 %v1072, 2147483648
      %v1652 = vor.u32 1.1754944e-38, %v1651
      %v1653 = vsel %vm1650, %v1652, %v1648
      %v1654 = vmul.f32 1.0, %v1653
      %v1655 = vrcp.pop %v1073
      %v1656 = vmul.f32 %v1073, %v1655
      %v1657 = vsub.f32 1.0, %v1656
      %v1658 = vmul.f32 %v1655, %v1657
      %v1659 = vadd.f32 %v1655, %v1658
      %vm1660 = vweird.f32 %v1073
      %vm1661 = vweird.f32 %v1655
      %vm1662 = vmor %vm1660, %vm1661
      %v1663 = vsel %vm1662, %v1655, %v1659
      %v1664 = vand.u32 2147483647, %v1073
      %vm1665 = vcmp.eq.f32.partialorder %v1664, 8.507059e+37
      %v1666 = vand.u32 %v1073, 2147483648
      %v1667 = vor.u32 1.1754944e-38, %v1666
      %v1668 = vsel %vm1665, %v1667, %v1663
      %v1669 = vmul.f32 1.0, %v1668
      %v1670 = vrcp.pop %v1074
      %v1671 = vmul.f32 %v1074, %v1670
      %v1672 = vsub.f32 1.0, %v1671
      %v1673 = vmul.f32 %v1670, %v1672
      %v1674 = vadd.f32 %v1670, %v1673
      %vm1675 = vweird.f32 %v1074
      %vm1676 = vweird.f32 %v1670
      %vm1677 = vmor %vm1675, %vm1676
      %v1678 = vsel %vm1677, %v1670, %v1674
      %v1679 = vand.u32 2147483647, %v1074
      %vm1680 = vcmp.eq.f32.partialorder %v1679, 8.507059e+37
      %v1681 = vand.u32 %v1074, 2147483648
      %v1682 = vor.u32 1.1754944e-38, %v1681
      %v1683 = vsel %vm1680, %v1682, %v1678
      %v1684 = vmul.f32 1.0, %v1683
      %v1685 = vrcp.pop %v1075
      %v1686 = vmul.f32 %v1075, %v1685
      %v1687 = vsub.f32 1.0, %v1686
      %v1688 = vmul.f32 %v1685, %v1687
      %v1689 = vadd.f32 %v1685, %v1688
      %vm1690 = vweird.f32 %v1075
      %vm1691 = vweird.f32 %v1685
      %vm1692 = vmor %vm1690, %vm1691
      %v1693 = vsel %vm1692, %v1685, %v1689
      %v1694 = vand.u32 2147483647, %v1075
      %vm1695 = vcmp.eq.f32.partialorder %v1694, 8.507059e+37
      %v1696 = vand.u32 %v1075, 2147483648
      %v1697 = vor.u32 1.1754944e-38, %v1696
      %v1698 = vsel %vm1695, %v1697, %v1693
      %v1699 = vmul.f32 1.0, %v1698
      %v1700 = vrcp.pop %v1076
      %v1701 = vmul.f32 %v1076, %v1700
      %v1702 = vsub.f32 1.0, %v1701
      %v1703 = vmul.f32 %v1700, %v1702
      %v1704 = vadd.f32 %v1700, %v1703
      %vm1705 = vweird.f32 %v1076
      %vm1706 = vweird.f32 %v1700
      %vm1707 = vmor %vm1705, %vm1706
      %v1708 = vsel %vm1707, %v1700, %v1704
      %v1709 = vand.u32 2147483647, %v1076
      %vm1710 = vcmp.eq.f32.partialorder %v1709, 8.507059e+37
      %v1711 = vand.u32 %v1076, 2147483648
      %v1712 = vor.u32 1.1754944e-38, %v1711
      %v1713 = vsel %vm1710, %v1712, %v1708
      %v1714 = vmul.f32 1.0, %v1713
      %v1715 = vrcp.pop %v1077
      %v1716 = vmul.f32 %v1077, %v1715
      %v1717 = vsub.f32 1.0, %v1716
      %v1718 = vmul.f32 %v1715, %v1717
      %v1719 = vadd.f32 %v1715, %v1718
      %vm1720 = vweird.f32 %v1077
      %vm1721 = vweird.f32 %v1715
      %vm1722 = vmor %vm1720, %vm1721
      %v1723 = vsel %vm1722, %v1715, %v1719
      %v1724 = vand.u32 2147483647, %v1077
      %vm1725 = vcmp.eq.f32.partialorder %v1724, 8.507059e+37
      %v1726 = vand.u32 %v1077, 2147483648
      %v1727 = vor.u32 1.1754944e-38, %v1726
      %v1728 = vsel %vm1725, %v1727, %v1723
      %v1729 = vmul.f32 1.0, %v1728
      %v1730 = vrcp.pop %v1078
      %v1731 = vmul.f32 %v1078, %v1730
      %v1732 = vsub.f32 1.0, %v1731
      %v1733 = vmul.f32 %v1730, %v1732
      %v1734 = vadd.f32 %v1730, %v1733
      %vm1735 = vweird.f32 %v1078
      %vm1736 = vweird.f32 %v1730
      %vm1737 = vmor %vm1735, %vm1736
      %v1738 = vsel %vm1737, %v1730, %v1734
      %v1739 = vand.u32 2147483647, %v1078
      %vm1740 = vcmp.eq.f32.partialorder %v1739, 8.507059e+37
      %v1741 = vand.u32 %v1078, 2147483648
      %v1742 = vor.u32 1.1754944e-38, %v1741
      %v1743 = vsel %vm1740, %v1742, %v1738
      %v1744 = vmul.f32 1.0, %v1743
      %v1745 = vrcp.pop %v1079
      %v1746 = vmul.f32 %v1079, %v1745
      %v1747 = vsub.f32 1.0, %v1746
      %v1748 = vmul.f32 %v1745, %v1747
      %v1749 = vadd.f32 %v1745, %v1748
      %vm1750 = vweird.f32 %v1079
      %vm1751 = vweird.f32 %v1745
      %vm1752 = vmor %vm1750, %vm1751
      %v1753 = vsel %vm1752, %v1745, %v1749
      %v1754 = vand.u32 2147483647, %v1079
      %vm1755 = vcmp.eq.f32.partialorder %v1754, 8.507059e+37
      %v1756 = vand.u32 %v1079, 2147483648
      %v1757 = vor.u32 1.1754944e-38, %v1756
      %v1758 = vsel %vm1755, %v1757, %v1753
      %v1759 = vmul.f32 1.0, %v1758
      %v1760 = vrcp.pop %v1080
      %v1761 = vmul.f32 %v1080, %v1760
      %v1762 = vsub.f32 1.0, %v1761
      %v1763 = vmul.f32 %v1760, %v1762
      %v1764 = vadd.f32 %v1760, %v1763
      %vm1765 = vweird.f32 %v1080
      %vm1766 = vweird.f32 %v1760
      %vm1767 = vmor %vm1765, %vm1766
      %v1768 = vsel %vm1767, %v1760, %v1764
      %v1769 = vand.u32 2147483647, %v1080
      %vm1770 = vcmp.eq.f32.partialorder %v1769, 8.507059e+37
      %v1771 = vand.u32 %v1080, 2147483648
      %v1772 = vor.u32 1.1754944e-38, %v1771
      %v1773 = vsel %vm1770, %v1772, %v1768
      %v1774 = vmul.f32 1.0, %v1773
      %v1775 = vrcp.pop %v1081
      %v1776 = vmul.f32 %v1081, %v1775
      %v1777 = vsub.f32 1.0, %v1776
      %v1778 = vmul.f32 %v1775, %v1777
      %v1779 = vadd.f32 %v1775, %v1778
      %vm1780 = vweird.f32 %v1081
      %vm1781 = vweird.f32 %v1775
      %vm1782 = vmor %vm1780, %vm1781
      %v1783 = vsel %vm1782, %v1775, %v1779
      %v1784 = vand.u32 2147483647, %v1081
      %vm1785 = vcmp.eq.f32.partialorder %v1784, 8.507059e+37
      %v1786 = vand.u32 %v1081, 2147483648
      %v1787 = vor.u32 1.1754944e-38, %v1786
      %v1788 = vsel %vm1785, %v1787, %v1783
      %v1789 = vmul.f32 1.0, %v1788
      %v1790 = vrcp.pop %v1082
      %v1791 = vmul.f32 %v1082, %v1790
      %v1792 = vsub.f32 1.0, %v1791
      %v1793 = vmul.f32 %v1790, %v1792
      %v1794 = vadd.f32 %v1790, %v1793
      %vm1795 = vweird.f32 %v1082
      %vm1796 = vweird.f32 %v1790
      %vm1797 = vmor %vm1795, %vm1796
      %v1798 = vsel %vm1797, %v1790, %v1794
      %v1799 = vand.u32 2147483647, %v1082
      %vm1800 = vcmp.eq.f32.partialorder %v1799, 8.507059e+37
      %v1801 = vand.u32 %v1082, 2147483648
      %v1802 = vor.u32 1.1754944e-38, %v1801
      %v1803 = vsel %vm1800, %v1802, %v1798
      %v1804 = vmul.f32 1.0, %v1803
      %v1805 = vrcp.pop %v1083
      %v1806 = vmul.f32 %v1083, %v1805
      %v1807 = vsub.f32 1.0, %v1806
      %v1808 = vmul.f32 %v1805, %v1807
      %v1809 = vadd.f32 %v1805, %v1808
      %vm1810 = vweird.f32 %v1083
      %vm1811 = vweird.f32 %v1805
      %vm1812 = vmor %vm1810, %vm1811
      %v1813 = vsel %vm1812, %v1805, %v1809
      %v1814 = vand.u32 2147483647, %v1083
      %vm1815 = vcmp.eq.f32.partialorder %v1814, 8.507059e+37
      %v1816 = vand.u32 %v1083, 2147483648
      %v1817 = vor.u32 1.1754944e-38, %v1816
      %v1818 = vsel %vm1815, %v1817, %v1813
      %v1819 = vmul.f32 1.0, %v1818
      %v1820 = vrcp.pop %v1084
      %v1821 = vmul.f32 %v1084, %v1820
      %v1822 = vsub.f32 1.0, %v1821
      %v1823 = vmul.f32 %v1820, %v1822
      %v1824 = vadd.f32 %v1820, %v1823
      %vm1825 = vweird.f32 %v1084
      %vm1826 = vweird.f32 %v1820
      %vm1827 = vmor %vm1825, %vm1826
      %v1828 = vsel %vm1827, %v1820, %v1824
      %v1829 = vand.u32 2147483647, %v1084
      %vm1830 = vcmp.eq.f32.partialorder %v1829, 8.507059e+37
      %v1831 = vand.u32 %v1084, 2147483648
      %v1832 = vor.u32 1.1754944e-38, %v1831
      %v1833 = vsel %vm1830, %v1832, %v1828
      %v1834 = vmul.f32 1.0, %v1833
      %v1835 = vrcp.pop %v1085
      %v1836 = vmul.f32 %v1085, %v1835
      %v1837 = vsub.f32 1.0, %v1836
      %v1838 = vmul.f32 %v1835, %v1837
      %v1839 = vadd.f32 %v1835, %v1838
      %vm1840 = vweird.f32 %v1085
      %vm1841 = vweird.f32 %v1835
      %vm1842 = vmor %vm1840, %vm1841
      %v1843 = vsel %vm1842, %v1835, %v1839
      %v1844 = vand.u32 2147483647, %v1085
      %vm1845 = vcmp.eq.f32.partialorder %v1844, 8.507059e+37
      %v1846 = vand.u32 %v1085, 2147483648
      %v1847 = vor.u32 1.1754944e-38, %v1846
      %v1848 = vsel %vm1845, %v1847, %v1843
      %v1849 = vmul.f32 1.0, %v1848
      %v1850 = vrcp.pop %v1086
      %v1851 = vmul.f32 %v1086, %v1850
      %v1852 = vsub.f32 1.0, %v1851
      %v1853 = vmul.f32 %v1850, %v1852
      %v1854 = vadd.f32 %v1850, %v1853
      %vm1855 = vweird.f32 %v1086
      %vm1856 = vweird.f32 %v1850
      %vm1857 = vmor %vm1855, %vm1856
      %v1858 = vsel %vm1857, %v1850, %v1854
      %v1859 = vand.u32 2147483647, %v1086
      %vm1860 = vcmp.eq.f32.partialorder %v1859, 8.507059e+37
      %v1861 = vand.u32 %v1086, 2147483648
      %v1862 = vor.u32 1.1754944e-38, %v1861
      %v1863 = vsel %vm1860, %v1862, %v1858
      %v1864 = vmul.f32 1.0, %v1863
      %v1865 = vrcp.pop %v1087
      %v1866 = vmul.f32 %v1087, %v1865
      %v1867 = vsub.f32 1.0, %v1866
      %v1868 = vmul.f32 %v1865, %v1867
      %v1869 = vadd.f32 %v1865, %v1868
      %vm1870 = vweird.f32 %v1087
      %vm1871 = vweird.f32 %v1865
      %vm1872 = vmor %vm1870, %vm1871
      %v1873 = vsel %vm1872, %v1865, %v1869
      %v1874 = vand.u32 2147483647, %v1087
      %vm1875 = vcmp.eq.f32.partialorder %v1874, 8.507059e+37
      %v1876 = vand.u32 %v1087, 2147483648
      %v1877 = vor.u32 1.1754944e-38, %v1876
      %v1878 = vsel %vm1875, %v1877, %v1873
      %v1879 = vmul.f32 1.0, %v1878
      %v1880 = vrcp.pop %v1088
      %v1881 = vmul.f32 %v1088, %v1880
      %v1882 = vsub.f32 1.0, %v1881
      %v1883 = vmul.f32 %v1880, %v1882
      %v1884 = vadd.f32 %v1880, %v1883
      %vm1885 = vweird.f32 %v1088
      %vm1886 = vweird.f32 %v1880
      %vm1887 = vmor %vm1885, %vm1886
      %v1888 = vsel %vm1887, %v1880, %v1884
      %v1889 = vand.u32 2147483647, %v1088
      %vm1890 = vcmp.eq.f32.partialorder %v1889, 8.507059e+37
      %v1891 = vand.u32 %v1088, 2147483648
      %v1892 = vor.u32 1.1754944e-38, %v1891
      %v1893 = vsel %vm1890, %v1892, %v1888
      %v1894 = vmul.f32 1.0, %v1893
      %v1895 = vrcp.pop %v1089
      %v1896 = vmul.f32 %v1089, %v1895
      %v1897 = vsub.f32 1.0, %v1896
      %v1898 = vmul.f32 %v1895, %v1897
      %v1899 = vadd.f32 %v1895, %v1898
      %vm1900 = vweird.f32 %v1089
      %vm1901 = vweird.f32 %v1895
      %vm1902 = vmor %vm1900, %vm1901
      %v1903 = vsel %vm1902, %v1895, %v1899
      %v1904 = vand.u32 2147483647, %v1089
      %vm1905 = vcmp.eq.f32.partialorder %v1904, 8.507059e+37
      %v1906 = vand.u32 %v1089, 2147483648
      %v1907 = vor.u32 1.1754944e-38, %v1906
      %v1908 = vsel %vm1905, %v1907, %v1903
      %v1909 = vmul.f32 1.0, %v1908
      %v1910 = vrcp.pop %v1090
      %v1911 = vmul.f32 %v1090, %v1910
      %v1912 = vsub.f32 1.0, %v1911
      %v1913 = vmul.f32 %v1910, %v1912
      %v1914 = vadd.f32 %v1910, %v1913
      %vm1915 = vweird.f32 %v1090
      %vm1916 = vweird.f32 %v1910
      %vm1917 = vmor %vm1915, %vm1916
      %v1918 = vsel %vm1917, %v1910, %v1914
      %v1919 = vand.u32 2147483647, %v1090
      %vm1920 = vcmp.eq.f32.partialorder %v1919, 8.507059e+37
      %v1921 = vand.u32 %v1090, 2147483648
      %v1922 = vor.u32 1.1754944e-38, %v1921
      %v1923 = vsel %vm1920, %v1922, %v1918
      %v1924 = vmul.f32 1.0, %v1923
      %v1925 = vrcp.pop %v1091
      %v1926 = vmul.f32 %v1091, %v1925
      %v1927 = vsub.f32 1.0, %v1926
      %v1928 = vmul.f32 %v1925, %v1927
      %v1929 = vadd.f32 %v1925, %v1928
      %vm1930 = vweird.f32 %v1091
      %vm1931 = vweird.f32 %v1925
      %vm1932 = vmor %vm1930, %vm1931
      %v1933 = vsel %vm1932, %v1925, %v1929
      %v1934 = vand.u32 2147483647, %v1091
      %vm1935 = vcmp.eq.f32.partialorder %v1934, 8.507059e+37
      %v1936 = vand.u32 %v1091, 2147483648
      %v1937 = vor.u32 1.1754944e-38, %v1936
      %v1938 = vsel %vm1935, %v1937, %v1933
      %v1939 = vmul.f32 1.0, %v1938
      %v1940 = vrcp.pop %v1092
      %v1941 = vmul.f32 %v1092, %v1940
      %v1942 = vsub.f32 1.0, %v1941
      %v1943 = vmul.f32 %v1940, %v1942
      %v1944 = vadd.f32 %v1940, %v1943
      %vm1945 = vweird.f32 %v1092
      %vm1946 = vweird.f32 %v1940
      %vm1947 = vmor %vm1945, %vm1946
      %v1948 = vsel %vm1947, %v1940, %v1944
      %v1949 = vand.u32 2147483647, %v1092
      %vm1950 = vcmp.eq.f32.partialorder %v1949, 8.507059e+37
      %v1951 = vand.u32 %v1092, 2147483648
      %v1952 = vor.u32 1.1754944e-38, %v1951
      %v1953 = vsel %vm1950, %v1952, %v1948
      %v1954 = vmul.f32 1.0, %v1953
      %v1955 = vrcp.pop %v1093
      %v1956 = vmul.f32 %v1093, %v1955
      %v1957 = vsub.f32 1.0, %v1956
      %v1958 = vmul.f32 %v1955, %v1957
      %v1959 = vadd.f32 %v1955, %v1958
      %vm1960 = vweird.f32 %v1093
      %vm1961 = vweird.f32 %v1955
      %vm1962 = vmor %vm1960, %vm1961
      %v1963 = vsel %vm1962, %v1955, %v1959
      %v1964 = vand.u32 2147483647, %v1093
      %vm1965 = vcmp.eq.f32.partialorder %v1964, 8.507059e+37
      %v1966 = vand.u32 %v1093, 2147483648
      %v1967 = vor.u32 1.1754944e-38, %v1966
      %v1968 = vsel %vm1965, %v1967, %v1963
      %v1969 = vmul.f32 1.0, %v1968
      %v1970 = vrcp.pop %v1094
      %v1971 = vmul.f32 %v1094, %v1970
      %v1972 = vsub.f32 1.0, %v1971
      %v1973 = vmul.f32 %v1970, %v1972
      %v1974 = vadd.f32 %v1970, %v1973
      %vm1975 = vweird.f32 %v1094
      %vm1976 = vweird.f32 %v1970
      %vm1977 = vmor %vm1975, %vm1976
      %v1978 = vsel %vm1977, %v1970, %v1974
      %v1979 = vand.u32 2147483647, %v1094
      %vm1980 = vcmp.eq.f32.partialorder %v1979, 8.507059e+37
      %v1981 = vand.u32 %v1094, 2147483648
      %v1982 = vor.u32 1.1754944e-38, %v1981
      %v1983 = vsel %vm1980, %v1982, %v1978
      %v1984 = vmul.f32 1.0, %v1983
      %v1985 = vrcp.pop %v1095
      %v1986 = vmul.f32 %v1095, %v1985
      %v1987 = vsub.f32 1.0, %v1986
      %v1988 = vmul.f32 %v1985, %v1987
      %v1989 = vadd.f32 %v1985, %v1988
      %vm1990 = vweird.f32 %v1095
      %vm1991 = vweird.f32 %v1985
      %vm1992 = vmor %vm1990, %vm1991
      %v1993 = vsel %vm1992, %v1985, %v1989
      %v1994 = vand.u32 2147483647, %v1095
      %vm1995 = vcmp.eq.f32.partialorder %v1994, 8.507059e+37
      %v1996 = vand.u32 %v1095, 2147483648
      %v1997 = vor.u32 1.1754944e-38, %v1996
      %v1998 = vsel %vm1995, %v1997, %v1993
      %v1999 = vmul.f32 1.0, %v1998
      %v2000 = vrcp.pop %v1096
      %v2001 = vmul.f32 %v1096, %v2000
      %v2002 = vsub.f32 1.0, %v2001
      %v2003 = vmul.f32 %v2000, %v2002
      %v2004 = vadd.f32 %v2000, %v2003
      %vm2005 = vweird.f32 %v1096
      %vm2006 = vweird.f32 %v2000
      %vm2007 = vmor %vm2005, %vm2006
      %v2008 = vsel %vm2007, %v2000, %v2004
      %v2009 = vand.u32 2147483647, %v1096
      %vm2010 = vcmp.eq.f32.partialorder %v2009, 8.507059e+37
      %v2011 = vand.u32 %v1096, 2147483648
      %v2012 = vor.u32 1.1754944e-38, %v2011
      %v2013 = vsel %vm2010, %v2012, %v2008
      %v2014 = vmul.f32 1.0, %v2013
      %v2015 = vrcp.pop %v1097
      %v2016 = vmul.f32 %v1097, %v2015
      %v2017 = vsub.f32 1.0, %v2016
      %v2018 = vmul.f32 %v2015, %v2017
      %v2019 = vadd.f32 %v2015, %v2018
      %vm2020 = vweird.f32 %v1097
      %vm2021 = vweird.f32 %v2015
      %vm2022 = vmor %vm2020, %vm2021
      %v2023 = vsel %vm2022, %v2015, %v2019
      %v2024 = vand.u32 2147483647, %v1097
      %vm2025 = vcmp.eq.f32.partialorder %v2024, 8.507059e+37
      %v2026 = vand.u32 %v1097, 2147483648
      %v2027 = vor.u32 1.1754944e-38, %v2026
      %v2028 = vsel %vm2025, %v2027, %v2023
      %v2029 = vmul.f32 1.0, %v2028
      %v2030 = vrcp.pop %v1098
      %v2031 = vmul.f32 %v1098, %v2030
      %v2032 = vsub.f32 1.0, %v2031
      %v2033 = vmul.f32 %v2030, %v2032
      %v2034 = vadd.f32 %v2030, %v2033
      %vm2035 = vweird.f32 %v1098
      %vm2036 = vweird.f32 %v2030
      %vm2037 = vmor %vm2035, %vm2036
      %v2038 = vsel %vm2037, %v2030, %v2034
      %v2039 = vand.u32 2147483647, %v1098
      %vm2040 = vcmp.eq.f32.partialorder %v2039, 8.507059e+37
      %v2041 = vand.u32 %v1098, 2147483648
      %v2042 = vor.u32 1.1754944e-38, %v2041
      %v2043 = vsel %vm2040, %v2042, %v2038
      %v2044 = vmul.f32 1.0, %v2043
      %v2045 = vrcp.pop %v1099
      %v2046 = vmul.f32 %v1099, %v2045
      %v2047 = vsub.f32 1.0, %v2046
      %v2048 = vmul.f32 %v2045, %v2047
      %v2049 = vadd.f32 %v2045, %v2048
      %vm2050 = vweird.f32 %v1099
      %vm2051 = vweird.f32 %v2045
      %vm2052 = vmor %vm2050, %vm2051
      %v2053 = vsel %vm2052, %v2045, %v2049
      %v2054 = vand.u32 2147483647, %v1099
      %vm2055 = vcmp.eq.f32.partialorder %v2054, 8.507059e+37
      %v2056 = vand.u32 %v1099, 2147483648
      %v2057 = vor.u32 1.1754944e-38, %v2056
      %v2058 = vsel %vm2055, %v2057, %v2053
      %v2059 = vmul.f32 1.0, %v2058
      %v2060 = vmul.f32 %v685, %v1114
      %v2061 = vmul.f32 %v687, %v1129
      %v2062 = vmul.f32 %v690, %v1144
      %v2063 = vmul.f32 %v692, %v1159
      %v2064 = vmul.f32 %v695, %v1174
      %v2065 = vmul.f32 %v697, %v1189
      %v2066 = vmul.f32 %v700, %v1204
      %v2067 = vmul.f32 %v702, %v1219
      %v2068 = vmul.f32 %v705, %v1234
      %v2069 = vmul.f32 %v707, %v1249
      %v2070 = vmul.f32 %v710, %v1264
      %v2071 = vmul.f32 %v712, %v1279
      %v2072 = vmul.f32 %v715, %v1294
      %v2073 = vmul.f32 %v717, %v1309
      %v2074 = vmul.f32 %v720, %v1324
      %v2075 = vmul.f32 %v722, %v1339
      %v2076 = vmul.f32 %v725, %v1354
      %v2077 = vmul.f32 %v727, %v1369
      %v2078 = vmul.f32 %v730, %v1384
      %v2079 = vmul.f32 %v732, %v1399
      %v2080 = vmul.f32 %v735, %v1414
      %v2081 = vmul.f32 %v737, %v1429
      %v2082 = vmul.f32 %v740, %v1444
      %v2083 = vmul.f32 %v742, %v1459
      %v2084 = vmul.f32 %v745, %v1474
      %v2085 = vmul.f32 %v747, %v1489
      %v2086 = vmul.f32 %v750, %v1504
      %v2087 = vmul.f32 %v752, %v1519
      %v2088 = vmul.f32 %v755, %v1534
      %v2089 = vmul.f32 %v757, %v1549
      %v2090 = vmul.f32 %v760, %v1564
      %v2091 = vmul.f32 %v762, %v1579
      %v2092 = vmul.f32 %v765, %v1594
      %v2093 = vmul.f32 %v767, %v1609
      %v2094 = vmul.f32 %v770, %v1624
      %v2095 = vmul.f32 %v772, %v1639
      %v2096 = vmul.f32 %v775, %v1654
      %v2097 = vmul.f32 %v777, %v1669
      %v2098 = vmul.f32 %v780, %v1684
      %v2099 = vmul.f32 %v782, %v1699
      %v2100 = vmul.f32 %v785, %v1714
      %v2101 = vmul.f32 %v787, %v1729
      %v2102 = vmul.f32 %v790, %v1744
      %v2103 = vmul.f32 %v792, %v1759
      %v2104 = vmul.f32 %v795, %v1774
      %v2105 = vmul.f32 %v797, %v1789
      %v2106 = vmul.f32 %v800, %v1804
      %v2107 = vmul.f32 %v802, %v1819
      %v2108 = vmul.f32 %v805, %v1834
      %v2109 = vmul.f32 %v807, %v1849
      %v2110 = vmul.f32 %v810, %v1864
      %v2111 = vmul.f32 %v812, %v1879
      %v2112 = vmul.f32 %v815, %v1894
      %v2113 = vmul.f32 %v817, %v1909
      %v2114 = vmul.f32 %v820, %v1924
      %v2115 = vmul.f32 %v822, %v1939
      %v2116 = vmul.f32 %v825, %v1954
      %v2117 = vmul.f32 %v827, %v1969
      %v2118 = vmul.f32 %v830, %v1984
      %v2119 = vmul.f32 %v832, %v1999
      %v2120 = vmul.f32 %v835, %v2014
      %v2121 = vmul.f32 %v837, %v2029
      %v2122 = vmul.f32 %v840, %v2044
      %v2123 = vmul.f32 %v842, %v2059
      %v2124 = vld [vmem:[%s3] sm:$0xff]
      %v2125 = vld [vmem:[%s3 + $0x8] sm:$0x1]
      %2126 = vst [vmem:[#allocation2] sm:$0xff] 0.0
      %2127 = vst [vmem:[#allocation2 + $0x8] sm:$0xff] 0.0
      %s2128 = scalar_lea.vmem [#allocation2], 144
      %2129 = vst [vmem:[%s2128] sm:$0xff] 0.0
      %2130 = vst [vmem:[%s2128 + $0x8] sm:$0xff] 0.0
      %s2131 = scalar_lea.vmem [#allocation2], 16
      %2132 = vst [vmem:[%s2131] sm:$0x1] 0.0
      %2133 = vst [vmem:[%s2131 + $0x10] sm:$0x1] 0.0
      %2134 = vst [vmem:[%s2131 + $0x20] sm:$0x1] 0.0
      %2135 = vst [vmem:[%s2131 + $0x30] sm:$0x1] 0.0
      %2136 = vst [vmem:[%s2131 + $0x40] sm:$0x1] 0.0
      %2137 = vst [vmem:[%s2131 + $0x50] sm:$0x1] 0.0
      %2138 = vst [vmem:[%s2131 + $0x60] sm:$0x1] 0.0
      %2139 = vst [vmem:[%s2131 + $0x70] sm:$0x1] 0.0
      %2140 = vst [vmem:[%s2131 + $0x9] sm:$0x1] 0.0
      %2141 = vst [vmem:[%s2131 + $0x19] sm:$0x1] 0.0
      %2142 = vst [vmem:[%s2131 + $0x29] sm:$0x1] 0.0
      %2143 = vst [vmem:[%s2131 + $0x39] sm:$0x1] 0.0
      %2144 = vst [vmem:[%s2131 + $0x49] sm:$0x1] 0.0
      %2145 = vst [vmem:[%s2131 + $0x59] sm:$0x1] 0.0
      %2146 = vst [vmem:[%s2131 + $0x69] sm:$0x1] 0.0
      %2147 = vst [vmem:[%s2131 + $0x79] sm:$0x1] 0.0
      %2148 = vst [vmem:[%s2131 + $0x1] sm:$0xff] %v2060
      %2149 = vst [vmem:[%s2131 + $0x11] sm:$0xff] %v2061
      %2150 = vst [vmem:[%s2131 + $0x21] sm:$0xff] %v2062
      %2151 = vst [vmem:[%s2131 + $0x31] sm:$0xff] %v2063
      %2152 = vst [vmem:[%s2131 + $0x41] sm:$0xff] %v2064
      %2153 = vst [vmem:[%s2131 + $0x51] sm:$0xff] %v2065
      %2154 = vst [vmem:[%s2131 + $0x61] sm:$0xff] %v2066
      %2155 = vst [vmem:[%s2131 + $0x71] sm:$0xff] %v2067
      %v2156 = vld [vmem:[#allocation2] sm:$0xff]
      %v2157 = vld [vmem:[#allocation2 + $0x8] sm:$0xff]
      %v2158 = vld [vmem:[#allocation2 + $0x10] sm:$0xff]
      %v2159 = vld [vmem:[#allocation2 + $0x18] sm:$0xff]
      %v2160 = vld [vmem:[#allocation2 + $0x20] sm:$0xff]
      %v2161 = vld [vmem:[#allocation2 + $0x28] sm:$0xff]
      %v2162 = vld [vmem:[#allocation2 + $0x30] sm:$0xff]
      %v2163 = vld [vmem:[#allocation2 + $0x38] sm:$0xff]
      %v2164 = vld [vmem:[#allocation2 + $0x40] sm:$0xff]
      %v2165 = vld [vmem:[#allocation2 + $0x48] sm:$0xff]
      %v2166 = vld [vmem:[#allocation2 + $0x50] sm:$0xff]
      %v2167 = vld [vmem:[#allocation2 + $0x58] sm:$0xff]
      %v2168 = vld [vmem:[#allocation2 + $0x60] sm:$0xff]
      %v2169 = vld [vmem:[#allocation2 + $0x68] sm:$0xff]
      %v2170 = vld [vmem:[#allocation2 + $0x70] sm:$0xff]
      %v2171 = vld [vmem:[#allocation2 + $0x78] sm:$0xff]
      %v2172 = vperm.slane %v2124, 0
      %v2173 = vmul.f32 %v2156, %v2172
      %v2174 = vmul.f32 %v2158, %v2172
      %v2175 = vmul.f32 %v2160, %v2172
      %v2176 = vmul.f32 %v2162, %v2172
      %v2177 = vmul.f32 %v2164, %v2172
      %v2178 = vmul.f32 %v2166, %v2172
      %v2179 = vmul.f32 %v2168, %v2172
      %v2180 = vmul.f32 %v2170, %v2172
      %v2181 = vadd.f32 %v2173, 0.0
      %v2182 = vadd.f32 %v2174, 0.0
      %v2183 = vadd.f32 %v2175, 0.0
      %v2184 = vadd.f32 %v2176, 0.0
      %v2185 = vadd.f32 %v2177, 0.0
      %v2186 = vadd.f32 %v2178, 0.0
      %v2187 = vadd.f32 %v2179, 0.0
      %v2188 = vadd.f32 %v2180, 0.0
      %v2189 = vperm.slane %v2124, 1
      %v2190 = vmul.f32 %v2156, %v2189
      %v2191 = vmul.f32 %v2157, %v2189
      %v2192 = vmul.f32 %v2158, %v2189
      %v2193 = vmul.f32 %v2159, %v2189
      %v2194 = vmul.f32 %v2160, %v2189
      %v2195 = vmul.f32 %v2161, %v2189
      %v2196 = vmul.f32 %v2162, %v2189
      %v2197 = vmul.f32 %v2163, %v2189
      %v2198 = vmul.f32 %v2164, %v2189
      %v2199 = vmul.f32 %v2165, %v2189
      %v2200 = vmul.f32 %v2166, %v2189
      %v2201 = vmul.f32 %v2167, %v2189
      %v2202 = vmul.f32 %v2168, %v2189
      %v2203 = vmul.f32 %v2169, %v2189
      %v2204 = vmul.f32 %v2170, %v2189
      %v2205 = vmul.f32 %v2171, %v2189
      %vm2222 = vcmask 1046528
      %v2223 = vrot.slane %v2190, 1
      %v2224 = vrot.slane %v2191, 1
      %v2225 = vsel %vm2222, %v2223, %v2224
      %v2226 = vrot.slane %v2192, 1
      %v2227 = vrot.slane %v2193, 1
      %v2228 = vsel %vm2222, %v2226, %v2227
      %v2229 = vrot.slane %v2194, 1
      %v2230 = vrot.slane %v2195, 1
      %v2231 = vsel %vm2222, %v2229, %v2230
      %v2232 = vrot.slane %v2196, 1
      %v2233 = vrot.slane %v2197, 1
      %v2234 = vsel %vm2222, %v2232, %v2233
      %v2235 = vrot.slane %v2198, 1
      %v2236 = vrot.slane %v2199, 1
      %v2237 = vsel %vm2222, %v2235, %v2236
      %v2238 = vrot.slane %v2200, 1
      %v2239 = vrot.slane %v2201, 1
      %v2240 = vsel %vm2222, %v2238, %v2239
      %v2241 = vrot.slane %v2202, 1
      %v2242 = vrot.slane %v2203, 1
      %v2243 = vsel %vm2222, %v2241, %v2242
      %v2244 = vrot.slane %v2204, 1
      %v2245 = vrot.slane %v2205, 1
      %v2246 = vsel %vm2222, %v2244, %v2245
      %v2255 = vadd.f32 %v2181, %v2225
      %v2256 = vadd.f32 %v2182, %v2228
      %v2257 = vadd.f32 %v2183, %v2231
      %v2258 = vadd.f32 %v2184, %v2234
      %v2259 = vadd.f32 %v2185, %v2237
      %v2260 = vadd.f32 %v2186, %v2240
      %v2261 = vadd.f32 %v2187, %v2243
      %v2262 = vadd.f32 %v2188, %v2246
      %v2263 = vperm.slane %v2124, 2
      %v2264 = vmul.f32 %v2156, %v2263
      %v2265 = vmul.f32 %v2157, %v2263
      %v2266 = vmul.f32 %v2158, %v2263
      %v2267 = vmul.f32 %v2159, %v2263
      %v2268 = vmul.f32 %v2160, %v2263
      %v2269 = vmul.f32 %v2161, %v2263
      %v2270 = vmul.f32 %v2162, %v2263
      %v2271 = vmul.f32 %v2163, %v2263
      %v2272 = vmul.f32 %v2164, %v2263
      %v2273 = vmul.f32 %v2165, %v2263
      %v2274 = vmul.f32 %v2166, %v2263
      %v2275 = vmul.f32 %v2167, %v2263
      %v2276 = vmul.f32 %v2168, %v2263
      %v2277 = vmul.f32 %v2169, %v2263
      %v2278 = vmul.f32 %v2170, %v2263
      %v2279 = vmul.f32 %v2171, %v2263
      %vm2296 = vcmask 1045504
      %v2297 = vrot.slane %v2264, 2
      %v2298 = vrot.slane %v2265, 2
      %v2299 = vsel %vm2296, %v2297, %v2298
      %v2300 = vrot.slane %v2266, 2
      %v2301 = vrot.slane %v2267, 2
      %v2302 = vsel %vm2296, %v2300, %v2301
      %v2303 = vrot.slane %v2268, 2
      %v2304 = vrot.slane %v2269, 2
      %v2305 = vsel %vm2296, %v2303, %v2304
      %v2306 = vrot.slane %v2270, 2
      %v2307 = vrot.slane %v2271, 2
      %v2308 = vsel %vm2296, %v2306, %v2307
      %v2309 = vrot.slane %v2272, 2
      %v2310 = vrot.slane %v2273, 2
      %v2311 = vsel %vm2296, %v2309, %v2310
      %v2312 = vrot.slane %v2274, 2
      %v2313 = vrot.slane %v2275, 2
      %v2314 = vsel %vm2296, %v2312, %v2313
      %v2315 = vrot.slane %v2276, 2
      %v2316 = vrot.slane %v2277, 2
      %v2317 = vsel %vm2296, %v2315, %v2316
      %v2318 = vrot.slane %v2278, 2
      %v2319 = vrot.slane %v2279, 2
      %v2320 = vsel %vm2296, %v2318, %v2319
      %v2329 = vadd.f32 %v2255, %v2299
      %v2330 = vadd.f32 %v2256, %v2302
      %v2331 = vadd.f32 %v2257, %v2305
      %v2332 = vadd.f32 %v2258, %v2308
      %v2333 = vadd.f32 %v2259, %v2311
      %v2334 = vadd.f32 %v2260, %v2314
      %v2335 = vadd.f32 %v2261, %v2317
      %v2336 = vadd.f32 %v2262, %v2320
      %v2337 = vld [vmem:[%s2131] sm:$0xff]
      %v2338 = vld [vmem:[%s2131 + $0x8] sm:$0xff]
      %v2339 = vld [vmem:[%s2131 + $0x10] sm:$0xff]
      %v2340 = vld [vmem:[%s2131 + $0x18] sm:$0xff]
      %v2341 = vld [vmem:[%s2131 + $0x20] sm:$0xff]
      %v2342 = vld [vmem:[%s2131 + $0x28] sm:$0xff]
      %v2343 = vld [vmem:[%s2131 + $0x30] sm:$0xff]
      %v2344 = vld [vmem:[%s2131 + $0x38] sm:$0xff]
      %v2345 = vld [vmem:[%s2131 + $0x40] sm:$0xff]
      %v2346 = vld [vmem:[%s2131 + $0x48] sm:$0xff]
      %v2347 = vld [vmem:[%s2131 + $0x50] sm:$0xff]
      %v2348 = vld [vmem:[%s2131 + $0x58] sm:$0xff]
      %v2349 = vld [vmem:[%s2131 + $0x60] sm:$0xff]
      %v2350 = vld [vmem:[%s2131 + $0x68] sm:$0xff]
      %v2351 = vld [vmem:[%s2131 + $0x70] sm:$0xff]
      %v2352 = vld [vmem:[%s2131 + $0x78] sm:$0xff]
      %v2353 = vperm.slane %v2124, 3
      %v2354 = vmul.f32 %v2337, %v2353
      %v2355 = vmul.f32 %v2339, %v2353
      %v2356 = vmul.f32 %v2341, %v2353
      %v2357 = vmul.f32 %v2343, %v2353
      %v2358 = vmul.f32 %v2345, %v2353
      %v2359 = vmul.f32 %v2347, %v2353
      %v2360 = vmul.f32 %v2349, %v2353
      %v2361 = vmul.f32 %v2351, %v2353
      %v2362 = vadd.f32 %v2329, %v2354
      %v2363 = vadd.f32 %v2330, %v2355
      %v2364 = vadd.f32 %v2331, %v2356
      %v2365 = vadd.f32 %v2332, %v2357
      %v2366 = vadd.f32 %v2333, %v2358
      %v2367 = vadd.f32 %v2334, %v2359
      %v2368 = vadd.f32 %v2335, %v2360
      %v2369 = vadd.f32 %v2336, %v2361
      %v2370 = vperm.slane %v2124, 4
      %v2371 = vmul.f32 %v2337, %v2370
      %v2372 = vmul.f32 %v2338, %v2370
      %v2373 = vmul.f32 %v2339, %v2370
      %v2374 = vmul.f32 %v2340, %v2370
      %v2375 = vmul.f32 %v2341, %v2370
      %v2376 = vmul.f32 %v2342, %v2370
      %v2377 = vmul.f32 %v2343, %v2370
      %v2378 = vmul.f32 %v2344, %v2370
      %v2379 = vmul.f32 %v2345, %v2370
      %v2380 = vmul.f32 %v2346, %v2370
      %v2381 = vmul.f32 %v2347, %v2370
      %v2382 = vmul.f32 %v2348, %v2370
      %v2383 = vmul.f32 %v2349, %v2370
      %v2384 = vmul.f32 %v2350, %v2370
      %v2385 = vmul.f32 %v2351, %v2370
      %v2386 = vmul.f32 %v2352, %v2370
      %v2403 = vrot.slane %v2371, 1
      %v2404 = vrot.slane %v2372, 1
      %v2405 = vsel %vm2222, %v2403, %v2404
      %v2406 = vrot.slane %v2373, 1
      %v2407 = vrot.slane %v2374, 1
      %v2408 = vsel %vm2222, %v2406, %v2407
      %v2409 = vrot.slane %v2375, 1
      %v2410 = vrot.slane %v2376, 1
      %v2411 = vsel %vm2222, %v2409, %v2410
      %v2412 = vrot.slane %v2377, 1
      %v2413 = vrot.slane %v2378, 1
      %v2414 = vsel %vm2222, %v2412, %v2413
      %v2415 = vrot.slane %v2379, 1
      %v2416 = vrot.slane %v2380, 1
      %v2417 = vsel %vm2222, %v2415, %v2416
      %v2418 = vrot.slane %v2381, 1
      %v2419 = vrot.slane %v2382, 1
      %v2420 = vsel %vm2222, %v2418, %v2419
      %v2421 = vrot.slane %v2383, 1
      %v2422 = vrot.slane %v2384, 1
      %v2423 = vsel %vm2222, %v2421, %v2422
      %v2424 = vrot.slane %v2385, 1
      %v2425 = vrot.slane %v2386, 1
      %v2426 = vsel %vm2222, %v2424, %v2425
      %v2435 = vadd.f32 %v2362, %v2405
      %v2436 = vadd.f32 %v2363, %v2408
      %v2437 = vadd.f32 %v2364, %v2411
      %v2438 = vadd.f32 %v2365, %v2414
      %v2439 = vadd.f32 %v2366, %v2417
      %v2440 = vadd.f32 %v2367, %v2420
      %v2441 = vadd.f32 %v2368, %v2423
      %v2442 = vadd.f32 %v2369, %v2426
      %v2443 = vperm.slane %v2124, 5
      %v2444 = vmul.f32 %v2337, %v2443
      %v2445 = vmul.f32 %v2338, %v2443
      %v2446 = vmul.f32 %v2339, %v2443
      %v2447 = vmul.f32 %v2340, %v2443
      %v2448 = vmul.f32 %v2341, %v2443
      %v2449 = vmul.f32 %v2342, %v2443
      %v2450 = vmul.f32 %v2343, %v2443
      %v2451 = vmul.f32 %v2344, %v2443
      %v2452 = vmul.f32 %v2345, %v2443
      %v2453 = vmul.f32 %v2346, %v2443
      %v2454 = vmul.f32 %v2347, %v2443
      %v2455 = vmul.f32 %v2348, %v2443
      %v2456 = vmul.f32 %v2349, %v2443
      %v2457 = vmul.f32 %v2350, %v2443
      %v2458 = vmul.f32 %v2351, %v2443
      %v2459 = vmul.f32 %v2352, %v2443
      %v2476 = vrot.slane %v2444, 2
      %v2477 = vrot.slane %v2445, 2
      %v2478 = vsel %vm2296, %v2476, %v2477
      %v2479 = vrot.slane %v2446, 2
      %v2480 = vrot.slane %v2447, 2
      %v2481 = vsel %vm2296, %v2479, %v2480
      %v2482 = vrot.slane %v2448, 2
      %v2483 = vrot.slane %v2449, 2
      %v2484 = vsel %vm2296, %v2482, %v2483
      %v2485 = vrot.slane %v2450, 2
      %v2486 = vrot.slane %v2451, 2
      %v2487 = vsel %vm2296, %v2485, %v2486
      %v2488 = vrot.slane %v2452, 2
      %v2489 = vrot.slane %v2453, 2
      %v2490 = vsel %vm2296, %v2488, %v2489
      %v2491 = vrot.slane %v2454, 2
      %v2492 = vrot.slane %v2455, 2
      %v2493 = vsel %vm2296, %v2491, %v2492
      %v2494 = vrot.slane %v2456, 2
      %v2495 = vrot.slane %v2457, 2
      %v2496 = vsel %vm2296, %v2494, %v2495
      %v2497 = vrot.slane %v2458, 2
      %v2498 = vrot.slane %v2459, 2
      %v2499 = vsel %vm2296, %v2497, %v2498
      %v2508 = vadd.f32 %v2435, %v2478
      %v2509 = vadd.f32 %v2436, %v2481
      %v2510 = vadd.f32 %v2437, %v2484
      %v2511 = vadd.f32 %v2438, %v2487
      %v2512 = vadd.f32 %v2439, %v2490
      %v2513 = vadd.f32 %v2440, %v2493
      %v2514 = vadd.f32 %v2441, %v2496
      %v2515 = vadd.f32 %v2442, %v2499
      %s2516 = scalar_lea.vmem [#allocation2], 32
      %v2517 = vld [vmem:[%s2516] sm:$0xff]
      %v2518 = vld [vmem:[%s2516 + $0x8] sm:$0xff]
      %v2519 = vld [vmem:[%s2516 + $0x10] sm:$0xff]
      %v2520 = vld [vmem:[%s2516 + $0x18] sm:$0xff]
      %v2521 = vld [vmem:[%s2516 + $0x20] sm:$0xff]
      %v2522 = vld [vmem:[%s2516 + $0x28] sm:$0xff]
      %v2523 = vld [vmem:[%s2516 + $0x30] sm:$0xff]
      %v2524 = vld [vmem:[%s2516 + $0x38] sm:$0xff]
      %v2525 = vld [vmem:[%s2516 + $0x40] sm:$0xff]
      %v2526 = vld [vmem:[%s2516 + $0x48] sm:$0xff]
      %v2527 = vld [vmem:[%s2516 + $0x50] sm:$0xff]
      %v2528 = vld [vmem:[%s2516 + $0x58] sm:$0xff]
      %v2529 = vld [vmem:[%s2516 + $0x60] sm:$0xff]
      %v2530 = vld [vmem:[%s2516 + $0x68] sm:$0xff]
      %v2531 = vld [vmem:[%s2516 + $0x70] sm:$0xff]
      %v2532 = vld [vmem:[%s2516 + $0x78] sm:$0xff]
      %v2533 = vperm.slane %v2124, 6
      %v2534 = vmul.f32 %v2517, %v2533
      %v2535 = vmul.f32 %v2519, %v2533
      %v2536 = vmul.f32 %v2521, %v2533
      %v2537 = vmul.f32 %v2523, %v2533
      %v2538 = vmul.f32 %v2525, %v2533
      %v2539 = vmul.f32 %v2527, %v2533
      %v2540 = vmul.f32 %v2529, %v2533
      %v2541 = vmul.f32 %v2531, %v2533
      %v2542 = vadd.f32 %v2508, %v2534
      %v2543 = vadd.f32 %v2509, %v2535
      %v2544 = vadd.f32 %v2510, %v2536
      %v2545 = vadd.f32 %v2511, %v2537
      %v2546 = vadd.f32 %v2512, %v2538
      %v2547 = vadd.f32 %v2513, %v2539
      %v2548 = vadd.f32 %v2514, %v2540
      %v2549 = vadd.f32 %v2515, %v2541
      %v2550 = vperm.slane %v2124, 7
      %v2551 = vmul.f32 %v2517, %v2550
      %v2552 = vmul.f32 %v2518, %v2550
      %v2553 = vmul.f32 %v2519, %v2550
      %v2554 = vmul.f32 %v2520, %v2550
      %v2555 = vmul.f32 %v2521, %v2550
      %v2556 = vmul.f32 %v2522, %v2550
      %v2557 = vmul.f32 %v2523, %v2550
      %v2558 = vmul.f32 %v2524, %v2550
      %v2559 = vmul.f32 %v2525, %v2550
      %v2560 = vmul.f32 %v2526, %v2550
      %v2561 = vmul.f32 %v2527, %v2550
      %v2562 = vmul.f32 %v2528, %v2550
      %v2563 = vmul.f32 %v2529, %v2550
      %v2564 = vmul.f32 %v2530, %v2550
      %v2565 = vmul.f32 %v2531, %v2550
      %v2566 = vmul.f32 %v2532, %v2550
      %v2583 = vrot.slane %v2551, 1
      %v2584 = vrot.slane %v2552, 1
      %v2585 = vsel %vm2222, %v2583, %v2584
      %v2586 = vrot.slane %v2553, 1
      %v2587 = vrot.slane %v2554, 1
      %v2588 = vsel %vm2222, %v2586, %v2587
      %v2589 = vrot.slane %v2555, 1
      %v2590 = vrot.slane %v2556, 1
      %v2591 = vsel %vm2222, %v2589, %v2590
      %v2592 = vrot.slane %v2557, 1
      %v2593 = vrot.slane %v2558, 1
      %v2594 = vsel %vm2222, %v2592, %v2593
      %v2595 = vrot.slane %v2559, 1
      %v2596 = vrot.slane %v2560, 1
      %v2597 = vsel %vm2222, %v2595, %v2596
      %v2598 = vrot.slane %v2561, 1
      %v2599 = vrot.slane %v2562, 1
      %v2600 = vsel %vm2222, %v2598, %v2599
      %v2601 = vrot.slane %v2563, 1
      %v2602 = vrot.slane %v2564, 1
      %v2603 = vsel %vm2222, %v2601, %v2602
      %v2604 = vrot.slane %v2565, 1
      %v2605 = vrot.slane %v2566, 1
      %v2606 = vsel %vm2222, %v2604, %v2605
      %v2615 = vadd.f32 %v2542, %v2585
      %v2616 = vadd.f32 %v2543, %v2588
      %v2617 = vadd.f32 %v2544, %v2591
      %v2618 = vadd.f32 %v2545, %v2594
      %v2619 = vadd.f32 %v2546, %v2597
      %v2620 = vadd.f32 %v2547, %v2600
      %v2621 = vadd.f32 %v2548, %v2603
      %v2622 = vadd.f32 %v2549, %v2606
      %v2623 = vperm.slane %v2125, 0
      %v2624 = vmul.f32 %v2517, %v2623
      %v2625 = vmul.f32 %v2518, %v2623
      %v2626 = vmul.f32 %v2519, %v2623
      %v2627 = vmul.f32 %v2520, %v2623
      %v2628 = vmul.f32 %v2521, %v2623
      %v2629 = vmul.f32 %v2522, %v2623
      %v2630 = vmul.f32 %v2523, %v2623
      %v2631 = vmul.f32 %v2524, %v2623
      %v2632 = vmul.f32 %v2525, %v2623
      %v2633 = vmul.f32 %v2526, %v2623
      %v2634 = vmul.f32 %v2527, %v2623
      %v2635 = vmul.f32 %v2528, %v2623
      %v2636 = vmul.f32 %v2529, %v2623
      %v2637 = vmul.f32 %v2530, %v2623
      %v2638 = vmul.f32 %v2531, %v2623
      %v2639 = vmul.f32 %v2532, %v2623
      %v2656 = vrot.slane %v2624, 2
      %v2657 = vrot.slane %v2625, 2
      %v2658 = vsel %vm2296, %v2656, %v2657
      %v2659 = vrot.slane %v2626, 2
      %v2660 = vrot.slane %v2627, 2
      %v2661 = vsel %vm2296, %v2659, %v2660
      %v2662 = vrot.slane %v2628, 2
      %v2663 = vrot.slane %v2629, 2
      %v2664 = vsel %vm2296, %v2662, %v2663
      %v2665 = vrot.slane %v2630, 2
      %v2666 = vrot.slane %v2631, 2
      %v2667 = vsel %vm2296, %v2665, %v2666
      %v2668 = vrot.slane %v2632, 2
      %v2669 = vrot.slane %v2633, 2
      %v2670 = vsel %vm2296, %v2668, %v2669
      %v2671 = vrot.slane %v2634, 2
      %v2672 = vrot.slane %v2635, 2
      %v2673 = vsel %vm2296, %v2671, %v2672
      %v2674 = vrot.slane %v2636, 2
      %v2675 = vrot.slane %v2637, 2
      %v2676 = vsel %vm2296, %v2674, %v2675
      %v2677 = vrot.slane %v2638, 2
      %v2678 = vrot.slane %v2639, 2
      %v2679 = vsel %vm2296, %v2677, %v2678
      %v2688 = vadd.f32 %v2615, %v2658
      %v2689 = vadd.f32 %v2616, %v2661
      %v2690 = vadd.f32 %v2617, %v2664
      %v2691 = vadd.f32 %v2618, %v2667
      %v2692 = vadd.f32 %v2619, %v2670
      %v2693 = vadd.f32 %v2620, %v2673
      %v2694 = vadd.f32 %v2621, %v2676
      %v2695 = vadd.f32 %v2622, %v2679
      %s2696 = scalar_lea.vmem [#allocation2], 160
      %2697 = vst [vmem:[%s2696] sm:$0xff] 0.0
      %2698 = vst [vmem:[%s2696 + $0x8] sm:$0xff] 0.0
      %s2699 = scalar_lea.vmem [#allocation2], 304
      %2700 = vst [vmem:[%s2699] sm:$0xff] 0.0
      %2701 = vst [vmem:[%s2699 + $0x8] sm:$0xff] 0.0
      %s2702 = scalar_lea.vmem [#allocation2], 176
      %2703 = vst [vmem:[%s2702] sm:$0x1] 0.0
      %2704 = vst [vmem:[%s2702 + $0x10] sm:$0x1] 0.0
      %2705 = vst [vmem:[%s2702 + $0x20] sm:$0x1] 0.0
      %2706 = vst [vmem:[%s2702 + $0x30] sm:$0x1] 0.0
      %2707 = vst [vmem:[%s2702 + $0x40] sm:$0x1] 0.0
      %2708 = vst [vmem:[%s2702 + $0x50] sm:$0x1] 0.0
      %2709 = vst [vmem:[%s2702 + $0x60] sm:$0x1] 0.0
      %2710 = vst [vmem:[%s2702 + $0x70] sm:$0x1] 0.0
      %2711 = vst [vmem:[%s2702 + $0x9] sm:$0x1] 0.0
      %2712 = vst [vmem:[%s2702 + $0x19] sm:$0x1] 0.0
      %2713 = vst [vmem:[%s2702 + $0x29] sm:$0x1] 0.0
      %2714 = vst [vmem:[%s2702 + $0x39] sm:$0x1] 0.0
      %2715 = vst [vmem:[%s2702 + $0x49] sm:$0x1] 0.0
      %2716 = vst [vmem:[%s2702 + $0x59] sm:$0x1] 0.0
      %2717 = vst [vmem:[%s2702 + $0x69] sm:$0x1] 0.0
      %2718 = vst [vmem:[%s2702 + $0x79] sm:$0x1] 0.0
      %2719 = vst [vmem:[%s2702 + $0x1] sm:$0xff] %v2068
      %2720 = vst [vmem:[%s2702 + $0x11] sm:$0xff] %v2069
      %2721 = vst [vmem:[%s2702 + $0x21] sm:$0xff] %v2070
      %2722 = vst [vmem:[%s2702 + $0x31] sm:$0xff] %v2071
      %2723 = vst [vmem:[%s2702 + $0x41] sm:$0xff] %v2072
      %2724 = vst [vmem:[%s2702 + $0x51] sm:$0xff] %v2073
      %2725 = vst [vmem:[%s2702 + $0x61] sm:$0xff] %v2074
      %2726 = vst [vmem:[%s2702 + $0x71] sm:$0xff] %v2075
      %v2727 = vld [vmem:[%s2696] sm:$0xff]
      %v2728 = vld [vmem:[%s2696 + $0x8] sm:$0xff]
      %v2729 = vld [vmem:[%s2696 + $0x10] sm:$0xff]
      %v2730 = vld [vmem:[%s2696 + $0x18] sm:$0xff]
      %v2731 = vld [vmem:[%s2696 + $0x20] sm:$0xff]
      %v2732 = vld [vmem:[%s2696 + $0x28] sm:$0xff]
      %v2733 = vld [vmem:[%s2696 + $0x30] sm:$0xff]
      %v2734 = vld [vmem:[%s2696 + $0x38] sm:$0xff]
      %v2735 = vld [vmem:[%s2696 + $0x40] sm:$0xff]
      %v2736 = vld [vmem:[%s2696 + $0x48] sm:$0xff]
      %v2737 = vld [vmem:[%s2696 + $0x50] sm:$0xff]
      %v2738 = vld [vmem:[%s2696 + $0x58] sm:$0xff]
      %v2739 = vld [vmem:[%s2696 + $0x60] sm:$0xff]
      %v2740 = vld [vmem:[%s2696 + $0x68] sm:$0xff]
      %v2741 = vld [vmem:[%s2696 + $0x70] sm:$0xff]
      %v2742 = vld [vmem:[%s2696 + $0x78] sm:$0xff]
      %v2743 = vmul.f32 %v2727, %v2172
      %v2744 = vmul.f32 %v2729, %v2172
      %v2745 = vmul.f32 %v2731, %v2172
      %v2746 = vmul.f32 %v2733, %v2172
      %v2747 = vmul.f32 %v2735, %v2172
      %v2748 = vmul.f32 %v2737, %v2172
      %v2749 = vmul.f32 %v2739, %v2172
      %v2750 = vmul.f32 %v2741, %v2172
      %v2751 = vadd.f32 %v2743, 0.0
      %v2752 = vadd.f32 %v2744, 0.0
      %v2753 = vadd.f32 %v2745, 0.0
      %v2754 = vadd.f32 %v2746, 0.0
      %v2755 = vadd.f32 %v2747, 0.0
      %v2756 = vadd.f32 %v2748, 0.0
      %v2757 = vadd.f32 %v2749, 0.0
      %v2758 = vadd.f32 %v2750, 0.0
      %v2759 = vmul.f32 %v2727, %v2189
      %v2760 = vmul.f32 %v2728, %v2189
      %v2761 = vmul.f32 %v2729, %v2189
      %v2762 = vmul.f32 %v2730, %v2189
      %v2763 = vmul.f32 %v2731, %v2189
      %v2764 = vmul.f32 %v2732, %v2189
      %v2765 = vmul.f32 %v2733, %v2189
      %v2766 = vmul.f32 %v2734, %v2189
      %v2767 = vmul.f32 %v2735, %v2189
      %v2768 = vmul.f32 %v2736, %v2189
      %v2769 = vmul.f32 %v2737, %v2189
      %v2770 = vmul.f32 %v2738, %v2189
      %v2771 = vmul.f32 %v2739, %v2189
      %v2772 = vmul.f32 %v2740, %v2189
      %v2773 = vmul.f32 %v2741, %v2189
      %v2774 = vmul.f32 %v2742, %v2189
      %v2791 = vrot.slane %v2759, 1
      %v2792 = vrot.slane %v2760, 1
      %v2793 = vsel %vm2222, %v2791, %v2792
      %v2794 = vrot.slane %v2761, 1
      %v2795 = vrot.slane %v2762, 1
      %v2796 = vsel %vm2222, %v2794, %v2795
      %v2797 = vrot.slane %v2763, 1
      %v2798 = vrot.slane %v2764, 1
      %v2799 = vsel %vm2222, %v2797, %v2798
      %v2800 = vrot.slane %v2765, 1
      %v2801 = vrot.slane %v2766, 1
      %v2802 = vsel %vm2222, %v2800, %v2801
      %v2803 = vrot.slane %v2767, 1
      %v2804 = vrot.slane %v2768, 1
      %v2805 = vsel %vm2222, %v2803, %v2804
      %v2806 = vrot.slane %v2769, 1
      %v2807 = vrot.slane %v2770, 1
      %v2808 = vsel %vm2222, %v2806, %v2807
      %v2809 = vrot.slane %v2771, 1
      %v2810 = vrot.slane %v2772, 1
      %v2811 = vsel %vm2222, %v2809, %v2810
      %v2812 = vrot.slane %v2773, 1
      %v2813 = vrot.slane %v2774, 1
      %v2814 = vsel %vm2222, %v2812, %v2813
      %v2823 = vadd.f32 %v2751, %v2793
      %v2824 = vadd.f32 %v2752, %v2796
      %v2825 = vadd.f32 %v2753, %v2799
      %v2826 = vadd.f32 %v2754, %v2802
      %v2827 = vadd.f32 %v2755, %v2805
      %v2828 = vadd.f32 %v2756, %v2808
      %v2829 = vadd.f32 %v2757, %v2811
      %v2830 = vadd.f32 %v2758, %v2814
      %v2831 = vmul.f32 %v2727, %v2263
      %v2832 = vmul.f32 %v2728, %v2263
      %v2833 = vmul.f32 %v2729, %v2263
      %v2834 = vmul.f32 %v2730, %v2263
      %v2835 = vmul.f32 %v2731, %v2263
      %v2836 = vmul.f32 %v2732, %v2263
      %v2837 = vmul.f32 %v2733, %v2263
      %v2838 = vmul.f32 %v2734, %v2263
      %v2839 = vmul.f32 %v2735, %v2263
      %v2840 = vmul.f32 %v2736, %v2263
      %v2841 = vmul.f32 %v2737, %v2263
      %v2842 = vmul.f32 %v2738, %v2263
      %v2843 = vmul.f32 %v2739, %v2263
      %v2844 = vmul.f32 %v2740, %v2263
      %v2845 = vmul.f32 %v2741, %v2263
      %v2846 = vmul.f32 %v2742, %v2263
      %v2863 = vrot.slane %v2831, 2
      %v2864 = vrot.slane %v2832, 2
      %v2865 = vsel %vm2296, %v2863, %v2864
      %v2866 = vrot.slane %v2833, 2
      %v2867 = vrot.slane %v2834, 2
      %v2868 = vsel %vm2296, %v2866, %v2867
      %v2869 = vrot.slane %v2835, 2
      %v2870 = vrot.slane %v2836, 2
      %v2871 = vsel %vm2296, %v2869, %v2870
      %v2872 = vrot.slane %v2837, 2
      %v2873 = vrot.slane %v2838, 2
      %v2874 = vsel %vm2296, %v2872, %v2873
      %v2875 = vrot.slane %v2839, 2
      %v2876 = vrot.slane %v2840, 2
      %v2877 = vsel %vm2296, %v2875, %v2876
      %v2878 = vrot.slane %v2841, 2
      %v2879 = vrot.slane %v2842, 2
      %v2880 = vsel %vm2296, %v2878, %v2879
      %v2881 = vrot.slane %v2843, 2
      %v2882 = vrot.slane %v2844, 2
      %v2883 = vsel %vm2296, %v2881, %v2882
      %v2884 = vrot.slane %v2845, 2
      %v2885 = vrot.slane %v2846, 2
      %v2886 = vsel %vm2296, %v2884, %v2885
      %v2895 = vadd.f32 %v2823, %v2865
      %v2896 = vadd.f32 %v2824, %v2868
      %v2897 = vadd.f32 %v2825, %v2871
      %v2898 = vadd.f32 %v2826, %v2874
      %v2899 = vadd.f32 %v2827, %v2877
      %v2900 = vadd.f32 %v2828, %v2880
      %v2901 = vadd.f32 %v2829, %v2883
      %v2902 = vadd.f32 %v2830, %v2886
      %v2903 = vld [vmem:[%s2702] sm:$0xff]
      %v2904 = vld [vmem:[%s2702 + $0x8] sm:$0xff]
      %v2905 = vld [vmem:[%s2702 + $0x10] sm:$0xff]
      %v2906 = vld [vmem:[%s2702 + $0x18] sm:$0xff]
      %v2907 = vld [vmem:[%s2702 + $0x20] sm:$0xff]
      %v2908 = vld [vmem:[%s2702 + $0x28] sm:$0xff]
      %v2909 = vld [vmem:[%s2702 + $0x30] sm:$0xff]
      %v2910 = vld [vmem:[%s2702 + $0x38] sm:$0xff]
      %v2911 = vld [vmem:[%s2702 + $0x40] sm:$0xff]
      %v2912 = vld [vmem:[%s2702 + $0x48] sm:$0xff]
      %v2913 = vld [vmem:[%s2702 + $0x50] sm:$0xff]
      %v2914 = vld [vmem:[%s2702 + $0x58] sm:$0xff]
      %v2915 = vld [vmem:[%s2702 + $0x60] sm:$0xff]
      %v2916 = vld [vmem:[%s2702 + $0x68] sm:$0xff]
      %v2917 = vld [vmem:[%s2702 + $0x70] sm:$0xff]
      %v2918 = vld [vmem:[%s2702 + $0x78] sm:$0xff]
      %v2919 = vmul.f32 %v2903, %v2353
      %v2920 = vmul.f32 %v2905, %v2353
      %v2921 = vmul.f32 %v2907, %v2353
      %v2922 = vmul.f32 %v2909, %v2353
      %v2923 = vmul.f32 %v2911, %v2353
      %v2924 = vmul.f32 %v2913, %v2353
      %v2925 = vmul.f32 %v2915, %v2353
      %v2926 = vmul.f32 %v2917, %v2353
      %v2927 = vadd.f32 %v2895, %v2919
      %v2928 = vadd.f32 %v2896, %v2920
      %v2929 = vadd.f32 %v2897, %v2921
      %v2930 = vadd.f32 %v2898, %v2922
      %v2931 = vadd.f32 %v2899, %v2923
      %v2932 = vadd.f32 %v2900, %v2924
      %v2933 = vadd.f32 %v2901, %v2925
      %v2934 = vadd.f32 %v2902, %v2926
      %v2935 = vmul.f32 %v2903, %v2370
      %v2936 = vmul.f32 %v2904, %v2370
      %v2937 = vmul.f32 %v2905, %v2370
      %v2938 = vmul.f32 %v2906, %v2370
      %v2939 = vmul.f32 %v2907, %v2370
      %v2940 = vmul.f32 %v2908, %v2370
      %v2941 = vmul.f32 %v2909, %v2370
      %v2942 = vmul.f32 %v2910, %v2370
      %v2943 = vmul.f32 %v2911, %v2370
      %v2944 = vmul.f32 %v2912, %v2370
      %v2945 = vmul.f32 %v2913, %v2370
      %v2946 = vmul.f32 %v2914, %v2370
      %v2947 = vmul.f32 %v2915, %v2370
      %v2948 = vmul.f32 %v2916, %v2370
      %v2949 = vmul.f32 %v2917, %v2370
      %v2950 = vmul.f32 %v2918, %v2370
      %v2967 = vrot.slane %v2935, 1
      %v2968 = vrot.slane %v2936, 1
      %v2969 = vsel %vm2222, %v2967, %v2968
      %v2970 = vrot.slane %v2937, 1
      %v2971 = vrot.slane %v2938, 1
      %v2972 = vsel %vm2222, %v2970, %v2971
      %v2973 = vrot.slane %v2939, 1
      %v2974 = vrot.slane %v2940, 1
      %v2975 = vsel %vm2222, %v2973, %v2974
      %v2976 = vrot.slane %v2941, 1
      %v2977 = vrot.slane %v2942, 1
      %v2978 = vsel %vm2222, %v2976, %v2977
      %v2979 = vrot.slane %v2943, 1
      %v2980 = vrot.slane %v2944, 1
      %v2981 = vsel %vm2222, %v2979, %v2980
      %v2982 = vrot.slane %v2945, 1
      %v2983 = vrot.slane %v2946, 1
      %v2984 = vsel %vm2222, %v2982, %v2983
      %v2985 = vrot.slane %v2947, 1
      %v2986 = vrot.slane %v2948, 1
      %v2987 = vsel %vm2222, %v2985, %v2986
      %v2988 = vrot.slane %v2949, 1
      %v2989 = vrot.slane %v2950, 1
      %v2990 = vsel %vm2222, %v2988, %v2989
      %v2999 = vadd.f32 %v2927, %v2969
      %v3000 = vadd.f32 %v2928, %v2972
      %v3001 = vadd.f32 %v2929, %v2975
      %v3002 = vadd.f32 %v2930, %v2978
      %v3003 = vadd.f32 %v2931, %v2981
      %v3004 = vadd.f32 %v2932, %v2984
      %v3005 = vadd.f32 %v2933, %v2987
      %v3006 = vadd.f32 %v2934, %v2990
      %v3007 = vmul.f32 %v2903, %v2443
      %v3008 = vmul.f32 %v2904, %v2443
      %v3009 = vmul.f32 %v2905, %v2443
      %v3010 = vmul.f32 %v2906, %v2443
      %v3011 = vmul.f32 %v2907, %v2443
      %v3012 = vmul.f32 %v2908, %v2443
      %v3013 = vmul.f32 %v2909, %v2443
      %v3014 = vmul.f32 %v2910, %v2443
      %v3015 = vmul.f32 %v2911, %v2443
      %v3016 = vmul.f32 %v2912, %v2443
      %v3017 = vmul.f32 %v2913, %v2443
      %v3018 = vmul.f32 %v2914, %v2443
      %v3019 = vmul.f32 %v2915, %v2443
      %v3020 = vmul.f32 %v2916, %v2443
      %v3021 = vmul.f32 %v2917, %v2443
      %v3022 = vmul.f32 %v2918, %v2443
      %v3039 = vrot.slane %v3007, 2
      %v3040 = vrot.slane %v3008, 2
      %v3041 = vsel %vm2296, %v3039, %v3040
      %v3042 = vrot.slane %v3009, 2
      %v3043 = vrot.slane %v3010, 2
      %v3044 = vsel %vm2296, %v3042, %v3043
      %v3045 = vrot.slane %v3011, 2
      %v3046 = vrot.slane %v3012, 2
      %v3047 = vsel %vm2296, %v3045, %v3046
      %v3048 = vrot.slane %v3013, 2
      %v3049 = vrot.slane %v3014, 2
      %v3050 = vsel %vm2296, %v3048, %v3049
      %v3051 = vrot.slane %v3015, 2
      %v3052 = vrot.slane %v3016, 2
      %v3053 = vsel %vm2296, %v3051, %v3052
      %v3054 = vrot.slane %v3017, 2
      %v3055 = vrot.slane %v3018, 2
      %v3056 = vsel %vm2296, %v3054, %v3055
      %v3057 = vrot.slane %v3019, 2
      %v3058 = vrot.slane %v3020, 2
      %v3059 = vsel %vm2296, %v3057, %v3058
      %v3060 = vrot.slane %v3021, 2
      %v3061 = vrot.slane %v3022, 2
      %v3062 = vsel %vm2296, %v3060, %v3061
      %v3071 = vadd.f32 %v2999, %v3041
      %v3072 = vadd.f32 %v3000, %v3044
      %v3073 = vadd.f32 %v3001, %v3047
      %v3074 = vadd.f32 %v3002, %v3050
      %v3075 = vadd.f32 %v3003, %v3053
      %v3076 = vadd.f32 %v3004, %v3056
      %v3077 = vadd.f32 %v3005, %v3059
      %v3078 = vadd.f32 %v3006, %v3062
      %s3079 = scalar_lea.vmem [#allocation2], 192
      %v3080 = vld [vmem:[%s3079] sm:$0xff]
      %v3081 = vld [vmem:[%s3079 + $0x8] sm:$0xff]
      %v3082 = vld [vmem:[%s3079 + $0x10] sm:$0xff]
      %v3083 = vld [vmem:[%s3079 + $0x18] sm:$0xff]
      %v3084 = vld [vmem:[%s3079 + $0x20] sm:$0xff]
      %v3085 = vld [vmem:[%s3079 + $0x28] sm:$0xff]
      %v3086 = vld [vmem:[%s3079 + $0x30] sm:$0xff]
      %v3087 = vld [vmem:[%s3079 + $0x38] sm:$0xff]
      %v3088 = vld [vmem:[%s3079 + $0x40] sm:$0xff]
      %v3089 = vld [vmem:[%s3079 + $0x48] sm:$0xff]
      %v3090 = vld [vmem:[%s3079 + $0x50] sm:$0xff]
      %v3091 = vld [vmem:[%s3079 + $0x58] sm:$0xff]
      %v3092 = vld [vmem:[%s3079 + $0x60] sm:$0xff]
      %v3093 = vld [vmem:[%s3079 + $0x68] sm:$0xff]
      %v3094 = vld [vmem:[%s3079 + $0x70] sm:$0xff]
      %v3095 = vld [vmem:[%s3079 + $0x78] sm:$0xff]
      %v3096 = vmul.f32 %v3080, %v2533
      %v3097 = vmul.f32 %v3082, %v2533
      %v3098 = vmul.f32 %v3084, %v2533
      %v3099 = vmul.f32 %v3086, %v2533
      %v3100 = vmul.f32 %v3088, %v2533
      %v3101 = vmul.f32 %v3090, %v2533
      %v3102 = vmul.f32 %v3092, %v2533
      %v3103 = vmul.f32 %v3094, %v2533
      %v3104 = vadd.f32 %v3071, %v3096
      %v3105 = vadd.f32 %v3072, %v3097
      %v3106 = vadd.f32 %v3073, %v3098
      %v3107 = vadd.f32 %v3074, %v3099
      %v3108 = vadd.f32 %v3075, %v3100
      %v3109 = vadd.f32 %v3076, %v3101
      %v3110 = vadd.f32 %v3077, %v3102
      %v3111 = vadd.f32 %v3078, %v3103
      %v3112 = vmul.f32 %v3080, %v2550
      %v3113 = vmul.f32 %v3081, %v2550
      %v3114 = vmul.f32 %v3082, %v2550
      %v3115 = vmul.f32 %v3083, %v2550
      %v3116 = vmul.f32 %v3084, %v2550
      %v3117 = vmul.f32 %v3085, %v2550
      %v3118 = vmul.f32 %v3086, %v2550
      %v3119 = vmul.f32 %v3087, %v2550
      %v3120 = vmul.f32 %v3088, %v2550
      %v3121 = vmul.f32 %v3089, %v2550
      %v3122 = vmul.f32 %v3090, %v2550
      %v3123 = vmul.f32 %v3091, %v2550
      %v3124 = vmul.f32 %v3092, %v2550
      %v3125 = vmul.f32 %v3093, %v2550
      %v3126 = vmul.f32 %v3094, %v2550
      %v3127 = vmul.f32 %v3095, %v2550
      %v3144 = vrot.slane %v3112, 1
      %v3145 = vrot.slane %v3113, 1
      %v3146 = vsel %vm2222, %v3144, %v3145
      %v3147 = vrot.slane %v3114, 1
      %v3148 = vrot.slane %v3115, 1
      %v3149 = vsel %vm2222, %v3147, %v3148
      %v3150 = vrot.slane %v3116, 1
      %v3151 = vrot.slane %v3117, 1
      %v3152 = vsel %vm2222, %v3150, %v3151
      %v3153 = vrot.slane %v3118, 1
      %v3154 = vrot.slane %v3119, 1
      %v3155 = vsel %vm2222, %v3153, %v3154
      %v3156 = vrot.slane %v3120, 1
      %v3157 = vrot.slane %v3121, 1
      %v3158 = vsel %vm2222, %v3156, %v3157
      %v3159 = vrot.slane %v3122, 1
      %v3160 = vrot.slane %v3123, 1
      %v3161 = vsel %vm2222, %v3159, %v3160
      %v3162 = vrot.slane %v3124, 1
      %v3163 = vrot.slane %v3125, 1
      %v3164 = vsel %vm2222, %v3162, %v3163
      %v3165 = vrot.slane %v3126, 1
      %v3166 = vrot.slane %v3127, 1
      %v3167 = vsel %vm2222, %v3165, %v3166
      %v3176 = vadd.f32 %v3104, %v3146
      %v3177 = vadd.f32 %v3105, %v3149
      %v3178 = vadd.f32 %v3106, %v3152
      %v3179 = vadd.f32 %v3107, %v3155
      %v3180 = vadd.f32 %v3108, %v3158
      %v3181 = vadd.f32 %v3109, %v3161
      %v3182 = vadd.f32 %v3110, %v3164
      %v3183 = vadd.f32 %v3111, %v3167
      %v3184 = vmul.f32 %v3080, %v2623
      %v3185 = vmul.f32 %v3081, %v2623
      %v3186 = vmul.f32 %v3082, %v2623
      %v3187 = vmul.f32 %v3083, %v2623
      %v3188 = vmul.f32 %v3084, %v2623
      %v3189 = vmul.f32 %v3085, %v2623
      %v3190 = vmul.f32 %v3086, %v2623
      %v3191 = vmul.f32 %v3087, %v2623
      %v3192 = vmul.f32 %v3088, %v2623
      %v3193 = vmul.f32 %v3089, %v2623
      %v3194 = vmul.f32 %v3090, %v2623
      %v3195 = vmul.f32 %v3091, %v2623
      %v3196 = vmul.f32 %v3092, %v2623
      %v3197 = vmul.f32 %v3093, %v2623
      %v3198 = vmul.f32 %v3094, %v2623
      %v3199 = vmul.f32 %v3095, %v2623
      %v3216 = vrot.slane %v3184, 2
      %v3217 = vrot.slane %v3185, 2
      %v3218 = vsel %vm2296, %v3216, %v3217
      %v3219 = vrot.slane %v3186, 2
      %v3220 = vrot.slane %v3187, 2
      %v3221 = vsel %vm2296, %v3219, %v3220
      %v3222 = vrot.slane %v3188, 2
      %v3223 = vrot.slane %v3189, 2
      %v3224 = vsel %vm2296, %v3222, %v3223
      %v3225 = vrot.slane %v3190, 2
      %v3226 = vrot.slane %v3191, 2
      %v3227 = vsel %vm2296, %v3225, %v3226
      %v3228 = vrot.slane %v3192, 2
      %v3229 = vrot.slane %v3193, 2
      %v3230 = vsel %vm2296, %v3228, %v3229
      %v3231 = vrot.slane %v3194, 2
      %v3232 = vrot.slane %v3195, 2
      %v3233 = vsel %vm2296, %v3231, %v3232
      %v3234 = vrot.slane %v3196, 2
      %v3235 = vrot.slane %v3197, 2
      %v3236 = vsel %vm2296, %v3234, %v3235
      %v3237 = vrot.slane %v3198, 2
      %v3238 = vrot.slane %v3199, 2
      %v3239 = vsel %vm2296, %v3237, %v3238
      %v3248 = vadd.f32 %v3176, %v3218
      %v3249 = vadd.f32 %v3177, %v3221
      %v3250 = vadd.f32 %v3178, %v3224
      %v3251 = vadd.f32 %v3179, %v3227
      %v3252 = vadd.f32 %v3180, %v3230
      %v3253 = vadd.f32 %v3181, %v3233
      %v3254 = vadd.f32 %v3182, %v3236
      %v3255 = vadd.f32 %v3183, %v3239
      %s3256 = scalar_lea.vmem [#allocation2], 320
      %3257 = vst [vmem:[%s3256] sm:$0xff] 0.0
      %3258 = vst [vmem:[%s3256 + $0x8] sm:$0xff] 0.0
      %s3259 = scalar_lea.vmem [#allocation2], 464
      %3260 = vst [vmem:[%s3259] sm:$0xff] 0.0
      %3261 = vst [vmem:[%s3259 + $0x8] sm:$0xff] 0.0
      %s3262 = scalar_lea.vmem [#allocation2], 336
      %3263 = vst [vmem:[%s3262] sm:$0x1] 0.0
      %3264 = vst [vmem:[%s3262 + $0x10] sm:$0x1] 0.0
      %3265 = vst [vmem:[%s3262 + $0x20] sm:$0x1] 0.0
      %3266 = vst [vmem:[%s3262 + $0x30] sm:$0x1] 0.0
      %3267 = vst [vmem:[%s3262 + $0x40] sm:$0x1] 0.0
      %3268 = vst [vmem:[%s3262 + $0x50] sm:$0x1] 0.0
      %3269 = vst [vmem:[%s3262 + $0x60] sm:$0x1] 0.0
      %3270 = vst [vmem:[%s3262 + $0x70] sm:$0x1] 0.0
      %3271 = vst [vmem:[%s3262 + $0x9] sm:$0x1] 0.0
      %3272 = vst [vmem:[%s3262 + $0x19] sm:$0x1] 0.0
      %3273 = vst [vmem:[%s3262 + $0x29] sm:$0x1] 0.0
      %3274 = vst [vmem:[%s3262 + $0x39] sm:$0x1] 0.0
      %3275 = vst [vmem:[%s3262 + $0x49] sm:$0x1] 0.0
      %3276 = vst [vmem:[%s3262 + $0x59] sm:$0x1] 0.0
      %3277 = vst [vmem:[%s3262 + $0x69] sm:$0x1] 0.0
      %3278 = vst [vmem:[%s3262 + $0x79] sm:$0x1] 0.0
      %3279 = vst [vmem:[%s3262 + $0x1] sm:$0xff] %v2076
      %3280 = vst [vmem:[%s3262 + $0x11] sm:$0xff] %v2077
      %3281 = vst [vmem:[%s3262 + $0x21] sm:$0xff] %v2078
      %3282 = vst [vmem:[%s3262 + $0x31] sm:$0xff] %v2079
      %3283 = vst [vmem:[%s3262 + $0x41] sm:$0xff] %v2080
      %3284 = vst [vmem:[%s3262 + $0x51] sm:$0xff] %v2081
      %3285 = vst [vmem:[%s3262 + $0x61] sm:$0xff] %v2082
      %3286 = vst [vmem:[%s3262 + $0x71] sm:$0xff] %v2083
      %v3287 = vld [vmem:[%s3256] sm:$0xff]
      %v3288 = vld [vmem:[%s3256 + $0x8] sm:$0xff]
      %v3289 = vld [vmem:[%s3256 + $0x10] sm:$0xff]
      %v3290 = vld [vmem:[%s3256 + $0x18] sm:$0xff]
      %v3291 = vld [vmem:[%s3256 + $0x20] sm:$0xff]
      %v3292 = vld [vmem:[%s3256 + $0x28] sm:$0xff]
      %v3293 = vld [vmem:[%s3256 + $0x30] sm:$0xff]
      %v3294 = vld [vmem:[%s3256 + $0x38] sm:$0xff]
      %v3295 = vld [vmem:[%s3256 + $0x40] sm:$0xff]
      %v3296 = vld [vmem:[%s3256 + $0x48] sm:$0xff]
      %v3297 = vld [vmem:[%s3256 + $0x50] sm:$0xff]
      %v3298 = vld [vmem:[%s3256 + $0x58] sm:$0xff]
      %v3299 = vld [vmem:[%s3256 + $0x60] sm:$0xff]
      %v3300 = vld [vmem:[%s3256 + $0x68] sm:$0xff]
      %v3301 = vld [vmem:[%s3256 + $0x70] sm:$0xff]
      %v3302 = vld [vmem:[%s3256 + $0x78] sm:$0xff]
      %v3303 = vmul.f32 %v3287, %v2172
      %v3304 = vmul.f32 %v3289, %v2172
      %v3305 = vmul.f32 %v3291, %v2172
      %v3306 = vmul.f32 %v3293, %v2172
      %v3307 = vmul.f32 %v3295, %v2172
      %v3308 = vmul.f32 %v3297, %v2172
      %v3309 = vmul.f32 %v3299, %v2172
      %v3310 = vmul.f32 %v3301, %v2172
      %v3311 = vadd.f32 %v3303, 0.0
      %v3312 = vadd.f32 %v3304, 0.0
      %v3313 = vadd.f32 %v3305, 0.0
      %v3314 = vadd.f32 %v3306, 0.0
      %v3315 = vadd.f32 %v3307, 0.0
      %v3316 = vadd.f32 %v3308, 0.0
      %v3317 = vadd.f32 %v3309, 0.0
      %v3318 = vadd.f32 %v3310, 0.0
      %v3319 = vmul.f32 %v3287, %v2189
      %v3320 = vmul.f32 %v3288, %v2189
      %v3321 = vmul.f32 %v3289, %v2189
      %v3322 = vmul.f32 %v3290, %v2189
      %v3323 = vmul.f32 %v3291, %v2189
      %v3324 = vmul.f32 %v3292, %v2189
      %v3325 = vmul.f32 %v3293, %v2189
      %v3326 = vmul.f32 %v3294, %v2189
      %v3327 = vmul.f32 %v3295, %v2189
      %v3328 = vmul.f32 %v3296, %v2189
      %v3329 = vmul.f32 %v3297, %v2189
      %v3330 = vmul.f32 %v3298, %v2189
      %v3331 = vmul.f32 %v3299, %v2189
      %v3332 = vmul.f32 %v3300, %v2189
      %v3333 = vmul.f32 %v3301, %v2189
      %v3334 = vmul.f32 %v3302, %v2189
      %v3351 = vrot.slane %v3319, 1
      %v3352 = vrot.slane %v3320, 1
      %v3353 = vsel %vm2222, %v3351, %v3352
      %v3354 = vrot.slane %v3321, 1
      %v3355 = vrot.slane %v3322, 1
      %v3356 = vsel %vm2222, %v3354, %v3355
      %v3357 = vrot.slane %v3323, 1
      %v3358 = vrot.slane %v3324, 1
      %v3359 = vsel %vm2222, %v3357, %v3358
      %v3360 = vrot.slane %v3325, 1
      %v3361 = vrot.slane %v3326, 1
      %v3362 = vsel %vm2222, %v3360, %v3361
      %v3363 = vrot.slane %v3327, 1
      %v3364 = vrot.slane %v3328, 1
      %v3365 = vsel %vm2222, %v3363, %v3364
      %v3366 = vrot.slane %v3329, 1
      %v3367 = vrot.slane %v3330, 1
      %v3368 = vsel %vm2222, %v3366, %v3367
      %v3369 = vrot.slane %v3331, 1
      %v3370 = vrot.slane %v3332, 1
      %v3371 = vsel %vm2222, %v3369, %v3370
      %v3372 = vrot.slane %v3333, 1
      %v3373 = vrot.slane %v3334, 1
      %v3374 = vsel %vm2222, %v3372, %v3373
      %v3383 = vadd.f32 %v3311, %v3353
      %v3384 = vadd.f32 %v3312, %v3356
      %v3385 = vadd.f32 %v3313, %v3359
      %v3386 = vadd.f32 %v3314, %v3362
      %v3387 = vadd.f32 %v3315, %v3365
      %v3388 = vadd.f32 %v3316, %v3368
      %v3389 = vadd.f32 %v3317, %v3371
      %v3390 = vadd.f32 %v3318, %v3374
      %v3391 = vmul.f32 %v3287, %v2263
      %v3392 = vmul.f32 %v3288, %v2263
      %v3393 = vmul.f32 %v3289, %v2263
      %v3394 = vmul.f32 %v3290, %v2263
      %v3395 = vmul.f32 %v3291, %v2263
      %v3396 = vmul.f32 %v3292, %v2263
      %v3397 = vmul.f32 %v3293, %v2263
      %v3398 = vmul.f32 %v3294, %v2263
      %v3399 = vmul.f32 %v3295, %v2263
      %v3400 = vmul.f32 %v3296, %v2263
      %v3401 = vmul.f32 %v3297, %v2263
      %v3402 = vmul.f32 %v3298, %v2263
      %v3403 = vmul.f32 %v3299, %v2263
      %v3404 = vmul.f32 %v3300, %v2263
      %v3405 = vmul.f32 %v3301, %v2263
      %v3406 = vmul.f32 %v3302, %v2263
      %v3423 = vrot.slane %v3391, 2
      %v3424 = vrot.slane %v3392, 2
      %v3425 = vsel %vm2296, %v3423, %v3424
      %v3426 = vrot.slane %v3393, 2
      %v3427 = vrot.slane %v3394, 2
      %v3428 = vsel %vm2296, %v3426, %v3427
      %v3429 = vrot.slane %v3395, 2
      %v3430 = vrot.slane %v3396, 2
      %v3431 = vsel %vm2296, %v3429, %v3430
      %v3432 = vrot.slane %v3397, 2
      %v3433 = vrot.slane %v3398, 2
      %v3434 = vsel %vm2296, %v3432, %v3433
      %v3435 = vrot.slane %v3399, 2
      %v3436 = vrot.slane %v3400, 2
      %v3437 = vsel %vm2296, %v3435, %v3436
      %v3438 = vrot.slane %v3401, 2
      %v3439 = vrot.slane %v3402, 2
      %v3440 = vsel %vm2296, %v3438, %v3439
      %v3441 = vrot.slane %v3403, 2
      %v3442 = vrot.slane %v3404, 2
      %v3443 = vsel %vm2296, %v3441, %v3442
      %v3444 = vrot.slane %v3405, 2
      %v3445 = vrot.slane %v3406, 2
      %v3446 = vsel %vm2296, %v3444, %v3445
      %v3455 = vadd.f32 %v3383, %v3425
      %v3456 = vadd.f32 %v3384, %v3428
      %v3457 = vadd.f32 %v3385, %v3431
      %v3458 = vadd.f32 %v3386, %v3434
      %v3459 = vadd.f32 %v3387, %v3437
      %v3460 = vadd.f32 %v3388, %v3440
      %v3461 = vadd.f32 %v3389, %v3443
      %v3462 = vadd.f32 %v3390, %v3446
      %v3463 = vld [vmem:[%s3262] sm:$0xff]
      %v3464 = vld [vmem:[%s3262 + $0x8] sm:$0xff]
      %v3465 = vld [vmem:[%s3262 + $0x10] sm:$0xff]
      %v3466 = vld [vmem:[%s3262 + $0x18] sm:$0xff]
      %v3467 = vld [vmem:[%s3262 + $0x20] sm:$0xff]
      %v3468 = vld [vmem:[%s3262 + $0x28] sm:$0xff]
      %v3469 = vld [vmem:[%s3262 + $0x30] sm:$0xff]
      %v3470 = vld [vmem:[%s3262 + $0x38] sm:$0xff]
      %v3471 = vld [vmem:[%s3262 + $0x40] sm:$0xff]
      %v3472 = vld [vmem:[%s3262 + $0x48] sm:$0xff]
      %v3473 = vld [vmem:[%s3262 + $0x50] sm:$0xff]
      %v3474 = vld [vmem:[%s3262 + $0x58] sm:$0xff]
      %v3475 = vld [vmem:[%s3262 + $0x60] sm:$0xff]
      %v3476 = vld [vmem:[%s3262 + $0x68] sm:$0xff]
      %v3477 = vld [vmem:[%s3262 + $0x70] sm:$0xff]
      %v3478 = vld [vmem:[%s3262 + $0x78] sm:$0xff]
      %v3479 = vmul.f32 %v3463, %v2353
      %v3480 = vmul.f32 %v3465, %v2353
      %v3481 = vmul.f32 %v3467, %v2353
      %v3482 = vmul.f32 %v3469, %v2353
      %v3483 = vmul.f32 %v3471, %v2353
      %v3484 = vmul.f32 %v3473, %v2353
      %v3485 = vmul.f32 %v3475, %v2353
      %v3486 = vmul.f32 %v3477, %v2353
      %v3487 = vadd.f32 %v3455, %v3479
      %v3488 = vadd.f32 %v3456, %v3480
      %v3489 = vadd.f32 %v3457, %v3481
      %v3490 = vadd.f32 %v3458, %v3482
      %v3491 = vadd.f32 %v3459, %v3483
      %v3492 = vadd.f32 %v3460, %v3484
      %v3493 = vadd.f32 %v3461, %v3485
      %v3494 = vadd.f32 %v3462, %v3486
      %v3495 = vmul.f32 %v3463, %v2370
      %v3496 = vmul.f32 %v3464, %v2370
      %v3497 = vmul.f32 %v3465, %v2370
      %v3498 = vmul.f32 %v3466, %v2370
      %v3499 = vmul.f32 %v3467, %v2370
      %v3500 = vmul.f32 %v3468, %v2370
      %v3501 = vmul.f32 %v3469, %v2370
      %v3502 = vmul.f32 %v3470, %v2370
      %v3503 = vmul.f32 %v3471, %v2370
      %v3504 = vmul.f32 %v3472, %v2370
      %v3505 = vmul.f32 %v3473, %v2370
      %v3506 = vmul.f32 %v3474, %v2370
      %v3507 = vmul.f32 %v3475, %v2370
      %v3508 = vmul.f32 %v3476, %v2370
      %v3509 = vmul.f32 %v3477, %v2370
      %v3510 = vmul.f32 %v3478, %v2370
      %v3527 = vrot.slane %v3495, 1
      %v3528 = vrot.slane %v3496, 1
      %v3529 = vsel %vm2222, %v3527, %v3528
      %v3530 = vrot.slane %v3497, 1
      %v3531 = vrot.slane %v3498, 1
      %v3532 = vsel %vm2222, %v3530, %v3531
      %v3533 = vrot.slane %v3499, 1
      %v3534 = vrot.slane %v3500, 1
      %v3535 = vsel %vm2222, %v3533, %v3534
      %v3536 = vrot.slane %v3501, 1
      %v3537 = vrot.slane %v3502, 1
      %v3538 = vsel %vm2222, %v3536, %v3537
      %v3539 = vrot.slane %v3503, 1
      %v3540 = vrot.slane %v3504, 1
      %v3541 = vsel %vm2222, %v3539, %v3540
      %v3542 = vrot.slane %v3505, 1
      %v3543 = vrot.slane %v3506, 1
      %v3544 = vsel %vm2222, %v3542, %v3543
      %v3545 = vrot.slane %v3507, 1
      %v3546 = vrot.slane %v3508, 1
      %v3547 = vsel %vm2222, %v3545, %v3546
      %v3548 = vrot.slane %v3509, 1
      %v3549 = vrot.slane %v3510, 1
      %v3550 = vsel %vm2222, %v3548, %v3549
      %v3559 = vadd.f32 %v3487, %v3529
      %v3560 = vadd.f32 %v3488, %v3532
      %v3561 = vadd.f32 %v3489, %v3535
      %v3562 = vadd.f32 %v3490, %v3538
      %v3563 = vadd.f32 %v3491, %v3541
      %v3564 = vadd.f32 %v3492, %v3544
      %v3565 = vadd.f32 %v3493, %v3547
      %v3566 = vadd.f32 %v3494, %v3550
      %v3567 = vmul.f32 %v3463, %v2443
      %v3568 = vmul.f32 %v3464, %v2443
      %v3569 = vmul.f32 %v3465, %v2443
      %v3570 = vmul.f32 %v3466, %v2443
      %v3571 = vmul.f32 %v3467, %v2443
      %v3572 = vmul.f32 %v3468, %v2443
      %v3573 = vmul.f32 %v3469, %v2443
      %v3574 = vmul.f32 %v3470, %v2443
      %v3575 = vmul.f32 %v3471, %v2443
      %v3576 = vmul.f32 %v3472, %v2443
      %v3577 = vmul.f32 %v3473, %v2443
      %v3578 = vmul.f32 %v3474, %v2443
      %v3579 = vmul.f32 %v3475, %v2443
      %v3580 = vmul.f32 %v3476, %v2443
      %v3581 = vmul.f32 %v3477, %v2443
      %v3582 = vmul.f32 %v3478, %v2443
      %v3599 = vrot.slane %v3567, 2
      %v3600 = vrot.slane %v3568, 2
      %v3601 = vsel %vm2296, %v3599, %v3600
      %v3602 = vrot.slane %v3569, 2
      %v3603 = vrot.slane %v3570, 2
      %v3604 = vsel %vm2296, %v3602, %v3603
      %v3605 = vrot.slane %v3571, 2
      %v3606 = vrot.slane %v3572, 2
      %v3607 = vsel %vm2296, %v3605, %v3606
      %v3608 = vrot.slane %v3573, 2
      %v3609 = vrot.slane %v3574, 2
      %v3610 = vsel %vm2296, %v3608, %v3609
      %v3611 = vrot.slane %v3575, 2
      %v3612 = vrot.slane %v3576, 2
      %v3613 = vsel %vm2296, %v3611, %v3612
      %v3614 = vrot.slane %v3577, 2
      %v3615 = vrot.slane %v3578, 2
      %v3616 = vsel %vm2296, %v3614, %v3615
      %v3617 = vrot.slane %v3579, 2
      %v3618 = vrot.slane %v3580, 2
      %v3619 = vsel %vm2296, %v3617, %v3618
      %v3620 = vrot.slane %v3581, 2
      %v3621 = vrot.slane %v3582, 2
      %v3622 = vsel %vm2296, %v3620, %v3621
      %v3631 = vadd.f32 %v3559, %v3601
      %v3632 = vadd.f32 %v3560, %v3604
      %v3633 = vadd.f32 %v3561, %v3607
      %v3634 = vadd.f32 %v3562, %v3610
      %v3635 = vadd.f32 %v3563, %v3613
      %v3636 = vadd.f32 %v3564, %v3616
      %v3637 = vadd.f32 %v3565, %v3619
      %v3638 = vadd.f32 %v3566, %v3622
      %s3639 = scalar_lea.vmem [#allocation2], 352
      %v3640 = vld [vmem:[%s3639] sm:$0xff]
      %v3641 = vld [vmem:[%s3639 + $0x8] sm:$0xff]
      %v3642 = vld [vmem:[%s3639 + $0x10] sm:$0xff]
      %v3643 = vld [vmem:[%s3639 + $0x18] sm:$0xff]
      %v3644 = vld [vmem:[%s3639 + $0x20] sm:$0xff]
      %v3645 = vld [vmem:[%s3639 + $0x28] sm:$0xff]
      %v3646 = vld [vmem:[%s3639 + $0x30] sm:$0xff]
      %v3647 = vld [vmem:[%s3639 + $0x38] sm:$0xff]
      %v3648 = vld [vmem:[%s3639 + $0x40] sm:$0xff]
      %v3649 = vld [vmem:[%s3639 + $0x48] sm:$0xff]
      %v3650 = vld [vmem:[%s3639 + $0x50] sm:$0xff]
      %v3651 = vld [vmem:[%s3639 + $0x58] sm:$0xff]
      %v3652 = vld [vmem:[%s3639 + $0x60] sm:$0xff]
      %v3653 = vld [vmem:[%s3639 + $0x68] sm:$0xff]
      %v3654 = vld [vmem:[%s3639 + $0x70] sm:$0xff]
      %v3655 = vld [vmem:[%s3639 + $0x78] sm:$0xff]
      %v3656 = vmul.f32 %v3640, %v2533
      %v3657 = vmul.f32 %v3642, %v2533
      %v3658 = vmul.f32 %v3644, %v2533
      %v3659 = vmul.f32 %v3646, %v2533
      %v3660 = vmul.f32 %v3648, %v2533
      %v3661 = vmul.f32 %v3650, %v2533
      %v3662 = vmul.f32 %v3652, %v2533
      %v3663 = vmul.f32 %v3654, %v2533
      %v3664 = vadd.f32 %v3631, %v3656
      %v3665 = vadd.f32 %v3632, %v3657
      %v3666 = vadd.f32 %v3633, %v3658
      %v3667 = vadd.f32 %v3634, %v3659
      %v3668 = vadd.f32 %v3635, %v3660
      %v3669 = vadd.f32 %v3636, %v3661
      %v3670 = vadd.f32 %v3637, %v3662
      %v3671 = vadd.f32 %v3638, %v3663
      %v3672 = vmul.f32 %v3640, %v2550
      %v3673 = vmul.f32 %v3641, %v2550
      %v3674 = vmul.f32 %v3642, %v2550
      %v3675 = vmul.f32 %v3643, %v2550
      %v3676 = vmul.f32 %v3644, %v2550
      %v3677 = vmul.f32 %v3645, %v2550
      %v3678 = vmul.f32 %v3646, %v2550
      %v3679 = vmul.f32 %v3647, %v2550
      %v3680 = vmul.f32 %v3648, %v2550
      %v3681 = vmul.f32 %v3649, %v2550
      %v3682 = vmul.f32 %v3650, %v2550
      %v3683 = vmul.f32 %v3651, %v2550
      %v3684 = vmul.f32 %v3652, %v2550
      %v3685 = vmul.f32 %v3653, %v2550
      %v3686 = vmul.f32 %v3654, %v2550
      %v3687 = vmul.f32 %v3655, %v2550
      %v3704 = vrot.slane %v3672, 1
      %v3705 = vrot.slane %v3673, 1
      %v3706 = vsel %vm2222, %v3704, %v3705
      %v3707 = vrot.slane %v3674, 1
      %v3708 = vrot.slane %v3675, 1
      %v3709 = vsel %vm2222, %v3707, %v3708
      %v3710 = vrot.slane %v3676, 1
      %v3711 = vrot.slane %v3677, 1
      %v3712 = vsel %vm2222, %v3710, %v3711
      %v3713 = vrot.slane %v3678, 1
      %v3714 = vrot.slane %v3679, 1
      %v3715 = vsel %vm2222, %v3713, %v3714
      %v3716 = vrot.slane %v3680, 1
      %v3717 = vrot.slane %v3681, 1
      %v3718 = vsel %vm2222, %v3716, %v3717
      %v3719 = vrot.slane %v3682, 1
      %v3720 = vrot.slane %v3683, 1
      %v3721 = vsel %vm2222, %v3719, %v3720
      %v3722 = vrot.slane %v3684, 1
      %v3723 = vrot.slane %v3685, 1
      %v3724 = vsel %vm2222, %v3722, %v3723
      %v3725 = vrot.slane %v3686, 1
      %v3726 = vrot.slane %v3687, 1
      %v3727 = vsel %vm2222, %v3725, %v3726
      %v3736 = vadd.f32 %v3664, %v3706
      %v3737 = vadd.f32 %v3665, %v3709
      %v3738 = vadd.f32 %v3666, %v3712
      %v3739 = vadd.f32 %v3667, %v3715
      %v3740 = vadd.f32 %v3668, %v3718
      %v3741 = vadd.f32 %v3669, %v3721
      %v3742 = vadd.f32 %v3670, %v3724
      %v3743 = vadd.f32 %v3671, %v3727
      %v3744 = vmul.f32 %v3640, %v2623
      %v3745 = vmul.f32 %v3641, %v2623
      %v3746 = vmul.f32 %v3642, %v2623
      %v3747 = vmul.f32 %v3643, %v2623
      %v3748 = vmul.f32 %v3644, %v2623
      %v3749 = vmul.f32 %v3645, %v2623
      %v3750 = vmul.f32 %v3646, %v2623
      %v3751 = vmul.f32 %v3647, %v2623
      %v3752 = vmul.f32 %v3648, %v2623
      %v3753 = vmul.f32 %v3649, %v2623
      %v3754 = vmul.f32 %v3650, %v2623
      %v3755 = vmul.f32 %v3651, %v2623
      %v3756 = vmul.f32 %v3652, %v2623
      %v3757 = vmul.f32 %v3653, %v2623
      %v3758 = vmul.f32 %v3654, %v2623
      %v3759 = vmul.f32 %v3655, %v2623
      %v3776 = vrot.slane %v3744, 2
      %v3777 = vrot.slane %v3745, 2
      %v3778 = vsel %vm2296, %v3776, %v3777
      %v3779 = vrot.slane %v3746, 2
      %v3780 = vrot.slane %v3747, 2
      %v3781 = vsel %vm2296, %v3779, %v3780
      %v3782 = vrot.slane %v3748, 2
      %v3783 = vrot.slane %v3749, 2
      %v3784 = vsel %vm2296, %v3782, %v3783
      %v3785 = vrot.slane %v3750, 2
      %v3786 = vrot.slane %v3751, 2
      %v3787 = vsel %vm2296, %v3785, %v3786
      %v3788 = vrot.slane %v3752, 2
      %v3789 = vrot.slane %v3753, 2
      %v3790 = vsel %vm2296, %v3788, %v3789
      %v3791 = vrot.slane %v3754, 2
      %v3792 = vrot.slane %v3755, 2
      %v3793 = vsel %vm2296, %v3791, %v3792
      %v3794 = vrot.slane %v3756, 2
      %v3795 = vrot.slane %v3757, 2
      %v3796 = vsel %vm2296, %v3794, %v3795
      %v3797 = vrot.slane %v3758, 2
      %v3798 = vrot.slane %v3759, 2
      %v3799 = vsel %vm2296, %v3797, %v3798
      %v3808 = vadd.f32 %v3736, %v3778
      %v3809 = vadd.f32 %v3737, %v3781
      %v3810 = vadd.f32 %v3738, %v3784
      %v3811 = vadd.f32 %v3739, %v3787
      %v3812 = vadd.f32 %v3740, %v3790
      %v3813 = vadd.f32 %v3741, %v3793
      %v3814 = vadd.f32 %v3742, %v3796
      %v3815 = vadd.f32 %v3743, %v3799
      %s3816 = scalar_lea.vmem [#allocation2], 480
      %3817 = vst [vmem:[%s3816] sm:$0xff] 0.0
      %3818 = vst [vmem:[%s3816 + $0x8] sm:$0xff] 0.0
      %s3819 = scalar_lea.vmem [#allocation2], 624
      %3820 = vst [vmem:[%s3819] sm:$0xff] 0.0
      %3821 = vst [vmem:[%s3819 + $0x8] sm:$0xff] 0.0
      %s3822 = scalar_lea.vmem [#allocation2], 496
      %3823 = vst [vmem:[%s3822] sm:$0x1] 0.0
      %3824 = vst [vmem:[%s3822 + $0x10] sm:$0x1] 0.0
      %3825 = vst [vmem:[%s3822 + $0x20] sm:$0x1] 0.0
      %3826 = vst [vmem:[%s3822 + $0x30] sm:$0x1] 0.0
      %3827 = vst [vmem:[%s3822 + $0x40] sm:$0x1] 0.0
      %3828 = vst [vmem:[%s3822 + $0x50] sm:$0x1] 0.0
      %3829 = vst [vmem:[%s3822 + $0x60] sm:$0x1] 0.0
      %3830 = vst [vmem:[%s3822 + $0x70] sm:$0x1] 0.0
      %3831 = vst [vmem:[%s3822 + $0x9] sm:$0x1] 0.0
      %3832 = vst [vmem:[%s3822 + $0x19] sm:$0x1] 0.0
      %3833 = vst [vmem:[%s3822 + $0x29] sm:$0x1] 0.0
      %3834 = vst [vmem:[%s3822 + $0x39] sm:$0x1] 0.0
      %3835 = vst [vmem:[%s3822 + $0x49] sm:$0x1] 0.0
      %3836 = vst [vmem:[%s3822 + $0x59] sm:$0x1] 0.0
      %3837 = vst [vmem:[%s3822 + $0x69] sm:$0x1] 0.0
      %3838 = vst [vmem:[%s3822 + $0x79] sm:$0x1] 0.0
      %3839 = vst [vmem:[%s3822 + $0x1] sm:$0xff] %v2084
      %3840 = vst [vmem:[%s3822 + $0x11] sm:$0xff] %v2085
      %3841 = vst [vmem:[%s3822 + $0x21] sm:$0xff] %v2086
      %3842 = vst [vmem:[%s3822 + $0x31] sm:$0xff] %v2087
      %3843 = vst [vmem:[%s3822 + $0x41] sm:$0xff] %v2088
      %3844 = vst [vmem:[%s3822 + $0x51] sm:$0xff] %v2089
      %3845 = vst [vmem:[%s3822 + $0x61] sm:$0xff] %v2090
      %3846 = vst [vmem:[%s3822 + $0x71] sm:$0xff] %v2091
      %v3847 = vld [vmem:[%s3816] sm:$0xff]
      %v3848 = vld [vmem:[%s3816 + $0x8] sm:$0xff]
      %v3849 = vld [vmem:[%s3816 + $0x10] sm:$0xff]
      %v3850 = vld [vmem:[%s3816 + $0x18] sm:$0xff]
      %v3851 = vld [vmem:[%s3816 + $0x20] sm:$0xff]
      %v3852 = vld [vmem:[%s3816 + $0x28] sm:$0xff]
      %v3853 = vld [vmem:[%s3816 + $0x30] sm:$0xff]
      %v3854 = vld [vmem:[%s3816 + $0x38] sm:$0xff]
      %v3855 = vld [vmem:[%s3816 + $0x40] sm:$0xff]
      %v3856 = vld [vmem:[%s3816 + $0x48] sm:$0xff]
      %v3857 = vld [vmem:[%s3816 + $0x50] sm:$0xff]
      %v3858 = vld [vmem:[%s3816 + $0x58] sm:$0xff]
      %v3859 = vld [vmem:[%s3816 + $0x60] sm:$0xff]
      %v3860 = vld [vmem:[%s3816 + $0x68] sm:$0xff]
      %v3861 = vld [vmem:[%s3816 + $0x70] sm:$0xff]
      %v3862 = vld [vmem:[%s3816 + $0x78] sm:$0xff]
      %v3863 = vmul.f32 %v3847, %v2172
      %v3864 = vmul.f32 %v3849, %v2172
      %v3865 = vmul.f32 %v3851, %v2172
      %v3866 = vmul.f32 %v3853, %v2172
      %v3867 = vmul.f32 %v3855, %v2172
      %v3868 = vmul.f32 %v3857, %v2172
      %v3869 = vmul.f32 %v3859, %v2172
      %v3870 = vmul.f32 %v3861, %v2172
      %v3871 = vadd.f32 %v3863, 0.0
      %v3872 = vadd.f32 %v3864, 0.0
      %v3873 = vadd.f32 %v3865, 0.0
      %v3874 = vadd.f32 %v3866, 0.0
      %v3875 = vadd.f32 %v3867, 0.0
      %v3876 = vadd.f32 %v3868, 0.0
      %v3877 = vadd.f32 %v3869, 0.0
      %v3878 = vadd.f32 %v3870, 0.0
      %v3879 = vmul.f32 %v3847, %v2189
      %v3880 = vmul.f32 %v3848, %v2189
      %v3881 = vmul.f32 %v3849, %v2189
      %v3882 = vmul.f32 %v3850, %v2189
      %v3883 = vmul.f32 %v3851, %v2189
      %v3884 = vmul.f32 %v3852, %v2189
      %v3885 = vmul.f32 %v3853, %v2189
      %v3886 = vmul.f32 %v3854, %v2189
      %v3887 = vmul.f32 %v3855, %v2189
      %v3888 = vmul.f32 %v3856, %v2189
      %v3889 = vmul.f32 %v3857, %v2189
      %v3890 = vmul.f32 %v3858, %v2189
      %v3891 = vmul.f32 %v3859, %v2189
      %v3892 = vmul.f32 %v3860, %v2189
      %v3893 = vmul.f32 %v3861, %v2189
      %v3894 = vmul.f32 %v3862, %v2189
      %v3911 = vrot.slane %v3879, 1
      %v3912 = vrot.slane %v3880, 1
      %v3913 = vsel %vm2222, %v3911, %v3912
      %v3914 = vrot.slane %v3881, 1
      %v3915 = vrot.slane %v3882, 1
      %v3916 = vsel %vm2222, %v3914, %v3915
      %v3917 = vrot.slane %v3883, 1
      %v3918 = vrot.slane %v3884, 1
      %v3919 = vsel %vm2222, %v3917, %v3918
      %v3920 = vrot.slane %v3885, 1
      %v3921 = vrot.slane %v3886, 1
      %v3922 = vsel %vm2222, %v3920, %v3921
      %v3923 = vrot.slane %v3887, 1
      %v3924 = vrot.slane %v3888, 1
      %v3925 = vsel %vm2222, %v3923, %v3924
      %v3926 = vrot.slane %v3889, 1
      %v3927 = vrot.slane %v3890, 1
      %v3928 = vsel %vm2222, %v3926, %v3927
      %v3929 = vrot.slane %v3891, 1
      %v3930 = vrot.slane %v3892, 1
      %v3931 = vsel %vm2222, %v3929, %v3930
      %v3932 = vrot.slane %v3893, 1
      %v3933 = vrot.slane %v3894, 1
      %v3934 = vsel %vm2222, %v3932, %v3933
      %v3943 = vadd.f32 %v3871, %v3913
      %v3944 = vadd.f32 %v3872, %v3916
      %v3945 = vadd.f32 %v3873, %v3919
      %v3946 = vadd.f32 %v3874, %v3922
      %v3947 = vadd.f32 %v3875, %v3925
      %v3948 = vadd.f32 %v3876, %v3928
      %v3949 = vadd.f32 %v3877, %v3931
      %v3950 = vadd.f32 %v3878, %v3934
      %v3951 = vmul.f32 %v3847, %v2263
      %v3952 = vmul.f32 %v3848, %v2263
      %v3953 = vmul.f32 %v3849, %v2263
      %v3954 = vmul.f32 %v3850, %v2263
      %v3955 = vmul.f32 %v3851, %v2263
      %v3956 = vmul.f32 %v3852, %v2263
      %v3957 = vmul.f32 %v3853, %v2263
      %v3958 = vmul.f32 %v3854, %v2263
      %v3959 = vmul.f32 %v3855, %v2263
      %v3960 = vmul.f32 %v3856, %v2263
      %v3961 = vmul.f32 %v3857, %v2263
      %v3962 = vmul.f32 %v3858, %v2263
      %v3963 = vmul.f32 %v3859, %v2263
      %v3964 = vmul.f32 %v3860, %v2263
      %v3965 = vmul.f32 %v3861, %v2263
      %v3966 = vmul.f32 %v3862, %v2263
      %v3983 = vrot.slane %v3951, 2
      %v3984 = vrot.slane %v3952, 2
      %v3985 = vsel %vm2296, %v3983, %v3984
      %v3986 = vrot.slane %v3953, 2
      %v3987 = vrot.slane %v3954, 2
      %v3988 = vsel %vm2296, %v3986, %v3987
      %v3989 = vrot.slane %v3955, 2
      %v3990 = vrot.slane %v3956, 2
      %v3991 = vsel %vm2296, %v3989, %v3990
      %v3992 = vrot.slane %v3957, 2
      %v3993 = vrot.slane %v3958, 2
      %v3994 = vsel %vm2296, %v3992, %v3993
      %v3995 = vrot.slane %v3959, 2
      %v3996 = vrot.slane %v3960, 2
      %v3997 = vsel %vm2296, %v3995, %v3996
      %v3998 = vrot.slane %v3961, 2
      %v3999 = vrot.slane %v3962, 2
      %v4000 = vsel %vm2296, %v3998, %v3999
      %v4001 = vrot.slane %v3963, 2
      %v4002 = vrot.slane %v3964, 2
      %v4003 = vsel %vm2296, %v4001, %v4002
      %v4004 = vrot.slane %v3965, 2
      %v4005 = vrot.slane %v3966, 2
      %v4006 = vsel %vm2296, %v4004, %v4005
      %v4015 = vadd.f32 %v3943, %v3985
      %v4016 = vadd.f32 %v3944, %v3988
      %v4017 = vadd.f32 %v3945, %v3991
      %v4018 = vadd.f32 %v3946, %v3994
      %v4019 = vadd.f32 %v3947, %v3997
      %v4020 = vadd.f32 %v3948, %v4000
      %v4021 = vadd.f32 %v3949, %v4003
      %v4022 = vadd.f32 %v3950, %v4006
      %v4023 = vld [vmem:[%s3822] sm:$0xff]
      %v4024 = vld [vmem:[%s3822 + $0x8] sm:$0xff]
      %v4025 = vld [vmem:[%s3822 + $0x10] sm:$0xff]
      %v4026 = vld [vmem:[%s3822 + $0x18] sm:$0xff]
      %v4027 = vld [vmem:[%s3822 + $0x20] sm:$0xff]
      %v4028 = vld [vmem:[%s3822 + $0x28] sm:$0xff]
      %v4029 = vld [vmem:[%s3822 + $0x30] sm:$0xff]
      %v4030 = vld [vmem:[%s3822 + $0x38] sm:$0xff]
      %v4031 = vld [vmem:[%s3822 + $0x40] sm:$0xff]
      %v4032 = vld [vmem:[%s3822 + $0x48] sm:$0xff]
      %v4033 = vld [vmem:[%s3822 + $0x50] sm:$0xff]
      %v4034 = vld [vmem:[%s3822 + $0x58] sm:$0xff]
      %v4035 = vld [vmem:[%s3822 + $0x60] sm:$0xff]
      %v4036 = vld [vmem:[%s3822 + $0x68] sm:$0xff]
      %v4037 = vld [vmem:[%s3822 + $0x70] sm:$0xff]
      %v4038 = vld [vmem:[%s3822 + $0x78] sm:$0xff]
      %v4039 = vmul.f32 %v4023, %v2353
      %v4040 = vmul.f32 %v4025, %v2353
      %v4041 = vmul.f32 %v4027, %v2353
      %v4042 = vmul.f32 %v4029, %v2353
      %v4043 = vmul.f32 %v4031, %v2353
      %v4044 = vmul.f32 %v4033, %v2353
      %v4045 = vmul.f32 %v4035, %v2353
      %v4046 = vmul.f32 %v4037, %v2353
      %v4047 = vadd.f32 %v4015, %v4039
      %v4048 = vadd.f32 %v4016, %v4040
      %v4049 = vadd.f32 %v4017, %v4041
      %v4050 = vadd.f32 %v4018, %v4042
      %v4051 = vadd.f32 %v4019, %v4043
      %v4052 = vadd.f32 %v4020, %v4044
      %v4053 = vadd.f32 %v4021, %v4045
      %v4054 = vadd.f32 %v4022, %v4046
      %v4055 = vmul.f32 %v4023, %v2370
      %v4056 = vmul.f32 %v4024, %v2370
      %v4057 = vmul.f32 %v4025, %v2370
      %v4058 = vmul.f32 %v4026, %v2370
      %v4059 = vmul.f32 %v4027, %v2370
      %v4060 = vmul.f32 %v4028, %v2370
      %v4061 = vmul.f32 %v4029, %v2370
      %v4062 = vmul.f32 %v4030, %v2370
      %v4063 = vmul.f32 %v4031, %v2370
      %v4064 = vmul.f32 %v4032, %v2370
      %v4065 = vmul.f32 %v4033, %v2370
      %v4066 = vmul.f32 %v4034, %v2370
      %v4067 = vmul.f32 %v4035, %v2370
      %v4068 = vmul.f32 %v4036, %v2370
      %v4069 = vmul.f32 %v4037, %v2370
      %v4070 = vmul.f32 %v4038, %v2370
      %v4087 = vrot.slane %v4055, 1
      %v4088 = vrot.slane %v4056, 1
      %v4089 = vsel %vm2222, %v4087, %v4088
      %v4090 = vrot.slane %v4057, 1
      %v4091 = vrot.slane %v4058, 1
      %v4092 = vsel %vm2222, %v4090, %v4091
      %v4093 = vrot.slane %v4059, 1
      %v4094 = vrot.slane %v4060, 1
      %v4095 = vsel %vm2222, %v4093, %v4094
      %v4096 = vrot.slane %v4061, 1
      %v4097 = vrot.slane %v4062, 1
      %v4098 = vsel %vm2222, %v4096, %v4097
      %v4099 = vrot.slane %v4063, 1
      %v4100 = vrot.slane %v4064, 1
      %v4101 = vsel %vm2222, %v4099, %v4100
      %v4102 = vrot.slane %v4065, 1
      %v4103 = vrot.slane %v4066, 1
      %v4104 = vsel %vm2222, %v4102, %v4103
      %v4105 = vrot.slane %v4067, 1
      %v4106 = vrot.slane %v4068, 1
      %v4107 = vsel %vm2222, %v4105, %v4106
      %v4108 = vrot.slane %v4069, 1
      %v4109 = vrot.slane %v4070, 1
      %v4110 = vsel %vm2222, %v4108, %v4109
      %v4119 = vadd.f32 %v4047, %v4089
      %v4120 = vadd.f32 %v4048, %v4092
      %v4121 = vadd.f32 %v4049, %v4095
      %v4122 = vadd.f32 %v4050, %v4098
      %v4123 = vadd.f32 %v4051, %v4101
      %v4124 = vadd.f32 %v4052, %v4104
      %v4125 = vadd.f32 %v4053, %v4107
      %v4126 = vadd.f32 %v4054, %v4110
      %v4127 = vmul.f32 %v4023, %v2443
      %v4128 = vmul.f32 %v4024, %v2443
      %v4129 = vmul.f32 %v4025, %v2443
      %v4130 = vmul.f32 %v4026, %v2443
      %v4131 = vmul.f32 %v4027, %v2443
      %v4132 = vmul.f32 %v4028, %v2443
      %v4133 = vmul.f32 %v4029, %v2443
      %v4134 = vmul.f32 %v4030, %v2443
      %v4135 = vmul.f32 %v4031, %v2443
      %v4136 = vmul.f32 %v4032, %v2443
      %v4137 = vmul.f32 %v4033, %v2443
      %v4138 = vmul.f32 %v4034, %v2443
      %v4139 = vmul.f32 %v4035, %v2443
      %v4140 = vmul.f32 %v4036, %v2443
      %v4141 = vmul.f32 %v4037, %v2443
      %v4142 = vmul.f32 %v4038, %v2443
      %v4159 = vrot.slane %v4127, 2
      %v4160 = vrot.slane %v4128, 2
      %v4161 = vsel %vm2296, %v4159, %v4160
      %v4162 = vrot.slane %v4129, 2
      %v4163 = vrot.slane %v4130, 2
      %v4164 = vsel %vm2296, %v4162, %v4163
      %v4165 = vrot.slane %v4131, 2
      %v4166 = vrot.slane %v4132, 2
      %v4167 = vsel %vm2296, %v4165, %v4166
      %v4168 = vrot.slane %v4133, 2
      %v4169 = vrot.slane %v4134, 2
      %v4170 = vsel %vm2296, %v4168, %v4169
      %v4171 = vrot.slane %v4135, 2
      %v4172 = vrot.slane %v4136, 2
      %v4173 = vsel %vm2296, %v4171, %v4172
      %v4174 = vrot.slane %v4137, 2
      %v4175 = vrot.slane %v4138, 2
      %v4176 = vsel %vm2296, %v4174, %v4175
      %v4177 = vrot.slane %v4139, 2
      %v4178 = vrot.slane %v4140, 2
      %v4179 = vsel %vm2296, %v4177, %v4178
      %v4180 = vrot.slane %v4141, 2
      %v4181 = vrot.slane %v4142, 2
      %v4182 = vsel %vm2296, %v4180, %v4181
      %v4191 = vadd.f32 %v4119, %v4161
      %v4192 = vadd.f32 %v4120, %v4164
      %v4193 = vadd.f32 %v4121, %v4167
      %v4194 = vadd.f32 %v4122, %v4170
      %v4195 = vadd.f32 %v4123, %v4173
      %v4196 = vadd.f32 %v4124, %v4176
      %v4197 = vadd.f32 %v4125, %v4179
      %v4198 = vadd.f32 %v4126, %v4182
      %s4199 = scalar_lea.vmem [#allocation2], 512
      %v4200 = vld [vmem:[%s4199] sm:$0xff]
      %v4201 = vld [vmem:[%s4199 + $0x8] sm:$0xff]
      %v4202 = vld [vmem:[%s4199 + $0x10] sm:$0xff]
      %v4203 = vld [vmem:[%s4199 + $0x18] sm:$0xff]
      %v4204 = vld [vmem:[%s4199 + $0x20] sm:$0xff]
      %v4205 = vld [vmem:[%s4199 + $0x28] sm:$0xff]
      %v4206 = vld [vmem:[%s4199 + $0x30] sm:$0xff]
      %v4207 = vld [vmem:[%s4199 + $0x38] sm:$0xff]
      %v4208 = vld [vmem:[%s4199 + $0x40] sm:$0xff]
      %v4209 = vld [vmem:[%s4199 + $0x48] sm:$0xff]
      %v4210 = vld [vmem:[%s4199 + $0x50] sm:$0xff]
      %v4211 = vld [vmem:[%s4199 + $0x58] sm:$0xff]
      %v4212 = vld [vmem:[%s4199 + $0x60] sm:$0xff]
      %v4213 = vld [vmem:[%s4199 + $0x68] sm:$0xff]
      %v4214 = vld [vmem:[%s4199 + $0x70] sm:$0xff]
      %v4215 = vld [vmem:[%s4199 + $0x78] sm:$0xff]
      %v4216 = vmul.f32 %v4200, %v2533
      %v4217 = vmul.f32 %v4202, %v2533
      %v4218 = vmul.f32 %v4204, %v2533
      %v4219 = vmul.f32 %v4206, %v2533
      %v4220 = vmul.f32 %v4208, %v2533
      %v4221 = vmul.f32 %v4210, %v2533
      %v4222 = vmul.f32 %v4212, %v2533
      %v4223 = vmul.f32 %v4214, %v2533
      %v4224 = vadd.f32 %v4191, %v4216
      %v4225 = vadd.f32 %v4192, %v4217
      %v4226 = vadd.f32 %v4193, %v4218
      %v4227 = vadd.f32 %v4194, %v4219
      %v4228 = vadd.f32 %v4195, %v4220
      %v4229 = vadd.f32 %v4196, %v4221
      %v4230 = vadd.f32 %v4197, %v4222
      %v4231 = vadd.f32 %v4198, %v4223
      %v4232 = vmul.f32 %v4200, %v2550
      %v4233 = vmul.f32 %v4201, %v2550
      %v4234 = vmul.f32 %v4202, %v2550
      %v4235 = vmul.f32 %v4203, %v2550
      %v4236 = vmul.f32 %v4204, %v2550
      %v4237 = vmul.f32 %v4205, %v2550
      %v4238 = vmul.f32 %v4206, %v2550
      %v4239 = vmul.f32 %v4207, %v2550
      %v4240 = vmul.f32 %v4208, %v2550
      %v4241 = vmul.f32 %v4209, %v2550
      %v4242 = vmul.f32 %v4210, %v2550
      %v4243 = vmul.f32 %v4211, %v2550
      %v4244 = vmul.f32 %v4212, %v2550
      %v4245 = vmul.f32 %v4213, %v2550
      %v4246 = vmul.f32 %v4214, %v2550
      %v4247 = vmul.f32 %v4215, %v2550
      %v4264 = vrot.slane %v4232, 1
      %v4265 = vrot.slane %v4233, 1
      %v4266 = vsel %vm2222, %v4264, %v4265
      %v4267 = vrot.slane %v4234, 1
      %v4268 = vrot.slane %v4235, 1
      %v4269 = vsel %vm2222, %v4267, %v4268
      %v4270 = vrot.slane %v4236, 1
      %v4271 = vrot.slane %v4237, 1
      %v4272 = vsel %vm2222, %v4270, %v4271
      %v4273 = vrot.slane %v4238, 1
      %v4274 = vrot.slane %v4239, 1
      %v4275 = vsel %vm2222, %v4273, %v4274
      %v4276 = vrot.slane %v4240, 1
      %v4277 = vrot.slane %v4241, 1
      %v4278 = vsel %vm2222, %v4276, %v4277
      %v4279 = vrot.slane %v4242, 1
      %v4280 = vrot.slane %v4243, 1
      %v4281 = vsel %vm2222, %v4279, %v4280
      %v4282 = vrot.slane %v4244, 1
      %v4283 = vrot.slane %v4245, 1
      %v4284 = vsel %vm2222, %v4282, %v4283
      %v4285 = vrot.slane %v4246, 1
      %v4286 = vrot.slane %v4247, 1
      %v4287 = vsel %vm2222, %v4285, %v4286
      %v4296 = vadd.f32 %v4224, %v4266
      %v4297 = vadd.f32 %v4225, %v4269
      %v4298 = vadd.f32 %v4226, %v4272
      %v4299 = vadd.f32 %v4227, %v4275
      %v4300 = vadd.f32 %v4228, %v4278
      %v4301 = vadd.f32 %v4229, %v4281
      %v4302 = vadd.f32 %v4230, %v4284
      %v4303 = vadd.f32 %v4231, %v4287
      %v4304 = vmul.f32 %v4200, %v2623
      %v4305 = vmul.f32 %v4201, %v2623
      %v4306 = vmul.f32 %v4202, %v2623
      %v4307 = vmul.f32 %v4203, %v2623
      %v4308 = vmul.f32 %v4204, %v2623
      %v4309 = vmul.f32 %v4205, %v2623
      %v4310 = vmul.f32 %v4206, %v2623
      %v4311 = vmul.f32 %v4207, %v2623
      %v4312 = vmul.f32 %v4208, %v2623
      %v4313 = vmul.f32 %v4209, %v2623
      %v4314 = vmul.f32 %v4210, %v2623
      %v4315 = vmul.f32 %v4211, %v2623
      %v4316 = vmul.f32 %v4212, %v2623
      %v4317 = vmul.f32 %v4213, %v2623
      %v4318 = vmul.f32 %v4214, %v2623
      %v4319 = vmul.f32 %v4215, %v2623
      %v4336 = vrot.slane %v4304, 2
      %v4337 = vrot.slane %v4305, 2
      %v4338 = vsel %vm2296, %v4336, %v4337
      %v4339 = vrot.slane %v4306, 2
      %v4340 = vrot.slane %v4307, 2
      %v4341 = vsel %vm2296, %v4339, %v4340
      %v4342 = vrot.slane %v4308, 2
      %v4343 = vrot.slane %v4309, 2
      %v4344 = vsel %vm2296, %v4342, %v4343
      %v4345 = vrot.slane %v4310, 2
      %v4346 = vrot.slane %v4311, 2
      %v4347 = vsel %vm2296, %v4345, %v4346
      %v4348 = vrot.slane %v4312, 2
      %v4349 = vrot.slane %v4313, 2
      %v4350 = vsel %vm2296, %v4348, %v4349
      %v4351 = vrot.slane %v4314, 2
      %v4352 = vrot.slane %v4315, 2
      %v4353 = vsel %vm2296, %v4351, %v4352
      %v4354 = vrot.slane %v4316, 2
      %v4355 = vrot.slane %v4317, 2
      %v4356 = vsel %vm2296, %v4354, %v4355
      %v4357 = vrot.slane %v4318, 2
      %v4358 = vrot.slane %v4319, 2
      %v4359 = vsel %vm2296, %v4357, %v4358
      %v4368 = vadd.f32 %v4296, %v4338
      %v4369 = vadd.f32 %v4297, %v4341
      %v4370 = vadd.f32 %v4298, %v4344
      %v4371 = vadd.f32 %v4299, %v4347
      %v4372 = vadd.f32 %v4300, %v4350
      %v4373 = vadd.f32 %v4301, %v4353
      %v4374 = vadd.f32 %v4302, %v4356
      %v4375 = vadd.f32 %v4303, %v4359
      %s4376 = scalar_lea.vmem [#allocation2], 640
      %4377 = vst [vmem:[%s4376] sm:$0xff] 0.0
      %4378 = vst [vmem:[%s4376 + $0x8] sm:$0xff] 0.0
      %s4379 = scalar_lea.vmem [#allocation2], 784
      %4380 = vst [vmem:[%s4379] sm:$0xff] 0.0
      %4381 = vst [vmem:[%s4379 + $0x8] sm:$0xff] 0.0
      %s4382 = scalar_lea.vmem [#allocation2], 656
      %4383 = vst [vmem:[%s4382] sm:$0x1] 0.0
      %4384 = vst [vmem:[%s4382 + $0x10] sm:$0x1] 0.0
      %4385 = vst [vmem:[%s4382 + $0x20] sm:$0x1] 0.0
      %4386 = vst [vmem:[%s4382 + $0x30] sm:$0x1] 0.0
      %4387 = vst [vmem:[%s4382 + $0x40] sm:$0x1] 0.0
      %4388 = vst [vmem:[%s4382 + $0x50] sm:$0x1] 0.0
      %4389 = vst [vmem:[%s4382 + $0x60] sm:$0x1] 0.0
      %4390 = vst [vmem:[%s4382 + $0x70] sm:$0x1] 0.0
      %4391 = vst [vmem:[%s4382 + $0x9] sm:$0x1] 0.0
      %4392 = vst [vmem:[%s4382 + $0x19] sm:$0x1] 0.0
      %4393 = vst [vmem:[%s4382 + $0x29] sm:$0x1] 0.0
      %4394 = vst [vmem:[%s4382 + $0x39] sm:$0x1] 0.0
      %4395 = vst [vmem:[%s4382 + $0x49] sm:$0x1] 0.0
      %4396 = vst [vmem:[%s4382 + $0x59] sm:$0x1] 0.0
      %4397 = vst [vmem:[%s4382 + $0x69] sm:$0x1] 0.0
      %4398 = vst [vmem:[%s4382 + $0x79] sm:$0x1] 0.0
      %4399 = vst [vmem:[%s4382 + $0x1] sm:$0xff] %v2092
      %4400 = vst [vmem:[%s4382 + $0x11] sm:$0xff] %v2093
      %4401 = vst [vmem:[%s4382 + $0x21] sm:$0xff] %v2094
      %4402 = vst [vmem:[%s4382 + $0x31] sm:$0xff] %v2095
      %4403 = vst [vmem:[%s4382 + $0x41] sm:$0xff] %v2096
      %4404 = vst [vmem:[%s4382 + $0x51] sm:$0xff] %v2097
      %4405 = vst [vmem:[%s4382 + $0x61] sm:$0xff] %v2098
      %4406 = vst [vmem:[%s4382 + $0x71] sm:$0xff] %v2099
      %v4407 = vld [vmem:[%s4376] sm:$0xff]
      %v4408 = vld [vmem:[%s4376 + $0x8] sm:$0xff]
      %v4409 = vld [vmem:[%s4376 + $0x10] sm:$0xff]
      %v4410 = vld [vmem:[%s4376 + $0x18] sm:$0xff]
      %v4411 = vld [vmem:[%s4376 + $0x20] sm:$0xff]
      %v4412 = vld [vmem:[%s4376 + $0x28] sm:$0xff]
      %v4413 = vld [vmem:[%s4376 + $0x30] sm:$0xff]
      %v4414 = vld [vmem:[%s4376 + $0x38] sm:$0xff]
      %v4415 = vld [vmem:[%s4376 + $0x40] sm:$0xff]
      %v4416 = vld [vmem:[%s4376 + $0x48] sm:$0xff]
      %v4417 = vld [vmem:[%s4376 + $0x50] sm:$0xff]
      %v4418 = vld [vmem:[%s4376 + $0x58] sm:$0xff]
      %v4419 = vld [vmem:[%s4376 + $0x60] sm:$0xff]
      %v4420 = vld [vmem:[%s4376 + $0x68] sm:$0xff]
      %v4421 = vld [vmem:[%s4376 + $0x70] sm:$0xff]
      %v4422 = vld [vmem:[%s4376 + $0x78] sm:$0xff]
      %v4423 = vmul.f32 %v4407, %v2172
      %v4424 = vmul.f32 %v4409, %v2172
      %v4425 = vmul.f32 %v4411, %v2172
      %v4426 = vmul.f32 %v4413, %v2172
      %v4427 = vmul.f32 %v4415, %v2172
      %v4428 = vmul.f32 %v4417, %v2172
      %v4429 = vmul.f32 %v4419, %v2172
      %v4430 = vmul.f32 %v4421, %v2172
      %v4431 = vadd.f32 %v4423, 0.0
      %v4432 = vadd.f32 %v4424, 0.0
      %v4433 = vadd.f32 %v4425, 0.0
      %v4434 = vadd.f32 %v4426, 0.0
      %v4435 = vadd.f32 %v4427, 0.0
      %v4436 = vadd.f32 %v4428, 0.0
      %v4437 = vadd.f32 %v4429, 0.0
      %v4438 = vadd.f32 %v4430, 0.0
      %v4439 = vmul.f32 %v4407, %v2189
      %v4440 = vmul.f32 %v4408, %v2189
      %v4441 = vmul.f32 %v4409, %v2189
      %v4442 = vmul.f32 %v4410, %v2189
      %v4443 = vmul.f32 %v4411, %v2189
      %v4444 = vmul.f32 %v4412, %v2189
      %v4445 = vmul.f32 %v4413, %v2189
      %v4446 = vmul.f32 %v4414, %v2189
      %v4447 = vmul.f32 %v4415, %v2189
      %v4448 = vmul.f32 %v4416, %v2189
      %v4449 = vmul.f32 %v4417, %v2189
      %v4450 = vmul.f32 %v4418, %v2189
      %v4451 = vmul.f32 %v4419, %v2189
      %v4452 = vmul.f32 %v4420, %v2189
      %v4453 = vmul.f32 %v4421, %v2189
      %v4454 = vmul.f32 %v4422, %v2189
      %v4471 = vrot.slane %v4439, 1
      %v4472 = vrot.slane %v4440, 1
      %v4473 = vsel %vm2222, %v4471, %v4472
      %v4474 = vrot.slane %v4441, 1
      %v4475 = vrot.slane %v4442, 1
      %v4476 = vsel %vm2222, %v4474, %v4475
      %v4477 = vrot.slane %v4443, 1
      %v4478 = vrot.slane %v4444, 1
      %v4479 = vsel %vm2222, %v4477, %v4478
      %v4480 = vrot.slane %v4445, 1
      %v4481 = vrot.slane %v4446, 1
      %v4482 = vsel %vm2222, %v4480, %v4481
      %v4483 = vrot.slane %v4447, 1
      %v4484 = vrot.slane %v4448, 1
      %v4485 = vsel %vm2222, %v4483, %v4484
      %v4486 = vrot.slane %v4449, 1
      %v4487 = vrot.slane %v4450, 1
      %v4488 = vsel %vm2222, %v4486, %v4487
      %v4489 = vrot.slane %v4451, 1
      %v4490 = vrot.slane %v4452, 1
      %v4491 = vsel %vm2222, %v4489, %v4490
      %v4492 = vrot.slane %v4453, 1
      %v4493 = vrot.slane %v4454, 1
      %v4494 = vsel %vm2222, %v4492, %v4493
      %v4503 = vadd.f32 %v4431, %v4473
      %v4504 = vadd.f32 %v4432, %v4476
      %v4505 = vadd.f32 %v4433, %v4479
      %v4506 = vadd.f32 %v4434, %v4482
      %v4507 = vadd.f32 %v4435, %v4485
      %v4508 = vadd.f32 %v4436, %v4488
      %v4509 = vadd.f32 %v4437, %v4491
      %v4510 = vadd.f32 %v4438, %v4494
      %v4511 = vmul.f32 %v4407, %v2263
      %v4512 = vmul.f32 %v4408, %v2263
      %v4513 = vmul.f32 %v4409, %v2263
      %v4514 = vmul.f32 %v4410, %v2263
      %v4515 = vmul.f32 %v4411, %v2263
      %v4516 = vmul.f32 %v4412, %v2263
      %v4517 = vmul.f32 %v4413, %v2263
      %v4518 = vmul.f32 %v4414, %v2263
      %v4519 = vmul.f32 %v4415, %v2263
      %v4520 = vmul.f32 %v4416, %v2263
      %v4521 = vmul.f32 %v4417, %v2263
      %v4522 = vmul.f32 %v4418, %v2263
      %v4523 = vmul.f32 %v4419, %v2263
      %v4524 = vmul.f32 %v4420, %v2263
      %v4525 = vmul.f32 %v4421, %v2263
      %v4526 = vmul.f32 %v4422, %v2263
      %v4543 = vrot.slane %v4511, 2
      %v4544 = vrot.slane %v4512, 2
      %v4545 = vsel %vm2296, %v4543, %v4544
      %v4546 = vrot.slane %v4513, 2
      %v4547 = vrot.slane %v4514, 2
      %v4548 = vsel %vm2296, %v4546, %v4547
      %v4549 = vrot.slane %v4515, 2
      %v4550 = vrot.slane %v4516, 2
      %v4551 = vsel %vm2296, %v4549, %v4550
      %v4552 = vrot.slane %v4517, 2
      %v4553 = vrot.slane %v4518, 2
      %v4554 = vsel %vm2296, %v4552, %v4553
      %v4555 = vrot.slane %v4519, 2
      %v4556 = vrot.slane %v4520, 2
      %v4557 = vsel %vm2296, %v4555, %v4556
      %v4558 = vrot.slane %v4521, 2
      %v4559 = vrot.slane %v4522, 2
      %v4560 = vsel %vm2296, %v4558, %v4559
      %v4561 = vrot.slane %v4523, 2
      %v4562 = vrot.slane %v4524, 2
      %v4563 = vsel %vm2296, %v4561, %v4562
      %v4564 = vrot.slane %v4525, 2
      %v4565 = vrot.slane %v4526, 2
      %v4566 = vsel %vm2296, %v4564, %v4565
      %v4575 = vadd.f32 %v4503, %v4545
      %v4576 = vadd.f32 %v4504, %v4548
      %v4577 = vadd.f32 %v4505, %v4551
      %v4578 = vadd.f32 %v4506, %v4554
      %v4579 = vadd.f32 %v4507, %v4557
      %v4580 = vadd.f32 %v4508, %v4560
      %v4581 = vadd.f32 %v4509, %v4563
      %v4582 = vadd.f32 %v4510, %v4566
      %v4583 = vld [vmem:[%s4382] sm:$0xff]
      %v4584 = vld [vmem:[%s4382 + $0x8] sm:$0xff]
      %v4585 = vld [vmem:[%s4382 + $0x10] sm:$0xff]
      %v4586 = vld [vmem:[%s4382 + $0x18] sm:$0xff]
      %v4587 = vld [vmem:[%s4382 + $0x20] sm:$0xff]
      %v4588 = vld [vmem:[%s4382 + $0x28] sm:$0xff]
      %v4589 = vld [vmem:[%s4382 + $0x30] sm:$0xff]
      %v4590 = vld [vmem:[%s4382 + $0x38] sm:$0xff]
      %v4591 = vld [vmem:[%s4382 + $0x40] sm:$0xff]
      %v4592 = vld [vmem:[%s4382 + $0x48] sm:$0xff]
      %v4593 = vld [vmem:[%s4382 + $0x50] sm:$0xff]
      %v4594 = vld [vmem:[%s4382 + $0x58] sm:$0xff]
      %v4595 = vld [vmem:[%s4382 + $0x60] sm:$0xff]
      %v4596 = vld [vmem:[%s4382 + $0x68] sm:$0xff]
      %v4597 = vld [vmem:[%s4382 + $0x70] sm:$0xff]
      %v4598 = vld [vmem:[%s4382 + $0x78] sm:$0xff]
      %v4599 = vmul.f32 %v4583, %v2353
      %v4600 = vmul.f32 %v4585, %v2353
      %v4601 = vmul.f32 %v4587, %v2353
      %v4602 = vmul.f32 %v4589, %v2353
      %v4603 = vmul.f32 %v4591, %v2353
      %v4604 = vmul.f32 %v4593, %v2353
      %v4605 = vmul.f32 %v4595, %v2353
      %v4606 = vmul.f32 %v4597, %v2353
      %v4607 = vadd.f32 %v4575, %v4599
      %v4608 = vadd.f32 %v4576, %v4600
      %v4609 = vadd.f32 %v4577, %v4601
      %v4610 = vadd.f32 %v4578, %v4602
      %v4611 = vadd.f32 %v4579, %v4603
      %v4612 = vadd.f32 %v4580, %v4604
      %v4613 = vadd.f32 %v4581, %v4605
      %v4614 = vadd.f32 %v4582, %v4606
      %v4615 = vmul.f32 %v4583, %v2370
      %v4616 = vmul.f32 %v4584, %v2370
      %v4617 = vmul.f32 %v4585, %v2370
      %v4618 = vmul.f32 %v4586, %v2370
      %v4619 = vmul.f32 %v4587, %v2370
      %v4620 = vmul.f32 %v4588, %v2370
      %v4621 = vmul.f32 %v4589, %v2370
      %v4622 = vmul.f32 %v4590, %v2370
      %v4623 = vmul.f32 %v4591, %v2370
      %v4624 = vmul.f32 %v4592, %v2370
      %v4625 = vmul.f32 %v4593, %v2370
      %v4626 = vmul.f32 %v4594, %v2370
      %v4627 = vmul.f32 %v4595, %v2370
      %v4628 = vmul.f32 %v4596, %v2370
      %v4629 = vmul.f32 %v4597, %v2370
      %v4630 = vmul.f32 %v4598, %v2370
      %v4647 = vrot.slane %v4615, 1
      %v4648 = vrot.slane %v4616, 1
      %v4649 = vsel %vm2222, %v4647, %v4648
      %v4650 = vrot.slane %v4617, 1
      %v4651 = vrot.slane %v4618, 1
      %v4652 = vsel %vm2222, %v4650, %v4651
      %v4653 = vrot.slane %v4619, 1
      %v4654 = vrot.slane %v4620, 1
      %v4655 = vsel %vm2222, %v4653, %v4654
      %v4656 = vrot.slane %v4621, 1
      %v4657 = vrot.slane %v4622, 1
      %v4658 = vsel %vm2222, %v4656, %v4657
      %v4659 = vrot.slane %v4623, 1
      %v4660 = vrot.slane %v4624, 1
      %v4661 = vsel %vm2222, %v4659, %v4660
      %v4662 = vrot.slane %v4625, 1
      %v4663 = vrot.slane %v4626, 1
      %v4664 = vsel %vm2222, %v4662, %v4663
      %v4665 = vrot.slane %v4627, 1
      %v4666 = vrot.slane %v4628, 1
      %v4667 = vsel %vm2222, %v4665, %v4666
      %v4668 = vrot.slane %v4629, 1
      %v4669 = vrot.slane %v4630, 1
      %v4670 = vsel %vm2222, %v4668, %v4669
      %v4679 = vadd.f32 %v4607, %v4649
      %v4680 = vadd.f32 %v4608, %v4652
      %v4681 = vadd.f32 %v4609, %v4655
      %v4682 = vadd.f32 %v4610, %v4658
      %v4683 = vadd.f32 %v4611, %v4661
      %v4684 = vadd.f32 %v4612, %v4664
      %v4685 = vadd.f32 %v4613, %v4667
      %v4686 = vadd.f32 %v4614, %v4670
      %v4687 = vmul.f32 %v4583, %v2443
      %v4688 = vmul.f32 %v4584, %v2443
      %v4689 = vmul.f32 %v4585, %v2443
      %v4690 = vmul.f32 %v4586, %v2443
      %v4691 = vmul.f32 %v4587, %v2443
      %v4692 = vmul.f32 %v4588, %v2443
      %v4693 = vmul.f32 %v4589, %v2443
      %v4694 = vmul.f32 %v4590, %v2443
      %v4695 = vmul.f32 %v4591, %v2443
      %v4696 = vmul.f32 %v4592, %v2443
      %v4697 = vmul.f32 %v4593, %v2443
      %v4698 = vmul.f32 %v4594, %v2443
      %v4699 = vmul.f32 %v4595, %v2443
      %v4700 = vmul.f32 %v4596, %v2443
      %v4701 = vmul.f32 %v4597, %v2443
      %v4702 = vmul.f32 %v4598, %v2443
      %v4719 = vrot.slane %v4687, 2
      %v4720 = vrot.slane %v4688, 2
      %v4721 = vsel %vm2296, %v4719, %v4720
      %v4722 = vrot.slane %v4689, 2
      %v4723 = vrot.slane %v4690, 2
      %v4724 = vsel %vm2296, %v4722, %v4723
      %v4725 = vrot.slane %v4691, 2
      %v4726 = vrot.slane %v4692, 2
      %v4727 = vsel %vm2296, %v4725, %v4726
      %v4728 = vrot.slane %v4693, 2
      %v4729 = vrot.slane %v4694, 2
      %v4730 = vsel %vm2296, %v4728, %v4729
      %v4731 = vrot.slane %v4695, 2
      %v4732 = vrot.slane %v4696, 2
      %v4733 = vsel %vm2296, %v4731, %v4732
      %v4734 = vrot.slane %v4697, 2
      %v4735 = vrot.slane %v4698, 2
      %v4736 = vsel %vm2296, %v4734, %v4735
      %v4737 = vrot.slane %v4699, 2
      %v4738 = vrot.slane %v4700, 2
      %v4739 = vsel %vm2296, %v4737, %v4738
      %v4740 = vrot.slane %v4701, 2
      %v4741 = vrot.slane %v4702, 2
      %v4742 = vsel %vm2296, %v4740, %v4741
      %v4751 = vadd.f32 %v4679, %v4721
      %v4752 = vadd.f32 %v4680, %v4724
      %v4753 = vadd.f32 %v4681, %v4727
      %v4754 = vadd.f32 %v4682, %v4730
      %v4755 = vadd.f32 %v4683, %v4733
      %v4756 = vadd.f32 %v4684, %v4736
      %v4757 = vadd.f32 %v4685, %v4739
      %v4758 = vadd.f32 %v4686, %v4742
      %s4759 = scalar_lea.vmem [#allocation2], 672
      %v4760 = vld [vmem:[%s4759] sm:$0xff]
      %v4761 = vld [vmem:[%s4759 + $0x8] sm:$0xff]
      %v4762 = vld [vmem:[%s4759 + $0x10] sm:$0xff]
      %v4763 = vld [vmem:[%s4759 + $0x18] sm:$0xff]
      %v4764 = vld [vmem:[%s4759 + $0x20] sm:$0xff]
      %v4765 = vld [vmem:[%s4759 + $0x28] sm:$0xff]
      %v4766 = vld [vmem:[%s4759 + $0x30] sm:$0xff]
      %v4767 = vld [vmem:[%s4759 + $0x38] sm:$0xff]
      %v4768 = vld [vmem:[%s4759 + $0x40] sm:$0xff]
      %v4769 = vld [vmem:[%s4759 + $0x48] sm:$0xff]
      %v4770 = vld [vmem:[%s4759 + $0x50] sm:$0xff]
      %v4771 = vld [vmem:[%s4759 + $0x58] sm:$0xff]
      %v4772 = vld [vmem:[%s4759 + $0x60] sm:$0xff]
      %v4773 = vld [vmem:[%s4759 + $0x68] sm:$0xff]
      %v4774 = vld [vmem:[%s4759 + $0x70] sm:$0xff]
      %v4775 = vld [vmem:[%s4759 + $0x78] sm:$0xff]
      %v4776 = vmul.f32 %v4760, %v2533
      %v4777 = vmul.f32 %v4762, %v2533
      %v4778 = vmul.f32 %v4764, %v2533
      %v4779 = vmul.f32 %v4766, %v2533
      %v4780 = vmul.f32 %v4768, %v2533
      %v4781 = vmul.f32 %v4770, %v2533
      %v4782 = vmul.f32 %v4772, %v2533
      %v4783 = vmul.f32 %v4774, %v2533
      %v4784 = vadd.f32 %v4751, %v4776
      %v4785 = vadd.f32 %v4752, %v4777
      %v4786 = vadd.f32 %v4753, %v4778
      %v4787 = vadd.f32 %v4754, %v4779
      %v4788 = vadd.f32 %v4755, %v4780
      %v4789 = vadd.f32 %v4756, %v4781
      %v4790 = vadd.f32 %v4757, %v4782
      %v4791 = vadd.f32 %v4758, %v4783
      %v4792 = vmul.f32 %v4760, %v2550
      %v4793 = vmul.f32 %v4761, %v2550
      %v4794 = vmul.f32 %v4762, %v2550
      %v4795 = vmul.f32 %v4763, %v2550
      %v4796 = vmul.f32 %v4764, %v2550
      %v4797 = vmul.f32 %v4765, %v2550
      %v4798 = vmul.f32 %v4766, %v2550
      %v4799 = vmul.f32 %v4767, %v2550
      %v4800 = vmul.f32 %v4768, %v2550
      %v4801 = vmul.f32 %v4769, %v2550
      %v4802 = vmul.f32 %v4770, %v2550
      %v4803 = vmul.f32 %v4771, %v2550
      %v4804 = vmul.f32 %v4772, %v2550
      %v4805 = vmul.f32 %v4773, %v2550
      %v4806 = vmul.f32 %v4774, %v2550
      %v4807 = vmul.f32 %v4775, %v2550
      %v4824 = vrot.slane %v4792, 1
      %v4825 = vrot.slane %v4793, 1
      %v4826 = vsel %vm2222, %v4824, %v4825
      %v4827 = vrot.slane %v4794, 1
      %v4828 = vrot.slane %v4795, 1
      %v4829 = vsel %vm2222, %v4827, %v4828
      %v4830 = vrot.slane %v4796, 1
      %v4831 = vrot.slane %v4797, 1
      %v4832 = vsel %vm2222, %v4830, %v4831
      %v4833 = vrot.slane %v4798, 1
      %v4834 = vrot.slane %v4799, 1
      %v4835 = vsel %vm2222, %v4833, %v4834
      %v4836 = vrot.slane %v4800, 1
      %v4837 = vrot.slane %v4801, 1
      %v4838 = vsel %vm2222, %v4836, %v4837
      %v4839 = vrot.slane %v4802, 1
      %v4840 = vrot.slane %v4803, 1
      %v4841 = vsel %vm2222, %v4839, %v4840
      %v4842 = vrot.slane %v4804, 1
      %v4843 = vrot.slane %v4805, 1
      %v4844 = vsel %vm2222, %v4842, %v4843
      %v4845 = vrot.slane %v4806, 1
      %v4846 = vrot.slane %v4807, 1
      %v4847 = vsel %vm2222, %v4845, %v4846
      %v4856 = vadd.f32 %v4784, %v4826
      %v4857 = vadd.f32 %v4785, %v4829
      %v4858 = vadd.f32 %v4786, %v4832
      %v4859 = vadd.f32 %v4787, %v4835
      %v4860 = vadd.f32 %v4788, %v4838
      %v4861 = vadd.f32 %v4789, %v4841
      %v4862 = vadd.f32 %v4790, %v4844
      %v4863 = vadd.f32 %v4791, %v4847
      %v4864 = vmul.f32 %v4760, %v2623
      %v4865 = vmul.f32 %v4761, %v2623
      %v4866 = vmul.f32 %v4762, %v2623
      %v4867 = vmul.f32 %v4763, %v2623
      %v4868 = vmul.f32 %v4764, %v2623
      %v4869 = vmul.f32 %v4765, %v2623
      %v4870 = vmul.f32 %v4766, %v2623
      %v4871 = vmul.f32 %v4767, %v2623
      %v4872 = vmul.f32 %v4768, %v2623
      %v4873 = vmul.f32 %v4769, %v2623
      %v4874 = vmul.f32 %v4770, %v2623
      %v4875 = vmul.f32 %v4771, %v2623
      %v4876 = vmul.f32 %v4772, %v2623
      %v4877 = vmul.f32 %v4773, %v2623
      %v4878 = vmul.f32 %v4774, %v2623
      %v4879 = vmul.f32 %v4775, %v2623
      %v4896 = vrot.slane %v4864, 2
      %v4897 = vrot.slane %v4865, 2
      %v4898 = vsel %vm2296, %v4896, %v4897
      %v4899 = vrot.slane %v4866, 2
      %v4900 = vrot.slane %v4867, 2
      %v4901 = vsel %vm2296, %v4899, %v4900
      %v4902 = vrot.slane %v4868, 2
      %v4903 = vrot.slane %v4869, 2
      %v4904 = vsel %vm2296, %v4902, %v4903
      %v4905 = vrot.slane %v4870, 2
      %v4906 = vrot.slane %v4871, 2
      %v4907 = vsel %vm2296, %v4905, %v4906
      %v4908 = vrot.slane %v4872, 2
      %v4909 = vrot.slane %v4873, 2
      %v4910 = vsel %vm2296, %v4908, %v4909
      %v4911 = vrot.slane %v4874, 2
      %v4912 = vrot.slane %v4875, 2
      %v4913 = vsel %vm2296, %v4911, %v4912
      %v4914 = vrot.slane %v4876, 2
      %v4915 = vrot.slane %v4877, 2
      %v4916 = vsel %vm2296, %v4914, %v4915
      %v4917 = vrot.slane %v4878, 2
      %v4918 = vrot.slane %v4879, 2
      %v4919 = vsel %vm2296, %v4917, %v4918
      %v4928 = vadd.f32 %v4856, %v4898
      %v4929 = vadd.f32 %v4857, %v4901
      %v4930 = vadd.f32 %v4858, %v4904
      %v4931 = vadd.f32 %v4859, %v4907
      %v4932 = vadd.f32 %v4860, %v4910
      %v4933 = vadd.f32 %v4861, %v4913
      %v4934 = vadd.f32 %v4862, %v4916
      %v4935 = vadd.f32 %v4863, %v4919
      %s4936 = scalar_lea.vmem [#allocation2], 800
      %4937 = vst [vmem:[%s4936] sm:$0xff] 0.0
      %4938 = vst [vmem:[%s4936 + $0x8] sm:$0xff] 0.0
      %s4939 = scalar_lea.vmem [#allocation2], 944
      %4940 = vst [vmem:[%s4939] sm:$0xff] 0.0
      %4941 = vst [vmem:[%s4939 + $0x8] sm:$0xff] 0.0
      %s4942 = scalar_lea.vmem [#allocation2], 816
      %4943 = vst [vmem:[%s4942] sm:$0x1] 0.0
      %4944 = vst [vmem:[%s4942 + $0x10] sm:$0x1] 0.0
      %4945 = vst [vmem:[%s4942 + $0x20] sm:$0x1] 0.0
      %4946 = vst [vmem:[%s4942 + $0x30] sm:$0x1] 0.0
      %4947 = vst [vmem:[%s4942 + $0x40] sm:$0x1] 0.0
      %4948 = vst [vmem:[%s4942 + $0x50] sm:$0x1] 0.0
      %4949 = vst [vmem:[%s4942 + $0x60] sm:$0x1] 0.0
      %4950 = vst [vmem:[%s4942 + $0x70] sm:$0x1] 0.0
      %4951 = vst [vmem:[%s4942 + $0x9] sm:$0x1] 0.0
      %4952 = vst [vmem:[%s4942 + $0x19] sm:$0x1] 0.0
      %4953 = vst [vmem:[%s4942 + $0x29] sm:$0x1] 0.0
      %4954 = vst [vmem:[%s4942 + $0x39] sm:$0x1] 0.0
      %4955 = vst [vmem:[%s4942 + $0x49] sm:$0x1] 0.0
      %4956 = vst [vmem:[%s4942 + $0x59] sm:$0x1] 0.0
      %4957 = vst [vmem:[%s4942 + $0x69] sm:$0x1] 0.0
      %4958 = vst [vmem:[%s4942 + $0x79] sm:$0x1] 0.0
      %4959 = vst [vmem:[%s4942 + $0x1] sm:$0xff] %v2100
      %4960 = vst [vmem:[%s4942 + $0x11] sm:$0xff] %v2101
      %4961 = vst [vmem:[%s4942 + $0x21] sm:$0xff] %v2102
      %4962 = vst [vmem:[%s4942 + $0x31] sm:$0xff] %v2103
      %4963 = vst [vmem:[%s4942 + $0x41] sm:$0xff] %v2104
      %4964 = vst [vmem:[%s4942 + $0x51] sm:$0xff] %v2105
      %4965 = vst [vmem:[%s4942 + $0x61] sm:$0xff] %v2106
      %4966 = vst [vmem:[%s4942 + $0x71] sm:$0xff] %v2107
      %v4967 = vld [vmem:[%s4936] sm:$0xff]
      %v4968 = vld [vmem:[%s4936 + $0x8] sm:$0xff]
      %v4969 = vld [vmem:[%s4936 + $0x10] sm:$0xff]
      %v4970 = vld [vmem:[%s4936 + $0x18] sm:$0xff]
      %v4971 = vld [vmem:[%s4936 + $0x20] sm:$0xff]
      %v4972 = vld [vmem:[%s4936 + $0x28] sm:$0xff]
      %v4973 = vld [vmem:[%s4936 + $0x30] sm:$0xff]
      %v4974 = vld [vmem:[%s4936 + $0x38] sm:$0xff]
      %v4975 = vld [vmem:[%s4936 + $0x40] sm:$0xff]
      %v4976 = vld [vmem:[%s4936 + $0x48] sm:$0xff]
      %v4977 = vld [vmem:[%s4936 + $0x50] sm:$0xff]
      %v4978 = vld [vmem:[%s4936 + $0x58] sm:$0xff]
      %v4979 = vld [vmem:[%s4936 + $0x60] sm:$0xff]
      %v4980 = vld [vmem:[%s4936 + $0x68] sm:$0xff]
      %v4981 = vld [vmem:[%s4936 + $0x70] sm:$0xff]
      %v4982 = vld [vmem:[%s4936 + $0x78] sm:$0xff]
      %v4983 = vmul.f32 %v4967, %v2172
      %v4984 = vmul.f32 %v4969, %v2172
      %v4985 = vmul.f32 %v4971, %v2172
      %v4986 = vmul.f32 %v4973, %v2172
      %v4987 = vmul.f32 %v4975, %v2172
      %v4988 = vmul.f32 %v4977, %v2172
      %v4989 = vmul.f32 %v4979, %v2172
      %v4990 = vmul.f32 %v4981, %v2172
      %v4991 = vadd.f32 %v4983, 0.0
      %v4992 = vadd.f32 %v4984, 0.0
      %v4993 = vadd.f32 %v4985, 0.0
      %v4994 = vadd.f32 %v4986, 0.0
      %v4995 = vadd.f32 %v4987, 0.0
      %v4996 = vadd.f32 %v4988, 0.0
      %v4997 = vadd.f32 %v4989, 0.0
      %v4998 = vadd.f32 %v4990, 0.0
      %v4999 = vmul.f32 %v4967, %v2189
      %v5000 = vmul.f32 %v4968, %v2189
      %v5001 = vmul.f32 %v4969, %v2189
      %v5002 = vmul.f32 %v4970, %v2189
      %v5003 = vmul.f32 %v4971, %v2189
      %v5004 = vmul.f32 %v4972, %v2189
      %v5005 = vmul.f32 %v4973, %v2189
      %v5006 = vmul.f32 %v4974, %v2189
      %v5007 = vmul.f32 %v4975, %v2189
      %v5008 = vmul.f32 %v4976, %v2189
      %v5009 = vmul.f32 %v4977, %v2189
      %v5010 = vmul.f32 %v4978, %v2189
      %v5011 = vmul.f32 %v4979, %v2189
      %v5012 = vmul.f32 %v4980, %v2189
      %v5013 = vmul.f32 %v4981, %v2189
      %v5014 = vmul.f32 %v4982, %v2189
      %v5031 = vrot.slane %v4999, 1
      %v5032 = vrot.slane %v5000, 1
      %v5033 = vsel %vm2222, %v5031, %v5032
      %v5034 = vrot.slane %v5001, 1
      %v5035 = vrot.slane %v5002, 1
      %v5036 = vsel %vm2222, %v5034, %v5035
      %v5037 = vrot.slane %v5003, 1
      %v5038 = vrot.slane %v5004, 1
      %v5039 = vsel %vm2222, %v5037, %v5038
      %v5040 = vrot.slane %v5005, 1
      %v5041 = vrot.slane %v5006, 1
      %v5042 = vsel %vm2222, %v5040, %v5041
      %v5043 = vrot.slane %v5007, 1
      %v5044 = vrot.slane %v5008, 1
      %v5045 = vsel %vm2222, %v5043, %v5044
      %v5046 = vrot.slane %v5009, 1
      %v5047 = vrot.slane %v5010, 1
      %v5048 = vsel %vm2222, %v5046, %v5047
      %v5049 = vrot.slane %v5011, 1
      %v5050 = vrot.slane %v5012, 1
      %v5051 = vsel %vm2222, %v5049, %v5050
      %v5052 = vrot.slane %v5013, 1
      %v5053 = vrot.slane %v5014, 1
      %v5054 = vsel %vm2222, %v5052, %v5053
      %v5063 = vadd.f32 %v4991, %v5033
      %v5064 = vadd.f32 %v4992, %v5036
      %v5065 = vadd.f32 %v4993, %v5039
      %v5066 = vadd.f32 %v4994, %v5042
      %v5067 = vadd.f32 %v4995, %v5045
      %v5068 = vadd.f32 %v4996, %v5048
      %v5069 = vadd.f32 %v4997, %v5051
      %v5070 = vadd.f32 %v4998, %v5054
      %v5071 = vmul.f32 %v4967, %v2263
      %v5072 = vmul.f32 %v4968, %v2263
      %v5073 = vmul.f32 %v4969, %v2263
      %v5074 = vmul.f32 %v4970, %v2263
      %v5075 = vmul.f32 %v4971, %v2263
      %v5076 = vmul.f32 %v4972, %v2263
      %v5077 = vmul.f32 %v4973, %v2263
      %v5078 = vmul.f32 %v4974, %v2263
      %v5079 = vmul.f32 %v4975, %v2263
      %v5080 = vmul.f32 %v4976, %v2263
      %v5081 = vmul.f32 %v4977, %v2263
      %v5082 = vmul.f32 %v4978, %v2263
      %v5083 = vmul.f32 %v4979, %v2263
      %v5084 = vmul.f32 %v4980, %v2263
      %v5085 = vmul.f32 %v4981, %v2263
      %v5086 = vmul.f32 %v4982, %v2263
      %v5103 = vrot.slane %v5071, 2
      %v5104 = vrot.slane %v5072, 2
      %v5105 = vsel %vm2296, %v5103, %v5104
      %v5106 = vrot.slane %v5073, 2
      %v5107 = vrot.slane %v5074, 2
      %v5108 = vsel %vm2296, %v5106, %v5107
      %v5109 = vrot.slane %v5075, 2
      %v5110 = vrot.slane %v5076, 2
      %v5111 = vsel %vm2296, %v5109, %v5110
      %v5112 = vrot.slane %v5077, 2
      %v5113 = vrot.slane %v5078, 2
      %v5114 = vsel %vm2296, %v5112, %v5113
      %v5115 = vrot.slane %v5079, 2
      %v5116 = vrot.slane %v5080, 2
      %v5117 = vsel %vm2296, %v5115, %v5116
      %v5118 = vrot.slane %v5081, 2
      %v5119 = vrot.slane %v5082, 2
      %v5120 = vsel %vm2296, %v5118, %v5119
      %v5121 = vrot.slane %v5083, 2
      %v5122 = vrot.slane %v5084, 2
      %v5123 = vsel %vm2296, %v5121, %v5122
      %v5124 = vrot.slane %v5085, 2
      %v5125 = vrot.slane %v5086, 2
      %v5126 = vsel %vm2296, %v5124, %v5125
      %v5135 = vadd.f32 %v5063, %v5105
      %v5136 = vadd.f32 %v5064, %v5108
      %v5137 = vadd.f32 %v5065, %v5111
      %v5138 = vadd.f32 %v5066, %v5114
      %v5139 = vadd.f32 %v5067, %v5117
      %v5140 = vadd.f32 %v5068, %v5120
      %v5141 = vadd.f32 %v5069, %v5123
      %v5142 = vadd.f32 %v5070, %v5126
      %v5143 = vld [vmem:[%s4942] sm:$0xff]
      %v5144 = vld [vmem:[%s4942 + $0x8] sm:$0xff]
      %v5145 = vld [vmem:[%s4942 + $0x10] sm:$0xff]
      %v5146 = vld [vmem:[%s4942 + $0x18] sm:$0xff]
      %v5147 = vld [vmem:[%s4942 + $0x20] sm:$0xff]
      %v5148 = vld [vmem:[%s4942 + $0x28] sm:$0xff]
      %v5149 = vld [vmem:[%s4942 + $0x30] sm:$0xff]
      %v5150 = vld [vmem:[%s4942 + $0x38] sm:$0xff]
      %v5151 = vld [vmem:[%s4942 + $0x40] sm:$0xff]
      %v5152 = vld [vmem:[%s4942 + $0x48] sm:$0xff]
      %v5153 = vld [vmem:[%s4942 + $0x50] sm:$0xff]
      %v5154 = vld [vmem:[%s4942 + $0x58] sm:$0xff]
      %v5155 = vld [vmem:[%s4942 + $0x60] sm:$0xff]
      %v5156 = vld [vmem:[%s4942 + $0x68] sm:$0xff]
      %v5157 = vld [vmem:[%s4942 + $0x70] sm:$0xff]
      %v5158 = vld [vmem:[%s4942 + $0x78] sm:$0xff]
      %v5159 = vmul.f32 %v5143, %v2353
      %v5160 = vmul.f32 %v5145, %v2353
      %v5161 = vmul.f32 %v5147, %v2353
      %v5162 = vmul.f32 %v5149, %v2353
      %v5163 = vmul.f32 %v5151, %v2353
      %v5164 = vmul.f32 %v5153, %v2353
      %v5165 = vmul.f32 %v5155, %v2353
      %v5166 = vmul.f32 %v5157, %v2353
      %v5167 = vadd.f32 %v5135, %v5159
      %v5168 = vadd.f32 %v5136, %v5160
      %v5169 = vadd.f32 %v5137, %v5161
      %v5170 = vadd.f32 %v5138, %v5162
      %v5171 = vadd.f32 %v5139, %v5163
      %v5172 = vadd.f32 %v5140, %v5164
      %v5173 = vadd.f32 %v5141, %v5165
      %v5174 = vadd.f32 %v5142, %v5166
      %v5175 = vmul.f32 %v5143, %v2370
      %v5176 = vmul.f32 %v5144, %v2370
      %v5177 = vmul.f32 %v5145, %v2370
      %v5178 = vmul.f32 %v5146, %v2370
      %v5179 = vmul.f32 %v5147, %v2370
      %v5180 = vmul.f32 %v5148, %v2370
      %v5181 = vmul.f32 %v5149, %v2370
      %v5182 = vmul.f32 %v5150, %v2370
      %v5183 = vmul.f32 %v5151, %v2370
      %v5184 = vmul.f32 %v5152, %v2370
      %v5185 = vmul.f32 %v5153, %v2370
      %v5186 = vmul.f32 %v5154, %v2370
      %v5187 = vmul.f32 %v5155, %v2370
      %v5188 = vmul.f32 %v5156, %v2370
      %v5189 = vmul.f32 %v5157, %v2370
      %v5190 = vmul.f32 %v5158, %v2370
      %v5207 = vrot.slane %v5175, 1
      %v5208 = vrot.slane %v5176, 1
      %v5209 = vsel %vm2222, %v5207, %v5208
      %v5210 = vrot.slane %v5177, 1
      %v5211 = vrot.slane %v5178, 1
      %v5212 = vsel %vm2222, %v5210, %v5211
      %v5213 = vrot.slane %v5179, 1
      %v5214 = vrot.slane %v5180, 1
      %v5215 = vsel %vm2222, %v5213, %v5214
      %v5216 = vrot.slane %v5181, 1
      %v5217 = vrot.slane %v5182, 1
      %v5218 = vsel %vm2222, %v5216, %v5217
      %v5219 = vrot.slane %v5183, 1
      %v5220 = vrot.slane %v5184, 1
      %v5221 = vsel %vm2222, %v5219, %v5220
      %v5222 = vrot.slane %v5185, 1
      %v5223 = vrot.slane %v5186, 1
      %v5224 = vsel %vm2222, %v5222, %v5223
      %v5225 = vrot.slane %v5187, 1
      %v5226 = vrot.slane %v5188, 1
      %v5227 = vsel %vm2222, %v5225, %v5226
      %v5228 = vrot.slane %v5189, 1
      %v5229 = vrot.slane %v5190, 1
      %v5230 = vsel %vm2222, %v5228, %v5229
      %v5239 = vadd.f32 %v5167, %v5209
      %v5240 = vadd.f32 %v5168, %v5212
      %v5241 = vadd.f32 %v5169, %v5215
      %v5242 = vadd.f32 %v5170, %v5218
      %v5243 = vadd.f32 %v5171, %v5221
      %v5244 = vadd.f32 %v5172, %v5224
      %v5245 = vadd.f32 %v5173, %v5227
      %v5246 = vadd.f32 %v5174, %v5230
      %v5247 = vmul.f32 %v5143, %v2443
      %v5248 = vmul.f32 %v5144, %v2443
      %v5249 = vmul.f32 %v5145, %v2443
      %v5250 = vmul.f32 %v5146, %v2443
      %v5251 = vmul.f32 %v5147, %v2443
      %v5252 = vmul.f32 %v5148, %v2443
      %v5253 = vmul.f32 %v5149, %v2443
      %v5254 = vmul.f32 %v5150, %v2443
      %v5255 = vmul.f32 %v5151, %v2443
      %v5256 = vmul.f32 %v5152, %v2443
      %v5257 = vmul.f32 %v5153, %v2443
      %v5258 = vmul.f32 %v5154, %v2443
      %v5259 = vmul.f32 %v5155, %v2443
      %v5260 = vmul.f32 %v5156, %v2443
      %v5261 = vmul.f32 %v5157, %v2443
      %v5262 = vmul.f32 %v5158, %v2443
      %v5279 = vrot.slane %v5247, 2
      %v5280 = vrot.slane %v5248, 2
      %v5281 = vsel %vm2296, %v5279, %v5280
      %v5282 = vrot.slane %v5249, 2
      %v5283 = vrot.slane %v5250, 2
      %v5284 = vsel %vm2296, %v5282, %v5283
      %v5285 = vrot.slane %v5251, 2
      %v5286 = vrot.slane %v5252, 2
      %v5287 = vsel %vm2296, %v5285, %v5286
      %v5288 = vrot.slane %v5253, 2
      %v5289 = vrot.slane %v5254, 2
      %v5290 = vsel %vm2296, %v5288, %v5289
      %v5291 = vrot.slane %v5255, 2
      %v5292 = vrot.slane %v5256, 2
      %v5293 = vsel %vm2296, %v5291, %v5292
      %v5294 = vrot.slane %v5257, 2
      %v5295 = vrot.slane %v5258, 2
      %v5296 = vsel %vm2296, %v5294, %v5295
      %v5297 = vrot.slane %v5259, 2
      %v5298 = vrot.slane %v5260, 2
      %v5299 = vsel %vm2296, %v5297, %v5298
      %v5300 = vrot.slane %v5261, 2
      %v5301 = vrot.slane %v5262, 2
      %v5302 = vsel %vm2296, %v5300, %v5301
      %v5311 = vadd.f32 %v5239, %v5281
      %v5312 = vadd.f32 %v5240, %v5284
      %v5313 = vadd.f32 %v5241, %v5287
      %v5314 = vadd.f32 %v5242, %v5290
      %v5315 = vadd.f32 %v5243, %v5293
      %v5316 = vadd.f32 %v5244, %v5296
      %v5317 = vadd.f32 %v5245, %v5299
      %v5318 = vadd.f32 %v5246, %v5302
      %s5319 = scalar_lea.vmem [#allocation2], 832
      %v5320 = vld [vmem:[%s5319] sm:$0xff]
      %v5321 = vld [vmem:[%s5319 + $0x8] sm:$0xff]
      %v5322 = vld [vmem:[%s5319 + $0x10] sm:$0xff]
      %v5323 = vld [vmem:[%s5319 + $0x18] sm:$0xff]
      %v5324 = vld [vmem:[%s5319 + $0x20] sm:$0xff]
      %v5325 = vld [vmem:[%s5319 + $0x28] sm:$0xff]
      %v5326 = vld [vmem:[%s5319 + $0x30] sm:$0xff]
      %v5327 = vld [vmem:[%s5319 + $0x38] sm:$0xff]
      %v5328 = vld [vmem:[%s5319 + $0x40] sm:$0xff]
      %v5329 = vld [vmem:[%s5319 + $0x48] sm:$0xff]
      %v5330 = vld [vmem:[%s5319 + $0x50] sm:$0xff]
      %v5331 = vld [vmem:[%s5319 + $0x58] sm:$0xff]
      %v5332 = vld [vmem:[%s5319 + $0x60] sm:$0xff]
      %v5333 = vld [vmem:[%s5319 + $0x68] sm:$0xff]
      %v5334 = vld [vmem:[%s5319 + $0x70] sm:$0xff]
      %v5335 = vld [vmem:[%s5319 + $0x78] sm:$0xff]
      %v5336 = vmul.f32 %v5320, %v2533
      %v5337 = vmul.f32 %v5322, %v2533
      %v5338 = vmul.f32 %v5324, %v2533
      %v5339 = vmul.f32 %v5326, %v2533
      %v5340 = vmul.f32 %v5328, %v2533
      %v5341 = vmul.f32 %v5330, %v2533
      %v5342 = vmul.f32 %v5332, %v2533
      %v5343 = vmul.f32 %v5334, %v2533
      %v5344 = vadd.f32 %v5311, %v5336
      %v5345 = vadd.f32 %v5312, %v5337
      %v5346 = vadd.f32 %v5313, %v5338
      %v5347 = vadd.f32 %v5314, %v5339
      %v5348 = vadd.f32 %v5315, %v5340
      %v5349 = vadd.f32 %v5316, %v5341
      %v5350 = vadd.f32 %v5317, %v5342
      %v5351 = vadd.f32 %v5318, %v5343
      %v5352 = vmul.f32 %v5320, %v2550
      %v5353 = vmul.f32 %v5321, %v2550
      %v5354 = vmul.f32 %v5322, %v2550
      %v5355 = vmul.f32 %v5323, %v2550
      %v5356 = vmul.f32 %v5324, %v2550
      %v5357 = vmul.f32 %v5325, %v2550
      %v5358 = vmul.f32 %v5326, %v2550
      %v5359 = vmul.f32 %v5327, %v2550
      %v5360 = vmul.f32 %v5328, %v2550
      %v5361 = vmul.f32 %v5329, %v2550
      %v5362 = vmul.f32 %v5330, %v2550
      %v5363 = vmul.f32 %v5331, %v2550
      %v5364 = vmul.f32 %v5332, %v2550
      %v5365 = vmul.f32 %v5333, %v2550
      %v5366 = vmul.f32 %v5334, %v2550
      %v5367 = vmul.f32 %v5335, %v2550
      %v5384 = vrot.slane %v5352, 1
      %v5385 = vrot.slane %v5353, 1
      %v5386 = vsel %vm2222, %v5384, %v5385
      %v5387 = vrot.slane %v5354, 1
      %v5388 = vrot.slane %v5355, 1
      %v5389 = vsel %vm2222, %v5387, %v5388
      %v5390 = vrot.slane %v5356, 1
      %v5391 = vrot.slane %v5357, 1
      %v5392 = vsel %vm2222, %v5390, %v5391
      %v5393 = vrot.slane %v5358, 1
      %v5394 = vrot.slane %v5359, 1
      %v5395 = vsel %vm2222, %v5393, %v5394
      %v5396 = vrot.slane %v5360, 1
      %v5397 = vrot.slane %v5361, 1
      %v5398 = vsel %vm2222, %v5396, %v5397
      %v5399 = vrot.slane %v5362, 1
      %v5400 = vrot.slane %v5363, 1
      %v5401 = vsel %vm2222, %v5399, %v5400
      %v5402 = vrot.slane %v5364, 1
      %v5403 = vrot.slane %v5365, 1
      %v5404 = vsel %vm2222, %v5402, %v5403
      %v5405 = vrot.slane %v5366, 1
      %v5406 = vrot.slane %v5367, 1
      %v5407 = vsel %vm2222, %v5405, %v5406
      %v5416 = vadd.f32 %v5344, %v5386
      %v5417 = vadd.f32 %v5345, %v5389
      %v5418 = vadd.f32 %v5346, %v5392
      %v5419 = vadd.f32 %v5347, %v5395
      %v5420 = vadd.f32 %v5348, %v5398
      %v5421 = vadd.f32 %v5349, %v5401
      %v5422 = vadd.f32 %v5350, %v5404
      %v5423 = vadd.f32 %v5351, %v5407
      %v5424 = vmul.f32 %v5320, %v2623
      %v5425 = vmul.f32 %v5321, %v2623
      %v5426 = vmul.f32 %v5322, %v2623
      %v5427 = vmul.f32 %v5323, %v2623
      %v5428 = vmul.f32 %v5324, %v2623
      %v5429 = vmul.f32 %v5325, %v2623
      %v5430 = vmul.f32 %v5326, %v2623
      %v5431 = vmul.f32 %v5327, %v2623
      %v5432 = vmul.f32 %v5328, %v2623
      %v5433 = vmul.f32 %v5329, %v2623
      %v5434 = vmul.f32 %v5330, %v2623
      %v5435 = vmul.f32 %v5331, %v2623
      %v5436 = vmul.f32 %v5332, %v2623
      %v5437 = vmul.f32 %v5333, %v2623
      %v5438 = vmul.f32 %v5334, %v2623
      %v5439 = vmul.f32 %v5335, %v2623
      %v5456 = vrot.slane %v5424, 2
      %v5457 = vrot.slane %v5425, 2
      %v5458 = vsel %vm2296, %v5456, %v5457
      %v5459 = vrot.slane %v5426, 2
      %v5460 = vrot.slane %v5427, 2
      %v5461 = vsel %vm2296, %v5459, %v5460
      %v5462 = vrot.slane %v5428, 2
      %v5463 = vrot.slane %v5429, 2
      %v5464 = vsel %vm2296, %v5462, %v5463
      %v5465 = vrot.slane %v5430, 2
      %v5466 = vrot.slane %v5431, 2
      %v5467 = vsel %vm2296, %v5465, %v5466
      %v5468 = vrot.slane %v5432, 2
      %v5469 = vrot.slane %v5433, 2
      %v5470 = vsel %vm2296, %v5468, %v5469
      %v5471 = vrot.slane %v5434, 2
      %v5472 = vrot.slane %v5435, 2
      %v5473 = vsel %vm2296, %v5471, %v5472
      %v5474 = vrot.slane %v5436, 2
      %v5475 = vrot.slane %v5437, 2
      %v5476 = vsel %vm2296, %v5474, %v5475
      %v5477 = vrot.slane %v5438, 2
      %v5478 = vrot.slane %v5439, 2
      %v5479 = vsel %vm2296, %v5477, %v5478
      %v5488 = vadd.f32 %v5416, %v5458
      %v5489 = vadd.f32 %v5417, %v5461
      %v5490 = vadd.f32 %v5418, %v5464
      %v5491 = vadd.f32 %v5419, %v5467
      %v5492 = vadd.f32 %v5420, %v5470
      %v5493 = vadd.f32 %v5421, %v5473
      %v5494 = vadd.f32 %v5422, %v5476
      %v5495 = vadd.f32 %v5423, %v5479
      %s5496 = scalar_lea.vmem [#allocation2], 960
      %5497 = vst [vmem:[%s5496] sm:$0xff] 0.0
      %5498 = vst [vmem:[%s5496 + $0x8] sm:$0xff] 0.0
      %s5499 = scalar_lea.vmem [#allocation2], 1104
      %5500 = vst [vmem:[%s5499] sm:$0xff] 0.0
      %5501 = vst [vmem:[%s5499 + $0x8] sm:$0xff] 0.0
      %s5502 = scalar_lea.vmem [#allocation2], 976
      %5503 = vst [vmem:[%s5502] sm:$0x1] 0.0
      %5504 = vst [vmem:[%s5502 + $0x10] sm:$0x1] 0.0
      %5505 = vst [vmem:[%s5502 + $0x20] sm:$0x1] 0.0
      %5506 = vst [vmem:[%s5502 + $0x30] sm:$0x1] 0.0
      %5507 = vst [vmem:[%s5502 + $0x40] sm:$0x1] 0.0
      %5508 = vst [vmem:[%s5502 + $0x50] sm:$0x1] 0.0
      %5509 = vst [vmem:[%s5502 + $0x60] sm:$0x1] 0.0
      %5510 = vst [vmem:[%s5502 + $0x70] sm:$0x1] 0.0
      %5511 = vst [vmem:[%s5502 + $0x9] sm:$0x1] 0.0
      %5512 = vst [vmem:[%s5502 + $0x19] sm:$0x1] 0.0
      %5513 = vst [vmem:[%s5502 + $0x29] sm:$0x1] 0.0
      %5514 = vst [vmem:[%s5502 + $0x39] sm:$0x1] 0.0
      %5515 = vst [vmem:[%s5502 + $0x49] sm:$0x1] 0.0
      %5516 = vst [vmem:[%s5502 + $0x59] sm:$0x1] 0.0
      %5517 = vst [vmem:[%s5502 + $0x69] sm:$0x1] 0.0
      %5518 = vst [vmem:[%s5502 + $0x79] sm:$0x1] 0.0
      %5519 = vst [vmem:[%s5502 + $0x1] sm:$0xff] %v2108
      %5520 = vst [vmem:[%s5502 + $0x11] sm:$0xff] %v2109
      %5521 = vst [vmem:[%s5502 + $0x21] sm:$0xff] %v2110
      %5522 = vst [vmem:[%s5502 + $0x31] sm:$0xff] %v2111
      %5523 = vst [vmem:[%s5502 + $0x41] sm:$0xff] %v2112
      %5524 = vst [vmem:[%s5502 + $0x51] sm:$0xff] %v2113
      %5525 = vst [vmem:[%s5502 + $0x61] sm:$0xff] %v2114
      %5526 = vst [vmem:[%s5502 + $0x71] sm:$0xff] %v2115
      %v5527 = vld [vmem:[%s5496] sm:$0xff]
      %v5528 = vld [vmem:[%s5496 + $0x8] sm:$0xff]
      %v5529 = vld [vmem:[%s5496 + $0x10] sm:$0xff]
      %v5530 = vld [vmem:[%s5496 + $0x18] sm:$0xff]
      %v5531 = vld [vmem:[%s5496 + $0x20] sm:$0xff]
      %v5532 = vld [vmem:[%s5496 + $0x28] sm:$0xff]
      %v5533 = vld [vmem:[%s5496 + $0x30] sm:$0xff]
      %v5534 = vld [vmem:[%s5496 + $0x38] sm:$0xff]
      %v5535 = vld [vmem:[%s5496 + $0x40] sm:$0xff]
      %v5536 = vld [vmem:[%s5496 + $0x48] sm:$0xff]
      %v5537 = vld [vmem:[%s5496 + $0x50] sm:$0xff]
      %v5538 = vld [vmem:[%s5496 + $0x58] sm:$0xff]
      %v5539 = vld [vmem:[%s5496 + $0x60] sm:$0xff]
      %v5540 = vld [vmem:[%s5496 + $0x68] sm:$0xff]
      %v5541 = vld [vmem:[%s5496 + $0x70] sm:$0xff]
      %v5542 = vld [vmem:[%s5496 + $0x78] sm:$0xff]
      %v5543 = vmul.f32 %v5527, %v2172
      %v5544 = vmul.f32 %v5529, %v2172
      %v5545 = vmul.f32 %v5531, %v2172
      %v5546 = vmul.f32 %v5533, %v2172
      %v5547 = vmul.f32 %v5535, %v2172
      %v5548 = vmul.f32 %v5537, %v2172
      %v5549 = vmul.f32 %v5539, %v2172
      %v5550 = vmul.f32 %v5541, %v2172
      %v5551 = vadd.f32 %v5543, 0.0
      %v5552 = vadd.f32 %v5544, 0.0
      %v5553 = vadd.f32 %v5545, 0.0
      %v5554 = vadd.f32 %v5546, 0.0
      %v5555 = vadd.f32 %v5547, 0.0
      %v5556 = vadd.f32 %v5548, 0.0
      %v5557 = vadd.f32 %v5549, 0.0
      %v5558 = vadd.f32 %v5550, 0.0
      %v5559 = vmul.f32 %v5527, %v2189
      %v5560 = vmul.f32 %v5528, %v2189
      %v5561 = vmul.f32 %v5529, %v2189
      %v5562 = vmul.f32 %v5530, %v2189
      %v5563 = vmul.f32 %v5531, %v2189
      %v5564 = vmul.f32 %v5532, %v2189
      %v5565 = vmul.f32 %v5533, %v2189
      %v5566 = vmul.f32 %v5534, %v2189
      %v5567 = vmul.f32 %v5535, %v2189
      %v5568 = vmul.f32 %v5536, %v2189
      %v5569 = vmul.f32 %v5537, %v2189
      %v5570 = vmul.f32 %v5538, %v2189
      %v5571 = vmul.f32 %v5539, %v2189
      %v5572 = vmul.f32 %v5540, %v2189
      %v5573 = vmul.f32 %v5541, %v2189
      %v5574 = vmul.f32 %v5542, %v2189
      %v5591 = vrot.slane %v5559, 1
      %v5592 = vrot.slane %v5560, 1
      %v5593 = vsel %vm2222, %v5591, %v5592
      %v5594 = vrot.slane %v5561, 1
      %v5595 = vrot.slane %v5562, 1
      %v5596 = vsel %vm2222, %v5594, %v5595
      %v5597 = vrot.slane %v5563, 1
      %v5598 = vrot.slane %v5564, 1
      %v5599 = vsel %vm2222, %v5597, %v5598
      %v5600 = vrot.slane %v5565, 1
      %v5601 = vrot.slane %v5566, 1
      %v5602 = vsel %vm2222, %v5600, %v5601
      %v5603 = vrot.slane %v5567, 1
      %v5604 = vrot.slane %v5568, 1
      %v5605 = vsel %vm2222, %v5603, %v5604
      %v5606 = vrot.slane %v5569, 1
      %v5607 = vrot.slane %v5570, 1
      %v5608 = vsel %vm2222, %v5606, %v5607
      %v5609 = vrot.slane %v5571, 1
      %v5610 = vrot.slane %v5572, 1
      %v5611 = vsel %vm2222, %v5609, %v5610
      %v5612 = vrot.slane %v5573, 1
      %v5613 = vrot.slane %v5574, 1
      %v5614 = vsel %vm2222, %v5612, %v5613
      %v5623 = vadd.f32 %v5551, %v5593
      %v5624 = vadd.f32 %v5552, %v5596
      %v5625 = vadd.f32 %v5553, %v5599
      %v5626 = vadd.f32 %v5554, %v5602
      %v5627 = vadd.f32 %v5555, %v5605
      %v5628 = vadd.f32 %v5556, %v5608
      %v5629 = vadd.f32 %v5557, %v5611
      %v5630 = vadd.f32 %v5558, %v5614
      %v5631 = vmul.f32 %v5527, %v2263
      %v5632 = vmul.f32 %v5528, %v2263
      %v5633 = vmul.f32 %v5529, %v2263
      %v5634 = vmul.f32 %v5530, %v2263
      %v5635 = vmul.f32 %v5531, %v2263
      %v5636 = vmul.f32 %v5532, %v2263
      %v5637 = vmul.f32 %v5533, %v2263
      %v5638 = vmul.f32 %v5534, %v2263
      %v5639 = vmul.f32 %v5535, %v2263
      %v5640 = vmul.f32 %v5536, %v2263
      %v5641 = vmul.f32 %v5537, %v2263
      %v5642 = vmul.f32 %v5538, %v2263
      %v5643 = vmul.f32 %v5539, %v2263
      %v5644 = vmul.f32 %v5540, %v2263
      %v5645 = vmul.f32 %v5541, %v2263
      %v5646 = vmul.f32 %v5542, %v2263
      %v5663 = vrot.slane %v5631, 2
      %v5664 = vrot.slane %v5632, 2
      %v5665 = vsel %vm2296, %v5663, %v5664
      %v5666 = vrot.slane %v5633, 2
      %v5667 = vrot.slane %v5634, 2
      %v5668 = vsel %vm2296, %v5666, %v5667
      %v5669 = vrot.slane %v5635, 2
      %v5670 = vrot.slane %v5636, 2
      %v5671 = vsel %vm2296, %v5669, %v5670
      %v5672 = vrot.slane %v5637, 2
      %v5673 = vrot.slane %v5638, 2
      %v5674 = vsel %vm2296, %v5672, %v5673
      %v5675 = vrot.slane %v5639, 2
      %v5676 = vrot.slane %v5640, 2
      %v5677 = vsel %vm2296, %v5675, %v5676
      %v5678 = vrot.slane %v5641, 2
      %v5679 = vrot.slane %v5642, 2
      %v5680 = vsel %vm2296, %v5678, %v5679
      %v5681 = vrot.slane %v5643, 2
      %v5682 = vrot.slane %v5644, 2
      %v5683 = vsel %vm2296, %v5681, %v5682
      %v5684 = vrot.slane %v5645, 2
      %v5685 = vrot.slane %v5646, 2
      %v5686 = vsel %vm2296, %v5684, %v5685
      %v5695 = vadd.f32 %v5623, %v5665
      %v5696 = vadd.f32 %v5624, %v5668
      %v5697 = vadd.f32 %v5625, %v5671
      %v5698 = vadd.f32 %v5626, %v5674
      %v5699 = vadd.f32 %v5627, %v5677
      %v5700 = vadd.f32 %v5628, %v5680
      %v5701 = vadd.f32 %v5629, %v5683
      %v5702 = vadd.f32 %v5630, %v5686
      %v5703 = vld [vmem:[%s5502] sm:$0xff]
      %v5704 = vld [vmem:[%s5502 + $0x8] sm:$0xff]
      %v5705 = vld [vmem:[%s5502 + $0x10] sm:$0xff]
      %v5706 = vld [vmem:[%s5502 + $0x18] sm:$0xff]
      %v5707 = vld [vmem:[%s5502 + $0x20] sm:$0xff]
      %v5708 = vld [vmem:[%s5502 + $0x28] sm:$0xff]
      %v5709 = vld [vmem:[%s5502 + $0x30] sm:$0xff]
      %v5710 = vld [vmem:[%s5502 + $0x38] sm:$0xff]
      %v5711 = vld [vmem:[%s5502 + $0x40] sm:$0xff]
      %v5712 = vld [vmem:[%s5502 + $0x48] sm:$0xff]
      %v5713 = vld [vmem:[%s5502 + $0x50] sm:$0xff]
      %v5714 = vld [vmem:[%s5502 + $0x58] sm:$0xff]
      %v5715 = vld [vmem:[%s5502 + $0x60] sm:$0xff]
      %v5716 = vld [vmem:[%s5502 + $0x68] sm:$0xff]
      %v5717 = vld [vmem:[%s5502 + $0x70] sm:$0xff]
      %v5718 = vld [vmem:[%s5502 + $0x78] sm:$0xff]
      %v5719 = vmul.f32 %v5703, %v2353
      %v5720 = vmul.f32 %v5705, %v2353
      %v5721 = vmul.f32 %v5707, %v2353
      %v5722 = vmul.f32 %v5709, %v2353
      %v5723 = vmul.f32 %v5711, %v2353
      %v5724 = vmul.f32 %v5713, %v2353
      %v5725 = vmul.f32 %v5715, %v2353
      %v5726 = vmul.f32 %v5717, %v2353
      %v5727 = vadd.f32 %v5695, %v5719
      %v5728 = vadd.f32 %v5696, %v5720
      %v5729 = vadd.f32 %v5697, %v5721
      %v5730 = vadd.f32 %v5698, %v5722
      %v5731 = vadd.f32 %v5699, %v5723
      %v5732 = vadd.f32 %v5700, %v5724
      %v5733 = vadd.f32 %v5701, %v5725
      %v5734 = vadd.f32 %v5702, %v5726
      %v5735 = vmul.f32 %v5703, %v2370
      %v5736 = vmul.f32 %v5704, %v2370
      %v5737 = vmul.f32 %v5705, %v2370
      %v5738 = vmul.f32 %v5706, %v2370
      %v5739 = vmul.f32 %v5707, %v2370
      %v5740 = vmul.f32 %v5708, %v2370
      %v5741 = vmul.f32 %v5709, %v2370
      %v5742 = vmul.f32 %v5710, %v2370
      %v5743 = vmul.f32 %v5711, %v2370
      %v5744 = vmul.f32 %v5712, %v2370
      %v5745 = vmul.f32 %v5713, %v2370
      %v5746 = vmul.f32 %v5714, %v2370
      %v5747 = vmul.f32 %v5715, %v2370
      %v5748 = vmul.f32 %v5716, %v2370
      %v5749 = vmul.f32 %v5717, %v2370
      %v5750 = vmul.f32 %v5718, %v2370
      %v5767 = vrot.slane %v5735, 1
      %v5768 = vrot.slane %v5736, 1
      %v5769 = vsel %vm2222, %v5767, %v5768
      %v5770 = vrot.slane %v5737, 1
      %v5771 = vrot.slane %v5738, 1
      %v5772 = vsel %vm2222, %v5770, %v5771
      %v5773 = vrot.slane %v5739, 1
      %v5774 = vrot.slane %v5740, 1
      %v5775 = vsel %vm2222, %v5773, %v5774
      %v5776 = vrot.slane %v5741, 1
      %v5777 = vrot.slane %v5742, 1
      %v5778 = vsel %vm2222, %v5776, %v5777
      %v5779 = vrot.slane %v5743, 1
      %v5780 = vrot.slane %v5744, 1
      %v5781 = vsel %vm2222, %v5779, %v5780
      %v5782 = vrot.slane %v5745, 1
      %v5783 = vrot.slane %v5746, 1
      %v5784 = vsel %vm2222, %v5782, %v5783
      %v5785 = vrot.slane %v5747, 1
      %v5786 = vrot.slane %v5748, 1
      %v5787 = vsel %vm2222, %v5785, %v5786
      %v5788 = vrot.slane %v5749, 1
      %v5789 = vrot.slane %v5750, 1
      %v5790 = vsel %vm2222, %v5788, %v5789
      %v5799 = vadd.f32 %v5727, %v5769
      %v5800 = vadd.f32 %v5728, %v5772
      %v5801 = vadd.f32 %v5729, %v5775
      %v5802 = vadd.f32 %v5730, %v5778
      %v5803 = vadd.f32 %v5731, %v5781
      %v5804 = vadd.f32 %v5732, %v5784
      %v5805 = vadd.f32 %v5733, %v5787
      %v5806 = vadd.f32 %v5734, %v5790
      %v5807 = vmul.f32 %v5703, %v2443
      %v5808 = vmul.f32 %v5704, %v2443
      %v5809 = vmul.f32 %v5705, %v2443
      %v5810 = vmul.f32 %v5706, %v2443
      %v5811 = vmul.f32 %v5707, %v2443
      %v5812 = vmul.f32 %v5708, %v2443
      %v5813 = vmul.f32 %v5709, %v2443
      %v5814 = vmul.f32 %v5710, %v2443
      %v5815 = vmul.f32 %v5711, %v2443
      %v5816 = vmul.f32 %v5712, %v2443
      %v5817 = vmul.f32 %v5713, %v2443
      %v5818 = vmul.f32 %v5714, %v2443
      %v5819 = vmul.f32 %v5715, %v2443
      %v5820 = vmul.f32 %v5716, %v2443
      %v5821 = vmul.f32 %v5717, %v2443
      %v5822 = vmul.f32 %v5718, %v2443
      %v5839 = vrot.slane %v5807, 2
      %v5840 = vrot.slane %v5808, 2
      %v5841 = vsel %vm2296, %v5839, %v5840
      %v5842 = vrot.slane %v5809, 2
      %v5843 = vrot.slane %v5810, 2
      %v5844 = vsel %vm2296, %v5842, %v5843
      %v5845 = vrot.slane %v5811, 2
      %v5846 = vrot.slane %v5812, 2
      %v5847 = vsel %vm2296, %v5845, %v5846
      %v5848 = vrot.slane %v5813, 2
      %v5849 = vrot.slane %v5814, 2
      %v5850 = vsel %vm2296, %v5848, %v5849
      %v5851 = vrot.slane %v5815, 2
      %v5852 = vrot.slane %v5816, 2
      %v5853 = vsel %vm2296, %v5851, %v5852
      %v5854 = vrot.slane %v5817, 2
      %v5855 = vrot.slane %v5818, 2
      %v5856 = vsel %vm2296, %v5854, %v5855
      %v5857 = vrot.slane %v5819, 2
      %v5858 = vrot.slane %v5820, 2
      %v5859 = vsel %vm2296, %v5857, %v5858
      %v5860 = vrot.slane %v5821, 2
      %v5861 = vrot.slane %v5822, 2
      %v5862 = vsel %vm2296, %v5860, %v5861
      %v5871 = vadd.f32 %v5799, %v5841
      %v5872 = vadd.f32 %v5800, %v5844
      %v5873 = vadd.f32 %v5801, %v5847
      %v5874 = vadd.f32 %v5802, %v5850
      %v5875 = vadd.f32 %v5803, %v5853
      %v5876 = vadd.f32 %v5804, %v5856
      %v5877 = vadd.f32 %v5805, %v5859
      %v5878 = vadd.f32 %v5806, %v5862
      %s5879 = scalar_lea.vmem [#allocation2], 992
      %v5880 = vld [vmem:[%s5879] sm:$0xff]
      %v5881 = vld [vmem:[%s5879 + $0x8] sm:$0xff]
      %v5882 = vld [vmem:[%s5879 + $0x10] sm:$0xff]
      %v5883 = vld [vmem:[%s5879 + $0x18] sm:$0xff]
      %v5884 = vld [vmem:[%s5879 + $0x20] sm:$0xff]
      %v5885 = vld [vmem:[%s5879 + $0x28] sm:$0xff]
      %v5886 = vld [vmem:[%s5879 + $0x30] sm:$0xff]
      %v5887 = vld [vmem:[%s5879 + $0x38] sm:$0xff]
      %v5888 = vld [vmem:[%s5879 + $0x40] sm:$0xff]
      %v5889 = vld [vmem:[%s5879 + $0x48] sm:$0xff]
      %v5890 = vld [vmem:[%s5879 + $0x50] sm:$0xff]
      %v5891 = vld [vmem:[%s5879 + $0x58] sm:$0xff]
      %v5892 = vld [vmem:[%s5879 + $0x60] sm:$0xff]
      %v5893 = vld [vmem:[%s5879 + $0x68] sm:$0xff]
      %v5894 = vld [vmem:[%s5879 + $0x70] sm:$0xff]
      %v5895 = vld [vmem:[%s5879 + $0x78] sm:$0xff]
      %v5896 = vmul.f32 %v5880, %v2533
      %v5897 = vmul.f32 %v5882, %v2533
      %v5898 = vmul.f32 %v5884, %v2533
      %v5899 = vmul.f32 %v5886, %v2533
      %v5900 = vmul.f32 %v5888, %v2533
      %v5901 = vmul.f32 %v5890, %v2533
      %v5902 = vmul.f32 %v5892, %v2533
      %v5903 = vmul.f32 %v5894, %v2533
      %v5904 = vadd.f32 %v5871, %v5896
      %v5905 = vadd.f32 %v5872, %v5897
      %v5906 = vadd.f32 %v5873, %v5898
      %v5907 = vadd.f32 %v5874, %v5899
      %v5908 = vadd.f32 %v5875, %v5900
      %v5909 = vadd.f32 %v5876, %v5901
      %v5910 = vadd.f32 %v5877, %v5902
      %v5911 = vadd.f32 %v5878, %v5903
      %v5912 = vmul.f32 %v5880, %v2550
      %v5913 = vmul.f32 %v5881, %v2550
      %v5914 = vmul.f32 %v5882, %v2550
      %v5915 = vmul.f32 %v5883, %v2550
      %v5916 = vmul.f32 %v5884, %v2550
      %v5917 = vmul.f32 %v5885, %v2550
      %v5918 = vmul.f32 %v5886, %v2550
      %v5919 = vmul.f32 %v5887, %v2550
      %v5920 = vmul.f32 %v5888, %v2550
      %v5921 = vmul.f32 %v5889, %v2550
      %v5922 = vmul.f32 %v5890, %v2550
      %v5923 = vmul.f32 %v5891, %v2550
      %v5924 = vmul.f32 %v5892, %v2550
      %v5925 = vmul.f32 %v5893, %v2550
      %v5926 = vmul.f32 %v5894, %v2550
      %v5927 = vmul.f32 %v5895, %v2550
      %v5944 = vrot.slane %v5912, 1
      %v5945 = vrot.slane %v5913, 1
      %v5946 = vsel %vm2222, %v5944, %v5945
      %v5947 = vrot.slane %v5914, 1
      %v5948 = vrot.slane %v5915, 1
      %v5949 = vsel %vm2222, %v5947, %v5948
      %v5950 = vrot.slane %v5916, 1
      %v5951 = vrot.slane %v5917, 1
      %v5952 = vsel %vm2222, %v5950, %v5951
      %v5953 = vrot.slane %v5918, 1
      %v5954 = vrot.slane %v5919, 1
      %v5955 = vsel %vm2222, %v5953, %v5954
      %v5956 = vrot.slane %v5920, 1
      %v5957 = vrot.slane %v5921, 1
      %v5958 = vsel %vm2222, %v5956, %v5957
      %v5959 = vrot.slane %v5922, 1
      %v5960 = vrot.slane %v5923, 1
      %v5961 = vsel %vm2222, %v5959, %v5960
      %v5962 = vrot.slane %v5924, 1
      %v5963 = vrot.slane %v5925, 1
      %v5964 = vsel %vm2222, %v5962, %v5963
      %v5965 = vrot.slane %v5926, 1
      %v5966 = vrot.slane %v5927, 1
      %v5967 = vsel %vm2222, %v5965, %v5966
      %v5976 = vadd.f32 %v5904, %v5946
      %v5977 = vadd.f32 %v5905, %v5949
      %v5978 = vadd.f32 %v5906, %v5952
      %v5979 = vadd.f32 %v5907, %v5955
      %v5980 = vadd.f32 %v5908, %v5958
      %v5981 = vadd.f32 %v5909, %v5961
      %v5982 = vadd.f32 %v5910, %v5964
      %v5983 = vadd.f32 %v5911, %v5967
      %v5984 = vmul.f32 %v5880, %v2623
      %v5985 = vmul.f32 %v5881, %v2623
      %v5986 = vmul.f32 %v5882, %v2623
      %v5987 = vmul.f32 %v5883, %v2623
      %v5988 = vmul.f32 %v5884, %v2623
      %v5989 = vmul.f32 %v5885, %v2623
      %v5990 = vmul.f32 %v5886, %v2623
      %v5991 = vmul.f32 %v5887, %v2623
      %v5992 = vmul.f32 %v5888, %v2623
      %v5993 = vmul.f32 %v5889, %v2623
      %v5994 = vmul.f32 %v5890, %v2623
      %v5995 = vmul.f32 %v5891, %v2623
      %v5996 = vmul.f32 %v5892, %v2623
      %v5997 = vmul.f32 %v5893, %v2623
      %v5998 = vmul.f32 %v5894, %v2623
      %v5999 = vmul.f32 %v5895, %v2623
      %v6016 = vrot.slane %v5984, 2
      %v6017 = vrot.slane %v5985, 2
      %v6018 = vsel %vm2296, %v6016, %v6017
      %v6019 = vrot.slane %v5986, 2
      %v6020 = vrot.slane %v5987, 2
      %v6021 = vsel %vm2296, %v6019, %v6020
      %v6022 = vrot.slane %v5988, 2
      %v6023 = vrot.slane %v5989, 2
      %v6024 = vsel %vm2296, %v6022, %v6023
      %v6025 = vrot.slane %v5990, 2
      %v6026 = vrot.slane %v5991, 2
      %v6027 = vsel %vm2296, %v6025, %v6026
      %v6028 = vrot.slane %v5992, 2
      %v6029 = vrot.slane %v5993, 2
      %v6030 = vsel %vm2296, %v6028, %v6029
      %v6031 = vrot.slane %v5994, 2
      %v6032 = vrot.slane %v5995, 2
      %v6033 = vsel %vm2296, %v6031, %v6032
      %v6034 = vrot.slane %v5996, 2
      %v6035 = vrot.slane %v5997, 2
      %v6036 = vsel %vm2296, %v6034, %v6035
      %v6037 = vrot.slane %v5998, 2
      %v6038 = vrot.slane %v5999, 2
      %v6039 = vsel %vm2296, %v6037, %v6038
      %v6048 = vadd.f32 %v5976, %v6018
      %v6049 = vadd.f32 %v5977, %v6021
      %v6050 = vadd.f32 %v5978, %v6024
      %v6051 = vadd.f32 %v5979, %v6027
      %v6052 = vadd.f32 %v5980, %v6030
      %v6053 = vadd.f32 %v5981, %v6033
      %v6054 = vadd.f32 %v5982, %v6036
      %v6055 = vadd.f32 %v5983, %v6039
      %s6056 = scalar_lea.vmem [#allocation2], 1120
      %6057 = vst [vmem:[%s6056] sm:$0xff] 0.0
      %6058 = vst [vmem:[%s6056 + $0x8] sm:$0xff] 0.0
      %s6059 = scalar_lea.vmem [#allocation2], 1264
      %6060 = vst [vmem:[%s6059] sm:$0xff] 0.0
      %6061 = vst [vmem:[%s6059 + $0x8] sm:$0xff] 0.0
      %s6062 = scalar_lea.vmem [#allocation2], 1136
      %6063 = vst [vmem:[%s6062] sm:$0x1] 0.0
      %6064 = vst [vmem:[%s6062 + $0x10] sm:$0x1] 0.0
      %6065 = vst [vmem:[%s6062 + $0x20] sm:$0x1] 0.0
      %6066 = vst [vmem:[%s6062 + $0x30] sm:$0x1] 0.0
      %6067 = vst [vmem:[%s6062 + $0x40] sm:$0x1] 0.0
      %6068 = vst [vmem:[%s6062 + $0x50] sm:$0x1] 0.0
      %6069 = vst [vmem:[%s6062 + $0x60] sm:$0x1] 0.0
      %6070 = vst [vmem:[%s6062 + $0x70] sm:$0x1] 0.0
      %6071 = vst [vmem:[%s6062 + $0x9] sm:$0x1] 0.0
      %6072 = vst [vmem:[%s6062 + $0x19] sm:$0x1] 0.0
      %6073 = vst [vmem:[%s6062 + $0x29] sm:$0x1] 0.0
      %6074 = vst [vmem:[%s6062 + $0x39] sm:$0x1] 0.0
      %6075 = vst [vmem:[%s6062 + $0x49] sm:$0x1] 0.0
      %6076 = vst [vmem:[%s6062 + $0x59] sm:$0x1] 0.0
      %6077 = vst [vmem:[%s6062 + $0x69] sm:$0x1] 0.0
      %6078 = vst [vmem:[%s6062 + $0x79] sm:$0x1] 0.0
      %6079 = vst [vmem:[%s6062 + $0x1] sm:$0xff] %v2116
      %6080 = vst [vmem:[%s6062 + $0x11] sm:$0xff] %v2117
      %6081 = vst [vmem:[%s6062 + $0x21] sm:$0xff] %v2118
      %6082 = vst [vmem:[%s6062 + $0x31] sm:$0xff] %v2119
      %6083 = vst [vmem:[%s6062 + $0x41] sm:$0xff] %v2120
      %6084 = vst [vmem:[%s6062 + $0x51] sm:$0xff] %v2121
      %6085 = vst [vmem:[%s6062 + $0x61] sm:$0xff] %v2122
      %6086 = vst [vmem:[%s6062 + $0x71] sm:$0xff] %v2123
      %v6087 = vld [vmem:[%s6056] sm:$0xff]
      %v6088 = vld [vmem:[%s6056 + $0x8] sm:$0xff]
      %v6089 = vld [vmem:[%s6056 + $0x10] sm:$0xff]
      %v6090 = vld [vmem:[%s6056 + $0x18] sm:$0xff]
      %v6091 = vld [vmem:[%s6056 + $0x20] sm:$0xff]
      %v6092 = vld [vmem:[%s6056 + $0x28] sm:$0xff]
      %v6093 = vld [vmem:[%s6056 + $0x30] sm:$0xff]
      %v6094 = vld [vmem:[%s6056 + $0x38] sm:$0xff]
      %v6095 = vld [vmem:[%s6056 + $0x40] sm:$0xff]
      %v6096 = vld [vmem:[%s6056 + $0x48] sm:$0xff]
      %v6097 = vld [vmem:[%s6056 + $0x50] sm:$0xff]
      %v6098 = vld [vmem:[%s6056 + $0x58] sm:$0xff]
      %v6099 = vld [vmem:[%s6056 + $0x60] sm:$0xff]
      %v6100 = vld [vmem:[%s6056 + $0x68] sm:$0xff]
      %v6101 = vld [vmem:[%s6056 + $0x70] sm:$0xff]
      %v6102 = vld [vmem:[%s6056 + $0x78] sm:$0xff]
      %v6103 = vmul.f32 %v6087, %v2172
      %v6104 = vmul.f32 %v6089, %v2172
      %v6105 = vmul.f32 %v6091, %v2172
      %v6106 = vmul.f32 %v6093, %v2172
      %v6107 = vmul.f32 %v6095, %v2172
      %v6108 = vmul.f32 %v6097, %v2172
      %v6109 = vmul.f32 %v6099, %v2172
      %v6110 = vmul.f32 %v6101, %v2172
      %v6111 = vadd.f32 %v6103, 0.0
      %v6112 = vadd.f32 %v6104, 0.0
      %v6113 = vadd.f32 %v6105, 0.0
      %v6114 = vadd.f32 %v6106, 0.0
      %v6115 = vadd.f32 %v6107, 0.0
      %v6116 = vadd.f32 %v6108, 0.0
      %v6117 = vadd.f32 %v6109, 0.0
      %v6118 = vadd.f32 %v6110, 0.0
      %v6119 = vmul.f32 %v6087, %v2189
      %v6120 = vmul.f32 %v6088, %v2189
      %v6121 = vmul.f32 %v6089, %v2189
      %v6122 = vmul.f32 %v6090, %v2189
      %v6123 = vmul.f32 %v6091, %v2189
      %v6124 = vmul.f32 %v6092, %v2189
      %v6125 = vmul.f32 %v6093, %v2189
      %v6126 = vmul.f32 %v6094, %v2189
      %v6127 = vmul.f32 %v6095, %v2189
      %v6128 = vmul.f32 %v6096, %v2189
      %v6129 = vmul.f32 %v6097, %v2189
      %v6130 = vmul.f32 %v6098, %v2189
      %v6131 = vmul.f32 %v6099, %v2189
      %v6132 = vmul.f32 %v6100, %v2189
      %v6133 = vmul.f32 %v6101, %v2189
      %v6134 = vmul.f32 %v6102, %v2189
      %v6151 = vrot.slane %v6119, 1
      %v6152 = vrot.slane %v6120, 1
      %v6153 = vsel %vm2222, %v6151, %v6152
      %v6154 = vrot.slane %v6121, 1
      %v6155 = vrot.slane %v6122, 1
      %v6156 = vsel %vm2222, %v6154, %v6155
      %v6157 = vrot.slane %v6123, 1
      %v6158 = vrot.slane %v6124, 1
      %v6159 = vsel %vm2222, %v6157, %v6158
      %v6160 = vrot.slane %v6125, 1
      %v6161 = vrot.slane %v6126, 1
      %v6162 = vsel %vm2222, %v6160, %v6161
      %v6163 = vrot.slane %v6127, 1
      %v6164 = vrot.slane %v6128, 1
      %v6165 = vsel %vm2222, %v6163, %v6164
      %v6166 = vrot.slane %v6129, 1
      %v6167 = vrot.slane %v6130, 1
      %v6168 = vsel %vm2222, %v6166, %v6167
      %v6169 = vrot.slane %v6131, 1
      %v6170 = vrot.slane %v6132, 1
      %v6171 = vsel %vm2222, %v6169, %v6170
      %v6172 = vrot.slane %v6133, 1
      %v6173 = vrot.slane %v6134, 1
      %v6174 = vsel %vm2222, %v6172, %v6173
      %v6183 = vadd.f32 %v6111, %v6153
      %v6184 = vadd.f32 %v6112, %v6156
      %v6185 = vadd.f32 %v6113, %v6159
      %v6186 = vadd.f32 %v6114, %v6162
      %v6187 = vadd.f32 %v6115, %v6165
      %v6188 = vadd.f32 %v6116, %v6168
      %v6189 = vadd.f32 %v6117, %v6171
      %v6190 = vadd.f32 %v6118, %v6174
      %v6191 = vmul.f32 %v6087, %v2263
      %v6192 = vmul.f32 %v6088, %v2263
      %v6193 = vmul.f32 %v6089, %v2263
      %v6194 = vmul.f32 %v6090, %v2263
      %v6195 = vmul.f32 %v6091, %v2263
      %v6196 = vmul.f32 %v6092, %v2263
      %v6197 = vmul.f32 %v6093, %v2263
      %v6198 = vmul.f32 %v6094, %v2263
      %v6199 = vmul.f32 %v6095, %v2263
      %v6200 = vmul.f32 %v6096, %v2263
      %v6201 = vmul.f32 %v6097, %v2263
      %v6202 = vmul.f32 %v6098, %v2263
      %v6203 = vmul.f32 %v6099, %v2263
      %v6204 = vmul.f32 %v6100, %v2263
      %v6205 = vmul.f32 %v6101, %v2263
      %v6206 = vmul.f32 %v6102, %v2263
      %v6223 = vrot.slane %v6191, 2
      %v6224 = vrot.slane %v6192, 2
      %v6225 = vsel %vm2296, %v6223, %v6224
      %v6226 = vrot.slane %v6193, 2
      %v6227 = vrot.slane %v6194, 2
      %v6228 = vsel %vm2296, %v6226, %v6227
      %v6229 = vrot.slane %v6195, 2
      %v6230 = vrot.slane %v6196, 2
      %v6231 = vsel %vm2296, %v6229, %v6230
      %v6232 = vrot.slane %v6197, 2
      %v6233 = vrot.slane %v6198, 2
      %v6234 = vsel %vm2296, %v6232, %v6233
      %v6235 = vrot.slane %v6199, 2
      %v6236 = vrot.slane %v6200, 2
      %v6237 = vsel %vm2296, %v6235, %v6236
      %v6238 = vrot.slane %v6201, 2
      %v6239 = vrot.slane %v6202, 2
      %v6240 = vsel %vm2296, %v6238, %v6239
      %v6241 = vrot.slane %v6203, 2
      %v6242 = vrot.slane %v6204, 2
      %v6243 = vsel %vm2296, %v6241, %v6242
      %v6244 = vrot.slane %v6205, 2
      %v6245 = vrot.slane %v6206, 2
      %v6246 = vsel %vm2296, %v6244, %v6245
      %v6255 = vadd.f32 %v6183, %v6225
      %v6256 = vadd.f32 %v6184, %v6228
      %v6257 = vadd.f32 %v6185, %v6231
      %v6258 = vadd.f32 %v6186, %v6234
      %v6259 = vadd.f32 %v6187, %v6237
      %v6260 = vadd.f32 %v6188, %v6240
      %v6261 = vadd.f32 %v6189, %v6243
      %v6262 = vadd.f32 %v6190, %v6246
      %v6263 = vld [vmem:[%s6062] sm:$0xff]
      %v6264 = vld [vmem:[%s6062 + $0x8] sm:$0xff]
      %v6265 = vld [vmem:[%s6062 + $0x10] sm:$0xff]
      %v6266 = vld [vmem:[%s6062 + $0x18] sm:$0xff]
      %v6267 = vld [vmem:[%s6062 + $0x20] sm:$0xff]
      %v6268 = vld [vmem:[%s6062 + $0x28] sm:$0xff]
      %v6269 = vld [vmem:[%s6062 + $0x30] sm:$0xff]
      %v6270 = vld [vmem:[%s6062 + $0x38] sm:$0xff]
      %v6271 = vld [vmem:[%s6062 + $0x40] sm:$0xff]
      %v6272 = vld [vmem:[%s6062 + $0x48] sm:$0xff]
      %v6273 = vld [vmem:[%s6062 + $0x50] sm:$0xff]
      %v6274 = vld [vmem:[%s6062 + $0x58] sm:$0xff]
      %v6275 = vld [vmem:[%s6062 + $0x60] sm:$0xff]
      %v6276 = vld [vmem:[%s6062 + $0x68] sm:$0xff]
      %v6277 = vld [vmem:[%s6062 + $0x70] sm:$0xff]
      %v6278 = vld [vmem:[%s6062 + $0x78] sm:$0xff]
      %v6279 = vmul.f32 %v6263, %v2353
      %v6280 = vmul.f32 %v6265, %v2353
      %v6281 = vmul.f32 %v6267, %v2353
      %v6282 = vmul.f32 %v6269, %v2353
      %v6283 = vmul.f32 %v6271, %v2353
      %v6284 = vmul.f32 %v6273, %v2353
      %v6285 = vmul.f32 %v6275, %v2353
      %v6286 = vmul.f32 %v6277, %v2353
      %v6287 = vadd.f32 %v6255, %v6279
      %v6288 = vadd.f32 %v6256, %v6280
      %v6289 = vadd.f32 %v6257, %v6281
      %v6290 = vadd.f32 %v6258, %v6282
      %v6291 = vadd.f32 %v6259, %v6283
      %v6292 = vadd.f32 %v6260, %v6284
      %v6293 = vadd.f32 %v6261, %v6285
      %v6294 = vadd.f32 %v6262, %v6286
      %v6295 = vmul.f32 %v6263, %v2370
      %v6296 = vmul.f32 %v6264, %v2370
      %v6297 = vmul.f32 %v6265, %v2370
      %v6298 = vmul.f32 %v6266, %v2370
      %v6299 = vmul.f32 %v6267, %v2370
      %v6300 = vmul.f32 %v6268, %v2370
      %v6301 = vmul.f32 %v6269, %v2370
      %v6302 = vmul.f32 %v6270, %v2370
      %v6303 = vmul.f32 %v6271, %v2370
      %v6304 = vmul.f32 %v6272, %v2370
      %v6305 = vmul.f32 %v6273, %v2370
      %v6306 = vmul.f32 %v6274, %v2370
      %v6307 = vmul.f32 %v6275, %v2370
      %v6308 = vmul.f32 %v6276, %v2370
      %v6309 = vmul.f32 %v6277, %v2370
      %v6310 = vmul.f32 %v6278, %v2370
      %v6327 = vrot.slane %v6295, 1
      %v6328 = vrot.slane %v6296, 1
      %v6329 = vsel %vm2222, %v6327, %v6328
      %v6330 = vrot.slane %v6297, 1
      %v6331 = vrot.slane %v6298, 1
      %v6332 = vsel %vm2222, %v6330, %v6331
      %v6333 = vrot.slane %v6299, 1
      %v6334 = vrot.slane %v6300, 1
      %v6335 = vsel %vm2222, %v6333, %v6334
      %v6336 = vrot.slane %v6301, 1
      %v6337 = vrot.slane %v6302, 1
      %v6338 = vsel %vm2222, %v6336, %v6337
      %v6339 = vrot.slane %v6303, 1
      %v6340 = vrot.slane %v6304, 1
      %v6341 = vsel %vm2222, %v6339, %v6340
      %v6342 = vrot.slane %v6305, 1
      %v6343 = vrot.slane %v6306, 1
      %v6344 = vsel %vm2222, %v6342, %v6343
      %v6345 = vrot.slane %v6307, 1
      %v6346 = vrot.slane %v6308, 1
      %v6347 = vsel %vm2222, %v6345, %v6346
      %v6348 = vrot.slane %v6309, 1
      %v6349 = vrot.slane %v6310, 1
      %v6350 = vsel %vm2222, %v6348, %v6349
      %v6359 = vadd.f32 %v6287, %v6329
      %v6360 = vadd.f32 %v6288, %v6332
      %v6361 = vadd.f32 %v6289, %v6335
      %v6362 = vadd.f32 %v6290, %v6338
      %v6363 = vadd.f32 %v6291, %v6341
      %v6364 = vadd.f32 %v6292, %v6344
      %v6365 = vadd.f32 %v6293, %v6347
      %v6366 = vadd.f32 %v6294, %v6350
      %v6367 = vmul.f32 %v6263, %v2443
      %v6368 = vmul.f32 %v6264, %v2443
      %v6369 = vmul.f32 %v6265, %v2443
      %v6370 = vmul.f32 %v6266, %v2443
      %v6371 = vmul.f32 %v6267, %v2443
      %v6372 = vmul.f32 %v6268, %v2443
      %v6373 = vmul.f32 %v6269, %v2443
      %v6374 = vmul.f32 %v6270, %v2443
      %v6375 = vmul.f32 %v6271, %v2443
      %v6376 = vmul.f32 %v6272, %v2443
      %v6377 = vmul.f32 %v6273, %v2443
      %v6378 = vmul.f32 %v6274, %v2443
      %v6379 = vmul.f32 %v6275, %v2443
      %v6380 = vmul.f32 %v6276, %v2443
      %v6381 = vmul.f32 %v6277, %v2443
      %v6382 = vmul.f32 %v6278, %v2443
      %v6399 = vrot.slane %v6367, 2
      %v6400 = vrot.slane %v6368, 2
      %v6401 = vsel %vm2296, %v6399, %v6400
      %v6402 = vrot.slane %v6369, 2
      %v6403 = vrot.slane %v6370, 2
      %v6404 = vsel %vm2296, %v6402, %v6403
      %v6405 = vrot.slane %v6371, 2
      %v6406 = vrot.slane %v6372, 2
      %v6407 = vsel %vm2296, %v6405, %v6406
      %v6408 = vrot.slane %v6373, 2
      %v6409 = vrot.slane %v6374, 2
      %v6410 = vsel %vm2296, %v6408, %v6409
      %v6411 = vrot.slane %v6375, 2
      %v6412 = vrot.slane %v6376, 2
      %v6413 = vsel %vm2296, %v6411, %v6412
      %v6414 = vrot.slane %v6377, 2
      %v6415 = vrot.slane %v6378, 2
      %v6416 = vsel %vm2296, %v6414, %v6415
      %v6417 = vrot.slane %v6379, 2
      %v6418 = vrot.slane %v6380, 2
      %v6419 = vsel %vm2296, %v6417, %v6418
      %v6420 = vrot.slane %v6381, 2
      %v6421 = vrot.slane %v6382, 2
      %v6422 = vsel %vm2296, %v6420, %v6421
      %v6431 = vadd.f32 %v6359, %v6401
      %v6432 = vadd.f32 %v6360, %v6404
      %v6433 = vadd.f32 %v6361, %v6407
      %v6434 = vadd.f32 %v6362, %v6410
      %v6435 = vadd.f32 %v6363, %v6413
      %v6436 = vadd.f32 %v6364, %v6416
      %v6437 = vadd.f32 %v6365, %v6419
      %v6438 = vadd.f32 %v6366, %v6422
      %s6439 = scalar_lea.vmem [#allocation2], 1152
      %v6440 = vld [vmem:[%s6439] sm:$0xff]
      %v6441 = vld [vmem:[%s6439 + $0x8] sm:$0xff]
      %v6442 = vld [vmem:[%s6439 + $0x10] sm:$0xff]
      %v6443 = vld [vmem:[%s6439 + $0x18] sm:$0xff]
      %v6444 = vld [vmem:[%s6439 + $0x20] sm:$0xff]
      %v6445 = vld [vmem:[%s6439 + $0x28] sm:$0xff]
      %v6446 = vld [vmem:[%s6439 + $0x30] sm:$0xff]
      %v6447 = vld [vmem:[%s6439 + $0x38] sm:$0xff]
      %v6448 = vld [vmem:[%s6439 + $0x40] sm:$0xff]
      %v6449 = vld [vmem:[%s6439 + $0x48] sm:$0xff]
      %v6450 = vld [vmem:[%s6439 + $0x50] sm:$0xff]
      %v6451 = vld [vmem:[%s6439 + $0x58] sm:$0xff]
      %v6452 = vld [vmem:[%s6439 + $0x60] sm:$0xff]
      %v6453 = vld [vmem:[%s6439 + $0x68] sm:$0xff]
      %v6454 = vld [vmem:[%s6439 + $0x70] sm:$0xff]
      %v6455 = vld [vmem:[%s6439 + $0x78] sm:$0xff]
      %v6456 = vmul.f32 %v6440, %v2533
      %v6457 = vmul.f32 %v6442, %v2533
      %v6458 = vmul.f32 %v6444, %v2533
      %v6459 = vmul.f32 %v6446, %v2533
      %v6460 = vmul.f32 %v6448, %v2533
      %v6461 = vmul.f32 %v6450, %v2533
      %v6462 = vmul.f32 %v6452, %v2533
      %v6463 = vmul.f32 %v6454, %v2533
      %v6464 = vadd.f32 %v6431, %v6456
      %v6465 = vadd.f32 %v6432, %v6457
      %v6466 = vadd.f32 %v6433, %v6458
      %v6467 = vadd.f32 %v6434, %v6459
      %v6468 = vadd.f32 %v6435, %v6460
      %v6469 = vadd.f32 %v6436, %v6461
      %v6470 = vadd.f32 %v6437, %v6462
      %v6471 = vadd.f32 %v6438, %v6463
      %v6472 = vmul.f32 %v6440, %v2550
      %v6473 = vmul.f32 %v6441, %v2550
      %v6474 = vmul.f32 %v6442, %v2550
      %v6475 = vmul.f32 %v6443, %v2550
      %v6476 = vmul.f32 %v6444, %v2550
      %v6477 = vmul.f32 %v6445, %v2550
      %v6478 = vmul.f32 %v6446, %v2550
      %v6479 = vmul.f32 %v6447, %v2550
      %v6480 = vmul.f32 %v6448, %v2550
      %v6481 = vmul.f32 %v6449, %v2550
      %v6482 = vmul.f32 %v6450, %v2550
      %v6483 = vmul.f32 %v6451, %v2550
      %v6484 = vmul.f32 %v6452, %v2550
      %v6485 = vmul.f32 %v6453, %v2550
      %v6486 = vmul.f32 %v6454, %v2550
      %v6487 = vmul.f32 %v6455, %v2550
      %v6504 = vrot.slane %v6472, 1
      %v6505 = vrot.slane %v6473, 1
      %v6506 = vsel %vm2222, %v6504, %v6505
      %v6507 = vrot.slane %v6474, 1
      %v6508 = vrot.slane %v6475, 1
      %v6509 = vsel %vm2222, %v6507, %v6508
      %v6510 = vrot.slane %v6476, 1
      %v6511 = vrot.slane %v6477, 1
      %v6512 = vsel %vm2222, %v6510, %v6511
      %v6513 = vrot.slane %v6478, 1
      %v6514 = vrot.slane %v6479, 1
      %v6515 = vsel %vm2222, %v6513, %v6514
      %v6516 = vrot.slane %v6480, 1
      %v6517 = vrot.slane %v6481, 1
      %v6518 = vsel %vm2222, %v6516, %v6517
      %v6519 = vrot.slane %v6482, 1
      %v6520 = vrot.slane %v6483, 1
      %v6521 = vsel %vm2222, %v6519, %v6520
      %v6522 = vrot.slane %v6484, 1
      %v6523 = vrot.slane %v6485, 1
      %v6524 = vsel %vm2222, %v6522, %v6523
      %v6525 = vrot.slane %v6486, 1
      %v6526 = vrot.slane %v6487, 1
      %v6527 = vsel %vm2222, %v6525, %v6526
      %v6536 = vadd.f32 %v6464, %v6506
      %v6537 = vadd.f32 %v6465, %v6509
      %v6538 = vadd.f32 %v6466, %v6512
      %v6539 = vadd.f32 %v6467, %v6515
      %v6540 = vadd.f32 %v6468, %v6518
      %v6541 = vadd.f32 %v6469, %v6521
      %v6542 = vadd.f32 %v6470, %v6524
      %v6543 = vadd.f32 %v6471, %v6527
      %v6544 = vmul.f32 %v6440, %v2623
      %v6545 = vmul.f32 %v6441, %v2623
      %v6546 = vmul.f32 %v6442, %v2623
      %v6547 = vmul.f32 %v6443, %v2623
      %v6548 = vmul.f32 %v6444, %v2623
      %v6549 = vmul.f32 %v6445, %v2623
      %v6550 = vmul.f32 %v6446, %v2623
      %v6551 = vmul.f32 %v6447, %v2623
      %v6552 = vmul.f32 %v6448, %v2623
      %v6553 = vmul.f32 %v6449, %v2623
      %v6554 = vmul.f32 %v6450, %v2623
      %v6555 = vmul.f32 %v6451, %v2623
      %v6556 = vmul.f32 %v6452, %v2623
      %v6557 = vmul.f32 %v6453, %v2623
      %v6558 = vmul.f32 %v6454, %v2623
      %v6559 = vmul.f32 %v6455, %v2623
      %v6576 = vrot.slane %v6544, 2
      %v6577 = vrot.slane %v6545, 2
      %v6578 = vsel %vm2296, %v6576, %v6577
      %v6579 = vrot.slane %v6546, 2
      %v6580 = vrot.slane %v6547, 2
      %v6581 = vsel %vm2296, %v6579, %v6580
      %v6582 = vrot.slane %v6548, 2
      %v6583 = vrot.slane %v6549, 2
      %v6584 = vsel %vm2296, %v6582, %v6583
      %v6585 = vrot.slane %v6550, 2
      %v6586 = vrot.slane %v6551, 2
      %v6587 = vsel %vm2296, %v6585, %v6586
      %v6588 = vrot.slane %v6552, 2
      %v6589 = vrot.slane %v6553, 2
      %v6590 = vsel %vm2296, %v6588, %v6589
      %v6591 = vrot.slane %v6554, 2
      %v6592 = vrot.slane %v6555, 2
      %v6593 = vsel %vm2296, %v6591, %v6592
      %v6594 = vrot.slane %v6556, 2
      %v6595 = vrot.slane %v6557, 2
      %v6596 = vsel %vm2296, %v6594, %v6595
      %v6597 = vrot.slane %v6558, 2
      %v6598 = vrot.slane %v6559, 2
      %v6599 = vsel %vm2296, %v6597, %v6598
      %v6608 = vadd.f32 %v6536, %v6578
      %v6609 = vadd.f32 %v6537, %v6581
      %v6610 = vadd.f32 %v6538, %v6584
      %v6611 = vadd.f32 %v6539, %v6587
      %v6612 = vadd.f32 %v6540, %v6590
      %v6613 = vadd.f32 %v6541, %v6593
      %v6614 = vadd.f32 %v6542, %v6596
      %v6615 = vadd.f32 %v6543, %v6599
      %v6616 = vld [vmem:[%s4] sm:$0x1]
      %v6618 = vperm.slane %v6616, 0
      %v6620 = vadd.f32 %v2688, %v6618
      %v6621 = vadd.f32 %v2689, %v6618
      %v6622 = vadd.f32 %v2690, %v6618
      %v6623 = vadd.f32 %v2691, %v6618
      %v6624 = vadd.f32 %v2692, %v6618
      %v6625 = vadd.f32 %v2693, %v6618
      %v6626 = vadd.f32 %v2694, %v6618
      %v6627 = vadd.f32 %v2695, %v6618
      %v6628 = vadd.f32 %v3248, %v6618
      %v6629 = vadd.f32 %v3249, %v6618
      %v6630 = vadd.f32 %v3250, %v6618
      %v6631 = vadd.f32 %v3251, %v6618
      %v6632 = vadd.f32 %v3252, %v6618
      %v6633 = vadd.f32 %v3253, %v6618
      %v6634 = vadd.f32 %v3254, %v6618
      %v6635 = vadd.f32 %v3255, %v6618
      %v6636 = vadd.f32 %v3808, %v6618
      %v6637 = vadd.f32 %v3809, %v6618
      %v6638 = vadd.f32 %v3810, %v6618
      %v6639 = vadd.f32 %v3811, %v6618
      %v6640 = vadd.f32 %v3812, %v6618
      %v6641 = vadd.f32 %v3813, %v6618
      %v6642 = vadd.f32 %v3814, %v6618
      %v6643 = vadd.f32 %v3815, %v6618
      %v6644 = vadd.f32 %v4368, %v6618
      %v6645 = vadd.f32 %v4369, %v6618
      %v6646 = vadd.f32 %v4370, %v6618
      %v6647 = vadd.f32 %v4371, %v6618
      %v6648 = vadd.f32 %v4372, %v6618
      %v6649 = vadd.f32 %v4373, %v6618
      %v6650 = vadd.f32 %v4374, %v6618
      %v6651 = vadd.f32 %v4375, %v6618
      %v6652 = vadd.f32 %v4928, %v6618
      %v6653 = vadd.f32 %v4929, %v6618
      %v6654 = vadd.f32 %v4930, %v6618
      %v6655 = vadd.f32 %v4931, %v6618
      %v6656 = vadd.f32 %v4932, %v6618
      %v6657 = vadd.f32 %v4933, %v6618
      %v6658 = vadd.f32 %v4934, %v6618
      %v6659 = vadd.f32 %v4935, %v6618
      %v6660 = vadd.f32 %v5488, %v6618
      %v6661 = vadd.f32 %v5489, %v6618
      %v6662 = vadd.f32 %v5490, %v6618
      %v6663 = vadd.f32 %v5491, %v6618
      %v6664 = vadd.f32 %v5492, %v6618
      %v6665 = vadd.f32 %v5493, %v6618
      %v6666 = vadd.f32 %v5494, %v6618
      %v6667 = vadd.f32 %v5495, %v6618
      %v6668 = vadd.f32 %v6048, %v6618
      %v6669 = vadd.f32 %v6049, %v6618
      %v6670 = vadd.f32 %v6050, %v6618
      %v6671 = vadd.f32 %v6051, %v6618
      %v6672 = vadd.f32 %v6052, %v6618
      %v6673 = vadd.f32 %v6053, %v6618
      %v6674 = vadd.f32 %v6054, %v6618
      %v6675 = vadd.f32 %v6055, %v6618
      %v6676 = vadd.f32 %v6608, %v6618
      %v6677 = vadd.f32 %v6609, %v6618
      %v6678 = vadd.f32 %v6610, %v6618
      %v6679 = vadd.f32 %v6611, %v6618
      %v6680 = vadd.f32 %v6612, %v6618
      %v6681 = vadd.f32 %v6613, %v6618
      %v6682 = vadd.f32 %v6614, %v6618
      %v6683 = vadd.f32 %v6615, %v6618
      %v6684 = vxor.u32 %v6620, 2147483648
      %v6685 = vxor.u32 %v6621, 2147483648
      %v6686 = vxor.u32 %v6622, 2147483648
      %v6687 = vxor.u32 %v6623, 2147483648
      %v6688 = vxor.u32 %v6624, 2147483648
      %v6689 = vxor.u32 %v6625, 2147483648
      %v6690 = vxor.u32 %v6626, 2147483648
      %v6691 = vxor.u32 %v6627, 2147483648
      %v6692 = vxor.u32 %v6628, 2147483648
      %v6693 = vxor.u32 %v6629, 2147483648
      %v6694 = vxor.u32 %v6630, 2147483648
      %v6695 = vxor.u32 %v6631, 2147483648
      %v6696 = vxor.u32 %v6632, 2147483648
      %v6697 = vxor.u32 %v6633, 2147483648
      %v6698 = vxor.u32 %v6634, 2147483648
      %v6699 = vxor.u32 %v6635, 2147483648
      %v6700 = vxor.u32 %v6636, 2147483648
      %v6701 = vxor.u32 %v6637, 2147483648
      %v6702 = vxor.u32 %v6638, 2147483648
      %v6703 = vxor.u32 %v6639, 2147483648
      %v6704 = vxor.u32 %v6640, 2147483648
      %v6705 = vxor.u32 %v6641, 2147483648
      %v6706 = vxor.u32 %v6642, 2147483648
      %v6707 = vxor.u32 %v6643, 2147483648
      %v6708 = vxor.u32 %v6644, 2147483648
      %v6709 = vxor.u32 %v6645, 2147483648
      %v6710 = vxor.u32 %v6646, 2147483648
      %v6711 = vxor.u32 %v6647, 2147483648
      %v6712 = vxor.u32 %v6648, 2147483648
      %v6713 = vxor.u32 %v6649, 2147483648
      %v6714 = vxor.u32 %v6650, 2147483648
      %v6715 = vxor.u32 %v6651, 2147483648
      %v6716 = vxor.u32 %v6652, 2147483648
      %v6717 = vxor.u32 %v6653, 2147483648
      %v6718 = vxor.u32 %v6654, 2147483648
      %v6719 = vxor.u32 %v6655, 2147483648
      %v6720 = vxor.u32 %v6656, 2147483648
      %v6721 = vxor.u32 %v6657, 2147483648
      %v6722 = vxor.u32 %v6658, 2147483648
      %v6723 = vxor.u32 %v6659, 2147483648
      %v6724 = vxor.u32 %v6660, 2147483648
      %v6725 = vxor.u32 %v6661, 2147483648
      %v6726 = vxor.u32 %v6662, 2147483648
      %v6727 = vxor.u32 %v6663, 2147483648
      %v6728 = vxor.u32 %v6664, 2147483648
      %v6729 = vxor.u32 %v6665, 2147483648
      %v6730 = vxor.u32 %v6666, 2147483648
      %v6731 = vxor.u32 %v6667, 2147483648
      %v6732 = vxor.u32 %v6668, 2147483648
      %v6733 = vxor.u32 %v6669, 2147483648
      %v6734 = vxor.u32 %v6670, 2147483648
      %v6735 = vxor.u32 %v6671, 2147483648
      %v6736 = vxor.u32 %v6672, 2147483648
      %v6737 = vxor.u32 %v6673, 2147483648
      %v6738 = vxor.u32 %v6674, 2147483648
      %v6739 = vxor.u32 %v6675, 2147483648
      %v6740 = vxor.u32 %v6676, 2147483648
      %v6741 = vxor.u32 %v6677, 2147483648
      %v6742 = vxor.u32 %v6678, 2147483648
      %v6743 = vxor.u32 %v6679, 2147483648
      %v6744 = vxor.u32 %v6680, 2147483648
      %v6745 = vxor.u32 %v6681, 2147483648
      %v6746 = vxor.u32 %v6682, 2147483648
      %v6747 = vxor.u32 %v6683, 2147483648
      %v6748 = vmul.f32 %v6684, 1.442695
      %v6749 = vpow.pop %v6748
      %v6750 = vmul.f32 %v6685, 1.442695
      %v6751 = vpow.pop %v6750
      %v6752 = vmul.f32 %v6686, 1.442695
      %v6753 = vpow.pop %v6752
      %v6754 = vmul.f32 %v6687, 1.442695
      %v6755 = vpow.pop %v6754
      %v6756 = vmul.f32 %v6688, 1.442695
      %v6757 = vpow.pop %v6756
      %v6758 = vmul.f32 %v6689, 1.442695
      %v6759 = vpow.pop %v6758
      %v6760 = vmul.f32 %v6690, 1.442695
      %v6761 = vpow.pop %v6760
      %v6762 = vmul.f32 %v6691, 1.442695
      %v6763 = vpow.pop %v6762
      %v6764 = vmul.f32 %v6692, 1.442695
      %v6765 = vpow.pop %v6764
      %v6766 = vmul.f32 %v6693, 1.442695
      %v6767 = vpow.pop %v6766
      %v6768 = vmul.f32 %v6694, 1.442695
      %v6769 = vpow.pop %v6768
      %v6770 = vmul.f32 %v6695, 1.442695
      %v6771 = vpow.pop %v6770
      %v6772 = vmul.f32 %v6696, 1.442695
      %v6773 = vpow.pop %v6772
      %v6774 = vmul.f32 %v6697, 1.442695
      %v6775 = vpow.pop %v6774
      %v6776 = vmul.f32 %v6698, 1.442695
      %v6777 = vpow.pop %v6776
      %v6778 = vmul.f32 %v6699, 1.442695
      %v6779 = vpow.pop %v6778
      %v6780 = vmul.f32 %v6700, 1.442695
      %v6781 = vpow.pop %v6780
      %v6782 = vmul.f32 %v6701, 1.442695
      %v6783 = vpow.pop %v6782
      %v6784 = vmul.f32 %v6702, 1.442695
      %v6785 = vpow.pop %v6784
      %v6786 = vmul.f32 %v6703, 1.442695
      %v6787 = vpow.pop %v6786
      %v6788 = vmul.f32 %v6704, 1.442695
      %v6789 = vpow.pop %v6788
      %v6790 = vmul.f32 %v6705, 1.442695
      %v6791 = vpow.pop %v6790
      %v6792 = vmul.f32 %v6706, 1.442695
      %v6793 = vpow.pop %v6792
      %v6794 = vmul.f32 %v6707, 1.442695
      %v6795 = vpow.pop %v6794
      %v6796 = vmul.f32 %v6708, 1.442695
      %v6797 = vpow.pop %v6796
      %v6798 = vmul.f32 %v6709, 1.442695
      %v6799 = vpow.pop %v6798
      %v6800 = vmul.f32 %v6710, 1.442695
      %v6801 = vpow.pop %v6800
      %v6802 = vmul.f32 %v6711, 1.442695
      %v6803 = vpow.pop %v6802
      %v6804 = vmul.f32 %v6712, 1.442695
      %v6805 = vpow.pop %v6804
      %v6806 = vmul.f32 %v6713, 1.442695
      %v6807 = vpow.pop %v6806
      %v6808 = vmul.f32 %v6714, 1.442695
      %v6809 = vpow.pop %v6808
      %v6810 = vmul.f32 %v6715, 1.442695
      %v6811 = vpow.pop %v6810
      %v6812 = vmul.f32 %v6716, 1.442695
      %v6813 = vpow.pop %v6812
      %v6814 = vmul.f32 %v6717, 1.442695
      %v6815 = vpow.pop %v6814
      %v6816 = vmul.f32 %v6718, 1.442695
      %v6817 = vpow.pop %v6816
      %v6818 = vmul.f32 %v6719, 1.442695
      %v6819 = vpow.pop %v6818
      %v6820 = vmul.f32 %v6720, 1.442695
      %v6821 = vpow.pop %v6820
      %v6822 = vmul.f32 %v6721, 1.442695
      %v6823 = vpow.pop %v6822
      %v6824 = vmul.f32 %v6722, 1.442695
      %v6825 = vpow.pop %v6824
      %v6826 = vmul.f32 %v6723, 1.442695
      %v6827 = vpow.pop %v6826
      %v6828 = vmul.f32 %v6724, 1.442695
      %v6829 = vpow.pop %v6828
      %v6830 = vmul.f32 %v6725, 1.442695
      %v6831 = vpow.pop %v6830
      %v6832 = vmul.f32 %v6726, 1.442695
      %v6833 = vpow.pop %v6832
      %v6834 = vmul.f32 %v6727, 1.442695
      %v6835 = vpow.pop %v6834
      %v6836 = vmul.f32 %v6728, 1.442695
      %v6837 = vpow.pop %v6836
      %v6838 = vmul.f32 %v6729, 1.442695
      %v6839 = vpow.pop %v6838
      %v6840 = vmul.f32 %v6730, 1.442695
      %v6841 = vpow.pop %v6840
      %v6842 = vmul.f32 %v6731, 1.442695
      %v6843 = vpow.pop %v6842
      %v6844 = vmul.f32 %v6732, 1.442695
      %v6845 = vpow.pop %v6844
      %v6846 = vmul.f32 %v6733, 1.442695
      %v6847 = vpow.pop %v6846
      %v6848 = vmul.f32 %v6734, 1.442695
      %v6849 = vpow.pop %v6848
      %v6850 = vmul.f32 %v6735, 1.442695
      %v6851 = vpow.pop %v6850
      %v6852 = vmul.f32 %v6736, 1.442695
      %v6853 = vpow.pop %v6852
      %v6854 = vmul.f32 %v6737, 1.442695
      %v6855 = vpow.pop %v6854
      %v6856 = vmul.f32 %v6738, 1.442695
      %v6857 = vpow.pop %v6856
      %v6858 = vmul.f32 %v6739, 1.442695
      %v6859 = vpow.pop %v6858
      %v6860 = vmul.f32 %v6740, 1.442695
      %v6861 = vpow.pop %v6860
      %v6862 = vmul.f32 %v6741, 1.442695
      %v6863 = vpow.pop %v6862
      %v6864 = vmul.f32 %v6742, 1.442695
      %v6865 = vpow.pop %v6864
      %v6866 = vmul.f32 %v6743, 1.442695
      %v6867 = vpow.pop %v6866
      %v6868 = vmul.f32 %v6744, 1.442695
      %v6869 = vpow.pop %v6868
      %v6870 = vmul.f32 %v6745, 1.442695
      %v6871 = vpow.pop %v6870
      %v6872 = vmul.f32 %v6746, 1.442695
      %v6873 = vpow.pop %v6872
      %v6874 = vmul.f32 %v6747, 1.442695
      %v6875 = vpow.pop %v6874
      %v6876 = vadd.f32 %v6749, 1.0
      %v6877 = vadd.f32 %v6751, 1.0
      %v6878 = vadd.f32 %v6753, 1.0
      %v6879 = vadd.f32 %v6755, 1.0
      %v6880 = vadd.f32 %v6757, 1.0
      %v6881 = vadd.f32 %v6759, 1.0
      %v6882 = vadd.f32 %v6761, 1.0
      %v6883 = vadd.f32 %v6763, 1.0
      %v6884 = vadd.f32 %v6765, 1.0
      %v6885 = vadd.f32 %v6767, 1.0
      %v6886 = vadd.f32 %v6769, 1.0
      %v6887 = vadd.f32 %v6771, 1.0
      %v6888 = vadd.f32 %v6773, 1.0
      %v6889 = vadd.f32 %v6775, 1.0
      %v6890 = vadd.f32 %v6777, 1.0
      %v6891 = vadd.f32 %v6779, 1.0
      %v6892 = vadd.f32 %v6781, 1.0
      %v6893 = vadd.f32 %v6783, 1.0
      %v6894 = vadd.f32 %v6785, 1.0
      %v6895 = vadd.f32 %v6787, 1.0
      %v6896 = vadd.f32 %v6789, 1.0
      %v6897 = vadd.f32 %v6791, 1.0
      %v6898 = vadd.f32 %v6793, 1.0
      %v6899 = vadd.f32 %v6795, 1.0
      %v6900 = vadd.f32 %v6797, 1.0
      %v6901 = vadd.f32 %v6799, 1.0
      %v6902 = vadd.f32 %v6801, 1.0
      %v6903 = vadd.f32 %v6803, 1.0
      %v6904 = vadd.f32 %v6805, 1.0
      %v6905 = vadd.f32 %v6807, 1.0
      %v6906 = vadd.f32 %v6809, 1.0
      %v6907 = vadd.f32 %v6811, 1.0
      %v6908 = vadd.f32 %v6813, 1.0
      %v6909 = vadd.f32 %v6815, 1.0
      %v6910 = vadd.f32 %v6817, 1.0
      %v6911 = vadd.f32 %v6819, 1.0
      %v6912 = vadd.f32 %v6821, 1.0
      %v6913 = vadd.f32 %v6823, 1.0
      %v6914 = vadd.f32 %v6825, 1.0
      %v6915 = vadd.f32 %v6827, 1.0
      %v6916 = vadd.f32 %v6829, 1.0
      %v6917 = vadd.f32 %v6831, 1.0
      %v6918 = vadd.f32 %v6833, 1.0
      %v6919 = vadd.f32 %v6835, 1.0
      %v6920 = vadd.f32 %v6837, 1.0
      %v6921 = vadd.f32 %v6839, 1.0
      %v6922 = vadd.f32 %v6841, 1.0
      %v6923 = vadd.f32 %v6843, 1.0
      %v6924 = vadd.f32 %v6845, 1.0
      %v6925 = vadd.f32 %v6847, 1.0
      %v6926 = vadd.f32 %v6849, 1.0
      %v6927 = vadd.f32 %v6851, 1.0
      %v6928 = vadd.f32 %v6853, 1.0
      %v6929 = vadd.f32 %v6855, 1.0
      %v6930 = vadd.f32 %v6857, 1.0
      %v6931 = vadd.f32 %v6859, 1.0
      %v6932 = vadd.f32 %v6861, 1.0
      %v6933 = vadd.f32 %v6863, 1.0
      %v6934 = vadd.f32 %v6865, 1.0
      %v6935 = vadd.f32 %v6867, 1.0
      %v6936 = vadd.f32 %v6869, 1.0
      %v6937 = vadd.f32 %v6871, 1.0
      %v6938 = vadd.f32 %v6873, 1.0
      %v6939 = vadd.f32 %v6875, 1.0
      %v6940 = vrcp.pop %v6876
      %v6941 = vmul.f32 %v6876, %v6940
      %v6942 = vsub.f32 1.0, %v6941
      %v6943 = vmul.f32 %v6940, %v6942
      %v6944 = vadd.f32 %v6940, %v6943
      %vm6945 = vweird.f32 %v6876
      %vm6946 = vweird.f32 %v6940
      %vm6947 = vmor %vm6945, %vm6946
      %v6948 = vsel %vm6947, %v6940, %v6944
      %v6949 = vand.u32 2147483647, %v6876
      %vm6950 = vcmp.eq.f32.partialorder %v6949, 8.507059e+37
      %v6951 = vand.u32 %v6876, 2147483648
      %v6952 = vor.u32 1.1754944e-38, %v6951
      %v6953 = vsel %vm6950, %v6952, %v6948
      %v6954 = vmul.f32 1.0, %v6953
      %v6955 = vrcp.pop %v6877
      %v6956 = vmul.f32 %v6877, %v6955
      %v6957 = vsub.f32 1.0, %v6956
      %v6958 = vmul.f32 %v6955, %v6957
      %v6959 = vadd.f32 %v6955, %v6958
      %vm6960 = vweird.f32 %v6877
      %vm6961 = vweird.f32 %v6955
      %vm6962 = vmor %vm6960, %vm6961
      %v6963 = vsel %vm6962, %v6955, %v6959
      %v6964 = vand.u32 2147483647, %v6877
      %vm6965 = vcmp.eq.f32.partialorder %v6964, 8.507059e+37
      %v6966 = vand.u32 %v6877, 2147483648
      %v6967 = vor.u32 1.1754944e-38, %v6966
      %v6968 = vsel %vm6965, %v6967, %v6963
      %v6969 = vmul.f32 1.0, %v6968
      %v6970 = vrcp.pop %v6878
      %v6971 = vmul.f32 %v6878, %v6970
      %v6972 = vsub.f32 1.0, %v6971
      %v6973 = vmul.f32 %v6970, %v6972
      %v6974 = vadd.f32 %v6970, %v6973
      %vm6975 = vweird.f32 %v6878
      %vm6976 = vweird.f32 %v6970
      %vm6977 = vmor %vm6975, %vm6976
      %v6978 = vsel %vm6977, %v6970, %v6974
      %v6979 = vand.u32 2147483647, %v6878
      %vm6980 = vcmp.eq.f32.partialorder %v6979, 8.507059e+37
      %v6981 = vand.u32 %v6878, 2147483648
      %v6982 = vor.u32 1.1754944e-38, %v6981
      %v6983 = vsel %vm6980, %v6982, %v6978
      %v6984 = vmul.f32 1.0, %v6983
      %v6985 = vrcp.pop %v6879
      %v6986 = vmul.f32 %v6879, %v6985
      %v6987 = vsub.f32 1.0, %v6986
      %v6988 = vmul.f32 %v6985, %v6987
      %v6989 = vadd.f32 %v6985, %v6988
      %vm6990 = vweird.f32 %v6879
      %vm6991 = vweird.f32 %v6985
      %vm6992 = vmor %vm6990, %vm6991
      %v6993 = vsel %vm6992, %v6985, %v6989
      %v6994 = vand.u32 2147483647, %v6879
      %vm6995 = vcmp.eq.f32.partialorder %v6994, 8.507059e+37
      %v6996 = vand.u32 %v6879, 2147483648
      %v6997 = vor.u32 1.1754944e-38, %v6996
      %v6998 = vsel %vm6995, %v6997, %v6993
      %v6999 = vmul.f32 1.0, %v6998
      %v7000 = vrcp.pop %v6880
      %v7001 = vmul.f32 %v6880, %v7000
      %v7002 = vsub.f32 1.0, %v7001
      %v7003 = vmul.f32 %v7000, %v7002
      %v7004 = vadd.f32 %v7000, %v7003
      %vm7005 = vweird.f32 %v6880
      %vm7006 = vweird.f32 %v7000
      %vm7007 = vmor %vm7005, %vm7006
      %v7008 = vsel %vm7007, %v7000, %v7004
      %v7009 = vand.u32 2147483647, %v6880
      %vm7010 = vcmp.eq.f32.partialorder %v7009, 8.507059e+37
      %v7011 = vand.u32 %v6880, 2147483648
      %v7012 = vor.u32 1.1754944e-38, %v7011
      %v7013 = vsel %vm7010, %v7012, %v7008
      %v7014 = vmul.f32 1.0, %v7013
      %v7015 = vrcp.pop %v6881
      %v7016 = vmul.f32 %v6881, %v7015
      %v7017 = vsub.f32 1.0, %v7016
      %v7018 = vmul.f32 %v7015, %v7017
      %v7019 = vadd.f32 %v7015, %v7018
      %vm7020 = vweird.f32 %v6881
      %vm7021 = vweird.f32 %v7015
      %vm7022 = vmor %vm7020, %vm7021
      %v7023 = vsel %vm7022, %v7015, %v7019
      %v7024 = vand.u32 2147483647, %v6881
      %vm7025 = vcmp.eq.f32.partialorder %v7024, 8.507059e+37
      %v7026 = vand.u32 %v6881, 2147483648
      %v7027 = vor.u32 1.1754944e-38, %v7026
      %v7028 = vsel %vm7025, %v7027, %v7023
      %v7029 = vmul.f32 1.0, %v7028
      %v7030 = vrcp.pop %v6882
      %v7031 = vmul.f32 %v6882, %v7030
      %v7032 = vsub.f32 1.0, %v7031
      %v7033 = vmul.f32 %v7030, %v7032
      %v7034 = vadd.f32 %v7030, %v7033
      %vm7035 = vweird.f32 %v6882
      %vm7036 = vweird.f32 %v7030
      %vm7037 = vmor %vm7035, %vm7036
      %v7038 = vsel %vm7037, %v7030, %v7034
      %v7039 = vand.u32 2147483647, %v6882
      %vm7040 = vcmp.eq.f32.partialorder %v7039, 8.507059e+37
      %v7041 = vand.u32 %v6882, 2147483648
      %v7042 = vor.u32 1.1754944e-38, %v7041
      %v7043 = vsel %vm7040, %v7042, %v7038
      %v7044 = vmul.f32 1.0, %v7043
      %v7045 = vrcp.pop %v6883
      %v7046 = vmul.f32 %v6883, %v7045
      %v7047 = vsub.f32 1.0, %v7046
      %v7048 = vmul.f32 %v7045, %v7047
      %v7049 = vadd.f32 %v7045, %v7048
      %vm7050 = vweird.f32 %v6883
      %vm7051 = vweird.f32 %v7045
      %vm7052 = vmor %vm7050, %vm7051
      %v7053 = vsel %vm7052, %v7045, %v7049
      %v7054 = vand.u32 2147483647, %v6883
      %vm7055 = vcmp.eq.f32.partialorder %v7054, 8.507059e+37
      %v7056 = vand.u32 %v6883, 2147483648
      %v7057 = vor.u32 1.1754944e-38, %v7056
      %v7058 = vsel %vm7055, %v7057, %v7053
      %v7059 = vmul.f32 1.0, %v7058
      %v7060 = vrcp.pop %v6884
      %v7061 = vmul.f32 %v6884, %v7060
      %v7062 = vsub.f32 1.0, %v7061
      %v7063 = vmul.f32 %v7060, %v7062
      %v7064 = vadd.f32 %v7060, %v7063
      %vm7065 = vweird.f32 %v6884
      %vm7066 = vweird.f32 %v7060
      %vm7067 = vmor %vm7065, %vm7066
      %v7068 = vsel %vm7067, %v7060, %v7064
      %v7069 = vand.u32 2147483647, %v6884
      %vm7070 = vcmp.eq.f32.partialorder %v7069, 8.507059e+37
      %v7071 = vand.u32 %v6884, 2147483648
      %v7072 = vor.u32 1.1754944e-38, %v7071
      %v7073 = vsel %vm7070, %v7072, %v7068
      %v7074 = vmul.f32 1.0, %v7073
      %v7075 = vrcp.pop %v6885
      %v7076 = vmul.f32 %v6885, %v7075
      %v7077 = vsub.f32 1.0, %v7076
      %v7078 = vmul.f32 %v7075, %v7077
      %v7079 = vadd.f32 %v7075, %v7078
      %vm7080 = vweird.f32 %v6885
      %vm7081 = vweird.f32 %v7075
      %vm7082 = vmor %vm7080, %vm7081
      %v7083 = vsel %vm7082, %v7075, %v7079
      %v7084 = vand.u32 2147483647, %v6885
      %vm7085 = vcmp.eq.f32.partialorder %v7084, 8.507059e+37
      %v7086 = vand.u32 %v6885, 2147483648
      %v7087 = vor.u32 1.1754944e-38, %v7086
      %v7088 = vsel %vm7085, %v7087, %v7083
      %v7089 = vmul.f32 1.0, %v7088
      %v7090 = vrcp.pop %v6886
      %v7091 = vmul.f32 %v6886, %v7090
      %v7092 = vsub.f32 1.0, %v7091
      %v7093 = vmul.f32 %v7090, %v7092
      %v7094 = vadd.f32 %v7090, %v7093
      %vm7095 = vweird.f32 %v6886
      %vm7096 = vweird.f32 %v7090
      %vm7097 = vmor %vm7095, %vm7096
      %v7098 = vsel %vm7097, %v7090, %v7094
      %v7099 = vand.u32 2147483647, %v6886
      %vm7100 = vcmp.eq.f32.partialorder %v7099, 8.507059e+37
      %v7101 = vand.u32 %v6886, 2147483648
      %v7102 = vor.u32 1.1754944e-38, %v7101
      %v7103 = vsel %vm7100, %v7102, %v7098
      %v7104 = vmul.f32 1.0, %v7103
      %v7105 = vrcp.pop %v6887
      %v7106 = vmul.f32 %v6887, %v7105
      %v7107 = vsub.f32 1.0, %v7106
      %v7108 = vmul.f32 %v7105, %v7107
      %v7109 = vadd.f32 %v7105, %v7108
      %vm7110 = vweird.f32 %v6887
      %vm7111 = vweird.f32 %v7105
      %vm7112 = vmor %vm7110, %vm7111
      %v7113 = vsel %vm7112, %v7105, %v7109
      %v7114 = vand.u32 2147483647, %v6887
      %vm7115 = vcmp.eq.f32.partialorder %v7114, 8.507059e+37
      %v7116 = vand.u32 %v6887, 2147483648
      %v7117 = vor.u32 1.1754944e-38, %v7116
      %v7118 = vsel %vm7115, %v7117, %v7113
      %v7119 = vmul.f32 1.0, %v7118
      %v7120 = vrcp.pop %v6888
      %v7121 = vmul.f32 %v6888, %v7120
      %v7122 = vsub.f32 1.0, %v7121
      %v7123 = vmul.f32 %v7120, %v7122
      %v7124 = vadd.f32 %v7120, %v7123
      %vm7125 = vweird.f32 %v6888
      %vm7126 = vweird.f32 %v7120
      %vm7127 = vmor %vm7125, %vm7126
      %v7128 = vsel %vm7127, %v7120, %v7124
      %v7129 = vand.u32 2147483647, %v6888
      %vm7130 = vcmp.eq.f32.partialorder %v7129, 8.507059e+37
      %v7131 = vand.u32 %v6888, 2147483648
      %v7132 = vor.u32 1.1754944e-38, %v7131
      %v7133 = vsel %vm7130, %v7132, %v7128
      %v7134 = vmul.f32 1.0, %v7133
      %v7135 = vrcp.pop %v6889
      %v7136 = vmul.f32 %v6889, %v7135
      %v7137 = vsub.f32 1.0, %v7136
      %v7138 = vmul.f32 %v7135, %v7137
      %v7139 = vadd.f32 %v7135, %v7138
      %vm7140 = vweird.f32 %v6889
      %vm7141 = vweird.f32 %v7135
      %vm7142 = vmor %vm7140, %vm7141
      %v7143 = vsel %vm7142, %v7135, %v7139
      %v7144 = vand.u32 2147483647, %v6889
      %vm7145 = vcmp.eq.f32.partialorder %v7144, 8.507059e+37
      %v7146 = vand.u32 %v6889, 2147483648
      %v7147 = vor.u32 1.1754944e-38, %v7146
      %v7148 = vsel %vm7145, %v7147, %v7143
      %v7149 = vmul.f32 1.0, %v7148
      %v7150 = vrcp.pop %v6890
      %v7151 = vmul.f32 %v6890, %v7150
      %v7152 = vsub.f32 1.0, %v7151
      %v7153 = vmul.f32 %v7150, %v7152
      %v7154 = vadd.f32 %v7150, %v7153
      %vm7155 = vweird.f32 %v6890
      %vm7156 = vweird.f32 %v7150
      %vm7157 = vmor %vm7155, %vm7156
      %v7158 = vsel %vm7157, %v7150, %v7154
      %v7159 = vand.u32 2147483647, %v6890
      %vm7160 = vcmp.eq.f32.partialorder %v7159, 8.507059e+37
      %v7161 = vand.u32 %v6890, 2147483648
      %v7162 = vor.u32 1.1754944e-38, %v7161
      %v7163 = vsel %vm7160, %v7162, %v7158
      %v7164 = vmul.f32 1.0, %v7163
      %v7165 = vrcp.pop %v6891
      %v7166 = vmul.f32 %v6891, %v7165
      %v7167 = vsub.f32 1.0, %v7166
      %v7168 = vmul.f32 %v7165, %v7167
      %v7169 = vadd.f32 %v7165, %v7168
      %vm7170 = vweird.f32 %v6891
      %vm7171 = vweird.f32 %v7165
      %vm7172 = vmor %vm7170, %vm7171
      %v7173 = vsel %vm7172, %v7165, %v7169
      %v7174 = vand.u32 2147483647, %v6891
      %vm7175 = vcmp.eq.f32.partialorder %v7174, 8.507059e+37
      %v7176 = vand.u32 %v6891, 2147483648
      %v7177 = vor.u32 1.1754944e-38, %v7176
      %v7178 = vsel %vm7175, %v7177, %v7173
      %v7179 = vmul.f32 1.0, %v7178
      %v7180 = vrcp.pop %v6892
      %v7181 = vmul.f32 %v6892, %v7180
      %v7182 = vsub.f32 1.0, %v7181
      %v7183 = vmul.f32 %v7180, %v7182
      %v7184 = vadd.f32 %v7180, %v7183
      %vm7185 = vweird.f32 %v6892
      %vm7186 = vweird.f32 %v7180
      %vm7187 = vmor %vm7185, %vm7186
      %v7188 = vsel %vm7187, %v7180, %v7184
      %v7189 = vand.u32 2147483647, %v6892
      %vm7190 = vcmp.eq.f32.partialorder %v7189, 8.507059e+37
      %v7191 = vand.u32 %v6892, 2147483648
      %v7192 = vor.u32 1.1754944e-38, %v7191
      %v7193 = vsel %vm7190, %v7192, %v7188
      %v7194 = vmul.f32 1.0, %v7193
      %v7195 = vrcp.pop %v6893
      %v7196 = vmul.f32 %v6893, %v7195
      %v7197 = vsub.f32 1.0, %v7196
      %v7198 = vmul.f32 %v7195, %v7197
      %v7199 = vadd.f32 %v7195, %v7198
      %vm7200 = vweird.f32 %v6893
      %vm7201 = vweird.f32 %v7195
      %vm7202 = vmor %vm7200, %vm7201
      %v7203 = vsel %vm7202, %v7195, %v7199
      %v7204 = vand.u32 2147483647, %v6893
      %vm7205 = vcmp.eq.f32.partialorder %v7204, 8.507059e+37
      %v7206 = vand.u32 %v6893, 2147483648
      %v7207 = vor.u32 1.1754944e-38, %v7206
      %v7208 = vsel %vm7205, %v7207, %v7203
      %v7209 = vmul.f32 1.0, %v7208
      %v7210 = vrcp.pop %v6894
      %v7211 = vmul.f32 %v6894, %v7210
      %v7212 = vsub.f32 1.0, %v7211
      %v7213 = vmul.f32 %v7210, %v7212
      %v7214 = vadd.f32 %v7210, %v7213
      %vm7215 = vweird.f32 %v6894
      %vm7216 = vweird.f32 %v7210
      %vm7217 = vmor %vm7215, %vm7216
      %v7218 = vsel %vm7217, %v7210, %v7214
      %v7219 = vand.u32 2147483647, %v6894
      %vm7220 = vcmp.eq.f32.partialorder %v7219, 8.507059e+37
      %v7221 = vand.u32 %v6894, 2147483648
      %v7222 = vor.u32 1.1754944e-38, %v7221
      %v7223 = vsel %vm7220, %v7222, %v7218
      %v7224 = vmul.f32 1.0, %v7223
      %v7225 = vrcp.pop %v6895
      %v7226 = vmul.f32 %v6895, %v7225
      %v7227 = vsub.f32 1.0, %v7226
      %v7228 = vmul.f32 %v7225, %v7227
      %v7229 = vadd.f32 %v7225, %v7228
      %vm7230 = vweird.f32 %v6895
      %vm7231 = vweird.f32 %v7225
      %vm7232 = vmor %vm7230, %vm7231
      %v7233 = vsel %vm7232, %v7225, %v7229
      %v7234 = vand.u32 2147483647, %v6895
      %vm7235 = vcmp.eq.f32.partialorder %v7234, 8.507059e+37
      %v7236 = vand.u32 %v6895, 2147483648
      %v7237 = vor.u32 1.1754944e-38, %v7236
      %v7238 = vsel %vm7235, %v7237, %v7233
      %v7239 = vmul.f32 1.0, %v7238
      %v7240 = vrcp.pop %v6896
      %v7241 = vmul.f32 %v6896, %v7240
      %v7242 = vsub.f32 1.0, %v7241
      %v7243 = vmul.f32 %v7240, %v7242
      %v7244 = vadd.f32 %v7240, %v7243
      %vm7245 = vweird.f32 %v6896
      %vm7246 = vweird.f32 %v7240
      %vm7247 = vmor %vm7245, %vm7246
      %v7248 = vsel %vm7247, %v7240, %v7244
      %v7249 = vand.u32 2147483647, %v6896
      %vm7250 = vcmp.eq.f32.partialorder %v7249, 8.507059e+37
      %v7251 = vand.u32 %v6896, 2147483648
      %v7252 = vor.u32 1.1754944e-38, %v7251
      %v7253 = vsel %vm7250, %v7252, %v7248
      %v7254 = vmul.f32 1.0, %v7253
      %v7255 = vrcp.pop %v6897
      %v7256 = vmul.f32 %v6897, %v7255
      %v7257 = vsub.f32 1.0, %v7256
      %v7258 = vmul.f32 %v7255, %v7257
      %v7259 = vadd.f32 %v7255, %v7258
      %vm7260 = vweird.f32 %v6897
      %vm7261 = vweird.f32 %v7255
      %vm7262 = vmor %vm7260, %vm7261
      %v7263 = vsel %vm7262, %v7255, %v7259
      %v7264 = vand.u32 2147483647, %v6897
      %vm7265 = vcmp.eq.f32.partialorder %v7264, 8.507059e+37
      %v7266 = vand.u32 %v6897, 2147483648
      %v7267 = vor.u32 1.1754944e-38, %v7266
      %v7268 = vsel %vm7265, %v7267, %v7263
      %v7269 = vmul.f32 1.0, %v7268
      %v7270 = vrcp.pop %v6898
      %v7271 = vmul.f32 %v6898, %v7270
      %v7272 = vsub.f32 1.0, %v7271
      %v7273 = vmul.f32 %v7270, %v7272
      %v7274 = vadd.f32 %v7270, %v7273
      %vm7275 = vweird.f32 %v6898
      %vm7276 = vweird.f32 %v7270
      %vm7277 = vmor %vm7275, %vm7276
      %v7278 = vsel %vm7277, %v7270, %v7274
      %v7279 = vand.u32 2147483647, %v6898
      %vm7280 = vcmp.eq.f32.partialorder %v7279, 8.507059e+37
      %v7281 = vand.u32 %v6898, 2147483648
      %v7282 = vor.u32 1.1754944e-38, %v7281
      %v7283 = vsel %vm7280, %v7282, %v7278
      %v7284 = vmul.f32 1.0, %v7283
      %v7285 = vrcp.pop %v6899
      %v7286 = vmul.f32 %v6899, %v7285
      %v7287 = vsub.f32 1.0, %v7286
      %v7288 = vmul.f32 %v7285, %v7287
      %v7289 = vadd.f32 %v7285, %v7288
      %vm7290 = vweird.f32 %v6899
      %vm7291 = vweird.f32 %v7285
      %vm7292 = vmor %vm7290, %vm7291
      %v7293 = vsel %vm7292, %v7285, %v7289
      %v7294 = vand.u32 2147483647, %v6899
      %vm7295 = vcmp.eq.f32.partialorder %v7294, 8.507059e+37
      %v7296 = vand.u32 %v6899, 2147483648
      %v7297 = vor.u32 1.1754944e-38, %v7296
      %v7298 = vsel %vm7295, %v7297, %v7293
      %v7299 = vmul.f32 1.0, %v7298
      %v7300 = vrcp.pop %v6900
      %v7301 = vmul.f32 %v6900, %v7300
      %v7302 = vsub.f32 1.0, %v7301
      %v7303 = vmul.f32 %v7300, %v7302
      %v7304 = vadd.f32 %v7300, %v7303
      %vm7305 = vweird.f32 %v6900
      %vm7306 = vweird.f32 %v7300
      %vm7307 = vmor %vm7305, %vm7306
      %v7308 = vsel %vm7307, %v7300, %v7304
      %v7309 = vand.u32 2147483647, %v6900
      %vm7310 = vcmp.eq.f32.partialorder %v7309, 8.507059e+37
      %v7311 = vand.u32 %v6900, 2147483648
      %v7312 = vor.u32 1.1754944e-38, %v7311
      %v7313 = vsel %vm7310, %v7312, %v7308
      %v7314 = vmul.f32 1.0, %v7313
      %v7315 = vrcp.pop %v6901
      %v7316 = vmul.f32 %v6901, %v7315
      %v7317 = vsub.f32 1.0, %v7316
      %v7318 = vmul.f32 %v7315, %v7317
      %v7319 = vadd.f32 %v7315, %v7318
      %vm7320 = vweird.f32 %v6901
      %vm7321 = vweird.f32 %v7315
      %vm7322 = vmor %vm7320, %vm7321
      %v7323 = vsel %vm7322, %v7315, %v7319
      %v7324 = vand.u32 2147483647, %v6901
      %vm7325 = vcmp.eq.f32.partialorder %v7324, 8.507059e+37
      %v7326 = vand.u32 %v6901, 2147483648
      %v7327 = vor.u32 1.1754944e-38, %v7326
      %v7328 = vsel %vm7325, %v7327, %v7323
      %v7329 = vmul.f32 1.0, %v7328
      %v7330 = vrcp.pop %v6902
      %v7331 = vmul.f32 %v6902, %v7330
      %v7332 = vsub.f32 1.0, %v7331
      %v7333 = vmul.f32 %v7330, %v7332
      %v7334 = vadd.f32 %v7330, %v7333
      %vm7335 = vweird.f32 %v6902
      %vm7336 = vweird.f32 %v7330
      %vm7337 = vmor %vm7335, %vm7336
      %v7338 = vsel %vm7337, %v7330, %v7334
      %v7339 = vand.u32 2147483647, %v6902
      %vm7340 = vcmp.eq.f32.partialorder %v7339, 8.507059e+37
      %v7341 = vand.u32 %v6902, 2147483648
      %v7342 = vor.u32 1.1754944e-38, %v7341
      %v7343 = vsel %vm7340, %v7342, %v7338
      %v7344 = vmul.f32 1.0, %v7343
      %v7345 = vrcp.pop %v6903
      %v7346 = vmul.f32 %v6903, %v7345
      %v7347 = vsub.f32 1.0, %v7346
      %v7348 = vmul.f32 %v7345, %v7347
      %v7349 = vadd.f32 %v7345, %v7348
      %vm7350 = vweird.f32 %v6903
      %vm7351 = vweird.f32 %v7345
      %vm7352 = vmor %vm7350, %vm7351
      %v7353 = vsel %vm7352, %v7345, %v7349
      %v7354 = vand.u32 2147483647, %v6903
      %vm7355 = vcmp.eq.f32.partialorder %v7354, 8.507059e+37
      %v7356 = vand.u32 %v6903, 2147483648
      %v7357 = vor.u32 1.1754944e-38, %v7356
      %v7358 = vsel %vm7355, %v7357, %v7353
      %v7359 = vmul.f32 1.0, %v7358
      %v7360 = vrcp.pop %v6904
      %v7361 = vmul.f32 %v6904, %v7360
      %v7362 = vsub.f32 1.0, %v7361
      %v7363 = vmul.f32 %v7360, %v7362
      %v7364 = vadd.f32 %v7360, %v7363
      %vm7365 = vweird.f32 %v6904
      %vm7366 = vweird.f32 %v7360
      %vm7367 = vmor %vm7365, %vm7366
      %v7368 = vsel %vm7367, %v7360, %v7364
      %v7369 = vand.u32 2147483647, %v6904
      %vm7370 = vcmp.eq.f32.partialorder %v7369, 8.507059e+37
      %v7371 = vand.u32 %v6904, 2147483648
      %v7372 = vor.u32 1.1754944e-38, %v7371
      %v7373 = vsel %vm7370, %v7372, %v7368
      %v7374 = vmul.f32 1.0, %v7373
      %v7375 = vrcp.pop %v6905
      %v7376 = vmul.f32 %v6905, %v7375
      %v7377 = vsub.f32 1.0, %v7376
      %v7378 = vmul.f32 %v7375, %v7377
      %v7379 = vadd.f32 %v7375, %v7378
      %vm7380 = vweird.f32 %v6905
      %vm7381 = vweird.f32 %v7375
      %vm7382 = vmor %vm7380, %vm7381
      %v7383 = vsel %vm7382, %v7375, %v7379
      %v7384 = vand.u32 2147483647, %v6905
      %vm7385 = vcmp.eq.f32.partialorder %v7384, 8.507059e+37
      %v7386 = vand.u32 %v6905, 2147483648
      %v7387 = vor.u32 1.1754944e-38, %v7386
      %v7388 = vsel %vm7385, %v7387, %v7383
      %v7389 = vmul.f32 1.0, %v7388
      %v7390 = vrcp.pop %v6906
      %v7391 = vmul.f32 %v6906, %v7390
      %v7392 = vsub.f32 1.0, %v7391
      %v7393 = vmul.f32 %v7390, %v7392
      %v7394 = vadd.f32 %v7390, %v7393
      %vm7395 = vweird.f32 %v6906
      %vm7396 = vweird.f32 %v7390
      %vm7397 = vmor %vm7395, %vm7396
      %v7398 = vsel %vm7397, %v7390, %v7394
      %v7399 = vand.u32 2147483647, %v6906
      %vm7400 = vcmp.eq.f32.partialorder %v7399, 8.507059e+37
      %v7401 = vand.u32 %v6906, 2147483648
      %v7402 = vor.u32 1.1754944e-38, %v7401
      %v7403 = vsel %vm7400, %v7402, %v7398
      %v7404 = vmul.f32 1.0, %v7403
      %v7405 = vrcp.pop %v6907
      %v7406 = vmul.f32 %v6907, %v7405
      %v7407 = vsub.f32 1.0, %v7406
      %v7408 = vmul.f32 %v7405, %v7407
      %v7409 = vadd.f32 %v7405, %v7408
      %vm7410 = vweird.f32 %v6907
      %vm7411 = vweird.f32 %v7405
      %vm7412 = vmor %vm7410, %vm7411
      %v7413 = vsel %vm7412, %v7405, %v7409
      %v7414 = vand.u32 2147483647, %v6907
      %vm7415 = vcmp.eq.f32.partialorder %v7414, 8.507059e+37
      %v7416 = vand.u32 %v6907, 2147483648
      %v7417 = vor.u32 1.1754944e-38, %v7416
      %v7418 = vsel %vm7415, %v7417, %v7413
      %v7419 = vmul.f32 1.0, %v7418
      %v7420 = vrcp.pop %v6908
      %v7421 = vmul.f32 %v6908, %v7420
      %v7422 = vsub.f32 1.0, %v7421
      %v7423 = vmul.f32 %v7420, %v7422
      %v7424 = vadd.f32 %v7420, %v7423
      %vm7425 = vweird.f32 %v6908
      %vm7426 = vweird.f32 %v7420
      %vm7427 = vmor %vm7425, %vm7426
      %v7428 = vsel %vm7427, %v7420, %v7424
      %v7429 = vand.u32 2147483647, %v6908
      %vm7430 = vcmp.eq.f32.partialorder %v7429, 8.507059e+37
      %v7431 = vand.u32 %v6908, 2147483648
      %v7432 = vor.u32 1.1754944e-38, %v7431
      %v7433 = vsel %vm7430, %v7432, %v7428
      %v7434 = vmul.f32 1.0, %v7433
      %v7435 = vrcp.pop %v6909
      %v7436 = vmul.f32 %v6909, %v7435
      %v7437 = vsub.f32 1.0, %v7436
      %v7438 = vmul.f32 %v7435, %v7437
      %v7439 = vadd.f32 %v7435, %v7438
      %vm7440 = vweird.f32 %v6909
      %vm7441 = vweird.f32 %v7435
      %vm7442 = vmor %vm7440, %vm7441
      %v7443 = vsel %vm7442, %v7435, %v7439
      %v7444 = vand.u32 2147483647, %v6909
      %vm7445 = vcmp.eq.f32.partialorder %v7444, 8.507059e+37
      %v7446 = vand.u32 %v6909, 2147483648
      %v7447 = vor.u32 1.1754944e-38, %v7446
      %v7448 = vsel %vm7445, %v7447, %v7443
      %v7449 = vmul.f32 1.0, %v7448
      %v7450 = vrcp.pop %v6910
      %v7451 = vmul.f32 %v6910, %v7450
      %v7452 = vsub.f32 1.0, %v7451
      %v7453 = vmul.f32 %v7450, %v7452
      %v7454 = vadd.f32 %v7450, %v7453
      %vm7455 = vweird.f32 %v6910
      %vm7456 = vweird.f32 %v7450
      %vm7457 = vmor %vm7455, %vm7456
      %v7458 = vsel %vm7457, %v7450, %v7454
      %v7459 = vand.u32 2147483647, %v6910
      %vm7460 = vcmp.eq.f32.partialorder %v7459, 8.507059e+37
      %v7461 = vand.u32 %v6910, 2147483648
      %v7462 = vor.u32 1.1754944e-38, %v7461
      %v7463 = vsel %vm7460, %v7462, %v7458
      %v7464 = vmul.f32 1.0, %v7463
      %v7465 = vrcp.pop %v6911
      %v7466 = vmul.f32 %v6911, %v7465
      %v7467 = vsub.f32 1.0, %v7466
      %v7468 = vmul.f32 %v7465, %v7467
      %v7469 = vadd.f32 %v7465, %v7468
      %vm7470 = vweird.f32 %v6911
      %vm7471 = vweird.f32 %v7465
      %vm7472 = vmor %vm7470, %vm7471
      %v7473 = vsel %vm7472, %v7465, %v7469
      %v7474 = vand.u32 2147483647, %v6911
      %vm7475 = vcmp.eq.f32.partialorder %v7474, 8.507059e+37
      %v7476 = vand.u32 %v6911, 2147483648
      %v7477 = vor.u32 1.1754944e-38, %v7476
      %v7478 = vsel %vm7475, %v7477, %v7473
      %v7479 = vmul.f32 1.0, %v7478
      %v7480 = vrcp.pop %v6912
      %v7481 = vmul.f32 %v6912, %v7480
      %v7482 = vsub.f32 1.0, %v7481
      %v7483 = vmul.f32 %v7480, %v7482
      %v7484 = vadd.f32 %v7480, %v7483
      %vm7485 = vweird.f32 %v6912
      %vm7486 = vweird.f32 %v7480
      %vm7487 = vmor %vm7485, %vm7486
      %v7488 = vsel %vm7487, %v7480, %v7484
      %v7489 = vand.u32 2147483647, %v6912
      %vm7490 = vcmp.eq.f32.partialorder %v7489, 8.507059e+37
      %v7491 = vand.u32 %v6912, 2147483648
      %v7492 = vor.u32 1.1754944e-38, %v7491
      %v7493 = vsel %vm7490, %v7492, %v7488
      %v7494 = vmul.f32 1.0, %v7493
      %v7495 = vrcp.pop %v6913
      %v7496 = vmul.f32 %v6913, %v7495
      %v7497 = vsub.f32 1.0, %v7496
      %v7498 = vmul.f32 %v7495, %v7497
      %v7499 = vadd.f32 %v7495, %v7498
      %vm7500 = vweird.f32 %v6913
      %vm7501 = vweird.f32 %v7495
      %vm7502 = vmor %vm7500, %vm7501
      %v7503 = vsel %vm7502, %v7495, %v7499
      %v7504 = vand.u32 2147483647, %v6913
      %vm7505 = vcmp.eq.f32.partialorder %v7504, 8.507059e+37
      %v7506 = vand.u32 %v6913, 2147483648
      %v7507 = vor.u32 1.1754944e-38, %v7506
      %v7508 = vsel %vm7505, %v7507, %v7503
      %v7509 = vmul.f32 1.0, %v7508
      %v7510 = vrcp.pop %v6914
      %v7511 = vmul.f32 %v6914, %v7510
      %v7512 = vsub.f32 1.0, %v7511
      %v7513 = vmul.f32 %v7510, %v7512
      %v7514 = vadd.f32 %v7510, %v7513
      %vm7515 = vweird.f32 %v6914
      %vm7516 = vweird.f32 %v7510
      %vm7517 = vmor %vm7515, %vm7516
      %v7518 = vsel %vm7517, %v7510, %v7514
      %v7519 = vand.u32 2147483647, %v6914
      %vm7520 = vcmp.eq.f32.partialorder %v7519, 8.507059e+37
      %v7521 = vand.u32 %v6914, 2147483648
      %v7522 = vor.u32 1.1754944e-38, %v7521
      %v7523 = vsel %vm7520, %v7522, %v7518
      %v7524 = vmul.f32 1.0, %v7523
      %v7525 = vrcp.pop %v6915
      %v7526 = vmul.f32 %v6915, %v7525
      %v7527 = vsub.f32 1.0, %v7526
      %v7528 = vmul.f32 %v7525, %v7527
      %v7529 = vadd.f32 %v7525, %v7528
      %vm7530 = vweird.f32 %v6915
      %vm7531 = vweird.f32 %v7525
      %vm7532 = vmor %vm7530, %vm7531
      %v7533 = vsel %vm7532, %v7525, %v7529
      %v7534 = vand.u32 2147483647, %v6915
      %vm7535 = vcmp.eq.f32.partialorder %v7534, 8.507059e+37
      %v7536 = vand.u32 %v6915, 2147483648
      %v7537 = vor.u32 1.1754944e-38, %v7536
      %v7538 = vsel %vm7535, %v7537, %v7533
      %v7539 = vmul.f32 1.0, %v7538
      %v7540 = vrcp.pop %v6916
      %v7541 = vmul.f32 %v6916, %v7540
      %v7542 = vsub.f32 1.0, %v7541
      %v7543 = vmul.f32 %v7540, %v7542
      %v7544 = vadd.f32 %v7540, %v7543
      %vm7545 = vweird.f32 %v6916
      %vm7546 = vweird.f32 %v7540
      %vm7547 = vmor %vm7545, %vm7546
      %v7548 = vsel %vm7547, %v7540, %v7544
      %v7549 = vand.u32 2147483647, %v6916
      %vm7550 = vcmp.eq.f32.partialorder %v7549, 8.507059e+37
      %v7551 = vand.u32 %v6916, 2147483648
      %v7552 = vor.u32 1.1754944e-38, %v7551
      %v7553 = vsel %vm7550, %v7552, %v7548
      %v7554 = vmul.f32 1.0, %v7553
      %v7555 = vrcp.pop %v6917
      %v7556 = vmul.f32 %v6917, %v7555
      %v7557 = vsub.f32 1.0, %v7556
      %v7558 = vmul.f32 %v7555, %v7557
      %v7559 = vadd.f32 %v7555, %v7558
      %vm7560 = vweird.f32 %v6917
      %vm7561 = vweird.f32 %v7555
      %vm7562 = vmor %vm7560, %vm7561
      %v7563 = vsel %vm7562, %v7555, %v7559
      %v7564 = vand.u32 2147483647, %v6917
      %vm7565 = vcmp.eq.f32.partialorder %v7564, 8.507059e+37
      %v7566 = vand.u32 %v6917, 2147483648
      %v7567 = vor.u32 1.1754944e-38, %v7566
      %v7568 = vsel %vm7565, %v7567, %v7563
      %v7569 = vmul.f32 1.0, %v7568
      %v7570 = vrcp.pop %v6918
      %v7571 = vmul.f32 %v6918, %v7570
      %v7572 = vsub.f32 1.0, %v7571
      %v7573 = vmul.f32 %v7570, %v7572
      %v7574 = vadd.f32 %v7570, %v7573
      %vm7575 = vweird.f32 %v6918
      %vm7576 = vweird.f32 %v7570
      %vm7577 = vmor %vm7575, %vm7576
      %v7578 = vsel %vm7577, %v7570, %v7574
      %v7579 = vand.u32 2147483647, %v6918
      %vm7580 = vcmp.eq.f32.partialorder %v7579, 8.507059e+37
      %v7581 = vand.u32 %v6918, 2147483648
      %v7582 = vor.u32 1.1754944e-38, %v7581
      %v7583 = vsel %vm7580, %v7582, %v7578
      %v7584 = vmul.f32 1.0, %v7583
      %v7585 = vrcp.pop %v6919
      %v7586 = vmul.f32 %v6919, %v7585
      %v7587 = vsub.f32 1.0, %v7586
      %v7588 = vmul.f32 %v7585, %v7587
      %v7589 = vadd.f32 %v7585, %v7588
      %vm7590 = vweird.f32 %v6919
      %vm7591 = vweird.f32 %v7585
      %vm7592 = vmor %vm7590, %vm7591
      %v7593 = vsel %vm7592, %v7585, %v7589
      %v7594 = vand.u32 2147483647, %v6919
      %vm7595 = vcmp.eq.f32.partialorder %v7594, 8.507059e+37
      %v7596 = vand.u32 %v6919, 2147483648
      %v7597 = vor.u32 1.1754944e-38, %v7596
      %v7598 = vsel %vm7595, %v7597, %v7593
      %v7599 = vmul.f32 1.0, %v7598
      %v7600 = vrcp.pop %v6920
      %v7601 = vmul.f32 %v6920, %v7600
      %v7602 = vsub.f32 1.0, %v7601
      %v7603 = vmul.f32 %v7600, %v7602
      %v7604 = vadd.f32 %v7600, %v7603
      %vm7605 = vweird.f32 %v6920
      %vm7606 = vweird.f32 %v7600
      %vm7607 = vmor %vm7605, %vm7606
      %v7608 = vsel %vm7607, %v7600, %v7604
      %v7609 = vand.u32 2147483647, %v6920
      %vm7610 = vcmp.eq.f32.partialorder %v7609, 8.507059e+37
      %v7611 = vand.u32 %v6920, 2147483648
      %v7612 = vor.u32 1.1754944e-38, %v7611
      %v7613 = vsel %vm7610, %v7612, %v7608
      %v7614 = vmul.f32 1.0, %v7613
      %v7615 = vrcp.pop %v6921
      %v7616 = vmul.f32 %v6921, %v7615
      %v7617 = vsub.f32 1.0, %v7616
      %v7618 = vmul.f32 %v7615, %v7617
      %v7619 = vadd.f32 %v7615, %v7618
      %vm7620 = vweird.f32 %v6921
      %vm7621 = vweird.f32 %v7615
      %vm7622 = vmor %vm7620, %vm7621
      %v7623 = vsel %vm7622, %v7615, %v7619
      %v7624 = vand.u32 2147483647, %v6921
      %vm7625 = vcmp.eq.f32.partialorder %v7624, 8.507059e+37
      %v7626 = vand.u32 %v6921, 2147483648
      %v7627 = vor.u32 1.1754944e-38, %v7626
      %v7628 = vsel %vm7625, %v7627, %v7623
      %v7629 = vmul.f32 1.0, %v7628
      %v7630 = vrcp.pop %v6922
      %v7631 = vmul.f32 %v6922, %v7630
      %v7632 = vsub.f32 1.0, %v7631
      %v7633 = vmul.f32 %v7630, %v7632
      %v7634 = vadd.f32 %v7630, %v7633
      %vm7635 = vweird.f32 %v6922
      %vm7636 = vweird.f32 %v7630
      %vm7637 = vmor %vm7635, %vm7636
      %v7638 = vsel %vm7637, %v7630, %v7634
      %v7639 = vand.u32 2147483647, %v6922
      %vm7640 = vcmp.eq.f32.partialorder %v7639, 8.507059e+37
      %v7641 = vand.u32 %v6922, 2147483648
      %v7642 = vor.u32 1.1754944e-38, %v7641
      %v7643 = vsel %vm7640, %v7642, %v7638
      %v7644 = vmul.f32 1.0, %v7643
      %v7645 = vrcp.pop %v6923
      %v7646 = vmul.f32 %v6923, %v7645
      %v7647 = vsub.f32 1.0, %v7646
      %v7648 = vmul.f32 %v7645, %v7647
      %v7649 = vadd.f32 %v7645, %v7648
      %vm7650 = vweird.f32 %v6923
      %vm7651 = vweird.f32 %v7645
      %vm7652 = vmor %vm7650, %vm7651
      %v7653 = vsel %vm7652, %v7645, %v7649
      %v7654 = vand.u32 2147483647, %v6923
      %vm7655 = vcmp.eq.f32.partialorder %v7654, 8.507059e+37
      %v7656 = vand.u32 %v6923, 2147483648
      %v7657 = vor.u32 1.1754944e-38, %v7656
      %v7658 = vsel %vm7655, %v7657, %v7653
      %v7659 = vmul.f32 1.0, %v7658
      %v7660 = vrcp.pop %v6924
      %v7661 = vmul.f32 %v6924, %v7660
      %v7662 = vsub.f32 1.0, %v7661
      %v7663 = vmul.f32 %v7660, %v7662
      %v7664 = vadd.f32 %v7660, %v7663
      %vm7665 = vweird.f32 %v6924
      %vm7666 = vweird.f32 %v7660
      %vm7667 = vmor %vm7665, %vm7666
      %v7668 = vsel %vm7667, %v7660, %v7664
      %v7669 = vand.u32 2147483647, %v6924
      %vm7670 = vcmp.eq.f32.partialorder %v7669, 8.507059e+37
      %v7671 = vand.u32 %v6924, 2147483648
      %v7672 = vor.u32 1.1754944e-38, %v7671
      %v7673 = vsel %vm7670, %v7672, %v7668
      %v7674 = vmul.f32 1.0, %v7673
      %v7675 = vrcp.pop %v6925
      %v7676 = vmul.f32 %v6925, %v7675
      %v7677 = vsub.f32 1.0, %v7676
      %v7678 = vmul.f32 %v7675, %v7677
      %v7679 = vadd.f32 %v7675, %v7678
      %vm7680 = vweird.f32 %v6925
      %vm7681 = vweird.f32 %v7675
      %vm7682 = vmor %vm7680, %vm7681
      %v7683 = vsel %vm7682, %v7675, %v7679
      %v7684 = vand.u32 2147483647, %v6925
      %vm7685 = vcmp.eq.f32.partialorder %v7684, 8.507059e+37
      %v7686 = vand.u32 %v6925, 2147483648
      %v7687 = vor.u32 1.1754944e-38, %v7686
      %v7688 = vsel %vm7685, %v7687, %v7683
      %v7689 = vmul.f32 1.0, %v7688
      %v7690 = vrcp.pop %v6926
      %v7691 = vmul.f32 %v6926, %v7690
      %v7692 = vsub.f32 1.0, %v7691
      %v7693 = vmul.f32 %v7690, %v7692
      %v7694 = vadd.f32 %v7690, %v7693
      %vm7695 = vweird.f32 %v6926
      %vm7696 = vweird.f32 %v7690
      %vm7697 = vmor %vm7695, %vm7696
      %v7698 = vsel %vm7697, %v7690, %v7694
      %v7699 = vand.u32 2147483647, %v6926
      %vm7700 = vcmp.eq.f32.partialorder %v7699, 8.507059e+37
      %v7701 = vand.u32 %v6926, 2147483648
      %v7702 = vor.u32 1.1754944e-38, %v7701
      %v7703 = vsel %vm7700, %v7702, %v7698
      %v7704 = vmul.f32 1.0, %v7703
      %v7705 = vrcp.pop %v6927
      %v7706 = vmul.f32 %v6927, %v7705
      %v7707 = vsub.f32 1.0, %v7706
      %v7708 = vmul.f32 %v7705, %v7707
      %v7709 = vadd.f32 %v7705, %v7708
      %vm7710 = vweird.f32 %v6927
      %vm7711 = vweird.f32 %v7705
      %vm7712 = vmor %vm7710, %vm7711
      %v7713 = vsel %vm7712, %v7705, %v7709
      %v7714 = vand.u32 2147483647, %v6927
      %vm7715 = vcmp.eq.f32.partialorder %v7714, 8.507059e+37
      %v7716 = vand.u32 %v6927, 2147483648
      %v7717 = vor.u32 1.1754944e-38, %v7716
      %v7718 = vsel %vm7715, %v7717, %v7713
      %v7719 = vmul.f32 1.0, %v7718
      %v7720 = vrcp.pop %v6928
      %v7721 = vmul.f32 %v6928, %v7720
      %v7722 = vsub.f32 1.0, %v7721
      %v7723 = vmul.f32 %v7720, %v7722
      %v7724 = vadd.f32 %v7720, %v7723
      %vm7725 = vweird.f32 %v6928
      %vm7726 = vweird.f32 %v7720
      %vm7727 = vmor %vm7725, %vm7726
      %v7728 = vsel %vm7727, %v7720, %v7724
      %v7729 = vand.u32 2147483647, %v6928
      %vm7730 = vcmp.eq.f32.partialorder %v7729, 8.507059e+37
      %v7731 = vand.u32 %v6928, 2147483648
      %v7732 = vor.u32 1.1754944e-38, %v7731
      %v7733 = vsel %vm7730, %v7732, %v7728
      %v7734 = vmul.f32 1.0, %v7733
      %v7735 = vrcp.pop %v6929
      %v7736 = vmul.f32 %v6929, %v7735
      %v7737 = vsub.f32 1.0, %v7736
      %v7738 = vmul.f32 %v7735, %v7737
      %v7739 = vadd.f32 %v7735, %v7738
      %vm7740 = vweird.f32 %v6929
      %vm7741 = vweird.f32 %v7735
      %vm7742 = vmor %vm7740, %vm7741
      %v7743 = vsel %vm7742, %v7735, %v7739
      %v7744 = vand.u32 2147483647, %v6929
      %vm7745 = vcmp.eq.f32.partialorder %v7744, 8.507059e+37
      %v7746 = vand.u32 %v6929, 2147483648
      %v7747 = vor.u32 1.1754944e-38, %v7746
      %v7748 = vsel %vm7745, %v7747, %v7743
      %v7749 = vmul.f32 1.0, %v7748
      %v7750 = vrcp.pop %v6930
      %v7751 = vmul.f32 %v6930, %v7750
      %v7752 = vsub.f32 1.0, %v7751
      %v7753 = vmul.f32 %v7750, %v7752
      %v7754 = vadd.f32 %v7750, %v7753
      %vm7755 = vweird.f32 %v6930
      %vm7756 = vweird.f32 %v7750
      %vm7757 = vmor %vm7755, %vm7756
      %v7758 = vsel %vm7757, %v7750, %v7754
      %v7759 = vand.u32 2147483647, %v6930
      %vm7760 = vcmp.eq.f32.partialorder %v7759, 8.507059e+37
      %v7761 = vand.u32 %v6930, 2147483648
      %v7762 = vor.u32 1.1754944e-38, %v7761
      %v7763 = vsel %vm7760, %v7762, %v7758
      %v7764 = vmul.f32 1.0, %v7763
      %v7765 = vrcp.pop %v6931
      %v7766 = vmul.f32 %v6931, %v7765
      %v7767 = vsub.f32 1.0, %v7766
      %v7768 = vmul.f32 %v7765, %v7767
      %v7769 = vadd.f32 %v7765, %v7768
      %vm7770 = vweird.f32 %v6931
      %vm7771 = vweird.f32 %v7765
      %vm7772 = vmor %vm7770, %vm7771
      %v7773 = vsel %vm7772, %v7765, %v7769
      %v7774 = vand.u32 2147483647, %v6931
      %vm7775 = vcmp.eq.f32.partialorder %v7774, 8.507059e+37
      %v7776 = vand.u32 %v6931, 2147483648
      %v7777 = vor.u32 1.1754944e-38, %v7776
      %v7778 = vsel %vm7775, %v7777, %v7773
      %v7779 = vmul.f32 1.0, %v7778
      %v7780 = vrcp.pop %v6932
      %v7781 = vmul.f32 %v6932, %v7780
      %v7782 = vsub.f32 1.0, %v7781
      %v7783 = vmul.f32 %v7780, %v7782
      %v7784 = vadd.f32 %v7780, %v7783
      %vm7785 = vweird.f32 %v6932
      %vm7786 = vweird.f32 %v7780
      %vm7787 = vmor %vm7785, %vm7786
      %v7788 = vsel %vm7787, %v7780, %v7784
      %v7789 = vand.u32 2147483647, %v6932
      %vm7790 = vcmp.eq.f32.partialorder %v7789, 8.507059e+37
      %v7791 = vand.u32 %v6932, 2147483648
      %v7792 = vor.u32 1.1754944e-38, %v7791
      %v7793 = vsel %vm7790, %v7792, %v7788
      %v7794 = vmul.f32 1.0, %v7793
      %v7795 = vrcp.pop %v6933
      %v7796 = vmul.f32 %v6933, %v7795
      %v7797 = vsub.f32 1.0, %v7796
      %v7798 = vmul.f32 %v7795, %v7797
      %v7799 = vadd.f32 %v7795, %v7798
      %vm7800 = vweird.f32 %v6933
      %vm7801 = vweird.f32 %v7795
      %vm7802 = vmor %vm7800, %vm7801
      %v7803 = vsel %vm7802, %v7795, %v7799
      %v7804 = vand.u32 2147483647, %v6933
      %vm7805 = vcmp.eq.f32.partialorder %v7804, 8.507059e+37
      %v7806 = vand.u32 %v6933, 2147483648
      %v7807 = vor.u32 1.1754944e-38, %v7806
      %v7808 = vsel %vm7805, %v7807, %v7803
      %v7809 = vmul.f32 1.0, %v7808
      %v7810 = vrcp.pop %v6934
      %v7811 = vmul.f32 %v6934, %v7810
      %v7812 = vsub.f32 1.0, %v7811
      %v7813 = vmul.f32 %v7810, %v7812
      %v7814 = vadd.f32 %v7810, %v7813
      %vm7815 = vweird.f32 %v6934
      %vm7816 = vweird.f32 %v7810
      %vm7817 = vmor %vm7815, %vm7816
      %v7818 = vsel %vm7817, %v7810, %v7814
      %v7819 = vand.u32 2147483647, %v6934
      %vm7820 = vcmp.eq.f32.partialorder %v7819, 8.507059e+37
      %v7821 = vand.u32 %v6934, 2147483648
      %v7822 = vor.u32 1.1754944e-38, %v7821
      %v7823 = vsel %vm7820, %v7822, %v7818
      %v7824 = vmul.f32 1.0, %v7823
      %v7825 = vrcp.pop %v6935
      %v7826 = vmul.f32 %v6935, %v7825
      %v7827 = vsub.f32 1.0, %v7826
      %v7828 = vmul.f32 %v7825, %v7827
      %v7829 = vadd.f32 %v7825, %v7828
      %vm7830 = vweird.f32 %v6935
      %vm7831 = vweird.f32 %v7825
      %vm7832 = vmor %vm7830, %vm7831
      %v7833 = vsel %vm7832, %v7825, %v7829
      %v7834 = vand.u32 2147483647, %v6935
      %vm7835 = vcmp.eq.f32.partialorder %v7834, 8.507059e+37
      %v7836 = vand.u32 %v6935, 2147483648
      %v7837 = vor.u32 1.1754944e-38, %v7836
      %v7838 = vsel %vm7835, %v7837, %v7833
      %v7839 = vmul.f32 1.0, %v7838
      %v7840 = vrcp.pop %v6936
      %v7841 = vmul.f32 %v6936, %v7840
      %v7842 = vsub.f32 1.0, %v7841
      %v7843 = vmul.f32 %v7840, %v7842
      %v7844 = vadd.f32 %v7840, %v7843
      %vm7845 = vweird.f32 %v6936
      %vm7846 = vweird.f32 %v7840
      %vm7847 = vmor %vm7845, %vm7846
      %v7848 = vsel %vm7847, %v7840, %v7844
      %v7849 = vand.u32 2147483647, %v6936
      %vm7850 = vcmp.eq.f32.partialorder %v7849, 8.507059e+37
      %v7851 = vand.u32 %v6936, 2147483648
      %v7852 = vor.u32 1.1754944e-38, %v7851
      %v7853 = vsel %vm7850, %v7852, %v7848
      %v7854 = vmul.f32 1.0, %v7853
      %v7855 = vrcp.pop %v6937
      %v7856 = vmul.f32 %v6937, %v7855
      %v7857 = vsub.f32 1.0, %v7856
      %v7858 = vmul.f32 %v7855, %v7857
      %v7859 = vadd.f32 %v7855, %v7858
      %vm7860 = vweird.f32 %v6937
      %vm7861 = vweird.f32 %v7855
      %vm7862 = vmor %vm7860, %vm7861
      %v7863 = vsel %vm7862, %v7855, %v7859
      %v7864 = vand.u32 2147483647, %v6937
      %vm7865 = vcmp.eq.f32.partialorder %v7864, 8.507059e+37
      %v7866 = vand.u32 %v6937, 2147483648
      %v7867 = vor.u32 1.1754944e-38, %v7866
      %v7868 = vsel %vm7865, %v7867, %v7863
      %v7869 = vmul.f32 1.0, %v7868
      %v7870 = vrcp.pop %v6938
      %v7871 = vmul.f32 %v6938, %v7870
      %v7872 = vsub.f32 1.0, %v7871
      %v7873 = vmul.f32 %v7870, %v7872
      %v7874 = vadd.f32 %v7870, %v7873
      %vm7875 = vweird.f32 %v6938
      %vm7876 = vweird.f32 %v7870
      %vm7877 = vmor %vm7875, %vm7876
      %v7878 = vsel %vm7877, %v7870, %v7874
      %v7879 = vand.u32 2147483647, %v6938
      %vm7880 = vcmp.eq.f32.partialorder %v7879, 8.507059e+37
      %v7881 = vand.u32 %v6938, 2147483648
      %v7882 = vor.u32 1.1754944e-38, %v7881
      %v7883 = vsel %vm7880, %v7882, %v7878
      %v7884 = vmul.f32 1.0, %v7883
      %v7885 = vrcp.pop %v6939
      %v7886 = vmul.f32 %v6939, %v7885
      %v7887 = vsub.f32 1.0, %v7886
      %v7888 = vmul.f32 %v7885, %v7887
      %v7889 = vadd.f32 %v7885, %v7888
      %vm7890 = vweird.f32 %v6939
      %vm7891 = vweird.f32 %v7885
      %vm7892 = vmor %vm7890, %vm7891
      %v7893 = vsel %vm7892, %v7885, %v7889
      %v7894 = vand.u32 2147483647, %v6939
      %vm7895 = vcmp.eq.f32.partialorder %v7894, 8.507059e+37
      %v7896 = vand.u32 %v6939, 2147483648
      %v7897 = vor.u32 1.1754944e-38, %v7896
      %v7898 = vsel %vm7895, %v7897, %v7893
      %v7899 = vmul.f32 1.0, %v7898
      %v7900 = vmul.f32 %v6620, %v6954
      %v7901 = vmul.f32 %v6621, %v6969
      %v7902 = vmul.f32 %v6622, %v6984
      %v7903 = vmul.f32 %v6623, %v6999
      %v7904 = vmul.f32 %v6624, %v7014
      %v7905 = vmul.f32 %v6625, %v7029
      %v7906 = vmul.f32 %v6626, %v7044
      %v7907 = vmul.f32 %v6627, %v7059
      %v7908 = vmul.f32 %v6628, %v7074
      %v7909 = vmul.f32 %v6629, %v7089
      %v7910 = vmul.f32 %v6630, %v7104
      %v7911 = vmul.f32 %v6631, %v7119
      %v7912 = vmul.f32 %v6632, %v7134
      %v7913 = vmul.f32 %v6633, %v7149
      %v7914 = vmul.f32 %v6634, %v7164
      %v7915 = vmul.f32 %v6635, %v7179
      %v7916 = vmul.f32 %v6636, %v7194
      %v7917 = vmul.f32 %v6637, %v7209
      %v7918 = vmul.f32 %v6638, %v7224
      %v7919 = vmul.f32 %v6639, %v7239
      %v7920 = vmul.f32 %v6640, %v7254
      %v7921 = vmul.f32 %v6641, %v7269
      %v7922 = vmul.f32 %v6642, %v7284
      %v7923 = vmul.f32 %v6643, %v7299
      %v7924 = vmul.f32 %v6644, %v7314
      %v7925 = vmul.f32 %v6645, %v7329
      %v7926 = vmul.f32 %v6646, %v7344
      %v7927 = vmul.f32 %v6647, %v7359
      %v7928 = vmul.f32 %v6648, %v7374
      %v7929 = vmul.f32 %v6649, %v7389
      %v7930 = vmul.f32 %v6650, %v7404
      %v7931 = vmul.f32 %v6651, %v7419
      %v7932 = vmul.f32 %v6652, %v7434
      %v7933 = vmul.f32 %v6653, %v7449
      %v7934 = vmul.f32 %v6654, %v7464
      %v7935 = vmul.f32 %v6655, %v7479
      %v7936 = vmul.f32 %v6656, %v7494
      %v7937 = vmul.f32 %v6657, %v7509
      %v7938 = vmul.f32 %v6658, %v7524
      %v7939 = vmul.f32 %v6659, %v7539
      %v7940 = vmul.f32 %v6660, %v7554
      %v7941 = vmul.f32 %v6661, %v7569
      %v7942 = vmul.f32 %v6662, %v7584
      %v7943 = vmul.f32 %v6663, %v7599
      %v7944 = vmul.f32 %v6664, %v7614
      %v7945 = vmul.f32 %v6665, %v7629
      %v7946 = vmul.f32 %v6666, %v7644
      %v7947 = vmul.f32 %v6667, %v7659
      %v7948 = vmul.f32 %v6668, %v7674
      %v7949 = vmul.f32 %v6669, %v7689
      %v7950 = vmul.f32 %v6670, %v7704
      %v7951 = vmul.f32 %v6671, %v7719
      %v7952 = vmul.f32 %v6672, %v7734
      %v7953 = vmul.f32 %v6673, %v7749
      %v7954 = vmul.f32 %v6674, %v7764
      %v7955 = vmul.f32 %v6675, %v7779
      %v7956 = vmul.f32 %v6676, %v7794
      %v7957 = vmul.f32 %v6677, %v7809
      %v7958 = vmul.f32 %v6678, %v7824
      %v7959 = vmul.f32 %v6679, %v7839
      %v7960 = vmul.f32 %v6680, %v7854
      %v7961 = vmul.f32 %v6681, %v7869
      %v7962 = vmul.f32 %v6682, %v7884
      %v7963 = vmul.f32 %v6683, %v7899
      %v7964 = vpack.c.bf16 %v7901, %v7900
      %v7965 = vpack.c.bf16 %v7903, %v7902
      %v7966 = vpack.c.bf16 %v7905, %v7904
      %v7967 = vpack.c.bf16 %v7907, %v7906
      %v7968 = vpack.c.bf16 %v7909, %v7908
      %v7969 = vpack.c.bf16 %v7911, %v7910
      %v7970 = vpack.c.bf16 %v7913, %v7912
      %v7971 = vpack.c.bf16 %v7915, %v7914
      %v7972 = vpack.c.bf16 %v7917, %v7916
      %v7973 = vpack.c.bf16 %v7919, %v7918
      %v7974 = vpack.c.bf16 %v7921, %v7920
      %v7975 = vpack.c.bf16 %v7923, %v7922
      %v7976 = vpack.c.bf16 %v7925, %v7924
      %v7977 = vpack.c.bf16 %v7927, %v7926
      %v7978 = vpack.c.bf16 %v7929, %v7928
      %v7979 = vpack.c.bf16 %v7931, %v7930
      %v7980 = vpack.c.bf16 %v7933, %v7932
      %v7981 = vpack.c.bf16 %v7935, %v7934
      %v7982 = vpack.c.bf16 %v7937, %v7936
      %v7983 = vpack.c.bf16 %v7939, %v7938
      %v7984 = vpack.c.bf16 %v7941, %v7940
      %v7985 = vpack.c.bf16 %v7943, %v7942
      %v7986 = vpack.c.bf16 %v7945, %v7944
      %v7987 = vpack.c.bf16 %v7947, %v7946
      %v7988 = vpack.c.bf16 %v7949, %v7948
      %v7989 = vpack.c.bf16 %v7951, %v7950
      %v7990 = vpack.c.bf16 %v7953, %v7952
      %v7991 = vpack.c.bf16 %v7955, %v7954
      %v7992 = vpack.c.bf16 %v7957, %v7956
      %v7993 = vpack.c.bf16 %v7959, %v7958
      %v7994 = vpack.c.bf16 %v7961, %v7960
      %v7995 = vpack.c.bf16 %v7963, %v7962
      %v7996 = vld [vmem:[%s5] sm:$0xf]
      %v7997 = vld [vmem:[%s5 + $0x4] sm:$0xf]
      %v7998 = vld [vmem:[%s5 + $0x8] sm:$0xf]
      %v7999 = vld [vmem:[%s5 + $0xc] sm:$0xf]
      %v8000 = vld [vmem:[%s5 + $0x10] sm:$0xf]
      %v8001 = vld [vmem:[%s5 + $0x14] sm:$0xf]
      %v8002 = vld [vmem:[%s5 + $0x18] sm:$0xf]
      %v8003 = vld [vmem:[%s5 + $0x1c] sm:$0xf]
      %v8004 = vld [vmem:[%s5 + $0x20] sm:$0xf]
      %v8005 = vld [vmem:[%s5 + $0x24] sm:$0xf]
      %v8006 = vld [vmem:[%s5 + $0x28] sm:$0xf]
      %v8007 = vld [vmem:[%s5 + $0x2c] sm:$0xf]
      %v8008 = vld [vmem:[%s5 + $0x30] sm:$0xf]
      %v8009 = vld [vmem:[%s5 + $0x34] sm:$0xf]
      %v8010 = vld [vmem:[%s5 + $0x38] sm:$0xf]
      %v8011 = vld [vmem:[%s5 + $0x3c] sm:$0xf]
      %v8012 = vld [vmem:[%s6] sm:$0x1]
      %v8014 = vperm.slane %v8012, 0
      %v8032 = vunpack.c.l.b16 %v7996
      %v8033 = vunpack.c.l.b16 %v7997
      %v8034 = vunpack.c.l.b16 %v7998
      %v8035 = vunpack.c.l.b16 %v7999
      %v8036 = vunpack.c.l.b16 %v8000
      %v8037 = vunpack.c.l.b16 %v8001
      %v8038 = vunpack.c.l.b16 %v8002
      %v8039 = vunpack.c.l.b16 %v8003
      %v8040 = vunpack.c.l.b16 %v8004
      %v8041 = vunpack.c.l.b16 %v8005
      %v8042 = vunpack.c.l.b16 %v8006
      %v8043 = vunpack.c.l.b16 %v8007
      %v8044 = vunpack.c.l.b16 %v8008
      %v8045 = vunpack.c.l.b16 %v8009
      %v8046 = vunpack.c.l.b16 %v8010
      %v8047 = vunpack.c.l.b16 %v8011
      %v8048 = vpack.c.b16 %v8033, %v8032
      %v8049 = vpack.c.b16 %v8035, %v8034
      %v8050 = vpack.c.b16 %v8037, %v8036
      %v8051 = vpack.c.b16 %v8039, %v8038
      %v8052 = vpack.c.b16 %v8041, %v8040
      %v8053 = vpack.c.b16 %v8043, %v8042
      %v8054 = vpack.c.b16 %v8045, %v8044
      %v8055 = vpack.c.b16 %v8047, %v8046
      %8064 = vmatpush.bf16.msra.mxu0 %v8055
      %8065 = vmatpush.bf16.msra.mxu0 %v8054
      %8066 = vmatpush.bf16.msra.mxu0 %v8053
      %8067 = vmatpush.bf16.msra.mxu0 %v8052
      %8068 = vmatpush.bf16.msra.mxu0 %v8051
      %8069 = vmatpush.bf16.msra.mxu0 %v8050
      %8070 = vmatpush.bf16.msra.mxu0 %v8049
      %8071 = vmatpush.bf16.msra.mxu0 %v8048
      %8072 = vmatmul.bf16.gmra.mxu0 %v7964
      %v8073 = vpop.f32.mrf.mxu0
      %v8074 = vadd.f32 %v8014, %v8073
      %v8075 = vpop.f32.mrf.mxu0
      %v8076 = vadd.f32 %v8014, %v8075
      %8077 = vmatmul.bf16.gmra.mxu0 %v7965
      %v8078 = vpop.f32.mrf.mxu0
      %v8079 = vadd.f32 %v8014, %v8078
      %v8080 = vpop.f32.mrf.mxu0
      %v8081 = vadd.f32 %v8014, %v8080
      %8082 = vmatmul.bf16.gmra.mxu0 %v7966
      %v8083 = vpop.f32.mrf.mxu0
      %v8084 = vadd.f32 %v8014, %v8083
      %v8085 = vpop.f32.mrf.mxu0
      %v8086 = vadd.f32 %v8014, %v8085
      %8087 = vmatmul.bf16.gmra.mxu0 %v7967
      %v8088 = vpop.f32.mrf.mxu0
      %v8089 = vadd.f32 %v8014, %v8088
      %v8090 = vpop.f32.mrf.mxu0
      %v8091 = vadd.f32 %v8014, %v8090
      %8092 = vmatmul.bf16.gmra.mxu0 %v7968
      %v8093 = vpop.f32.mrf.mxu0
      %v8094 = vadd.f32 %v8014, %v8093
      %v8095 = vpop.f32.mrf.mxu0
      %v8096 = vadd.f32 %v8014, %v8095
      %8097 = vmatmul.bf16.gmra.mxu0 %v7969
      %v8098 = vpop.f32.mrf.mxu0
      %v8099 = vadd.f32 %v8014, %v8098
      %v8100 = vpop.f32.mrf.mxu0
      %v8101 = vadd.f32 %v8014, %v8100
      %8102 = vmatmul.bf16.gmra.mxu0 %v7970
      %v8103 = vpop.f32.mrf.mxu0
      %v8104 = vadd.f32 %v8014, %v8103
      %v8105 = vpop.f32.mrf.mxu0
      %v8106 = vadd.f32 %v8014, %v8105
      %8107 = vmatmul.bf16.gmra.mxu0 %v7971
      %v8108 = vpop.f32.mrf.mxu0
      %v8109 = vadd.f32 %v8014, %v8108
      %v8110 = vpop.f32.mrf.mxu0
      %v8111 = vadd.f32 %v8014, %v8110
      %8112 = vmatmul.bf16.gmra.mxu0 %v7972
      %v8113 = vpop.f32.mrf.mxu0
      %v8114 = vadd.f32 %v8014, %v8113
      %v8115 = vpop.f32.mrf.mxu0
      %v8116 = vadd.f32 %v8014, %v8115
      %8117 = vmatmul.bf16.gmra.mxu0 %v7973
      %v8118 = vpop.f32.mrf.mxu0
      %v8119 = vadd.f32 %v8014, %v8118
      %v8120 = vpop.f32.mrf.mxu0
      %v8121 = vadd.f32 %v8014, %v8120
      %8122 = vmatmul.bf16.gmra.mxu0 %v7974
      %v8123 = vpop.f32.mrf.mxu0
      %v8124 = vadd.f32 %v8014, %v8123
      %v8125 = vpop.f32.mrf.mxu0
      %v8126 = vadd.f32 %v8014, %v8125
      %8127 = vmatmul.bf16.gmra.mxu0 %v7975
      %v8128 = vpop.f32.mrf.mxu0
      %v8129 = vadd.f32 %v8014, %v8128
      %v8130 = vpop.f32.mrf.mxu0
      %v8131 = vadd.f32 %v8014, %v8130
      %8132 = vmatmul.bf16.gmra.mxu0 %v7976
      %v8133 = vpop.f32.mrf.mxu0
      %v8134 = vadd.f32 %v8014, %v8133
      %v8135 = vpop.f32.mrf.mxu0
      %v8136 = vadd.f32 %v8014, %v8135
      %8137 = vmatmul.bf16.gmra.mxu0 %v7977
      %v8138 = vpop.f32.mrf.mxu0
      %v8139 = vadd.f32 %v8014, %v8138
      %v8140 = vpop.f32.mrf.mxu0
      %v8141 = vadd.f32 %v8014, %v8140
      %8142 = vmatmul.bf16.gmra.mxu0 %v7978
      %v8143 = vpop.f32.mrf.mxu0
      %v8144 = vadd.f32 %v8014, %v8143
      %v8145 = vpop.f32.mrf.mxu0
      %v8146 = vadd.f32 %v8014, %v8145
      %8147 = vmatmul.bf16.gmra.mxu0 %v7979
      %v8148 = vpop.f32.mrf.mxu0
      %v8149 = vadd.f32 %v8014, %v8148
      %v8150 = vpop.f32.mrf.mxu0
      %v8151 = vadd.f32 %v8014, %v8150
      %8152 = vmatmul.bf16.gmra.mxu0 %v7980
      %v8153 = vpop.f32.mrf.mxu0
      %v8154 = vadd.f32 %v8014, %v8153
      %v8155 = vpop.f32.mrf.mxu0
      %v8156 = vadd.f32 %v8014, %v8155
      %8157 = vmatmul.bf16.gmra.mxu0 %v7981
      %v8158 = vpop.f32.mrf.mxu0
      %v8159 = vadd.f32 %v8014, %v8158
      %v8160 = vpop.f32.mrf.mxu0
      %v8161 = vadd.f32 %v8014, %v8160
      %8162 = vmatmul.bf16.gmra.mxu0 %v7982
      %v8163 = vpop.f32.mrf.mxu0
      %v8164 = vadd.f32 %v8014, %v8163
      %v8165 = vpop.f32.mrf.mxu0
      %v8166 = vadd.f32 %v8014, %v8165
      %8167 = vmatmul.bf16.gmra.mxu0 %v7983
      %v8168 = vpop.f32.mrf.mxu0
      %v8169 = vadd.f32 %v8014, %v8168
      %v8170 = vpop.f32.mrf.mxu0
      %v8171 = vadd.f32 %v8014, %v8170
      %8172 = vmatmul.bf16.gmra.mxu0 %v7984
      %v8173 = vpop.f32.mrf.mxu0
      %v8174 = vadd.f32 %v8014, %v8173
      %v8175 = vpop.f32.mrf.mxu0
      %v8176 = vadd.f32 %v8014, %v8175
      %8177 = vmatmul.bf16.gmra.mxu0 %v7985
      %v8178 = vpop.f32.mrf.mxu0
      %v8179 = vadd.f32 %v8014, %v8178
      %v8180 = vpop.f32.mrf.mxu0
      %v8181 = vadd.f32 %v8014, %v8180
      %8182 = vmatmul.bf16.gmra.mxu0 %v7986
      %v8183 = vpop.f32.mrf.mxu0
      %v8184 = vadd.f32 %v8014, %v8183
      %v8185 = vpop.f32.mrf.mxu0
      %v8186 = vadd.f32 %v8014, %v8185
      %8187 = vmatmul.bf16.gmra.mxu0 %v7987
      %v8188 = vpop.f32.mrf.mxu0
      %v8189 = vadd.f32 %v8014, %v8188
      %v8190 = vpop.f32.mrf.mxu0
      %v8191 = vadd.f32 %v8014, %v8190
      %8192 = vmatmul.bf16.gmra.mxu0 %v7988
      %v8193 = vpop.f32.mrf.mxu0
      %v8194 = vadd.f32 %v8014, %v8193
      %v8195 = vpop.f32.mrf.mxu0
      %v8196 = vadd.f32 %v8014, %v8195
      %8197 = vmatmul.bf16.gmra.mxu0 %v7989
      %v8198 = vpop.f32.mrf.mxu0
      %v8199 = vadd.f32 %v8014, %v8198
      %v8200 = vpop.f32.mrf.mxu0
      %v8201 = vadd.f32 %v8014, %v8200
      %8202 = vmatmul.bf16.gmra.mxu0 %v7990
      %v8203 = vpop.f32.mrf.mxu0
      %v8204 = vadd.f32 %v8014, %v8203
      %v8205 = vpop.f32.mrf.mxu0
      %v8206 = vadd.f32 %v8014, %v8205
      %8207 = vmatmul.bf16.gmra.mxu0 %v7991
      %v8208 = vpop.f32.mrf.mxu0
      %v8209 = vadd.f32 %v8014, %v8208
      %v8210 = vpop.f32.mrf.mxu0
      %v8211 = vadd.f32 %v8014, %v8210
      %8212 = vmatmul.bf16.gmra.mxu0 %v7992
      %v8213 = vpop.f32.mrf.mxu0
      %v8214 = vadd.f32 %v8014, %v8213
      %v8215 = vpop.f32.mrf.mxu0
      %v8216 = vadd.f32 %v8014, %v8215
      %8217 = vmatmul.bf16.gmra.mxu0 %v7993
      %v8218 = vpop.f32.mrf.mxu0
      %v8219 = vadd.f32 %v8014, %v8218
      %v8220 = vpop.f32.mrf.mxu0
      %v8221 = vadd.f32 %v8014, %v8220
      %8222 = vmatmul.bf16.gmra.mxu0 %v7994
      %v8223 = vpop.f32.mrf.mxu0
      %v8224 = vadd.f32 %v8014, %v8223
      %v8225 = vpop.f32.mrf.mxu0
      %v8226 = vadd.f32 %v8014, %v8225
      %8227 = vmatmul.bf16.gmra.mxu0 %v7995
      %v8228 = vpop.f32.mrf.mxu0
      %v8229 = vadd.f32 %v8014, %v8228
      %v8230 = vpop.f32.mrf.mxu0
      %v8231 = vadd.f32 %v8014, %v8230
      %8232 = vdwg.mxu0
      %v8233 = vxor.u32 %v8074, 2147483648
      %v8234 = vxor.u32 %v8076, 2147483648
      %v8235 = vxor.u32 %v8079, 2147483648
      %v8236 = vxor.u32 %v8081, 2147483648
      %v8237 = vxor.u32 %v8084, 2147483648
      %v8238 = vxor.u32 %v8086, 2147483648
      %v8239 = vxor.u32 %v8089, 2147483648
      %v8240 = vxor.u32 %v8091, 2147483648
      %v8241 = vxor.u32 %v8094, 2147483648
      %v8242 = vxor.u32 %v8096, 2147483648
      %v8243 = vxor.u32 %v8099, 2147483648
      %v8244 = vxor.u32 %v8101, 2147483648
      %v8245 = vxor.u32 %v8104, 2147483648
      %v8246 = vxor.u32 %v8106, 2147483648
      %v8247 = vxor.u32 %v8109, 2147483648
      %v8248 = vxor.u32 %v8111, 2147483648
      %v8249 = vxor.u32 %v8114, 2147483648
      %v8250 = vxor.u32 %v8116, 2147483648
      %v8251 = vxor.u32 %v8119, 2147483648
      %v8252 = vxor.u32 %v8121, 2147483648
      %v8253 = vxor.u32 %v8124, 2147483648
      %v8254 = vxor.u32 %v8126, 2147483648
      %v8255 = vxor.u32 %v8129, 2147483648
      %v8256 = vxor.u32 %v8131, 2147483648
      %v8257 = vxor.u32 %v8134, 2147483648
      %v8258 = vxor.u32 %v8136, 2147483648
      %v8259 = vxor.u32 %v8139, 2147483648
      %v8260 = vxor.u32 %v8141, 2147483648
      %v8261 = vxor.u32 %v8144, 2147483648
      %v8262 = vxor.u32 %v8146, 2147483648
      %v8263 = vxor.u32 %v8149, 2147483648
      %v8264 = vxor.u32 %v8151, 2147483648
      %v8265 = vxor.u32 %v8154, 2147483648
      %v8266 = vxor.u32 %v8156, 2147483648
      %v8267 = vxor.u32 %v8159, 2147483648
      %v8268 = vxor.u32 %v8161, 2147483648
      %v8269 = vxor.u32 %v8164, 2147483648
      %v8270 = vxor.u32 %v8166, 2147483648
      %v8271 = vxor.u32 %v8169, 2147483648
      %v8272 = vxor.u32 %v8171, 2147483648
      %v8273 = vxor.u32 %v8174, 2147483648
      %v8274 = vxor.u32 %v8176, 2147483648
      %v8275 = vxor.u32 %v8179, 2147483648
      %v8276 = vxor.u32 %v8181, 2147483648
      %v8277 = vxor.u32 %v8184, 2147483648
      %v8278 = vxor.u32 %v8186, 2147483648
      %v8279 = vxor.u32 %v8189, 2147483648
      %v8280 = vxor.u32 %v8191, 2147483648
      %v8281 = vxor.u32 %v8194, 2147483648
      %v8282 = vxor.u32 %v8196, 2147483648
      %v8283 = vxor.u32 %v8199, 2147483648
      %v8284 = vxor.u32 %v8201, 2147483648
      %v8285 = vxor.u32 %v8204, 2147483648
      %v8286 = vxor.u32 %v8206, 2147483648
      %v8287 = vxor.u32 %v8209, 2147483648
      %v8288 = vxor.u32 %v8211, 2147483648
      %v8289 = vxor.u32 %v8214, 2147483648
      %v8290 = vxor.u32 %v8216, 2147483648
      %v8291 = vxor.u32 %v8219, 2147483648
      %v8292 = vxor.u32 %v8221, 2147483648
      %v8293 = vxor.u32 %v8224, 2147483648
      %v8294 = vxor.u32 %v8226, 2147483648
      %v8295 = vxor.u32 %v8229, 2147483648
      %v8296 = vxor.u32 %v8231, 2147483648
      %v8297 = vmul.f32 %v8233, 1.442695
      %v8298 = vpow.pop %v8297
      %v8299 = vmul.f32 %v8234, 1.442695
      %v8300 = vpow.pop %v8299
      %v8301 = vmul.f32 %v8235, 1.442695
      %v8302 = vpow.pop %v8301
      %v8303 = vmul.f32 %v8236, 1.442695
      %v8304 = vpow.pop %v8303
      %v8305 = vmul.f32 %v8237, 1.442695
      %v8306 = vpow.pop %v8305
      %v8307 = vmul.f32 %v8238, 1.442695
      %v8308 = vpow.pop %v8307
      %v8309 = vmul.f32 %v8239, 1.442695
      %v8310 = vpow.pop %v8309
      %v8311 = vmul.f32 %v8240, 1.442695
      %v8312 = vpow.pop %v8311
      %v8313 = vmul.f32 %v8241, 1.442695
      %v8314 = vpow.pop %v8313
      %v8315 = vmul.f32 %v8242, 1.442695
      %v8316 = vpow.pop %v8315
      %v8317 = vmul.f32 %v8243, 1.442695
      %v8318 = vpow.pop %v8317
      %v8319 = vmul.f32 %v8244, 1.442695
      %v8320 = vpow.pop %v8319
      %v8321 = vmul.f32 %v8245, 1.442695
      %v8322 = vpow.pop %v8321
      %v8323 = vmul.f32 %v8246, 1.442695
      %v8324 = vpow.pop %v8323
      %v8325 = vmul.f32 %v8247, 1.442695
      %v8326 = vpow.pop %v8325
      %v8327 = vmul.f32 %v8248, 1.442695
      %v8328 = vpow.pop %v8327
      %v8329 = vmul.f32 %v8249, 1.442695
      %v8330 = vpow.pop %v8329
      %v8331 = vmul.f32 %v8250, 1.442695
      %v8332 = vpow.pop %v8331
      %v8333 = vmul.f32 %v8251, 1.442695
      %v8334 = vpow.pop %v8333
      %v8335 = vmul.f32 %v8252, 1.442695
      %v8336 = vpow.pop %v8335
      %v8337 = vmul.f32 %v8253, 1.442695
      %v8338 = vpow.pop %v8337
      %v8339 = vmul.f32 %v8254, 1.442695
      %v8340 = vpow.pop %v8339
      %v8341 = vmul.f32 %v8255, 1.442695
      %v8342 = vpow.pop %v8341
      %v8343 = vmul.f32 %v8256, 1.442695
      %v8344 = vpow.pop %v8343
      %v8345 = vmul.f32 %v8257, 1.442695
      %v8346 = vpow.pop %v8345
      %v8347 = vmul.f32 %v8258, 1.442695
      %v8348 = vpow.pop %v8347
      %v8349 = vmul.f32 %v8259, 1.442695
      %v8350 = vpow.pop %v8349
      %v8351 = vmul.f32 %v8260, 1.442695
      %v8352 = vpow.pop %v8351
      %v8353 = vmul.f32 %v8261, 1.442695
      %v8354 = vpow.pop %v8353
      %v8355 = vmul.f32 %v8262, 1.442695
      %v8356 = vpow.pop %v8355
      %v8357 = vmul.f32 %v8263, 1.442695
      %v8358 = vpow.pop %v8357
      %v8359 = vmul.f32 %v8264, 1.442695
      %v8360 = vpow.pop %v8359
      %v8361 = vmul.f32 %v8265, 1.442695
      %v8362 = vpow.pop %v8361
      %v8363 = vmul.f32 %v8266, 1.442695
      %v8364 = vpow.pop %v8363
      %v8365 = vmul.f32 %v8267, 1.442695
      %v8366 = vpow.pop %v8365
      %v8367 = vmul.f32 %v8268, 1.442695
      %v8368 = vpow.pop %v8367
      %v8369 = vmul.f32 %v8269, 1.442695
      %v8370 = vpow.pop %v8369
      %v8371 = vmul.f32 %v8270, 1.442695
      %v8372 = vpow.pop %v8371
      %v8373 = vmul.f32 %v8271, 1.442695
      %v8374 = vpow.pop %v8373
      %v8375 = vmul.f32 %v8272, 1.442695
      %v8376 = vpow.pop %v8375
      %v8377 = vmul.f32 %v8273, 1.442695
      %v8378 = vpow.pop %v8377
      %v8379 = vmul.f32 %v8274, 1.442695
      %v8380 = vpow.pop %v8379
      %v8381 = vmul.f32 %v8275, 1.442695
      %v8382 = vpow.pop %v8381
      %v8383 = vmul.f32 %v8276, 1.442695
      %v8384 = vpow.pop %v8383
      %v8385 = vmul.f32 %v8277, 1.442695
      %v8386 = vpow.pop %v8385
      %v8387 = vmul.f32 %v8278, 1.442695
      %v8388 = vpow.pop %v8387
      %v8389 = vmul.f32 %v8279, 1.442695
      %v8390 = vpow.pop %v8389
      %v8391 = vmul.f32 %v8280, 1.442695
      %v8392 = vpow.pop %v8391
      %v8393 = vmul.f32 %v8281, 1.442695
      %v8394 = vpow.pop %v8393
      %v8395 = vmul.f32 %v8282, 1.442695
      %v8396 = vpow.pop %v8395
      %v8397 = vmul.f32 %v8283, 1.442695
      %v8398 = vpow.pop %v8397
      %v8399 = vmul.f32 %v8284, 1.442695
      %v8400 = vpow.pop %v8399
      %v8401 = vmul.f32 %v8285, 1.442695
      %v8402 = vpow.pop %v8401
      %v8403 = vmul.f32 %v8286, 1.442695
      %v8404 = vpow.pop %v8403
      %v8405 = vmul.f32 %v8287, 1.442695
      %v8406 = vpow.pop %v8405
      %v8407 = vmul.f32 %v8288, 1.442695
      %v8408 = vpow.pop %v8407
      %v8409 = vmul.f32 %v8289, 1.442695
      %v8410 = vpow.pop %v8409
      %v8411 = vmul.f32 %v8290, 1.442695
      %v8412 = vpow.pop %v8411
      %v8413 = vmul.f32 %v8291, 1.442695
      %v8414 = vpow.pop %v8413
      %v8415 = vmul.f32 %v8292, 1.442695
      %v8416 = vpow.pop %v8415
      %v8417 = vmul.f32 %v8293, 1.442695
      %v8418 = vpow.pop %v8417
      %v8419 = vmul.f32 %v8294, 1.442695
      %v8420 = vpow.pop %v8419
      %v8421 = vmul.f32 %v8295, 1.442695
      %v8422 = vpow.pop %v8421
      %v8423 = vmul.f32 %v8296, 1.442695
      %v8424 = vpow.pop %v8423
      %v8425 = vadd.f32 %v8298, 1.0
      %v8426 = vadd.f32 %v8300, 1.0
      %v8427 = vadd.f32 %v8302, 1.0
      %v8428 = vadd.f32 %v8304, 1.0
      %v8429 = vadd.f32 %v8306, 1.0
      %v8430 = vadd.f32 %v8308, 1.0
      %v8431 = vadd.f32 %v8310, 1.0
      %v8432 = vadd.f32 %v8312, 1.0
      %v8433 = vadd.f32 %v8314, 1.0
      %v8434 = vadd.f32 %v8316, 1.0
      %v8435 = vadd.f32 %v8318, 1.0
      %v8436 = vadd.f32 %v8320, 1.0
      %v8437 = vadd.f32 %v8322, 1.0
      %v8438 = vadd.f32 %v8324, 1.0
      %v8439 = vadd.f32 %v8326, 1.0
      %v8440 = vadd.f32 %v8328, 1.0
      %v8441 = vadd.f32 %v8330, 1.0
      %v8442 = vadd.f32 %v8332, 1.0
      %v8443 = vadd.f32 %v8334, 1.0
      %v8444 = vadd.f32 %v8336, 1.0
      %v8445 = vadd.f32 %v8338, 1.0
      %v8446 = vadd.f32 %v8340, 1.0
      %v8447 = vadd.f32 %v8342, 1.0
      %v8448 = vadd.f32 %v8344, 1.0
      %v8449 = vadd.f32 %v8346, 1.0
      %v8450 = vadd.f32 %v8348, 1.0
      %v8451 = vadd.f32 %v8350, 1.0
      %v8452 = vadd.f32 %v8352, 1.0
      %v8453 = vadd.f32 %v8354, 1.0
      %v8454 = vadd.f32 %v8356, 1.0
      %v8455 = vadd.f32 %v8358, 1.0
      %v8456 = vadd.f32 %v8360, 1.0
      %v8457 = vadd.f32 %v8362, 1.0
      %v8458 = vadd.f32 %v8364, 1.0
      %v8459 = vadd.f32 %v8366, 1.0
      %v8460 = vadd.f32 %v8368, 1.0
      %v8461 = vadd.f32 %v8370, 1.0
      %v8462 = vadd.f32 %v8372, 1.0
      %v8463 = vadd.f32 %v8374, 1.0
      %v8464 = vadd.f32 %v8376, 1.0
      %v8465 = vadd.f32 %v8378, 1.0
      %v8466 = vadd.f32 %v8380, 1.0
      %v8467 = vadd.f32 %v8382, 1.0
      %v8468 = vadd.f32 %v8384, 1.0
      %v8469 = vadd.f32 %v8386, 1.0
      %v8470 = vadd.f32 %v8388, 1.0
      %v8471 = vadd.f32 %v8390, 1.0
      %v8472 = vadd.f32 %v8392, 1.0
      %v8473 = vadd.f32 %v8394, 1.0
      %v8474 = vadd.f32 %v8396, 1.0
      %v8475 = vadd.f32 %v8398, 1.0
      %v8476 = vadd.f32 %v8400, 1.0
      %v8477 = vadd.f32 %v8402, 1.0
      %v8478 = vadd.f32 %v8404, 1.0
      %v8479 = vadd.f32 %v8406, 1.0
      %v8480 = vadd.f32 %v8408, 1.0
      %v8481 = vadd.f32 %v8410, 1.0
      %v8482 = vadd.f32 %v8412, 1.0
      %v8483 = vadd.f32 %v8414, 1.0
      %v8484 = vadd.f32 %v8416, 1.0
      %v8485 = vadd.f32 %v8418, 1.0
      %v8486 = vadd.f32 %v8420, 1.0
      %v8487 = vadd.f32 %v8422, 1.0
      %v8488 = vadd.f32 %v8424, 1.0
      %v8489 = vrcp.pop %v8425
      %v8490 = vmul.f32 %v8425, %v8489
      %v8491 = vsub.f32 1.0, %v8490
      %v8492 = vmul.f32 %v8489, %v8491
      %v8493 = vadd.f32 %v8489, %v8492
      %vm8494 = vweird.f32 %v8425
      %vm8495 = vweird.f32 %v8489
      %vm8496 = vmor %vm8494, %vm8495
      %v8497 = vsel %vm8496, %v8489, %v8493
      %v8498 = vand.u32 2147483647, %v8425
      %vm8499 = vcmp.eq.f32.partialorder %v8498, 8.507059e+37
      %v8500 = vand.u32 %v8425, 2147483648
      %v8501 = vor.u32 1.1754944e-38, %v8500
      %v8502 = vsel %vm8499, %v8501, %v8497
      %v8503 = vmul.f32 1.0, %v8502
      %v8504 = vrcp.pop %v8426
      %v8505 = vmul.f32 %v8426, %v8504
      %v8506 = vsub.f32 1.0, %v8505
      %v8507 = vmul.f32 %v8504, %v8506
      %v8508 = vadd.f32 %v8504, %v8507
      %vm8509 = vweird.f32 %v8426
      %vm8510 = vweird.f32 %v8504
      %vm8511 = vmor %vm8509, %vm8510
      %v8512 = vsel %vm8511, %v8504, %v8508
      %v8513 = vand.u32 2147483647, %v8426
      %vm8514 = vcmp.eq.f32.partialorder %v8513, 8.507059e+37
      %v8515 = vand.u32 %v8426, 2147483648
      %v8516 = vor.u32 1.1754944e-38, %v8515
      %v8517 = vsel %vm8514, %v8516, %v8512
      %v8518 = vmul.f32 1.0, %v8517
      %v8519 = vrcp.pop %v8427
      %v8520 = vmul.f32 %v8427, %v8519
      %v8521 = vsub.f32 1.0, %v8520
      %v8522 = vmul.f32 %v8519, %v8521
      %v8523 = vadd.f32 %v8519, %v8522
      %vm8524 = vweird.f32 %v8427
      %vm8525 = vweird.f32 %v8519
      %vm8526 = vmor %vm8524, %vm8525
      %v8527 = vsel %vm8526, %v8519, %v8523
      %v8528 = vand.u32 2147483647, %v8427
      %vm8529 = vcmp.eq.f32.partialorder %v8528, 8.507059e+37
      %v8530 = vand.u32 %v8427, 2147483648
      %v8531 = vor.u32 1.1754944e-38, %v8530
      %v8532 = vsel %vm8529, %v8531, %v8527
      %v8533 = vmul.f32 1.0, %v8532
      %v8534 = vrcp.pop %v8428
      %v8535 = vmul.f32 %v8428, %v8534
      %v8536 = vsub.f32 1.0, %v8535
      %v8537 = vmul.f32 %v8534, %v8536
      %v8538 = vadd.f32 %v8534, %v8537
      %vm8539 = vweird.f32 %v8428
      %vm8540 = vweird.f32 %v8534
      %vm8541 = vmor %vm8539, %vm8540
      %v8542 = vsel %vm8541, %v8534, %v8538
      %v8543 = vand.u32 2147483647, %v8428
      %vm8544 = vcmp.eq.f32.partialorder %v8543, 8.507059e+37
      %v8545 = vand.u32 %v8428, 2147483648
      %v8546 = vor.u32 1.1754944e-38, %v8545
      %v8547 = vsel %vm8544, %v8546, %v8542
      %v8548 = vmul.f32 1.0, %v8547
      %v8549 = vrcp.pop %v8429
      %v8550 = vmul.f32 %v8429, %v8549
      %v8551 = vsub.f32 1.0, %v8550
      %v8552 = vmul.f32 %v8549, %v8551
      %v8553 = vadd.f32 %v8549, %v8552
      %vm8554 = vweird.f32 %v8429
      %vm8555 = vweird.f32 %v8549
      %vm8556 = vmor %vm8554, %vm8555
      %v8557 = vsel %vm8556, %v8549, %v8553
      %v8558 = vand.u32 2147483647, %v8429
      %vm8559 = vcmp.eq.f32.partialorder %v8558, 8.507059e+37
      %v8560 = vand.u32 %v8429, 2147483648
      %v8561 = vor.u32 1.1754944e-38, %v8560
      %v8562 = vsel %vm8559, %v8561, %v8557
      %v8563 = vmul.f32 1.0, %v8562
      %v8564 = vrcp.pop %v8430
      %v8565 = vmul.f32 %v8430, %v8564
      %v8566 = vsub.f32 1.0, %v8565
      %v8567 = vmul.f32 %v8564, %v8566
      %v8568 = vadd.f32 %v8564, %v8567
      %vm8569 = vweird.f32 %v8430
      %vm8570 = vweird.f32 %v8564
      %vm8571 = vmor %vm8569, %vm8570
      %v8572 = vsel %vm8571, %v8564, %v8568
      %v8573 = vand.u32 2147483647, %v8430
      %vm8574 = vcmp.eq.f32.partialorder %v8573, 8.507059e+37
      %v8575 = vand.u32 %v8430, 2147483648
      %v8576 = vor.u32 1.1754944e-38, %v8575
      %v8577 = vsel %vm8574, %v8576, %v8572
      %v8578 = vmul.f32 1.0, %v8577
      %v8579 = vrcp.pop %v8431
      %v8580 = vmul.f32 %v8431, %v8579
      %v8581 = vsub.f32 1.0, %v8580
      %v8582 = vmul.f32 %v8579, %v8581
      %v8583 = vadd.f32 %v8579, %v8582
      %vm8584 = vweird.f32 %v8431
      %vm8585 = vweird.f32 %v8579
      %vm8586 = vmor %vm8584, %vm8585
      %v8587 = vsel %vm8586, %v8579, %v8583
      %v8588 = vand.u32 2147483647, %v8431
      %vm8589 = vcmp.eq.f32.partialorder %v8588, 8.507059e+37
      %v8590 = vand.u32 %v8431, 2147483648
      %v8591 = vor.u32 1.1754944e-38, %v8590
      %v8592 = vsel %vm8589, %v8591, %v8587
      %v8593 = vmul.f32 1.0, %v8592
      %v8594 = vrcp.pop %v8432
      %v8595 = vmul.f32 %v8432, %v8594
      %v8596 = vsub.f32 1.0, %v8595
      %v8597 = vmul.f32 %v8594, %v8596
      %v8598 = vadd.f32 %v8594, %v8597
      %vm8599 = vweird.f32 %v8432
      %vm8600 = vweird.f32 %v8594
      %vm8601 = vmor %vm8599, %vm8600
      %v8602 = vsel %vm8601, %v8594, %v8598
      %v8603 = vand.u32 2147483647, %v8432
      %vm8604 = vcmp.eq.f32.partialorder %v8603, 8.507059e+37
      %v8605 = vand.u32 %v8432, 2147483648
      %v8606 = vor.u32 1.1754944e-38, %v8605
      %v8607 = vsel %vm8604, %v8606, %v8602
      %v8608 = vmul.f32 1.0, %v8607
      %v8609 = vrcp.pop %v8433
      %v8610 = vmul.f32 %v8433, %v8609
      %v8611 = vsub.f32 1.0, %v8610
      %v8612 = vmul.f32 %v8609, %v8611
      %v8613 = vadd.f32 %v8609, %v8612
      %vm8614 = vweird.f32 %v8433
      %vm8615 = vweird.f32 %v8609
      %vm8616 = vmor %vm8614, %vm8615
      %v8617 = vsel %vm8616, %v8609, %v8613
      %v8618 = vand.u32 2147483647, %v8433
      %vm8619 = vcmp.eq.f32.partialorder %v8618, 8.507059e+37
      %v8620 = vand.u32 %v8433, 2147483648
      %v8621 = vor.u32 1.1754944e-38, %v8620
      %v8622 = vsel %vm8619, %v8621, %v8617
      %v8623 = vmul.f32 1.0, %v8622
      %v8624 = vrcp.pop %v8434
      %v8625 = vmul.f32 %v8434, %v8624
      %v8626 = vsub.f32 1.0, %v8625
      %v8627 = vmul.f32 %v8624, %v8626
      %v8628 = vadd.f32 %v8624, %v8627
      %vm8629 = vweird.f32 %v8434
      %vm8630 = vweird.f32 %v8624
      %vm8631 = vmor %vm8629, %vm8630
      %v8632 = vsel %vm8631, %v8624, %v8628
      %v8633 = vand.u32 2147483647, %v8434
      %vm8634 = vcmp.eq.f32.partialorder %v8633, 8.507059e+37
      %v8635 = vand.u32 %v8434, 2147483648
      %v8636 = vor.u32 1.1754944e-38, %v8635
      %v8637 = vsel %vm8634, %v8636, %v8632
      %v8638 = vmul.f32 1.0, %v8637
      %v8639 = vrcp.pop %v8435
      %v8640 = vmul.f32 %v8435, %v8639
      %v8641 = vsub.f32 1.0, %v8640
      %v8642 = vmul.f32 %v8639, %v8641
      %v8643 = vadd.f32 %v8639, %v8642
      %vm8644 = vweird.f32 %v8435
      %vm8645 = vweird.f32 %v8639
      %vm8646 = vmor %vm8644, %vm8645
      %v8647 = vsel %vm8646, %v8639, %v8643
      %v8648 = vand.u32 2147483647, %v8435
      %vm8649 = vcmp.eq.f32.partialorder %v8648, 8.507059e+37
      %v8650 = vand.u32 %v8435, 2147483648
      %v8651 = vor.u32 1.1754944e-38, %v8650
      %v8652 = vsel %vm8649, %v8651, %v8647
      %v8653 = vmul.f32 1.0, %v8652
      %v8654 = vrcp.pop %v8436
      %v8655 = vmul.f32 %v8436, %v8654
      %v8656 = vsub.f32 1.0, %v8655
      %v8657 = vmul.f32 %v8654, %v8656
      %v8658 = vadd.f32 %v8654, %v8657
      %vm8659 = vweird.f32 %v8436
      %vm8660 = vweird.f32 %v8654
      %vm8661 = vmor %vm8659, %vm8660
      %v8662 = vsel %vm8661, %v8654, %v8658
      %v8663 = vand.u32 2147483647, %v8436
      %vm8664 = vcmp.eq.f32.partialorder %v8663, 8.507059e+37
      %v8665 = vand.u32 %v8436, 2147483648
      %v8666 = vor.u32 1.1754944e-38, %v8665
      %v8667 = vsel %vm8664, %v8666, %v8662
      %v8668 = vmul.f32 1.0, %v8667
      %v8669 = vrcp.pop %v8437
      %v8670 = vmul.f32 %v8437, %v8669
      %v8671 = vsub.f32 1.0, %v8670
      %v8672 = vmul.f32 %v8669, %v8671
      %v8673 = vadd.f32 %v8669, %v8672
      %vm8674 = vweird.f32 %v8437
      %vm8675 = vweird.f32 %v8669
      %vm8676 = vmor %vm8674, %vm8675
      %v8677 = vsel %vm8676, %v8669, %v8673
      %v8678 = vand.u32 2147483647, %v8437
      %vm8679 = vcmp.eq.f32.partialorder %v8678, 8.507059e+37
      %v8680 = vand.u32 %v8437, 2147483648
      %v8681 = vor.u32 1.1754944e-38, %v8680
      %v8682 = vsel %vm8679, %v8681, %v8677
      %v8683 = vmul.f32 1.0, %v8682
      %v8684 = vrcp.pop %v8438
      %v8685 = vmul.f32 %v8438, %v8684
      %v8686 = vsub.f32 1.0, %v8685
      %v8687 = vmul.f32 %v8684, %v8686
      %v8688 = vadd.f32 %v8684, %v8687
      %vm8689 = vweird.f32 %v8438
      %vm8690 = vweird.f32 %v8684
      %vm8691 = vmor %vm8689, %vm8690
      %v8692 = vsel %vm8691, %v8684, %v8688
      %v8693 = vand.u32 2147483647, %v8438
      %vm8694 = vcmp.eq.f32.partialorder %v8693, 8.507059e+37
      %v8695 = vand.u32 %v8438, 2147483648
      %v8696 = vor.u32 1.1754944e-38, %v8695
      %v8697 = vsel %vm8694, %v8696, %v8692
      %v8698 = vmul.f32 1.0, %v8697
      %v8699 = vrcp.pop %v8439
      %v8700 = vmul.f32 %v8439, %v8699
      %v8701 = vsub.f32 1.0, %v8700
      %v8702 = vmul.f32 %v8699, %v8701
      %v8703 = vadd.f32 %v8699, %v8702
      %vm8704 = vweird.f32 %v8439
      %vm8705 = vweird.f32 %v8699
      %vm8706 = vmor %vm8704, %vm8705
      %v8707 = vsel %vm8706, %v8699, %v8703
      %v8708 = vand.u32 2147483647, %v8439
      %vm8709 = vcmp.eq.f32.partialorder %v8708, 8.507059e+37
      %v8710 = vand.u32 %v8439, 2147483648
      %v8711 = vor.u32 1.1754944e-38, %v8710
      %v8712 = vsel %vm8709, %v8711, %v8707
      %v8713 = vmul.f32 1.0, %v8712
      %v8714 = vrcp.pop %v8440
      %v8715 = vmul.f32 %v8440, %v8714
      %v8716 = vsub.f32 1.0, %v8715
      %v8717 = vmul.f32 %v8714, %v8716
      %v8718 = vadd.f32 %v8714, %v8717
      %vm8719 = vweird.f32 %v8440
      %vm8720 = vweird.f32 %v8714
      %vm8721 = vmor %vm8719, %vm8720
      %v8722 = vsel %vm8721, %v8714, %v8718
      %v8723 = vand.u32 2147483647, %v8440
      %vm8724 = vcmp.eq.f32.partialorder %v8723, 8.507059e+37
      %v8725 = vand.u32 %v8440, 2147483648
      %v8726 = vor.u32 1.1754944e-38, %v8725
      %v8727 = vsel %vm8724, %v8726, %v8722
      %v8728 = vmul.f32 1.0, %v8727
      %v8729 = vrcp.pop %v8441
      %v8730 = vmul.f32 %v8441, %v8729
      %v8731 = vsub.f32 1.0, %v8730
      %v8732 = vmul.f32 %v8729, %v8731
      %v8733 = vadd.f32 %v8729, %v8732
      %vm8734 = vweird.f32 %v8441
      %vm8735 = vweird.f32 %v8729
      %vm8736 = vmor %vm8734, %vm8735
      %v8737 = vsel %vm8736, %v8729, %v8733
      %v8738 = vand.u32 2147483647, %v8441
      %vm8739 = vcmp.eq.f32.partialorder %v8738, 8.507059e+37
      %v8740 = vand.u32 %v8441, 2147483648
      %v8741 = vor.u32 1.1754944e-38, %v8740
      %v8742 = vsel %vm8739, %v8741, %v8737
      %v8743 = vmul.f32 1.0, %v8742
      %v8744 = vrcp.pop %v8442
      %v8745 = vmul.f32 %v8442, %v8744
      %v8746 = vsub.f32 1.0, %v8745
      %v8747 = vmul.f32 %v8744, %v8746
      %v8748 = vadd.f32 %v8744, %v8747
      %vm8749 = vweird.f32 %v8442
      %vm8750 = vweird.f32 %v8744
      %vm8751 = vmor %vm8749, %vm8750
      %v8752 = vsel %vm8751, %v8744, %v8748
      %v8753 = vand.u32 2147483647, %v8442
      %vm8754 = vcmp.eq.f32.partialorder %v8753, 8.507059e+37
      %v8755 = vand.u32 %v8442, 2147483648
      %v8756 = vor.u32 1.1754944e-38, %v8755
      %v8757 = vsel %vm8754, %v8756, %v8752
      %v8758 = vmul.f32 1.0, %v8757
      %v8759 = vrcp.pop %v8443
      %v8760 = vmul.f32 %v8443, %v8759
      %v8761 = vsub.f32 1.0, %v8760
      %v8762 = vmul.f32 %v8759, %v8761
      %v8763 = vadd.f32 %v8759, %v8762
      %vm8764 = vweird.f32 %v8443
      %vm8765 = vweird.f32 %v8759
      %vm8766 = vmor %vm8764, %vm8765
      %v8767 = vsel %vm8766, %v8759, %v8763
      %v8768 = vand.u32 2147483647, %v8443
      %vm8769 = vcmp.eq.f32.partialorder %v8768, 8.507059e+37
      %v8770 = vand.u32 %v8443, 2147483648
      %v8771 = vor.u32 1.1754944e-38, %v8770
      %v8772 = vsel %vm8769, %v8771, %v8767
      %v8773 = vmul.f32 1.0, %v8772
      %v8774 = vrcp.pop %v8444
      %v8775 = vmul.f32 %v8444, %v8774
      %v8776 = vsub.f32 1.0, %v8775
      %v8777 = vmul.f32 %v8774, %v8776
      %v8778 = vadd.f32 %v8774, %v8777
      %vm8779 = vweird.f32 %v8444
      %vm8780 = vweird.f32 %v8774
      %vm8781 = vmor %vm8779, %vm8780
      %v8782 = vsel %vm8781, %v8774, %v8778
      %v8783 = vand.u32 2147483647, %v8444
      %vm8784 = vcmp.eq.f32.partialorder %v8783, 8.507059e+37
      %v8785 = vand.u32 %v8444, 2147483648
      %v8786 = vor.u32 1.1754944e-38, %v8785
      %v8787 = vsel %vm8784, %v8786, %v8782
      %v8788 = vmul.f32 1.0, %v8787
      %v8789 = vrcp.pop %v8445
      %v8790 = vmul.f32 %v8445, %v8789
      %v8791 = vsub.f32 1.0, %v8790
      %v8792 = vmul.f32 %v8789, %v8791
      %v8793 = vadd.f32 %v8789, %v8792
      %vm8794 = vweird.f32 %v8445
      %vm8795 = vweird.f32 %v8789
      %vm8796 = vmor %vm8794, %vm8795
      %v8797 = vsel %vm8796, %v8789, %v8793
      %v8798 = vand.u32 2147483647, %v8445
      %vm8799 = vcmp.eq.f32.partialorder %v8798, 8.507059e+37
      %v8800 = vand.u32 %v8445, 2147483648
      %v8801 = vor.u32 1.1754944e-38, %v8800
      %v8802 = vsel %vm8799, %v8801, %v8797
      %v8803 = vmul.f32 1.0, %v8802
      %v8804 = vrcp.pop %v8446
      %v8805 = vmul.f32 %v8446, %v8804
      %v8806 = vsub.f32 1.0, %v8805
      %v8807 = vmul.f32 %v8804, %v8806
      %v8808 = vadd.f32 %v8804, %v8807
      %vm8809 = vweird.f32 %v8446
      %vm8810 = vweird.f32 %v8804
      %vm8811 = vmor %vm8809, %vm8810
      %v8812 = vsel %vm8811, %v8804, %v8808
      %v8813 = vand.u32 2147483647, %v8446
      %vm8814 = vcmp.eq.f32.partialorder %v8813, 8.507059e+37
      %v8815 = vand.u32 %v8446, 2147483648
      %v8816 = vor.u32 1.1754944e-38, %v8815
      %v8817 = vsel %vm8814, %v8816, %v8812
      %v8818 = vmul.f32 1.0, %v8817
      %v8819 = vrcp.pop %v8447
      %v8820 = vmul.f32 %v8447, %v8819
      %v8821 = vsub.f32 1.0, %v8820
      %v8822 = vmul.f32 %v8819, %v8821
      %v8823 = vadd.f32 %v8819, %v8822
      %vm8824 = vweird.f32 %v8447
      %vm8825 = vweird.f32 %v8819
      %vm8826 = vmor %vm8824, %vm8825
      %v8827 = vsel %vm8826, %v8819, %v8823
      %v8828 = vand.u32 2147483647, %v8447
      %vm8829 = vcmp.eq.f32.partialorder %v8828, 8.507059e+37
      %v8830 = vand.u32 %v8447, 2147483648
      %v8831 = vor.u32 1.1754944e-38, %v8830
      %v8832 = vsel %vm8829, %v8831, %v8827
      %v8833 = vmul.f32 1.0, %v8832
      %v8834 = vrcp.pop %v8448
      %v8835 = vmul.f32 %v8448, %v8834
      %v8836 = vsub.f32 1.0, %v8835
      %v8837 = vmul.f32 %v8834, %v8836
      %v8838 = vadd.f32 %v8834, %v8837
      %vm8839 = vweird.f32 %v8448
      %vm8840 = vweird.f32 %v8834
      %vm8841 = vmor %vm8839, %vm8840
      %v8842 = vsel %vm8841, %v8834, %v8838
      %v8843 = vand.u32 2147483647, %v8448
      %vm8844 = vcmp.eq.f32.partialorder %v8843, 8.507059e+37
      %v8845 = vand.u32 %v8448, 2147483648
      %v8846 = vor.u32 1.1754944e-38, %v8845
      %v8847 = vsel %vm8844, %v8846, %v8842
      %v8848 = vmul.f32 1.0, %v8847
      %v8849 = vrcp.pop %v8449
      %v8850 = vmul.f32 %v8449, %v8849
      %v8851 = vsub.f32 1.0, %v8850
      %v8852 = vmul.f32 %v8849, %v8851
      %v8853 = vadd.f32 %v8849, %v8852
      %vm8854 = vweird.f32 %v8449
      %vm8855 = vweird.f32 %v8849
      %vm8856 = vmor %vm8854, %vm8855
      %v8857 = vsel %vm8856, %v8849, %v8853
      %v8858 = vand.u32 2147483647, %v8449
      %vm8859 = vcmp.eq.f32.partialorder %v8858, 8.507059e+37
      %v8860 = vand.u32 %v8449, 2147483648
      %v8861 = vor.u32 1.1754944e-38, %v8860
      %v8862 = vsel %vm8859, %v8861, %v8857
      %v8863 = vmul.f32 1.0, %v8862
      %v8864 = vrcp.pop %v8450
      %v8865 = vmul.f32 %v8450, %v8864
      %v8866 = vsub.f32 1.0, %v8865
      %v8867 = vmul.f32 %v8864, %v8866
      %v8868 = vadd.f32 %v8864, %v8867
      %vm8869 = vweird.f32 %v8450
      %vm8870 = vweird.f32 %v8864
      %vm8871 = vmor %vm8869, %vm8870
      %v8872 = vsel %vm8871, %v8864, %v8868
      %v8873 = vand.u32 2147483647, %v8450
      %vm8874 = vcmp.eq.f32.partialorder %v8873, 8.507059e+37
      %v8875 = vand.u32 %v8450, 2147483648
      %v8876 = vor.u32 1.1754944e-38, %v8875
      %v8877 = vsel %vm8874, %v8876, %v8872
      %v8878 = vmul.f32 1.0, %v8877
      %v8879 = vrcp.pop %v8451
      %v8880 = vmul.f32 %v8451, %v8879
      %v8881 = vsub.f32 1.0, %v8880
      %v8882 = vmul.f32 %v8879, %v8881
      %v8883 = vadd.f32 %v8879, %v8882
      %vm8884 = vweird.f32 %v8451
      %vm8885 = vweird.f32 %v8879
      %vm8886 = vmor %vm8884, %vm8885
      %v8887 = vsel %vm8886, %v8879, %v8883
      %v8888 = vand.u32 2147483647, %v8451
      %vm8889 = vcmp.eq.f32.partialorder %v8888, 8.507059e+37
      %v8890 = vand.u32 %v8451, 2147483648
      %v8891 = vor.u32 1.1754944e-38, %v8890
      %v8892 = vsel %vm8889, %v8891, %v8887
      %v8893 = vmul.f32 1.0, %v8892
      %v8894 = vrcp.pop %v8452
      %v8895 = vmul.f32 %v8452, %v8894
      %v8896 = vsub.f32 1.0, %v8895
      %v8897 = vmul.f32 %v8894, %v8896
      %v8898 = vadd.f32 %v8894, %v8897
      %vm8899 = vweird.f32 %v8452
      %vm8900 = vweird.f32 %v8894
      %vm8901 = vmor %vm8899, %vm8900
      %v8902 = vsel %vm8901, %v8894, %v8898
      %v8903 = vand.u32 2147483647, %v8452
      %vm8904 = vcmp.eq.f32.partialorder %v8903, 8.507059e+37
      %v8905 = vand.u32 %v8452, 2147483648
      %v8906 = vor.u32 1.1754944e-38, %v8905
      %v8907 = vsel %vm8904, %v8906, %v8902
      %v8908 = vmul.f32 1.0, %v8907
      %v8909 = vrcp.pop %v8453
      %v8910 = vmul.f32 %v8453, %v8909
      %v8911 = vsub.f32 1.0, %v8910
      %v8912 = vmul.f32 %v8909, %v8911
      %v8913 = vadd.f32 %v8909, %v8912
      %vm8914 = vweird.f32 %v8453
      %vm8915 = vweird.f32 %v8909
      %vm8916 = vmor %vm8914, %vm8915
      %v8917 = vsel %vm8916, %v8909, %v8913
      %v8918 = vand.u32 2147483647, %v8453
      %vm8919 = vcmp.eq.f32.partialorder %v8918, 8.507059e+37
      %v8920 = vand.u32 %v8453, 2147483648
      %v8921 = vor.u32 1.1754944e-38, %v8920
      %v8922 = vsel %vm8919, %v8921, %v8917
      %v8923 = vmul.f32 1.0, %v8922
      %v8924 = vrcp.pop %v8454
      %v8925 = vmul.f32 %v8454, %v8924
      %v8926 = vsub.f32 1.0, %v8925
      %v8927 = vmul.f32 %v8924, %v8926
      %v8928 = vadd.f32 %v8924, %v8927
      %vm8929 = vweird.f32 %v8454
      %vm8930 = vweird.f32 %v8924
      %vm8931 = vmor %vm8929, %vm8930
      %v8932 = vsel %vm8931, %v8924, %v8928
      %v8933 = vand.u32 2147483647, %v8454
      %vm8934 = vcmp.eq.f32.partialorder %v8933, 8.507059e+37
      %v8935 = vand.u32 %v8454, 2147483648
      %v8936 = vor.u32 1.1754944e-38, %v8935
      %v8937 = vsel %vm8934, %v8936, %v8932
      %v8938 = vmul.f32 1.0, %v8937
      %v8939 = vrcp.pop %v8455
      %v8940 = vmul.f32 %v8455, %v8939
      %v8941 = vsub.f32 1.0, %v8940
      %v8942 = vmul.f32 %v8939, %v8941
      %v8943 = vadd.f32 %v8939, %v8942
      %vm8944 = vweird.f32 %v8455
      %vm8945 = vweird.f32 %v8939
      %vm8946 = vmor %vm8944, %vm8945
      %v8947 = vsel %vm8946, %v8939, %v8943
      %v8948 = vand.u32 2147483647, %v8455
      %vm8949 = vcmp.eq.f32.partialorder %v8948, 8.507059e+37
      %v8950 = vand.u32 %v8455, 2147483648
      %v8951 = vor.u32 1.1754944e-38, %v8950
      %v8952 = vsel %vm8949, %v8951, %v8947
      %v8953 = vmul.f32 1.0, %v8952
      %v8954 = vrcp.pop %v8456
      %v8955 = vmul.f32 %v8456, %v8954
      %v8956 = vsub.f32 1.0, %v8955
      %v8957 = vmul.f32 %v8954, %v8956
      %v8958 = vadd.f32 %v8954, %v8957
      %vm8959 = vweird.f32 %v8456
      %vm8960 = vweird.f32 %v8954
      %vm8961 = vmor %vm8959, %vm8960
      %v8962 = vsel %vm8961, %v8954, %v8958
      %v8963 = vand.u32 2147483647, %v8456
      %vm8964 = vcmp.eq.f32.partialorder %v8963, 8.507059e+37
      %v8965 = vand.u32 %v8456, 2147483648
      %v8966 = vor.u32 1.1754944e-38, %v8965
      %v8967 = vsel %vm8964, %v8966, %v8962
      %v8968 = vmul.f32 1.0, %v8967
      %v8969 = vrcp.pop %v8457
      %v8970 = vmul.f32 %v8457, %v8969
      %v8971 = vsub.f32 1.0, %v8970
      %v8972 = vmul.f32 %v8969, %v8971
      %v8973 = vadd.f32 %v8969, %v8972
      %vm8974 = vweird.f32 %v8457
      %vm8975 = vweird.f32 %v8969
      %vm8976 = vmor %vm8974, %vm8975
      %v8977 = vsel %vm8976, %v8969, %v8973
      %v8978 = vand.u32 2147483647, %v8457
      %vm8979 = vcmp.eq.f32.partialorder %v8978, 8.507059e+37
      %v8980 = vand.u32 %v8457, 2147483648
      %v8981 = vor.u32 1.1754944e-38, %v8980
      %v8982 = vsel %vm8979, %v8981, %v8977
      %v8983 = vmul.f32 1.0, %v8982
      %v8984 = vrcp.pop %v8458
      %v8985 = vmul.f32 %v8458, %v8984
      %v8986 = vsub.f32 1.0, %v8985
      %v8987 = vmul.f32 %v8984, %v8986
      %v8988 = vadd.f32 %v8984, %v8987
      %vm8989 = vweird.f32 %v8458
      %vm8990 = vweird.f32 %v8984
      %vm8991 = vmor %vm8989, %vm8990
      %v8992 = vsel %vm8991, %v8984, %v8988
      %v8993 = vand.u32 2147483647, %v8458
      %vm8994 = vcmp.eq.f32.partialorder %v8993, 8.507059e+37
      %v8995 = vand.u32 %v8458, 2147483648
      %v8996 = vor.u32 1.1754944e-38, %v8995
      %v8997 = vsel %vm8994, %v8996, %v8992
      %v8998 = vmul.f32 1.0, %v8997
      %v8999 = vrcp.pop %v8459
      %v9000 = vmul.f32 %v8459, %v8999
      %v9001 = vsub.f32 1.0, %v9000
      %v9002 = vmul.f32 %v8999, %v9001
      %v9003 = vadd.f32 %v8999, %v9002
      %vm9004 = vweird.f32 %v8459
      %vm9005 = vweird.f32 %v8999
      %vm9006 = vmor %vm9004, %vm9005
      %v9007 = vsel %vm9006, %v8999, %v9003
      %v9008 = vand.u32 2147483647, %v8459
      %vm9009 = vcmp.eq.f32.partialorder %v9008, 8.507059e+37
      %v9010 = vand.u32 %v8459, 2147483648
      %v9011 = vor.u32 1.1754944e-38, %v9010
      %v9012 = vsel %vm9009, %v9011, %v9007
      %v9013 = vmul.f32 1.0, %v9012
      %v9014 = vrcp.pop %v8460
      %v9015 = vmul.f32 %v8460, %v9014
      %v9016 = vsub.f32 1.0, %v9015
      %v9017 = vmul.f32 %v9014, %v9016
      %v9018 = vadd.f32 %v9014, %v9017
      %vm9019 = vweird.f32 %v8460
      %vm9020 = vweird.f32 %v9014
      %vm9021 = vmor %vm9019, %vm9020
      %v9022 = vsel %vm9021, %v9014, %v9018
      %v9023 = vand.u32 2147483647, %v8460
      %vm9024 = vcmp.eq.f32.partialorder %v9023, 8.507059e+37
      %v9025 = vand.u32 %v8460, 2147483648
      %v9026 = vor.u32 1.1754944e-38, %v9025
      %v9027 = vsel %vm9024, %v9026, %v9022
      %v9028 = vmul.f32 1.0, %v9027
      %v9029 = vrcp.pop %v8461
      %v9030 = vmul.f32 %v8461, %v9029
      %v9031 = vsub.f32 1.0, %v9030
      %v9032 = vmul.f32 %v9029, %v9031
      %v9033 = vadd.f32 %v9029, %v9032
      %vm9034 = vweird.f32 %v8461
      %vm9035 = vweird.f32 %v9029
      %vm9036 = vmor %vm9034, %vm9035
      %v9037 = vsel %vm9036, %v9029, %v9033
      %v9038 = vand.u32 2147483647, %v8461
      %vm9039 = vcmp.eq.f32.partialorder %v9038, 8.507059e+37
      %v9040 = vand.u32 %v8461, 2147483648
      %v9041 = vor.u32 1.1754944e-38, %v9040
      %v9042 = vsel %vm9039, %v9041, %v9037
      %v9043 = vmul.f32 1.0, %v9042
      %v9044 = vrcp.pop %v8462
      %v9045 = vmul.f32 %v8462, %v9044
      %v9046 = vsub.f32 1.0, %v9045
      %v9047 = vmul.f32 %v9044, %v9046
      %v9048 = vadd.f32 %v9044, %v9047
      %vm9049 = vweird.f32 %v8462
      %vm9050 = vweird.f32 %v9044
      %vm9051 = vmor %vm9049, %vm9050
      %v9052 = vsel %vm9051, %v9044, %v9048
      %v9053 = vand.u32 2147483647, %v8462
      %vm9054 = vcmp.eq.f32.partialorder %v9053, 8.507059e+37
      %v9055 = vand.u32 %v8462, 2147483648
      %v9056 = vor.u32 1.1754944e-38, %v9055
      %v9057 = vsel %vm9054, %v9056, %v9052
      %v9058 = vmul.f32 1.0, %v9057
      %v9059 = vrcp.pop %v8463
      %v9060 = vmul.f32 %v8463, %v9059
      %v9061 = vsub.f32 1.0, %v9060
      %v9062 = vmul.f32 %v9059, %v9061
      %v9063 = vadd.f32 %v9059, %v9062
      %vm9064 = vweird.f32 %v8463
      %vm9065 = vweird.f32 %v9059
      %vm9066 = vmor %vm9064, %vm9065
      %v9067 = vsel %vm9066, %v9059, %v9063
      %v9068 = vand.u32 2147483647, %v8463
      %vm9069 = vcmp.eq.f32.partialorder %v9068, 8.507059e+37
      %v9070 = vand.u32 %v8463, 2147483648
      %v9071 = vor.u32 1.1754944e-38, %v9070
      %v9072 = vsel %vm9069, %v9071, %v9067
      %v9073 = vmul.f32 1.0, %v9072
      %v9074 = vrcp.pop %v8464
      %v9075 = vmul.f32 %v8464, %v9074
      %v9076 = vsub.f32 1.0, %v9075
      %v9077 = vmul.f32 %v9074, %v9076
      %v9078 = vadd.f32 %v9074, %v9077
      %vm9079 = vweird.f32 %v8464
      %vm9080 = vweird.f32 %v9074
      %vm9081 = vmor %vm9079, %vm9080
      %v9082 = vsel %vm9081, %v9074, %v9078
      %v9083 = vand.u32 2147483647, %v8464
      %vm9084 = vcmp.eq.f32.partialorder %v9083, 8.507059e+37
      %v9085 = vand.u32 %v8464, 2147483648
      %v9086 = vor.u32 1.1754944e-38, %v9085
      %v9087 = vsel %vm9084, %v9086, %v9082
      %v9088 = vmul.f32 1.0, %v9087
      %v9089 = vrcp.pop %v8465
      %v9090 = vmul.f32 %v8465, %v9089
      %v9091 = vsub.f32 1.0, %v9090
      %v9092 = vmul.f32 %v9089, %v9091
      %v9093 = vadd.f32 %v9089, %v9092
      %vm9094 = vweird.f32 %v8465
      %vm9095 = vweird.f32 %v9089
      %vm9096 = vmor %vm9094, %vm9095
      %v9097 = vsel %vm9096, %v9089, %v9093
      %v9098 = vand.u32 2147483647, %v8465
      %vm9099 = vcmp.eq.f32.partialorder %v9098, 8.507059e+37
      %v9100 = vand.u32 %v8465, 2147483648
      %v9101 = vor.u32 1.1754944e-38, %v9100
      %v9102 = vsel %vm9099, %v9101, %v9097
      %v9103 = vmul.f32 1.0, %v9102
      %v9104 = vrcp.pop %v8466
      %v9105 = vmul.f32 %v8466, %v9104
      %v9106 = vsub.f32 1.0, %v9105
      %v9107 = vmul.f32 %v9104, %v9106
      %v9108 = vadd.f32 %v9104, %v9107
      %vm9109 = vweird.f32 %v8466
      %vm9110 = vweird.f32 %v9104
      %vm9111 = vmor %vm9109, %vm9110
      %v9112 = vsel %vm9111, %v9104, %v9108
      %v9113 = vand.u32 2147483647, %v8466
      %vm9114 = vcmp.eq.f32.partialorder %v9113, 8.507059e+37
      %v9115 = vand.u32 %v8466, 2147483648
      %v9116 = vor.u32 1.1754944e-38, %v9115
      %v9117 = vsel %vm9114, %v9116, %v9112
      %v9118 = vmul.f32 1.0, %v9117
      %v9119 = vrcp.pop %v8467
      %v9120 = vmul.f32 %v8467, %v9119
      %v9121 = vsub.f32 1.0, %v9120
      %v9122 = vmul.f32 %v9119, %v9121
      %v9123 = vadd.f32 %v9119, %v9122
      %vm9124 = vweird.f32 %v8467
      %vm9125 = vweird.f32 %v9119
      %vm9126 = vmor %vm9124, %vm9125
      %v9127 = vsel %vm9126, %v9119, %v9123
      %v9128 = vand.u32 2147483647, %v8467
      %vm9129 = vcmp.eq.f32.partialorder %v9128, 8.507059e+37
      %v9130 = vand.u32 %v8467, 2147483648
      %v9131 = vor.u32 1.1754944e-38, %v9130
      %v9132 = vsel %vm9129, %v9131, %v9127
      %v9133 = vmul.f32 1.0, %v9132
      %v9134 = vrcp.pop %v8468
      %v9135 = vmul.f32 %v8468, %v9134
      %v9136 = vsub.f32 1.0, %v9135
      %v9137 = vmul.f32 %v9134, %v9136
      %v9138 = vadd.f32 %v9134, %v9137
      %vm9139 = vweird.f32 %v8468
      %vm9140 = vweird.f32 %v9134
      %vm9141 = vmor %vm9139, %vm9140
      %v9142 = vsel %vm9141, %v9134, %v9138
      %v9143 = vand.u32 2147483647, %v8468
      %vm9144 = vcmp.eq.f32.partialorder %v9143, 8.507059e+37
      %v9145 = vand.u32 %v8468, 2147483648
      %v9146 = vor.u32 1.1754944e-38, %v9145
      %v9147 = vsel %vm9144, %v9146, %v9142
      %v9148 = vmul.f32 1.0, %v9147
      %v9149 = vrcp.pop %v8469
      %v9150 = vmul.f32 %v8469, %v9149
      %v9151 = vsub.f32 1.0, %v9150
      %v9152 = vmul.f32 %v9149, %v9151
      %v9153 = vadd.f32 %v9149, %v9152
      %vm9154 = vweird.f32 %v8469
      %vm9155 = vweird.f32 %v9149
      %vm9156 = vmor %vm9154, %vm9155
      %v9157 = vsel %vm9156, %v9149, %v9153
      %v9158 = vand.u32 2147483647, %v8469
      %vm9159 = vcmp.eq.f32.partialorder %v9158, 8.507059e+37
      %v9160 = vand.u32 %v8469, 2147483648
      %v9161 = vor.u32 1.1754944e-38, %v9160
      %v9162 = vsel %vm9159, %v9161, %v9157
      %v9163 = vmul.f32 1.0, %v9162
      %v9164 = vrcp.pop %v8470
      %v9165 = vmul.f32 %v8470, %v9164
      %v9166 = vsub.f32 1.0, %v9165
      %v9167 = vmul.f32 %v9164, %v9166
      %v9168 = vadd.f32 %v9164, %v9167
      %vm9169 = vweird.f32 %v8470
      %vm9170 = vweird.f32 %v9164
      %vm9171 = vmor %vm9169, %vm9170
      %v9172 = vsel %vm9171, %v9164, %v9168
      %v9173 = vand.u32 2147483647, %v8470
      %vm9174 = vcmp.eq.f32.partialorder %v9173, 8.507059e+37
      %v9175 = vand.u32 %v8470, 2147483648
      %v9176 = vor.u32 1.1754944e-38, %v9175
      %v9177 = vsel %vm9174, %v9176, %v9172
      %v9178 = vmul.f32 1.0, %v9177
      %v9179 = vrcp.pop %v8471
      %v9180 = vmul.f32 %v8471, %v9179
      %v9181 = vsub.f32 1.0, %v9180
      %v9182 = vmul.f32 %v9179, %v9181
      %v9183 = vadd.f32 %v9179, %v9182
      %vm9184 = vweird.f32 %v8471
      %vm9185 = vweird.f32 %v9179
      %vm9186 = vmor %vm9184, %vm9185
      %v9187 = vsel %vm9186, %v9179, %v9183
      %v9188 = vand.u32 2147483647, %v8471
      %vm9189 = vcmp.eq.f32.partialorder %v9188, 8.507059e+37
      %v9190 = vand.u32 %v8471, 2147483648
      %v9191 = vor.u32 1.1754944e-38, %v9190
      %v9192 = vsel %vm9189, %v9191, %v9187
      %v9193 = vmul.f32 1.0, %v9192
      %v9194 = vrcp.pop %v8472
      %v9195 = vmul.f32 %v8472, %v9194
      %v9196 = vsub.f32 1.0, %v9195
      %v9197 = vmul.f32 %v9194, %v9196
      %v9198 = vadd.f32 %v9194, %v9197
      %vm9199 = vweird.f32 %v8472
      %vm9200 = vweird.f32 %v9194
      %vm9201 = vmor %vm9199, %vm9200
      %v9202 = vsel %vm9201, %v9194, %v9198
      %v9203 = vand.u32 2147483647, %v8472
      %vm9204 = vcmp.eq.f32.partialorder %v9203, 8.507059e+37
      %v9205 = vand.u32 %v8472, 2147483648
      %v9206 = vor.u32 1.1754944e-38, %v9205
      %v9207 = vsel %vm9204, %v9206, %v9202
      %v9208 = vmul.f32 1.0, %v9207
      %v9209 = vrcp.pop %v8473
      %v9210 = vmul.f32 %v8473, %v9209
      %v9211 = vsub.f32 1.0, %v9210
      %v9212 = vmul.f32 %v9209, %v9211
      %v9213 = vadd.f32 %v9209, %v9212
      %vm9214 = vweird.f32 %v8473
      %vm9215 = vweird.f32 %v9209
      %vm9216 = vmor %vm9214, %vm9215
      %v9217 = vsel %vm9216, %v9209, %v9213
      %v9218 = vand.u32 2147483647, %v8473
      %vm9219 = vcmp.eq.f32.partialorder %v9218, 8.507059e+37
      %v9220 = vand.u32 %v8473, 2147483648
      %v9221 = vor.u32 1.1754944e-38, %v9220
      %v9222 = vsel %vm9219, %v9221, %v9217
      %v9223 = vmul.f32 1.0, %v9222
      %v9224 = vrcp.pop %v8474
      %v9225 = vmul.f32 %v8474, %v9224
      %v9226 = vsub.f32 1.0, %v9225
      %v9227 = vmul.f32 %v9224, %v9226
      %v9228 = vadd.f32 %v9224, %v9227
      %vm9229 = vweird.f32 %v8474
      %vm9230 = vweird.f32 %v9224
      %vm9231 = vmor %vm9229, %vm9230
      %v9232 = vsel %vm9231, %v9224, %v9228
      %v9233 = vand.u32 2147483647, %v8474
      %vm9234 = vcmp.eq.f32.partialorder %v9233, 8.507059e+37
      %v9235 = vand.u32 %v8474, 2147483648
      %v9236 = vor.u32 1.1754944e-38, %v9235
      %v9237 = vsel %vm9234, %v9236, %v9232
      %v9238 = vmul.f32 1.0, %v9237
      %v9239 = vrcp.pop %v8475
      %v9240 = vmul.f32 %v8475, %v9239
      %v9241 = vsub.f32 1.0, %v9240
      %v9242 = vmul.f32 %v9239, %v9241
      %v9243 = vadd.f32 %v9239, %v9242
      %vm9244 = vweird.f32 %v8475
      %vm9245 = vweird.f32 %v9239
      %vm9246 = vmor %vm9244, %vm9245
      %v9247 = vsel %vm9246, %v9239, %v9243
      %v9248 = vand.u32 2147483647, %v8475
      %vm9249 = vcmp.eq.f32.partialorder %v9248, 8.507059e+37
      %v9250 = vand.u32 %v8475, 2147483648
      %v9251 = vor.u32 1.1754944e-38, %v9250
      %v9252 = vsel %vm9249, %v9251, %v9247
      %v9253 = vmul.f32 1.0, %v9252
      %v9254 = vrcp.pop %v8476
      %v9255 = vmul.f32 %v8476, %v9254
      %v9256 = vsub.f32 1.0, %v9255
      %v9257 = vmul.f32 %v9254, %v9256
      %v9258 = vadd.f32 %v9254, %v9257
      %vm9259 = vweird.f32 %v8476
      %vm9260 = vweird.f32 %v9254
      %vm9261 = vmor %vm9259, %vm9260
      %v9262 = vsel %vm9261, %v9254, %v9258
      %v9263 = vand.u32 2147483647, %v8476
      %vm9264 = vcmp.eq.f32.partialorder %v9263, 8.507059e+37
      %v9265 = vand.u32 %v8476, 2147483648
      %v9266 = vor.u32 1.1754944e-38, %v9265
      %v9267 = vsel %vm9264, %v9266, %v9262
      %v9268 = vmul.f32 1.0, %v9267
      %v9269 = vrcp.pop %v8477
      %v9270 = vmul.f32 %v8477, %v9269
      %v9271 = vsub.f32 1.0, %v9270
      %v9272 = vmul.f32 %v9269, %v9271
      %v9273 = vadd.f32 %v9269, %v9272
      %vm9274 = vweird.f32 %v8477
      %vm9275 = vweird.f32 %v9269
      %vm9276 = vmor %vm9274, %vm9275
      %v9277 = vsel %vm9276, %v9269, %v9273
      %v9278 = vand.u32 2147483647, %v8477
      %vm9279 = vcmp.eq.f32.partialorder %v9278, 8.507059e+37
      %v9280 = vand.u32 %v8477, 2147483648
      %v9281 = vor.u32 1.1754944e-38, %v9280
      %v9282 = vsel %vm9279, %v9281, %v9277
      %v9283 = vmul.f32 1.0, %v9282
      %v9284 = vrcp.pop %v8478
      %v9285 = vmul.f32 %v8478, %v9284
      %v9286 = vsub.f32 1.0, %v9285
      %v9287 = vmul.f32 %v9284, %v9286
      %v9288 = vadd.f32 %v9284, %v9287
      %vm9289 = vweird.f32 %v8478
      %vm9290 = vweird.f32 %v9284
      %vm9291 = vmor %vm9289, %vm9290
      %v9292 = vsel %vm9291, %v9284, %v9288
      %v9293 = vand.u32 2147483647, %v8478
      %vm9294 = vcmp.eq.f32.partialorder %v9293, 8.507059e+37
      %v9295 = vand.u32 %v8478, 2147483648
      %v9296 = vor.u32 1.1754944e-38, %v9295
      %v9297 = vsel %vm9294, %v9296, %v9292
      %v9298 = vmul.f32 1.0, %v9297
      %v9299 = vrcp.pop %v8479
      %v9300 = vmul.f32 %v8479, %v9299
      %v9301 = vsub.f32 1.0, %v9300
      %v9302 = vmul.f32 %v9299, %v9301
      %v9303 = vadd.f32 %v9299, %v9302
      %vm9304 = vweird.f32 %v8479
      %vm9305 = vweird.f32 %v9299
      %vm9306 = vmor %vm9304, %vm9305
      %v9307 = vsel %vm9306, %v9299, %v9303
      %v9308 = vand.u32 2147483647, %v8479
      %vm9309 = vcmp.eq.f32.partialorder %v9308, 8.507059e+37
      %v9310 = vand.u32 %v8479, 2147483648
      %v9311 = vor.u32 1.1754944e-38, %v9310
      %v9312 = vsel %vm9309, %v9311, %v9307
      %v9313 = vmul.f32 1.0, %v9312
      %v9314 = vrcp.pop %v8480
      %v9315 = vmul.f32 %v8480, %v9314
      %v9316 = vsub.f32 1.0, %v9315
      %v9317 = vmul.f32 %v9314, %v9316
      %v9318 = vadd.f32 %v9314, %v9317
      %vm9319 = vweird.f32 %v8480
      %vm9320 = vweird.f32 %v9314
      %vm9321 = vmor %vm9319, %vm9320
      %v9322 = vsel %vm9321, %v9314, %v9318
      %v9323 = vand.u32 2147483647, %v8480
      %vm9324 = vcmp.eq.f32.partialorder %v9323, 8.507059e+37
      %v9325 = vand.u32 %v8480, 2147483648
      %v9326 = vor.u32 1.1754944e-38, %v9325
      %v9327 = vsel %vm9324, %v9326, %v9322
      %v9328 = vmul.f32 1.0, %v9327
      %v9329 = vrcp.pop %v8481
      %v9330 = vmul.f32 %v8481, %v9329
      %v9331 = vsub.f32 1.0, %v9330
      %v9332 = vmul.f32 %v9329, %v9331
      %v9333 = vadd.f32 %v9329, %v9332
      %vm9334 = vweird.f32 %v8481
      %vm9335 = vweird.f32 %v9329
      %vm9336 = vmor %vm9334, %vm9335
      %v9337 = vsel %vm9336, %v9329, %v9333
      %v9338 = vand.u32 2147483647, %v8481
      %vm9339 = vcmp.eq.f32.partialorder %v9338, 8.507059e+37
      %v9340 = vand.u32 %v8481, 2147483648
      %v9341 = vor.u32 1.1754944e-38, %v9340
      %v9342 = vsel %vm9339, %v9341, %v9337
      %v9343 = vmul.f32 1.0, %v9342
      %v9344 = vrcp.pop %v8482
      %v9345 = vmul.f32 %v8482, %v9344
      %v9346 = vsub.f32 1.0, %v9345
      %v9347 = vmul.f32 %v9344, %v9346
      %v9348 = vadd.f32 %v9344, %v9347
      %vm9349 = vweird.f32 %v8482
      %vm9350 = vweird.f32 %v9344
      %vm9351 = vmor %vm9349, %vm9350
      %v9352 = vsel %vm9351, %v9344, %v9348
      %v9353 = vand.u32 2147483647, %v8482
      %vm9354 = vcmp.eq.f32.partialorder %v9353, 8.507059e+37
      %v9355 = vand.u32 %v8482, 2147483648
      %v9356 = vor.u32 1.1754944e-38, %v9355
      %v9357 = vsel %vm9354, %v9356, %v9352
      %v9358 = vmul.f32 1.0, %v9357
      %v9359 = vrcp.pop %v8483
      %v9360 = vmul.f32 %v8483, %v9359
      %v9361 = vsub.f32 1.0, %v9360
      %v9362 = vmul.f32 %v9359, %v9361
      %v9363 = vadd.f32 %v9359, %v9362
      %vm9364 = vweird.f32 %v8483
      %vm9365 = vweird.f32 %v9359
      %vm9366 = vmor %vm9364, %vm9365
      %v9367 = vsel %vm9366, %v9359, %v9363
      %v9368 = vand.u32 2147483647, %v8483
      %vm9369 = vcmp.eq.f32.partialorder %v9368, 8.507059e+37
      %v9370 = vand.u32 %v8483, 2147483648
      %v9371 = vor.u32 1.1754944e-38, %v9370
      %v9372 = vsel %vm9369, %v9371, %v9367
      %v9373 = vmul.f32 1.0, %v9372
      %v9374 = vrcp.pop %v8484
      %v9375 = vmul.f32 %v8484, %v9374
      %v9376 = vsub.f32 1.0, %v9375
      %v9377 = vmul.f32 %v9374, %v9376
      %v9378 = vadd.f32 %v9374, %v9377
      %vm9379 = vweird.f32 %v8484
      %vm9380 = vweird.f32 %v9374
      %vm9381 = vmor %vm9379, %vm9380
      %v9382 = vsel %vm9381, %v9374, %v9378
      %v9383 = vand.u32 2147483647, %v8484
      %vm9384 = vcmp.eq.f32.partialorder %v9383, 8.507059e+37
      %v9385 = vand.u32 %v8484, 2147483648
      %v9386 = vor.u32 1.1754944e-38, %v9385
      %v9387 = vsel %vm9384, %v9386, %v9382
      %v9388 = vmul.f32 1.0, %v9387
      %v9389 = vrcp.pop %v8485
      %v9390 = vmul.f32 %v8485, %v9389
      %v9391 = vsub.f32 1.0, %v9390
      %v9392 = vmul.f32 %v9389, %v9391
      %v9393 = vadd.f32 %v9389, %v9392
      %vm9394 = vweird.f32 %v8485
      %vm9395 = vweird.f32 %v9389
      %vm9396 = vmor %vm9394, %vm9395
      %v9397 = vsel %vm9396, %v9389, %v9393
      %v9398 = vand.u32 2147483647, %v8485
      %vm9399 = vcmp.eq.f32.partialorder %v9398, 8.507059e+37
      %v9400 = vand.u32 %v8485, 2147483648
      %v9401 = vor.u32 1.1754944e-38, %v9400
      %v9402 = vsel %vm9399, %v9401, %v9397
      %v9403 = vmul.f32 1.0, %v9402
      %v9404 = vrcp.pop %v8486
      %v9405 = vmul.f32 %v8486, %v9404
      %v9406 = vsub.f32 1.0, %v9405
      %v9407 = vmul.f32 %v9404, %v9406
      %v9408 = vadd.f32 %v9404, %v9407
      %vm9409 = vweird.f32 %v8486
      %vm9410 = vweird.f32 %v9404
      %vm9411 = vmor %vm9409, %vm9410
      %v9412 = vsel %vm9411, %v9404, %v9408
      %v9413 = vand.u32 2147483647, %v8486
      %vm9414 = vcmp.eq.f32.partialorder %v9413, 8.507059e+37
      %v9415 = vand.u32 %v8486, 2147483648
      %v9416 = vor.u32 1.1754944e-38, %v9415
      %v9417 = vsel %vm9414, %v9416, %v9412
      %v9418 = vmul.f32 1.0, %v9417
      %v9419 = vrcp.pop %v8487
      %v9420 = vmul.f32 %v8487, %v9419
      %v9421 = vsub.f32 1.0, %v9420
      %v9422 = vmul.f32 %v9419, %v9421
      %v9423 = vadd.f32 %v9419, %v9422
      %vm9424 = vweird.f32 %v8487
      %vm9425 = vweird.f32 %v9419
      %vm9426 = vmor %vm9424, %vm9425
      %v9427 = vsel %vm9426, %v9419, %v9423
      %v9428 = vand.u32 2147483647, %v8487
      %vm9429 = vcmp.eq.f32.partialorder %v9428, 8.507059e+37
      %v9430 = vand.u32 %v8487, 2147483648
      %v9431 = vor.u32 1.1754944e-38, %v9430
      %v9432 = vsel %vm9429, %v9431, %v9427
      %v9433 = vmul.f32 1.0, %v9432
      %v9434 = vrcp.pop %v8488
      %v9435 = vmul.f32 %v8488, %v9434
      %v9436 = vsub.f32 1.0, %v9435
      %v9437 = vmul.f32 %v9434, %v9436
      %v9438 = vadd.f32 %v9434, %v9437
      %vm9439 = vweird.f32 %v8488
      %vm9440 = vweird.f32 %v9434
      %vm9441 = vmor %vm9439, %vm9440
      %v9442 = vsel %vm9441, %v9434, %v9438
      %v9443 = vand.u32 2147483647, %v8488
      %vm9444 = vcmp.eq.f32.partialorder %v9443, 8.507059e+37
      %v9445 = vand.u32 %v8488, 2147483648
      %v9446 = vor.u32 1.1754944e-38, %v9445
      %v9447 = vsel %vm9444, %v9446, %v9442
      %v9448 = vmul.f32 1.0, %v9447
      %v9449 = vmul.f32 %v8074, %v8503
      %v9450 = vmul.f32 %v8076, %v8518
      %v9451 = vmul.f32 %v8079, %v8533
      %v9452 = vmul.f32 %v8081, %v8548
      %v9453 = vmul.f32 %v8084, %v8563
      %v9454 = vmul.f32 %v8086, %v8578
      %v9455 = vmul.f32 %v8089, %v8593
      %v9456 = vmul.f32 %v8091, %v8608
      %v9457 = vmul.f32 %v8094, %v8623
      %v9458 = vmul.f32 %v8096, %v8638
      %v9459 = vmul.f32 %v8099, %v8653
      %v9460 = vmul.f32 %v8101, %v8668
      %v9461 = vmul.f32 %v8104, %v8683
      %v9462 = vmul.f32 %v8106, %v8698
      %v9463 = vmul.f32 %v8109, %v8713
      %v9464 = vmul.f32 %v8111, %v8728
      %v9465 = vmul.f32 %v8114, %v8743
      %v9466 = vmul.f32 %v8116, %v8758
      %v9467 = vmul.f32 %v8119, %v8773
      %v9468 = vmul.f32 %v8121, %v8788
      %v9469 = vmul.f32 %v8124, %v8803
      %v9470 = vmul.f32 %v8126, %v8818
      %v9471 = vmul.f32 %v8129, %v8833
      %v9472 = vmul.f32 %v8131, %v8848
      %v9473 = vmul.f32 %v8134, %v8863
      %v9474 = vmul.f32 %v8136, %v8878
      %v9475 = vmul.f32 %v8139, %v8893
      %v9476 = vmul.f32 %v8141, %v8908
      %v9477 = vmul.f32 %v8144, %v8923
      %v9478 = vmul.f32 %v8146, %v8938
      %v9479 = vmul.f32 %v8149, %v8953
      %v9480 = vmul.f32 %v8151, %v8968
      %v9481 = vmul.f32 %v8154, %v8983
      %v9482 = vmul.f32 %v8156, %v8998
      %v9483 = vmul.f32 %v8159, %v9013
      %v9484 = vmul.f32 %v8161, %v9028
      %v9485 = vmul.f32 %v8164, %v9043
      %v9486 = vmul.f32 %v8166, %v9058
      %v9487 = vmul.f32 %v8169, %v9073
      %v9488 = vmul.f32 %v8171, %v9088
      %v9489 = vmul.f32 %v8174, %v9103
      %v9490 = vmul.f32 %v8176, %v9118
      %v9491 = vmul.f32 %v8179, %v9133
      %v9492 = vmul.f32 %v8181, %v9148
      %v9493 = vmul.f32 %v8184, %v9163
      %v9494 = vmul.f32 %v8186, %v9178
      %v9495 = vmul.f32 %v8189, %v9193
      %v9496 = vmul.f32 %v8191, %v9208
      %v9497 = vmul.f32 %v8194, %v9223
      %v9498 = vmul.f32 %v8196, %v9238
      %v9499 = vmul.f32 %v8199, %v9253
      %v9500 = vmul.f32 %v8201, %v9268
      %v9501 = vmul.f32 %v8204, %v9283
      %v9502 = vmul.f32 %v8206, %v9298
      %v9503 = vmul.f32 %v8209, %v9313
      %v9504 = vmul.f32 %v8211, %v9328
      %v9505 = vmul.f32 %v8214, %v9343
      %v9506 = vmul.f32 %v8216, %v9358
      %v9507 = vmul.f32 %v8219, %v9373
      %v9508 = vmul.f32 %v8221, %v9388
      %v9509 = vmul.f32 %v8224, %v9403
      %v9510 = vmul.f32 %v8226, %v9418
      %v9511 = vmul.f32 %v8229, %v9433
      %v9512 = vmul.f32 %v8231, %v9448
      %v9513 = vadd.f32 %v9449, %v9450
      %v9514 = vadd.f32 %v9513, %v9451
      %v9515 = vadd.f32 %v9514, %v9452
      %v9516 = vadd.f32 %v9515, %v9453
      %v9517 = vadd.f32 %v9516, %v9454
      %v9518 = vadd.f32 %v9517, %v9455
      %v9519 = vadd.f32 %v9518, %v9456
      %v9520 = vrot.slane %v9519, 4
      %v9521 = vadd.f32 %v9519, %v9520
      %v9522 = vrot.slane %v9521, 2
      %v9523 = vadd.f32 %v9521, %v9522
      %v9524 = vrot.slane %v9523, 1
      %v9525 = vadd.f32 %v9523, %v9524
      %v9526 = vadd.f32 %v9457, %v9458
      %v9527 = vadd.f32 %v9526, %v9459
      %v9528 = vadd.f32 %v9527, %v9460
      %v9529 = vadd.f32 %v9528, %v9461
      %v9530 = vadd.f32 %v9529, %v9462
      %v9531 = vadd.f32 %v9530, %v9463
      %v9532 = vadd.f32 %v9531, %v9464
      %v9533 = vrot.slane %v9532, 4
      %v9534 = vadd.f32 %v9532, %v9533
      %v9535 = vrot.slane %v9534, 2
      %v9536 = vadd.f32 %v9534, %v9535
      %v9537 = vrot.slane %v9536, 1
      %v9538 = vadd.f32 %v9536, %v9537
      %v9539 = vadd.f32 %v9465, %v9466
      %v9540 = vadd.f32 %v9539, %v9467
      %v9541 = vadd.f32 %v9540, %v9468
      %v9542 = vadd.f32 %v9541, %v9469
      %v9543 = vadd.f32 %v9542, %v9470
      %v9544 = vadd.f32 %v9543, %v9471
      %v9545 = vadd.f32 %v9544, %v9472
      %v9546 = vrot.slane %v9545, 4
      %v9547 = vadd.f32 %v9545, %v9546
      %v9548 = vrot.slane %v9547, 2
      %v9549 = vadd.f32 %v9547, %v9548
      %v9550 = vrot.slane %v9549, 1
      %v9551 = vadd.f32 %v9549, %v9550
      %v9552 = vadd.f32 %v9473, %v9474
      %v9553 = vadd.f32 %v9552, %v9475
      %v9554 = vadd.f32 %v9553, %v9476
      %v9555 = vadd.f32 %v9554, %v9477
      %v9556 = vadd.f32 %v9555, %v9478
      %v9557 = vadd.f32 %v9556, %v9479
      %v9558 = vadd.f32 %v9557, %v9480
      %v9559 = vrot.slane %v9558, 4
      %v9560 = vadd.f32 %v9558, %v9559
      %v9561 = vrot.slane %v9560, 2
      %v9562 = vadd.f32 %v9560, %v9561
      %v9563 = vrot.slane %v9562, 1
      %v9564 = vadd.f32 %v9562, %v9563
      %v9565 = vadd.f32 %v9481, %v9482
      %v9566 = vadd.f32 %v9565, %v9483
      %v9567 = vadd.f32 %v9566, %v9484
      %v9568 = vadd.f32 %v9567, %v9485
      %v9569 = vadd.f32 %v9568, %v9486
      %v9570 = vadd.f32 %v9569, %v9487
      %v9571 = vadd.f32 %v9570, %v9488
      %v9572 = vrot.slane %v9571, 4
      %v9573 = vadd.f32 %v9571, %v9572
      %v9574 = vrot.slane %v9573, 2
      %v9575 = vadd.f32 %v9573, %v9574
      %v9576 = vrot.slane %v9575, 1
      %v9577 = vadd.f32 %v9575, %v9576
      %v9578 = vadd.f32 %v9489, %v9490
      %v9579 = vadd.f32 %v9578, %v9491
      %v9580 = vadd.f32 %v9579, %v9492
      %v9581 = vadd.f32 %v9580, %v9493
      %v9582 = vadd.f32 %v9581, %v9494
      %v9583 = vadd.f32 %v9582, %v9495
      %v9584 = vadd.f32 %v9583, %v9496
      %v9585 = vrot.slane %v9584, 4
      %v9586 = vadd.f32 %v9584, %v9585
      %v9587 = vrot.slane %v9586, 2
      %v9588 = vadd.f32 %v9586, %v9587
      %v9589 = vrot.slane %v9588, 1
      %v9590 = vadd.f32 %v9588, %v9589
      %v9591 = vadd.f32 %v9497, %v9498
      %v9592 = vadd.f32 %v9591, %v9499
      %v9593 = vadd.f32 %v9592, %v9500
      %v9594 = vadd.f32 %v9593, %v9501
      %v9595 = vadd.f32 %v9594, %v9502
      %v9596 = vadd.f32 %v9595, %v9503
      %v9597 = vadd.f32 %v9596, %v9504
      %v9598 = vrot.slane %v9597, 4
      %v9599 = vadd.f32 %v9597, %v9598
      %v9600 = vrot.slane %v9599, 2
      %v9601 = vadd.f32 %v9599, %v9600
      %v9602 = vrot.slane %v9601, 1
      %v9603 = vadd.f32 %v9601, %v9602
      %v9604 = vadd.f32 %v9505, %v9506
      %v9605 = vadd.f32 %v9604, %v9507
      %v9606 = vadd.f32 %v9605, %v9508
      %v9607 = vadd.f32 %v9606, %v9509
      %v9608 = vadd.f32 %v9607, %v9510
      %v9609 = vadd.f32 %v9608, %v9511
      %v9610 = vadd.f32 %v9609, %v9512
      %v9611 = vrot.slane %v9610, 4
      %v9612 = vadd.f32 %v9610, %v9611
      %v9613 = vrot.slane %v9612, 2
      %v9614 = vadd.f32 %v9612, %v9613
      %v9615 = vrot.slane %v9614, 1
      %v9616 = vadd.f32 %v9614, %v9615
      %v9617 = vmul.f32 %v9525, 0.015625
      %v9618 = vmul.f32 %v9538, 0.015625
      %v9619 = vmul.f32 %v9551, 0.015625
      %v9620 = vmul.f32 %v9564, 0.015625
      %v9621 = vmul.f32 %v9577, 0.015625
      %v9622 = vmul.f32 %v9590, 0.015625
      %v9623 = vmul.f32 %v9603, 0.015625
      %v9624 = vmul.f32 %v9616, 0.015625
      %v9625 = vpack.c.bf16 %v9617, %v9617
      %v9626 = vpack.c.bf16 %v9618, %v9618
      %v9627 = vpack.c.bf16 %v9619, %v9619
      %v9628 = vpack.c.bf16 %v9620, %v9620
      %v9629 = vpack.c.bf16 %v9621, %v9621
      %v9630 = vpack.c.bf16 %v9622, %v9622
      %v9631 = vpack.c.bf16 %v9623, %v9623
      %v9632 = vpack.c.bf16 %v9624, %v9624
      %v9633 = vld [vmem:[%s7] sm:$0xf]
      %v9634 = vld [vmem:[%s7 + $0x4] sm:$0xf]
      %v9635 = vld [vmem:[%s7 + $0x8] sm:$0xf]
      %v9636 = vld [vmem:[%s7 + $0xc] sm:$0xf]
      %v9637 = vld [vmem:[%s7 + $0x10] sm:$0xf]
      %v9638 = vld [vmem:[%s7 + $0x14] sm:$0xf]
      %v9639 = vld [vmem:[%s7 + $0x18] sm:$0xf]
      %v9640 = vld [vmem:[%s7 + $0x1c] sm:$0xf]
      %v9641 = vld [vmem:[%s7 + $0x20] sm:$0xf]
      %v9642 = vld [vmem:[%s7 + $0x24] sm:$0xf]
      %v9643 = vld [vmem:[%s7 + $0x28] sm:$0xf]
      %v9644 = vld [vmem:[%s7 + $0x2c] sm:$0xf]
      %v9645 = vld [vmem:[%s7 + $0x30] sm:$0xf]
      %v9646 = vld [vmem:[%s7 + $0x34] sm:$0xf]
      %v9647 = vld [vmem:[%s7 + $0x38] sm:$0xf]
      %v9648 = vld [vmem:[%s7 + $0x3c] sm:$0xf]
      %v9649 = vld [vmem:[%s8] sm:$0x1]
      %v9651 = vperm.slane %v9649, 0
      %v9661 = vunpack.c.l.b16 %v9625
      %v9662 = vunpack.c.l.b16 %v9626
      %v9663 = vunpack.c.l.b16 %v9627
      %v9664 = vunpack.c.l.b16 %v9628
      %v9665 = vunpack.c.l.b16 %v9629
      %v9666 = vunpack.c.l.b16 %v9630
      %v9667 = vunpack.c.l.b16 %v9631
      %v9668 = vunpack.c.l.b16 %v9632
      %vm9669 = vcmask 1041409
      %v9670 = vsel %vm9669, %v9662, %v9661
      %vm9671 = vcmask 1042434
      %v9672 = vsel %vm9671, %v9663, %v9670
      %vm9673 = vcmask 1043459
      %v9674 = vsel %vm9673, %v9664, %v9672
      %vm9675 = vcmask 1044484
      %v9676 = vsel %vm9675, %v9665, %v9674
      %vm9677 = vcmask 1045509
      %v9678 = vsel %vm9677, %v9666, %v9676
      %vm9679 = vcmask 1046534
      %v9680 = vsel %vm9679, %v9667, %v9678
      %vm9681 = vcmask 1047559
      %v9682 = vsel %vm9681, %v9668, %v9680
      %v9683 = vpack.c.b16 %v9682, %v9682
      %v9701 = vunpack.c.l.b16 %v9633
      %v9702 = vunpack.c.l.b16 %v9634
      %v9703 = vunpack.c.l.b16 %v9635
      %v9704 = vunpack.c.l.b16 %v9636
      %v9705 = vunpack.c.l.b16 %v9637
      %v9706 = vunpack.c.l.b16 %v9638
      %v9707 = vunpack.c.l.b16 %v9639
      %v9708 = vunpack.c.l.b16 %v9640
      %v9709 = vunpack.c.l.b16 %v9641
      %v9710 = vunpack.c.l.b16 %v9642
      %v9711 = vunpack.c.l.b16 %v9643
      %v9712 = vunpack.c.l.b16 %v9644
      %v9713 = vunpack.c.l.b16 %v9645
      %v9714 = vunpack.c.l.b16 %v9646
      %v9715 = vunpack.c.l.b16 %v9647
      %v9716 = vunpack.c.l.b16 %v9648
      %v9717 = vpack.c.b16 %v9702, %v9701
      %v9718 = vpack.c.b16 %v9704, %v9703
      %v9719 = vpack.c.b16 %v9706, %v9705
      %v9720 = vpack.c.b16 %v9708, %v9707
      %v9721 = vpack.c.b16 %v9710, %v9709
      %v9722 = vpack.c.b16 %v9712, %v9711
      %v9723 = vpack.c.b16 %v9714, %v9713
      %v9724 = vpack.c.b16 %v9716, %v9715
      %9733 = vmatpush.bf16.msra.mxu0 %v9724
      %9734 = vmatpush.bf16.msra.mxu0 %v9723
      %9735 = vmatpush.bf16.msra.mxu0 %v9722
      %9736 = vmatpush.bf16.msra.mxu0 %v9721
      %9737 = vmatpush.bf16.msra.mxu0 %v9720
      %9738 = vmatpush.bf16.msra.mxu0 %v9719
      %9739 = vmatpush.bf16.msra.mxu0 %v9718
      %9740 = vmatpush.bf16.msra.mxu0 %v9717
      %9741 = vmatmul.bf16.gmra.mxu0 %v9683
      %v9742 = vpop.f32.mrf.mxu0
      %v9743 = vadd.f32 %v9651, %v9742
      %v9744 = vpop.f32.mrf.mxu0
      %9745 = vdwg.mxu0
      %9746 = vst [vmem:[%s332] sm:$0xff] %v9743
      %p9747 = scmp.lt.s32.totalorder %s20, 1
      %s9748 = scalar_select %p9747, %s20, 1
      %s9749 = smul.addr %s9748, 8
      %s9750 = scalar_lea.vmem %s9, %s9749
      // Predicated region
      $region57: #{enetv2_forward.1} parent=55 // pred_check
        %p9751 = pneg %p232
      $region58: #{enetv2_forward.1} parent=55 // pred_check_branch
        %9753 = sbr.rel (%p9751) target = $region60
      $region59: #{enetv2_forward.1} parent=55 // pred_region
        _
      $region60: #{enetv2_forward.1} parent=55 // pred_fallthru
        _
    $region56: #{enetv2_forward.1} parent=5 // pred_fallthru
      _
    %p9754 = scmp.le.s32.totalorder 2, %s15
    // Predicated region
    $region61: #{enetv2_forward.1} parent=5 // pred_check
      %p9755 = pneg %p9754
    $region62: #{enetv2_forward.1} parent=5 // pred_check_branch
      %9757 = sbr.rel (%p9755) target = $region64
    $region63: #{enetv2_forward.1} parent=5 // pred_region
      %s9758 = ssub.s32 %s15, 2
      // Predicated region
      $region65: #{enetv2_forward.1} parent=63 // pred_check
        %p9759 = pneg %p238
      $region66: #{enetv2_forward.1} parent=63 // pred_check_branch
        %9761 = sbr.rel (%p9759) target = $region68
      $region67: #{enetv2_forward.1} parent=63 // pred_region
        %p9762 = scmp.lt.s32.totalorder %s21, 1
        %s9763 = scalar_select %p9762, %s21, 1
        %s9764 = smul.addr %s9763, 8
        %s9765 = scalar_lea.vmem %s9, %s9764
      $region68: #{enetv2_forward.1} parent=63 // pred_fallthru
        _
    $region64: #{enetv2_forward.1} parent=5 // pred_fallthru
      _
  $region6: #{enetv2_forward.1} parent=0 // loop_footer
    %s19 = sadd.s32 1, %s15
  $region7: #{enetv2_forward.1} parent=0 // loop_footer_branch
    %14 = sbr.rel target = $region3
  $region8: #{enetv2_forward.1} parent=0 // loop_exit
    _

</llo_original>
